<compile_context>
chip_gen: v7x
topology: tpu7x:2x2x1
jax: 0.10.0
libtpu: 0.0.40
codegen_flags: <defaults>
</compile_context>

<pallas_src>
import functools
import math

import numpy as np
import jax
import jax.numpy as jnp
from jax import lax
from jax.experimental import pallas as pl
from jax.experimental.pallas import tpu as pltpu


# ----------------------------- tile helpers -----------------------------

def _row_tile(m, target=256):
    """Largest multiple-of-8 divisor of m that is <= target (or m itself)."""
    if m <= target:
        return m
    for t in range(target - target % 8, 7, -8):
        if m % t == 0:
            return t
    return m


def _lane_tile(n, target=512):
    """Largest multiple-of-128 divisor of n that is <= target (or n itself)."""
    if n <= target:
        return n
    for t in range(target - target % 128, 127, -128):
        if n % t == 0:
            return t
    return n


# ----------------------------- tiled matmul (+bias/gelu/residual) -----------------------------

def _mm_kernel(x_ref, w_ref, *rest, has_bias, has_res, activation):
    idx = 0
    b_ref = rest[idx] if has_bias else None
    idx += int(has_bias)
    r_ref = rest[idx] if has_res else None
    idx += int(has_res)
    o_ref = rest[idx]
    acc_ref = rest[idx + 1]

    @pl.when(pl.program_id(2) == 0)
    def _():
        acc_ref[...] = jnp.zeros_like(acc_ref)

    acc_ref[...] += jnp.dot(x_ref[...], w_ref[...],
                            preferred_element_type=jnp.float32)

    @pl.when(pl.program_id(2) == pl.num_programs(2) - 1)
    def _():
        acc = acc_ref[...]
        if has_bias:
            acc = acc + b_ref[...].astype(jnp.float32)
        if activation == "gelu":
            acc = 0.5 * acc * (1.0 + lax.erf(acc * (1.0 / math.sqrt(2.0))))
        if has_res:
            acc = acc + r_ref[...].astype(jnp.float32)
        o_ref[...] = acc.astype(o_ref.dtype)


def matmul(x, w, bias=None, residual=None, activation=None):
    """y = x @ w (+bias) (+gelu) (+residual).  x: (M,K), w: (K,N)."""
    M, K = x.shape
    N = w.shape[1]
    tm, tn, tk = _row_tile(M), _lane_tile(N), _lane_tile(K)

    in_arrays = [x, w]
    in_specs = [pl.BlockSpec((tm, tk), lambda i, j, k: (i, k)),
                pl.BlockSpec((tk, tn), lambda i, j, k: (k, j))]
    has_bias = bias is not None
    if has_bias:
        in_arrays.append(bias.reshape(1, N))
        in_specs.append(pl.BlockSpec((1, tn), lambda i, j, k: (0, j)))
    has_res = residual is not None
    if has_res:
        in_arrays.append(residual)
        in_specs.append(pl.BlockSpec((tm, tn), lambda i, j, k: (i, j)))

    kern = functools.partial(_mm_kernel, has_bias=has_bias, has_res=has_res,
                             activation=activation)
    return pl.pallas_call(
        kern,
        out_shape=jax.ShapeDtypeStruct((M, N), x.dtype),
        grid=(M // tm, N // tn, K // tk),
        in_specs=in_specs,
        out_specs=pl.BlockSpec((tm, tn), lambda i, j, k: (i, j)),
        scratch_shapes=[pltpu.VMEM((tm, tn), jnp.float32)],
        compiler_params=pltpu.CompilerParams(
            dimension_semantics=("parallel", "parallel", "arbitrary")),
    )(*in_arrays)


# ----------------------------- LN -> matmul fused kernel -----------------------------

def _ln_mm_kernel(x_ref, g_ref, bta_ref, w_ref, *rest,
                  has_bias, has_out_ln, activation, eps):
    idx = 0
    b_ref = rest[idx] if has_bias else None
    idx += int(has_bias)
    if has_out_ln:
        g2_ref, b2_ref = rest[idx], rest[idx + 1]
        idx += 2
    o_ref = rest[idx]

    x = x_ref[...].astype(jnp.float32)
    mu = jnp.mean(x, axis=-1, keepdims=True)
    xc = x - mu
    var = jnp.mean(xc * xc, axis=-1, keepdims=True)
    xn = xc * lax.rsqrt(var + eps)
    xn = xn * g_ref[...].astype(jnp.float32) + bta_ref[...].astype(jnp.float32)

    acc = jnp.dot(xn.astype(w_ref.dtype), w_ref[...],
                  preferred_element_type=jnp.float32)
    if has_bias:
        acc = acc + b_ref[...].astype(jnp.float32)
    if activation == "gelu":
        acc = 0.5 * acc * (1.0 + lax.erf(acc * (1.0 / math.sqrt(2.0))))
    if has_out_ln:
        mu2 = jnp.mean(acc, axis=-1, keepdims=True)
        ac = acc - mu2
        var2 = jnp.mean(ac * ac, axis=-1, keepdims=True)
        acc = (ac * lax.rsqrt(var2 + eps) * g2_ref[...].astype(jnp.float32)
               + b2_ref[...].astype(jnp.float32))
    o_ref[...] = acc.astype(o_ref.dtype)


def ln_matmul(x, g, b, w, bias=None, activation=None, out_ln=None, eps=1e-5):
    """y = [LN_out]( LN_in(x) @ w (+bias) (+gelu) ).  Full K per block (LN stats)."""
    M, K = x.shape
    N = w.shape[1]
    tm = _row_tile(M)
    tn = N if out_ln is not None else _lane_tile(N)

    in_arrays = [x, g.reshape(1, K), b.reshape(1, K), w]
    in_specs = [pl.BlockSpec((tm, K), lambda i, j: (i, 0)),
                pl.BlockSpec((1, K), lambda i, j: (0, 0)),
                pl.BlockSpec((1, K), lambda i, j: (0, 0)),
                pl.BlockSpec((K, tn), lambda i, j: (0, j))]
    has_bias = bias is not None
    if has_bias:
        in_arrays.append(bias.reshape(1, N))
        in_specs.append(pl.BlockSpec((1, tn), lambda i, j: (0, j)))
    has_out_ln = out_ln is not None
    if has_out_ln:
        g2, b2 = out_ln
        in_arrays += [g2.reshape(1, N), b2.reshape(1, N)]
        in_specs += [pl.BlockSpec((1, tn), lambda i, j: (0, j)),
                     pl.BlockSpec((1, tn), lambda i, j: (0, j))]

    kern = functools.partial(_ln_mm_kernel, has_bias=has_bias,
                             has_out_ln=has_out_ln, activation=activation, eps=eps)
    return pl.pallas_call(
        kern,
        out_shape=jax.ShapeDtypeStruct((M, N), x.dtype),
        grid=(M // tm, N // tn),
        in_specs=in_specs,
        out_specs=pl.BlockSpec((tm, tn), lambda i, j: (i, j)),
        compiler_params=pltpu.CompilerParams(
            dimension_semantics=("parallel", "parallel")),
    )(*in_arrays)


# ----------------------------- standalone (row-tiled) layernorm -----------------------------

def _ln_kernel(x_ref, g_ref, b_ref, o_ref, *, eps):
    x = x_ref[...].astype(jnp.float32)
    mu = jnp.mean(x, axis=-1, keepdims=True)
    xc = x - mu
    var = jnp.mean(xc * xc, axis=-1, keepdims=True)
    y = xc * lax.rsqrt(var + eps)
    o_ref[...] = (y * g_ref[...].astype(jnp.float32)
                  + b_ref[...].astype(jnp.float32)).astype(o_ref.dtype)


def layernorm(x, g, b, eps=1e-5):
    M, D = x.shape
    tm = _row_tile(M)
    return pl.pallas_call(
        functools.partial(_ln_kernel, eps=eps),
        out_shape=jax.ShapeDtypeStruct((M, D), x.dtype),
        grid=(M // tm,),
        in_specs=[pl.BlockSpec((tm, D), lambda i: (i, 0)),
                  pl.BlockSpec((1, D), lambda i: (0, 0)),
                  pl.BlockSpec((1, D), lambda i: (0, 0))],
        out_specs=pl.BlockSpec((tm, D), lambda i: (i, 0)),
        compiler_params=pltpu.CompilerParams(dimension_semantics=("parallel",)),
    )(x, g.reshape(1, D), b.reshape(1, D))


# ----------------------------- head-batched fused attention -----------------------------

def _attn_kernel(qkv_ref, o_ref, *, heads, dim_head, n_valid, scale):
    inner = heads * dim_head
    n_pad = qkv_ref.shape[1]
    for h in range(heads):                                   # static loop over heads
        q = qkv_ref[0, :, pl.ds(h * dim_head, dim_head)].astype(jnp.float32)
        k = qkv_ref[0, :, pl.ds(inner + h * dim_head, dim_head)].astype(jnp.float32)
        v = qkv_ref[0, :, pl.ds(2 * inner + h * dim_head, dim_head)].astype(jnp.float32)
        # q @ k^T via dot_general (contract last dims; no explicit transpose)
        s = lax.dot_general(q, k, (((1,), (1,)), ((), ())),
                            preferred_element_type=jnp.float32) * scale
        if n_valid < n_pad:                                  # mask padded key columns
            col = lax.broadcasted_iota(jnp.int32, s.shape, 1)
            s = jnp.where(col < n_valid, s, -1e30)
        s = s - jnp.max(s, axis=-1, keepdims=True)
        p = jnp.exp(s)
        p = p * pl.reciprocal(jnp.sum(p, axis=-1, keepdims=True), approx=True)
        o = jnp.dot(p, v, preferred_element_type=jnp.float32)
        o_ref[0, :, pl.ds(h * dim_head, dim_head)] = o.astype(o_ref.dtype)


def attention(qkv, heads, dim_head, scale, n_valid):
    """qkv: (B, Np, 3*heads*dim_head) column-packed [q|k|v] -> (B, Np, heads*dim_head)."""
    B, Np, three_inner = qkv.shape
    inner = heads * dim_head
    kern = functools.partial(_attn_kernel, heads=heads, dim_head=dim_head,
                             n_valid=n_valid, scale=scale)
    return pl.pallas_call(
        kern,
        out_shape=jax.ShapeDtypeStruct((B, Np, inner), qkv.dtype),
        grid=(B,),
        in_specs=[pl.BlockSpec((1, Np, three_inner), lambda b: (b, 0, 0))],
        out_specs=pl.BlockSpec((1, Np, inner), lambda b: (b, 0, 0)),
        compiler_params=pltpu.CompilerParams(dimension_semantics=("parallel",)),
    )(qkv)


# ----------------------------- bilinear upsample (D on lanes) -----------------------------

def _bilinear_matrix(in_size, out_size):
    """(out, in) numpy matrix reproducing F.interpolate bilinear, align_corners=False."""
    scale = in_size / out_size
    dst = np.arange(out_size, dtype=np.float64)
    src = np.clip((dst + 0.5) * scale - 0.5, 0.0, in_size - 1)
    lo = np.floor(src).astype(np.int64)
    hi = np.minimum(lo + 1, in_size - 1)
    frac = src - lo
    m = np.zeros((out_size, in_size), np.float32)
    rows = np.arange(out_size)
    m[rows, lo] += (1.0 - frac)
    m[rows, hi] += frac
    return m


def _upsample_kernel(m_ref, x_ref, o_ref):
    o_ref[0] = jnp.dot(m_ref[...], x_ref[0],
                       preferred_element_type=jnp.float32).astype(o_ref.dtype)


def bilinear_upsample(x_tokens, gs, s):
    """x_tokens: (B, gs*gs, D) -> (B, s*s, D); channel dim stays on the 128-lane axis."""
    B, n, D = x_tokens.shape
    m1 = _bilinear_matrix(gs, s)                 # (s, gs)
    # TODO(synk): for large s use the separable (two-matmul) form; kron is fine at this scale.
    mk = jnp.asarray(np.kron(m1, m1), jnp.float32)   # (s*s, gs*gs)
    return pl.pallas_call(
        _upsample_kernel,
        out_shape=jax.ShapeDtypeStruct((B, s * s, D), x_tokens.dtype),
        grid=(B,),
        in_specs=[pl.BlockSpec((s * s, gs * gs), lambda b: (0, 0)),
                  pl.BlockSpec((1, n, D), lambda b: (b, 0, 0))],
        out_specs=pl.BlockSpec((1, s * s, D), lambda b: (b, 0, 0)),
        compiler_params=pltpu.CompilerParams(dimension_semantics=("parallel",)),
    )(mk, x_tokens)


# ----------------------------- model pieces -----------------------------

def _mhsa(x, p, heads, dim_head, scale, n_valid):
    """pre-LN multi-head self-attention, residual fused into the output projection."""
    B, Np, D = x.shape
    inner = heads * dim_head
    xf = x.reshape(B * Np, D)
    # LN -> qkv projection, fused (no bias in encoder, bias in decoder blocks)
    qkv = ln_matmul(xf, p["ln_g"], p["ln_b"], p["w_qkv"], bias=p.get("b_qkv"))
    o = attention(qkv.reshape(B, Np, 3 * inner), heads, dim_head, scale, n_valid)
    # output projection + bias + residual, fused epilogue
    y = matmul(o.reshape(B * Np, inner), p["w_out"], bias=p["b_out"], residual=xf)
    return y.reshape(B, Np, D)


def _ff(x, p):
    """pre-LN MLP; LN fused into W1, residual fused into W2 epilogue."""
    B, Np, D = x.shape
    xf = x.reshape(B * Np, D)
    h = ln_matmul(xf, p["ln_g"], p["ln_b"], p["w1"], bias=p["b1"], activation="gelu")
    y = matmul(h, p["w2"], bias=p["b2"], residual=xf)
    return y.reshape(B, Np, D)


def vit_forward(params, img, task_id, scale_id, cfg):
    del scale_id  # unused in the reference forward
    B, C, H, W = img.shape
    P = cfg["patch_size"]
    D = cfg["dim"]
    Hp, Wp = H // P, W // P
    n = Hp * Wp
    pd = C * P * P

    # --- to_patch_embedding: 'b c (h p1) (w p2) -> b (h w) (p1 p2 c)' ---
    x = img.reshape(B, C, Hp, P, Wp, P).transpose(0, 2, 4, 3, 5, 1).reshape(B, n, pd)

    # fused LN(pd) -> Linear(pd, D) -> LN(D)
    pe = params["patch_embed"]
    xf = ln_matmul(x.reshape(B * n, pd), pe["ln1_g"], pe["ln1_b"], pe["w"],
                   bias=pe["b"], out_ln=(pe["ln2_g"], pe["ln2_b"]))
    x = xf.reshape(B, n, D)

    # --- cls token (traced task_id select) + positional embedding ---
    cls = lax.dynamic_slice_in_dim(params["cls_token"], task_id[0], 1, axis=1)  # (1,1,D)
    cls = jnp.broadcast_to(cls, (B, 1, D))
    x = jnp.concatenate([cls, x], axis=1) + params["pos_embedding"][:, :n + 1]

    # pad token dim to a multiple of 8 (sublane alignment); padded keys masked in attention
    N = n + 1
    Np = ((N + 7) // 8) * 8
    if Np != N:
        x = jnp.pad(x, ((0, 0), (0, Np - N), (0, 0)))

    enc_scale = cfg["dim_head"] ** -0.5

    # --- encoder Transformer ---
    for layer in params["transformer"]:
        x = _mhsa(x, layer["attn"], cfg["heads"], cfg["dim_head"], enc_scale, N)
        x = _ff(x, layer["ff"])
    x = layernorm(x.reshape(B * Np, D),
                  params["transformer_norm_g"], params["transformer_norm_b"]).reshape(B, Np, D)

    # --- decoder blocks (canonical Segmenter pre-norm Block) ---
    nh_dec = D // 64
    dh_dec = D // nh_dec
    dec_scale = dh_dec ** -0.5
    for blk in params["blocks"]:
        x = _mhsa(x, blk["attn"], nh_dec, dh_dec, dec_scale, N)
        x = _ff(x, blk["ff"])

    x = layernorm(x.reshape(B * Np, D),
                  params["decoder_norm_g"], params["decoder_norm_b"]).reshape(B, Np, D)

    # TODO(synk): masks branch (proj_patch/proj_classes/mask_norm) is dead code in the source
    # and crashes on `GS` used before definition; omitted.

    cls_tokens = x[:, 0:1, :]
    xp = x[:, 1:1 + n, :]                            # (B, n, D), padded rows dropped

    S = cfg["image_size"]
    GS = S // P
    up = bilinear_upsample(xp, GS, S)                # (B, S*S, D), D on lanes
    out = up.reshape(B, S, S, D).transpose(0, 3, 1, 2)   # NCHW to match F.interpolate

    return out, cls_tokens


# ----------------------------- parameter init -----------------------------

def init_params(key, cfg):
    D = cfg["dim"]
    heads, dh = cfg["heads"], cfg["dim_head"]
    inner = heads * dh
    pd = cfg["channels"] * cfg["patch_size"] ** 2
    n = (cfg["image_size"] // cfg["patch_size"]) ** 2
    d_ff = 4 * D

    keys = iter(jax.random.split(key, 256))

    def randn(shape, std=0.02):
        return std * jax.random.normal(next(keys), shape, jnp.float32)

    ones = lambda s: jnp.ones(s, jnp.float32)
    zeros = lambda s: jnp.zeros(s, jnp.float32)

    params = dict(
        patch_embed=dict(ln1_g=ones((pd,)), ln1_b=zeros((pd,)),
                         w=randn((pd, D)), b=zeros((D,)),
                         ln2_g=ones((D,)), ln2_b=zeros((D,))),
        cls_token=randn((1, cfg["num_classes"], D), std=1.0),
        pos_embedding=randn((1, n + 1, D), std=1.0),
        transformer=[dict(
            attn=dict(ln_g=ones((D,)), ln_b=zeros((D,)),
                      w_qkv=randn((D, 3 * inner)),                 # bias=False (ref Attention)
                      w_out=randn((inner, D)), b_out=zeros((D,))),
            ff=dict(ln_g=ones((D,)), ln_b=zeros((D,)),
                    w1=randn((D, cfg["mlp_dim"])), b1=zeros((cfg["mlp_dim"],)),
                    w2=randn((cfg["mlp_dim"], D)), b2=zeros((D,))),
        ) for _ in range(cfg["depth"])],
        transformer_norm_g=ones((D,)), transformer_norm_b=zeros((D,)),
        blocks=[dict(
            attn=dict(ln_g=ones((D,)), ln_b=zeros((D,)),
                      w_qkv=randn((D, 3 * D)), b_qkv=zeros((3 * D,)),
                      w_out=randn((D, D)), b_out=zeros((D,))),
            ff=dict(ln_g=ones((D,)), ln_b=zeros((D,)),
                    w1=randn((D, d_ff)), b1=zeros((d_ff,)),
                    w2=randn((d_ff, D)), b2=zeros((D,))),
        ) for _ in range(cfg["depth"])],
        decoder_norm_g=ones((D,)), decoder_norm_b=zeros((D,)),
    )
    return params


# ----------------------------- main -----------------------------

if __name__ == "__main__":
    cfg = dict(image_size=16, patch_size=4, num_classes=4, dim=128, depth=2,
               heads=2, dim_head=32, mlp_dim=256, channels=3)

    key = jax.random.PRNGKey(0)
    kp, kimg = jax.random.split(key)
    params = init_params(kp, cfg)

    img = jax.random.normal(
        kimg, (2, cfg["channels"], cfg["image_size"], cfg["image_size"]), jnp.float32)
    task_id = jnp.array([1], dtype=jnp.int32)
    scale_id = jnp.array([0], dtype=jnp.int32)

    fwd = jax.jit(functools.partial(vit_forward, cfg=cfg))
    out, cls_tokens = fwd(params, img, task_id, scale_id)
    jax.block_until_ready(out)
    jax.block_until_ready(cls_tokens)

    assert out.shape == (2, cfg["dim"], cfg["image_size"], cfg["image_size"]), out.shape
    assert cls_tokens.shape == (2, 1, cfg["dim"]), cls_tokens.shape
    assert bool(jnp.all(jnp.isfinite(out))) and bool(jnp.all(jnp.isfinite(cls_tokens)))
    print("KERNEL_OK")
</pallas_src>

<mosaic_0001>
module attributes {stable_mosaic.version = 11 : i64} {
  func.func @_ln_mm_kernel(%arg0: i32, %arg1: i32, %arg2: memref<32x48xf32, #tpu.memory_space<vmem>>, %arg3: memref<1x48xf32, #tpu.memory_space<vmem>>, %arg4: memref<1x48xf32, #tpu.memory_space<vmem>>, %arg5: memref<48x128xf32, #tpu.memory_space<vmem>>, %arg6: memref<1x128xf32, #tpu.memory_space<vmem>>, %arg7: memref<1x128xf32, #tpu.memory_space<vmem>>, %arg8: memref<1x128xf32, #tpu.memory_space<vmem>>, %arg9: memref<32x128xf32, #tpu.memory_space<vmem>>) attributes {dimension_semantics = [#tpu.dimension_semantics<parallel>, #tpu.dimension_semantics<parallel>], iteration_bounds = array<i64: 1, 1>, scalar_prefetch = 0 : i64, scratch_operands = 0 : i64, tpu.core_type = #tpu.core_type<tc>, window_params = [{transform_indices = @transform_0, window_bounds = array<i64: 32, 48>}, {pipeline_mode = #tpu.pipeline_mode<synchronous>, transform_indices = @transform_1, window_bounds = array<i64: 1, 48>}, {pipeline_mode = #tpu.pipeline_mode<synchronous>, transform_indices = @transform_2, window_bounds = array<i64: 1, 48>}, {transform_indices = @transform_3, window_bounds = array<i64: 48, 128>}, {transform_indices = @transform_4, window_bounds = array<i64: 1, 128>}, {transform_indices = @transform_5, window_bounds = array<i64: 1, 128>}, {transform_indices = @transform_6, window_bounds = array<i64: 1, 128>}, {transform_indices = @transform_7, window_bounds = array<i64: 32, 128>}]} {
    %c0 = arith.constant 0 : index
    %c0_0 = arith.constant 0 : index
    %0 = vector.load %arg2[%c0, %c0_0] : memref<32x48xf32, #tpu.memory_space<vmem>>, vector<32x48xf32>
    %cst = arith.constant dense<0.000000e+00> : vector<32xf32>
    %1 = vector.multi_reduction <add>, %0, %cst [1] : vector<32x48xf32> to vector<32xf32>
    %2 = vector.shape_cast %1 : vector<32xf32> to vector<32x1xf32>
    %cst_1 = arith.constant 4.800000e+01 : f32
    %3 = vector.broadcast %cst_1 : f32 to vector<32x1xf32>
    %4 = arith.divf %2, %3 : vector<32x1xf32>
    %5 = vector.broadcast %4 : vector<32x1xf32> to vector<32x48xf32>
    %6 = arith.subf %0, %5 : vector<32x48xf32>
    %7 = arith.mulf %6, %6 : vector<32x48xf32>
    %cst_2 = arith.constant dense<0.000000e+00> : vector<32xf32>
    %8 = vector.multi_reduction <add>, %7, %cst_2 [1] : vector<32x48xf32> to vector<32xf32>
    %9 = vector.shape_cast %8 : vector<32xf32> to vector<32x1xf32>
    %cst_3 = arith.constant 4.800000e+01 : f32
    %10 = vector.broadcast %cst_3 : f32 to vector<32x1xf32>
    %11 = arith.divf %9, %10 : vector<32x1xf32>
    %cst_4 = arith.constant 9.99999974E-6 : f32
    %12 = vector.broadcast %cst_4 : f32 to vector<32x1xf32>
    %13 = arith.addf %11, %12 : vector<32x1xf32>
    %14 = math.rsqrt %13 : vector<32x1xf32>
    %15 = vector.broadcast %14 : vector<32x1xf32> to vector<32x48xf32>
    %16 = arith.mulf %6, %15 : vector<32x48xf32>
    %c0_5 = arith.constant 0 : index
    %c0_6 = arith.constant 0 : index
    %17 = vector.load %arg3[%c0_5, %c0_6] : memref<1x48xf32, #tpu.memory_space<vmem>>, vector<1x48xf32>
    %18 = vector.broadcast %17 : vector<1x48xf32> to vector<32x48xf32>
    %19 = arith.mulf %16, %18 : vector<32x48xf32>
    %c0_7 = arith.constant 0 : index
    %c0_8 = arith.constant 0 : index
    %20 = vector.load %arg4[%c0_7, %c0_8] : memref<1x48xf32, #tpu.memory_space<vmem>>, vector<1x48xf32>
    %21 = vector.broadcast %20 : vector<1x48xf32> to vector<32x48xf32>
    %22 = arith.addf %19, %21 : vector<32x48xf32>
    %c0_9 = arith.constant 0 : index
    %c0_10 = arith.constant 0 : index
    %23 = vector.load %arg5[%c0_9, %c0_10] : memref<48x128xf32, #tpu.memory_space<vmem>>, vector<48x128xf32>
    %cst_11 = arith.constant dense<0.000000e+00> : vector<32x128xf32>
    %24 = tpu.matmul %22, %23, %cst_11 {dimension_numbers = #tpu.dot_dimension_numbers<[1], [0], [0], [1], [0, 0, 1, 1], [], []>} : vector<32x48xf32>, vector<48x128xf32>, vector<32x128xf32> -> vector<32x128xf32>
    %c0_12 = arith.constant 0 : index
    %c0_13 = arith.constant 0 : index
    %25 = vector.load %arg6[%c0_12, %c0_13] : memref<1x128xf32, #tpu.memory_space<vmem>>, vector<1x128xf32>
    %26 = vector.broadcast %25 : vector<1x128xf32> to vector<32x128xf32>
    %27 = arith.addf %24, %26 : vector<32x128xf32>
    %cst_14 = arith.constant dense<0.000000e+00> : vector<32xf32>
    %28 = vector.multi_reduction <add>, %27, %cst_14 [1] : vector<32x128xf32> to vector<32xf32>
    %29 = vector.shape_cast %28 : vector<32xf32> to vector<32x1xf32>
    %cst_15 = arith.constant 1.280000e+02 : f32
    %30 = vector.broadcast %cst_15 : f32 to vector<32x1xf32>
    %31 = arith.divf %29, %30 : vector<32x1xf32>
    %32 = vector.broadcast %31 : vector<32x1xf32> to vector<32x128xf32>
    %33 = arith.subf %27, %32 : vector<32x128xf32>
    %34 = arith.mulf %33, %33 : vector<32x128xf32>
    %cst_16 = arith.constant dense<0.000000e+00> : vector<32xf32>
    %35 = vector.multi_reduction <add>, %34, %cst_16 [1] : vector<32x128xf32> to vector<32xf32>
    %36 = vector.shape_cast %35 : vector<32xf32> to vector<32x1xf32>
    %cst_17 = arith.constant 1.280000e+02 : f32
    %37 = vector.broadcast %cst_17 : f32 to vector<32x1xf32>
    %38 = arith.divf %36, %37 : vector<32x1xf32>
    %cst_18 = arith.constant 9.99999974E-6 : f32
    %39 = vector.broadcast %cst_18 : f32 to vector<32x1xf32>
    %40 = arith.addf %38, %39 : vector<32x1xf32>
    %41 = math.rsqrt %40 : vector<32x1xf32>
    %42 = vector.broadcast %41 : vector<32x1xf32> to vector<32x128xf32>
    %43 = arith.mulf %33, %42 : vector<32x128xf32>
    %c0_19 = arith.constant 0 : index
    %c0_20 = arith.constant 0 : index
    %44 = vector.load %arg7[%c0_19, %c0_20] : memref<1x128xf32, #tpu.memory_space<vmem>>, vector<1x128xf32>
    %45 = vector.broadcast %44 : vector<1x128xf32> to vector<32x128xf32>
    %46 = arith.mulf %43, %45 : vector<32x128xf32>
    %c0_21 = arith.constant 0 : index
    %c0_22 = arith.constant 0 : index
    %47 = vector.load %arg8[%c0_21, %c0_22] : memref<1x128xf32, #tpu.memory_space<vmem>>, vector<1x128xf32>
    %48 = vector.broadcast %47 : vector<1x128xf32> to vector<32x128xf32>
    %49 = arith.addf %46, %48 : vector<32x128xf32>
    %c0_23 = arith.constant 0 : index
    %c0_24 = arith.constant 0 : index
    %50 = vector.load %arg9[%c0_23, %c0_24] : memref<32x128xf32, #tpu.memory_space<vmem>>, vector<32x128xf32>
    tpu.vector_store %arg9[%c0_23, %c0_24], %49 {strides = array<i32>} : memref<32x128xf32, #tpu.memory_space<vmem>>, vector<32x128xf32>,
    return
  }
  func.func @transform_0(%arg0: i32, %arg1: i32) -> (i32, i32) {
    %c0_i32 = arith.constant 0 : i32
    %c0_i32_0 = arith.constant 0 : i32
    return %arg0, %c0_i32 : i32, i32
  }
  func.func @transform_1(%arg0: i32, %arg1: i32) -> (i32, i32) {
    %c0_i32 = arith.constant 0 : i32
    %c0_i32_0 = arith.constant 0 : i32
    %c0_i32_1 = arith.constant 0 : i32
    return %c0_i32, %c0_i32_0 : i32, i32
  }
  func.func @transform_2(%arg0: i32, %arg1: i32) -> (i32, i32) {
    %c0_i32 = arith.constant 0 : i32
    %c0_i32_0 = arith.constant 0 : i32
    %c0_i32_1 = arith.constant 0 : i32
    return %c0_i32, %c0_i32_0 : i32, i32
  }
  func.func @transform_3(%arg0: i32, %arg1: i32) -> (i32, i32) {
    %c0_i32 = arith.constant 0 : i32
    %c0_i32_0 = arith.constant 0 : i32
    return %c0_i32, %arg1 : i32, i32
  }
  func.func @transform_4(%arg0: i32, %arg1: i32) -> (i32, i32) {
    %c0_i32 = arith.constant 0 : i32
    %c0_i32_0 = arith.constant 0 : i32
    return %c0_i32, %arg1 : i32, i32
  }
  func.func @transform_5(%arg0: i32, %arg1: i32) -> (i32, i32) {
    %c0_i32 = arith.constant 0 : i32
    %c0_i32_0 = arith.constant 0 : i32
    return %c0_i32, %arg1 : i32, i32
  }
  func.func @transform_6(%arg0: i32, %arg1: i32) -> (i32, i32) {
    %c0_i32 = arith.constant 0 : i32
    %c0_i32_0 = arith.constant 0 : i32
    return %c0_i32, %arg1 : i32, i32
  }
  func.func @transform_7(%arg0: i32, %arg1: i32) -> (i32, i32) {
    %c0_i32 = arith.constant 0 : i32
    return %arg0, %arg1 : i32, i32
  }
}

module attributes {stable_mosaic.version = 11 : i64} {
  func.func @_ln_mm_kernel(%arg0: i32, %arg1: i32, %arg2: memref<48x128xf32, #tpu.memory_space<vmem>>, %arg3: memref<1x128xf32, #tpu.memory_space<vmem>>, %arg4: memref<1x128xf32, #tpu.memory_space<vmem>>, %arg5: memref<128x192xf32, #tpu.memory_space<vmem>>, %arg6: memref<48x192xf32, #tpu.memory_space<vmem>>) attributes {dimension_semantics = [#tpu.dimension_semantics<parallel>, #tpu.dimension_semantics<parallel>], iteration_bounds = array<i64: 1, 1>, scalar_prefetch = 0 : i64, scratch_operands = 0 : i64, tpu.core_type = #tpu.core_type<tc>, window_params = [{transform_indices = @transform_0, window_bounds = array<i64: 48, 128>}, {pipeline_mode = #tpu.pipeline_mode<synchronous>, transform_indices = @transform_1, window_bounds = array<i64: 1, 128>}, {pipeline_mode = #tpu.pipeline_mode<synchronous>, transform_indices = @transform_2, window_bounds = array<i64: 1, 128>}, {transform_indices = @transform_3, window_bounds = array<i64: 128, 192>}, {transform_indices = @transform_4, window_bounds = array<i64: 48, 192>}]} {
    %c0 = arith.constant 0 : index
    %c0_0 = arith.constant 0 : index
    %0 = vector.load %arg2[%c0, %c0_0] : memref<48x128xf32, #tpu.memory_space<vmem>>, vector<48x128xf32>
    %cst = arith.constant dense<0.000000e+00> : vector<48xf32>
    %1 = vector.multi_reduction <add>, %0, %cst [1] : vector<48x128xf32> to vector<48xf32>
    %2 = vector.shape_cast %1 : vector<48xf32> to vector<48x1xf32>
    %cst_1 = arith.constant 1.280000e+02 : f32
    %3 = vector.broadcast %cst_1 : f32 to vector<48x1xf32>
    %4 = arith.divf %2, %3 : vector<48x1xf32>
    %5 = vector.broadcast %4 : vector<48x1xf32> to vector<48x128xf32>
    %6 = arith.subf %0, %5 : vector<48x128xf32>
    %7 = arith.mulf %6, %6 : vector<48x128xf32>
    %cst_2 = arith.constant dense<0.000000e+00> : vector<48xf32>
    %8 = vector.multi_reduction <add>, %7, %cst_2 [1] : vector<48x128xf32> to vector<48xf32>
    %9 = vector.shape_cast %8 : vector<48xf32> to vector<48x1xf32>
    %cst_3 = arith.constant 1.280000e+02 : f32
    %10 = vector.broadcast %cst_3 : f32 to vector<48x1xf32>
    %11 = arith.divf %9, %10 : vector<48x1xf32>
    %cst_4 = arith.constant 9.99999974E-6 : f32
    %12 = vector.broadcast %cst_4 : f32 to vector<48x1xf32>
    %13 = arith.addf %11, %12 : vector<48x1xf32>
    %14 = math.rsqrt %13 : vector<48x1xf32>
    %15 = vector.broadcast %14 : vector<48x1xf32> to vector<48x128xf32>
    %16 = arith.mulf %6, %15 : vector<48x128xf32>
    %c0_5 = arith.constant 0 : index
    %c0_6 = arith.constant 0 : index
    %17 = vector.load %arg3[%c0_5, %c0_6] : memref<1x128xf32, #tpu.memory_space<vmem>>, vector<1x128xf32>
    %18 = vector.broadcast %17 : vector<1x128xf32> to vector<48x128xf32>
    %19 = arith.mulf %16, %18 : vector<48x128xf32>
    %c0_7 = arith.constant 0 : index
    %c0_8 = arith.constant 0 : index
    %20 = vector.load %arg4[%c0_7, %c0_8] : memref<1x128xf32, #tpu.memory_space<vmem>>, vector<1x128xf32>
    %21 = vector.broadcast %20 : vector<1x128xf32> to vector<48x128xf32>
    %22 = arith.addf %19, %21 : vector<48x128xf32>
    %c0_9 = arith.constant 0 : index
    %c0_10 = arith.constant 0 : index
    %23 = vector.load %arg5[%c0_9, %c0_10] : memref<128x192xf32, #tpu.memory_space<vmem>>, vector<128x192xf32>
    %cst_11 = arith.constant dense<0.000000e+00> : vector<48x192xf32>
    %24 = tpu.matmul %22, %23, %cst_11 {dimension_numbers = #tpu.dot_dimension_numbers<[1], [0], [0], [1], [0, 0, 1, 1], [], []>} : vector<48x128xf32>, vector<128x192xf32>, vector<48x192xf32> -> vector<48x192xf32>
    %c0_12 = arith.constant 0 : index
    %c0_13 = arith.constant 0 : index
    %25 = vector.load %arg6[%c0_12, %c0_13] : memref<48x192xf32, #tpu.memory_space<vmem>>, vector<48x192xf32>
    tpu.vector_store %arg6[%c0_12, %c0_13], %24 {strides = array<i32>} : memref<48x192xf32, #tpu.memory_space<vmem>>, vector<48x192xf32>,
    return
  }
  func.func @transform_0(%arg0: i32, %arg1: i32) -> (i32, i32) {
    %c0_i32 = arith.constant 0 : i32
    %c0_i32_0 = arith.constant 0 : i32
    return %arg0, %c0_i32 : i32, i32
  }
  func.func @transform_1(%arg0: i32, %arg1: i32) -> (i32, i32) {
    %c0_i32 = arith.constant 0 : i32
    %c0_i32_0 = arith.constant 0 : i32
    %c0_i32_1 = arith.constant 0 : i32
    return %c0_i32, %c0_i32_0 : i32, i32
  }
  func.func @transform_2(%arg0: i32, %arg1: i32) -> (i32, i32) {
    %c0_i32 = arith.constant 0 : i32
    %c0_i32_0 = arith.constant 0 : i32
    %c0_i32_1 = arith.constant 0 : i32
    return %c0_i32, %c0_i32_0 : i32, i32
  }
  func.func @transform_3(%arg0: i32, %arg1: i32) -> (i32, i32) {
    %c0_i32 = arith.constant 0 : i32
    %c0_i32_0 = arith.constant 0 : i32
    return %c0_i32, %arg1 : i32, i32
  }
  func.func @transform_4(%arg0: i32, %arg1: i32) -> (i32, i32) {
    %c0_i32 = arith.constant 0 : i32
    return %arg0, %arg1 : i32, i32
  }
}

module attributes {stable_mosaic.version = 11 : i64} {
  func.func @_attn_kernel(%arg0: i32, %arg1: memref<1x24x192xf32, #tpu.memory_space<vmem>>, %arg2: memref<1x24x64xf32, #tpu.memory_space<vmem>>) attributes {dimension_semantics = [#tpu.dimension_semantics<parallel>], iteration_bounds = array<i64: 2>, scalar_prefetch = 0 : i64, scratch_operands = 0 : i64, tpu.core_type = #tpu.core_type<tc>, window_params = [{transform_indices = @transform_0, window_bounds = array<i64: 1, 24, 192>}, {transform_indices = @transform_1, window_bounds = array<i64: 1, 24, 64>}]} {
    %c0 = arith.constant 0 : index
    %c0_0 = arith.constant 0 : index
    %c0_1 = arith.constant 0 : index
    %0 = vector.load %arg1[%c0, %c0_0, %c0_1] : memref<1x24x192xf32, #tpu.memory_space<vmem>>, vector<1x24x32xf32>
    %1 = vector.shape_cast %0 : vector<1x24x32xf32> to vector<24x32xf32>
    %c0_2 = arith.constant 0 : index
    %c0_3 = arith.constant 0 : index
    %c64 = arith.constant 64 : index
    %2 = vector.load %arg1[%c0_2, %c0_3, %c64] : memref<1x24x192xf32, #tpu.memory_space<vmem>>, vector<1x24x32xf32>
    %3 = vector.shape_cast %2 : vector<1x24x32xf32> to vector<24x32xf32>
    %c0_4 = arith.constant 0 : index
    %c0_5 = arith.constant 0 : index
    %c128 = arith.constant 128 : index
    %4 = vector.load %arg1[%c0_4, %c0_5, %c128] : memref<1x24x192xf32, #tpu.memory_space<vmem>>, vector<1x24x32xf32>
    %5 = vector.shape_cast %4 : vector<1x24x32xf32> to vector<24x32xf32>
    %cst = arith.constant dense<0.000000e+00> : vector<24x24xf32>
    %6 = tpu.matmul %1, %3, %cst {dimension_numbers = #tpu.dot_dimension_numbers<[1], [1], [0], [0], [0, 0, 1, 0], [], []>} : vector<24x32xf32>, vector<24x32xf32>, vector<24x24xf32> -> vector<24x24xf32>
    %cst_6 = arith.constant 0.176776692 : f32
    %7 = vector.broadcast %cst_6 : f32 to vector<24x24xf32>
    %8 = arith.mulf %6, %7 : vector<24x24xf32>
    %9 = tpu.iota {dimensions = array<i32: 1>} : vector<24x24xi32>
    %c17_i32 = arith.constant 17 : i32
    %10 = vector.broadcast %c17_i32 : i32 to vector<24x24xi32>
    %11 = arith.cmpi slt, %9, %10 : vector<24x24xi32>
    %cst_7 = arith.constant -1.000000e+30 : f32
    %12 = vector.broadcast %cst_7 : f32 to vector<24x24xf32>
    %13 = arith.select %11, %8, %12 : vector<24x24xi1>, vector<24x24xf32>
    %cst_8 = arith.constant dense<0xFF800000> : vector<24xf32>
    %14 = vector.multi_reduction <maximumf>, %13, %cst_8 [1] : vector<24x24xf32> to vector<24xf32>
    %15 = vector.shape_cast %14 : vector<24xf32> to vector<24x1xf32>
    %16 = vector.broadcast %15 : vector<24x1xf32> to vector<24x24xf32>
    %17 = arith.subf %13, %16 : vector<24x24xf32>
    %18 = math.exp %17 : vector<24x24xf32>
    %cst_9 = arith.constant dense<0.000000e+00> : vector<24xf32>
    %19 = vector.multi_reduction <add>, %18, %cst_9 [1] : vector<24x24xf32> to vector<24xf32>
    %20 = vector.shape_cast %19 : vector<24xf32> to vector<24x1xf32>
    %21 = tpu.reciprocal %20 {approx = true} : vector<24x1xf32> -> vector<24x1xf32>
    %22 = vector.broadcast %21 : vector<24x1xf32> to vector<24x24xf32>
    %23 = arith.mulf %18, %22 : vector<24x24xf32>
    %cst_10 = arith.constant dense<0.000000e+00> : vector<24x32xf32>
    %24 = tpu.matmul %23, %5, %cst_10 {dimension_numbers = #tpu.dot_dimension_numbers<[1], [0], [0], [1], [0, 0, 1, 1], [], []>} : vector<24x24xf32>, vector<24x32xf32>, vector<24x32xf32> -> vector<24x32xf32>
    %c0_11 = arith.constant 0 : index
    %c0_12 = arith.constant 0 : index
    %c0_13 = arith.constant 0 : index
    %25 = vector.load %arg2[%c0_11, %c0_12, %c0_13] : memref<1x24x64xf32, #tpu.memory_space<vmem>>, vector<1x24x32xf32>
    %26 = vector.shape_cast %25 : vector<1x24x32xf32> to vector<24x32xf32>
    %27 = vector.shape_cast %24 : vector<24x32xf32> to vector<1x24x32xf32>
    tpu.vector_store %arg2[%c0_11, %c0_12, %c0_13], %27 {strides = array<i32>} : memref<1x24x64xf32, #tpu.memory_space<vmem>>, vector<1x24x32xf32>,
    %c0_14 = arith.constant 0 : index
    %c0_15 = arith.constant 0 : index
    %c32 = arith.constant 32 : index
    %28 = vector.load %arg1[%c0_14, %c0_15, %c32] : memref<1x24x192xf32, #tpu.memory_space<vmem>>, vector<1x24x32xf32>
    %29 = vector.shape_cast %28 : vector<1x24x32xf32> to vector<24x32xf32>
    %c0_16 = arith.constant 0 : index
    %c0_17 = arith.constant 0 : index
    %c96 = arith.constant 96 : index
    %30 = vector.load %arg1[%c0_16, %c0_17, %c96] : memref<1x24x192xf32, #tpu.memory_space<vmem>>, vector<1x24x32xf32>
    %31 = vector.shape_cast %30 : vector<1x24x32xf32> to vector<24x32xf32>
    %c0_18 = arith.constant 0 : index
    %c0_19 = arith.constant 0 : index
    %c160 = arith.constant 160 : index
    %32 = vector.load %arg1[%c0_18, %c0_19, %c160] : memref<1x24x192xf32, #tpu.memory_space<vmem>>, vector<1x24x32xf32>
    %33 = vector.shape_cast %32 : vector<1x24x32xf32> to vector<24x32xf32>
    %cst_20 = arith.constant dense<0.000000e+00> : vector<24x24xf32>
    %34 = tpu.matmul %29, %31, %cst_20 {dimension_numbers = #tpu.dot_dimension_numbers<[1], [1], [0], [0], [0, 0, 1, 0], [], []>} : vector<24x32xf32>, vector<24x32xf32>, vector<24x24xf32> -> vector<24x24xf32>
    %cst_21 = arith.constant 0.176776692 : f32
    %35 = vector.broadcast %cst_21 : f32 to vector<24x24xf32>
    %36 = arith.mulf %34, %35 : vector<24x24xf32>
    %37 = tpu.iota {dimensions = array<i32: 1>} : vector<24x24xi32>
    %c17_i32_22 = arith.constant 17 : i32
    %38 = vector.broadcast %c17_i32_22 : i32 to vector<24x24xi32>
    %39 = arith.cmpi slt, %37, %38 : vector<24x24xi32>
    %cst_23 = arith.constant -1.000000e+30 : f32
    %40 = vector.broadcast %cst_23 : f32 to vector<24x24xf32>
    %41 = arith.select %39, %36, %40 : vector<24x24xi1>, vector<24x24xf32>
    %cst_24 = arith.constant dense<0xFF800000> : vector<24xf32>
    %42 = vector.multi_reduction <maximumf>, %41, %cst_24 [1] : vector<24x24xf32> to vector<24xf32>
    %43 = vector.shape_cast %42 : vector<24xf32> to vector<24x1xf32>
    %44 = vector.broadcast %43 : vector<24x1xf32> to vector<24x24xf32>
    %45 = arith.subf %41, %44 : vector<24x24xf32>
    %46 = math.exp %45 : vector<24x24xf32>
    %cst_25 = arith.constant dense<0.000000e+00> : vector<24xf32>
    %47 = vector.multi_reduction <add>, %46, %cst_25 [1] : vector<24x24xf32> to vector<24xf32>
    %48 = vector.shape_cast %47 : vector<24xf32> to vector<24x1xf32>
    %49 = tpu.reciprocal %48 {approx = true} : vector<24x1xf32> -> vector<24x1xf32>
    %50 = vector.broadcast %49 : vector<24x1xf32> to vector<24x24xf32>
    %51 = arith.mulf %46, %50 : vector<24x24xf32>
    %cst_26 = arith.constant dense<0.000000e+00> : vector<24x32xf32>
    %52 = tpu.matmul %51, %33, %cst_26 {dimension_numbers = #tpu.dot_dimension_numbers<[1], [0], [0], [1], [0, 0, 1, 1], [], []>} : vector<24x24xf32>, vector<24x32xf32>, vector<24x32xf32> -> vector<24x32xf32>
    %c0_27 = arith.constant 0 : index
    %c0_28 = arith.constant 0 : index
    %c32_29 = arith.constant 32 : index
    %53 = vector.load %arg2[%c0_27, %c0_28, %c32_29] : memref<1x24x64xf32, #tpu.memory_space<vmem>>, vector<1x24x32xf32>
    %54 = vector.shape_cast %53 : vector<1x24x32xf32> to vector<24x32xf32>
    %55 = vector.shape_cast %52 : vector<24x32xf32> to vector<1x24x32xf32>
    tpu.vector_store %arg2[%c0_27, %c0_28, %c32_29], %55 {strides = array<i32>} : memref<1x24x64xf32, #tpu.memory_space<vmem>>, vector<1x24x32xf32>,
    return
  }
  func.func @transform_0(%arg0: i32) -> (i32, i32, i32) {
    %c0_i32 = arith.constant 0 : i32
    %c0_i32_0 = arith.constant 0 : i32
    %c0_i32_1 = arith.constant 0 : i32
    return %arg0, %c0_i32, %c0_i32_0 : i32, i32, i32
  }
  func.func @transform_1(%arg0: i32) -> (i32, i32, i32) {
    %c0_i32 = arith.constant 0 : i32
    %c0_i32_0 = arith.constant 0 : i32
    %c0_i32_1 = arith.constant 0 : i32
    return %arg0, %c0_i32, %c0_i32_0 : i32, i32, i32
  }
}

module attributes {stable_mosaic.version = 11 : i64} {
  func.func @_mm_kernel(%arg0: i32, %arg1: i32, %arg2: i32, %arg3: memref<48x64xf32, #tpu.memory_space<vmem>>, %arg4: memref<64x128xf32, #tpu.memory_space<vmem>>, %arg5: memref<1x128xf32, #tpu.memory_space<vmem>>, %arg6: memref<48x128xf32, #tpu.memory_space<vmem>>, %arg7: memref<48x128xf32, #tpu.memory_space<vmem>>, %arg8: memref<48x128xf32, #tpu.memory_space<vmem>>) attributes {dimension_semantics = [#tpu.dimension_semantics<parallel>, #tpu.dimension_semantics<parallel>, #tpu.dimension_semantics<arbitrary>], iteration_bounds = array<i64: 1, 1, 1>, scalar_prefetch = 0 : i64, scratch_operands = 1 : i64, tpu.core_type = #tpu.core_type<tc>, window_params = [{transform_indices = @transform_0, window_bounds = array<i64: 48, 64>}, {transform_indices = @transform_1, window_bounds = array<i64: 64, 128>}, {transform_indices = @transform_2, window_bounds = array<i64: 1, 128>}, {transform_indices = @transform_3, window_bounds = array<i64: 48, 128>}, {transform_indices = @transform_4, window_bounds = array<i64: 48, 128>}]} {
    %c0_i32 = arith.constant 0 : i32
    %0 = arith.cmpi eq, %arg2, %c0_i32 : i32
    %1 = arith.extui %0 : i1 to i32
    %c0_i32_0 = arith.constant 0 : i32
    %2 = arith.cmpi ne, %1, %c0_i32_0 : i32
    scf.if %2 {
      %cst_10 = arith.constant 0.000000e+00 : f32
      %12 = vector.broadcast %cst_10 : f32 to vector<48x128xf32>
      %c0_11 = arith.constant 0 : index
      %c0_12 = arith.constant 0 : index
      %13 = vector.load %arg8[%c0_11, %c0_12] : memref<48x128xf32, #tpu.memory_space<vmem>>, vector<48x128xf32>
      tpu.vector_store %arg8[%c0_11, %c0_12], %12 {strides = array<i32>} : memref<48x128xf32, #tpu.memory_space<vmem>>, vector<48x128xf32>,
    } else {
    }
    %c0 = arith.constant 0 : index
    %c0_1 = arith.constant 0 : index
    %3 = vector.load %arg8[%c0, %c0_1] : memref<48x128xf32, #tpu.memory_space<vmem>>, vector<48x128xf32>
    %c0_2 = arith.constant 0 : index
    %c0_3 = arith.constant 0 : index
    %4 = vector.load %arg3[%c0_2, %c0_3] : memref<48x64xf32, #tpu.memory_space<vmem>>, vector<48x64xf32>
    %c0_4 = arith.constant 0 : index
    %c0_5 = arith.constant 0 : index
    %5 = vector.load %arg4[%c0_4, %c0_5] : memref<64x128xf32, #tpu.memory_space<vmem>>, vector<64x128xf32>
    %cst = arith.constant dense<0.000000e+00> : vector<48x128xf32>
    %6 = tpu.matmul %4, %5, %cst {dimension_numbers = #tpu.dot_dimension_numbers<[1], [0], [0], [1], [0, 0, 1, 1], [], []>} : vector<48x64xf32>, vector<64x128xf32>, vector<48x128xf32> -> vector<48x128xf32>
    %7 = arith.addf %3, %6 : vector<48x128xf32>
    %c0_6 = arith.constant 0 : index
    %c0_7 = arith.constant 0 : index
    %8 = vector.load %arg8[%c0_6, %c0_7] : memref<48x128xf32, #tpu.memory_space<vmem>>, vector<48x128xf32>
    tpu.vector_store %arg8[%c0_6, %c0_7], %7 {strides = array<i32>} : memref<48x128xf32, #tpu.memory_space<vmem>>, vector<48x128xf32>,
    %c0_i32_8 = arith.constant 0 : i32
    %9 = arith.cmpi eq, %arg2, %c0_i32_8 : i32
    %10 = arith.extui %9 : i1 to i32
    %c0_i32_9 = arith.constant 0 : i32
    %11 = arith.cmpi ne, %10, %c0_i32_9 : i32
    scf.if %11 {
      %c0_10 = arith.constant 0 : index
      %c0_11 = arith.constant 0 : index
      %12 = vector.load %arg8[%c0_10, %c0_11] : memref<48x128xf32, #tpu.memory_space<vmem>>, vector<48x128xf32>
      %c0_12 = arith.constant 0 : index
      %c0_13 = arith.constant 0 : index
      %13 = vector.load %arg5[%c0_12, %c0_13] : memref<1x128xf32, #tpu.memory_space<vmem>>, vector<1x128xf32>
      %14 = vector.broadcast %13 : vector<1x128xf32> to vector<48x128xf32>
      %15 = arith.addf %12, %14 : vector<48x128xf32>
      %c0_14 = arith.constant 0 : index
      %c0_15 = arith.constant 0 : index
      %16 = vector.load %arg6[%c0_14, %c0_15] : memref<48x128xf32, #tpu.memory_space<vmem>>, vector<48x128xf32>
      %17 = arith.addf %15, %16 : vector<48x128xf32>
      %c0_16 = arith.constant 0 : index
      %c0_17 = arith.constant 0 : index
      %18 = vector.load %arg7[%c0_16, %c0_17] : memref<48x128xf32, #tpu.memory_space<vmem>>, vector<48x128xf32>
      tpu.vector_store %arg7[%c0_16, %c0_17], %17 {strides = array<i32>} : memref<48x128xf32, #tpu.memory_space<vmem>>, vector<48x128xf32>,
    } else {
    }
    return
  }
  func.func @transform_0(%arg0: i32, %arg1: i32, %arg2: i32) -> (i32, i32) {
    %c0_i32 = arith.constant 0 : i32
    return %arg0, %arg2 : i32, i32
  }
  func.func @transform_1(%arg0: i32, %arg1: i32, %arg2: i32) -> (i32, i32) {
    %c0_i32 = arith.constant 0 : i32
    return %arg2, %arg1 : i32, i32
  }
  func.func @transform_2(%arg0: i32, %arg1: i32, %arg2: i32) -> (i32, i32) {
    %c0_i32 = arith.constant 0 : i32
    %c0_i32_0 = arith.constant 0 : i32
    return %c0_i32, %arg1 : i32, i32
  }
  func.func @transform_3(%arg0: i32, %arg1: i32, %arg2: i32) -> (i32, i32) {
    %c0_i32 = arith.constant 0 : i32
    return %arg0, %arg1 : i32, i32
  }
  func.func @transform_4(%arg0: i32, %arg1: i32, %arg2: i32) -> (i32, i32) {
    %c0_i32 = arith.constant 0 : i32
    return %arg0, %arg1 : i32, i32
  }
}

module attributes {stable_mosaic.version = 11 : i64} {
  func.func @_ln_mm_kernel(%arg0: i32, %arg1: i32, %arg2: memref<48x128xf32, #tpu.memory_space<vmem>>, %arg3: memref<1x128xf32, #tpu.memory_space<vmem>>, %arg4: memref<1x128xf32, #tpu.memory_space<vmem>>, %arg5: memref<128x256xf32, #tpu.memory_space<vmem>>, %arg6: memref<1x256xf32, #tpu.memory_space<vmem>>, %arg7: memref<48x256xf32, #tpu.memory_space<vmem>>) attributes {dimension_semantics = [#tpu.dimension_semantics<parallel>, #tpu.dimension_semantics<parallel>], iteration_bounds = array<i64: 1, 1>, scalar_prefetch = 0 : i64, scratch_operands = 0 : i64, tpu.core_type = #tpu.core_type<tc>, window_params = [{transform_indices = @transform_0, window_bounds = array<i64: 48, 128>}, {pipeline_mode = #tpu.pipeline_mode<synchronous>, transform_indices = @transform_1, window_bounds = array<i64: 1, 128>}, {pipeline_mode = #tpu.pipeline_mode<synchronous>, transform_indices = @transform_2, window_bounds = array<i64: 1, 128>}, {transform_indices = @transform_3, window_bounds = array<i64: 128, 256>}, {transform_indices = @transform_4, window_bounds = array<i64: 1, 256>}, {transform_indices = @transform_5, window_bounds = array<i64: 48, 256>}]} {
    %c0 = arith.constant 0 : index
    %c0_0 = arith.constant 0 : index
    %0 = vector.load %arg2[%c0, %c0_0] : memref<48x128xf32, #tpu.memory_space<vmem>>, vector<48x128xf32>
    %cst = arith.constant dense<0.000000e+00> : vector<48xf32>
    %1 = vector.multi_reduction <add>, %0, %cst [1] : vector<48x128xf32> to vector<48xf32>
    %2 = vector.shape_cast %1 : vector<48xf32> to vector<48x1xf32>
    %cst_1 = arith.constant 1.280000e+02 : f32
    %3 = vector.broadcast %cst_1 : f32 to vector<48x1xf32>
    %4 = arith.divf %2, %3 : vector<48x1xf32>
    %5 = vector.broadcast %4 : vector<48x1xf32> to vector<48x128xf32>
    %6 = arith.subf %0, %5 : vector<48x128xf32>
    %7 = arith.mulf %6, %6 : vector<48x128xf32>
    %cst_2 = arith.constant dense<0.000000e+00> : vector<48xf32>
    %8 = vector.multi_reduction <add>, %7, %cst_2 [1] : vector<48x128xf32> to vector<48xf32>
    %9 = vector.shape_cast %8 : vector<48xf32> to vector<48x1xf32>
    %cst_3 = arith.constant 1.280000e+02 : f32
    %10 = vector.broadcast %cst_3 : f32 to vector<48x1xf32>
    %11 = arith.divf %9, %10 : vector<48x1xf32>
    %cst_4 = arith.constant 9.99999974E-6 : f32
    %12 = vector.broadcast %cst_4 : f32 to vector<48x1xf32>
    %13 = arith.addf %11, %12 : vector<48x1xf32>
    %14 = math.rsqrt %13 : vector<48x1xf32>
    %15 = vector.broadcast %14 : vector<48x1xf32> to vector<48x128xf32>
    %16 = arith.mulf %6, %15 : vector<48x128xf32>
    %c0_5 = arith.constant 0 : index
    %c0_6 = arith.constant 0 : index
    %17 = vector.load %arg3[%c0_5, %c0_6] : memref<1x128xf32, #tpu.memory_space<vmem>>, vector<1x128xf32>
    %18 = vector.broadcast %17 : vector<1x128xf32> to vector<48x128xf32>
    %19 = arith.mulf %16, %18 : vector<48x128xf32>
    %c0_7 = arith.constant 0 : index
    %c0_8 = arith.constant 0 : index
    %20 = vector.load %arg4[%c0_7, %c0_8] : memref<1x128xf32, #tpu.memory_space<vmem>>, vector<1x128xf32>
    %21 = vector.broadcast %20 : vector<1x128xf32> to vector<48x128xf32>
    %22 = arith.addf %19, %21 : vector<48x128xf32>
    %c0_9 = arith.constant 0 : index
    %c0_10 = arith.constant 0 : index
    %23 = vector.load %arg5[%c0_9, %c0_10] : memref<128x256xf32, #tpu.memory_space<vmem>>, vector<128x256xf32>
    %cst_11 = arith.constant dense<0.000000e+00> : vector<48x256xf32>
    %24 = tpu.matmul %22, %23, %cst_11 {dimension_numbers = #tpu.dot_dimension_numbers<[1], [0], [0], [1], [0, 0, 1, 1], [], []>} : vector<48x128xf32>, vector<128x256xf32>, vector<48x256xf32> -> vector<48x256xf32>
    %c0_12 = arith.constant 0 : index
    %c0_13 = arith.constant 0 : index
    %25 = vector.load %arg6[%c0_12, %c0_13] : memref<1x256xf32, #tpu.memory_space<vmem>>, vector<1x256xf32>
    %26 = vector.broadcast %25 : vector<1x256xf32> to vector<48x256xf32>
    %27 = arith.addf %24, %26 : vector<48x256xf32>
    %cst_14 = arith.constant 5.000000e-01 : f32
    %28 = vector.broadcast %cst_14 : f32 to vector<48x256xf32>
    %29 = arith.mulf %28, %27 : vector<48x256xf32>
    %cst_15 = arith.constant 0.707106769 : f32
    %30 = vector.broadcast %cst_15 : f32 to vector<48x256xf32>
    %31 = arith.mulf %27, %30 : vector<48x256xf32>
    %32 = math.erf %31 : vector<48x256xf32>
    %cst_16 = arith.constant 1.000000e+00 : f32
    %33 = vector.broadcast %cst_16 : f32 to vector<48x256xf32>
    %34 = arith.addf %33, %32 : vector<48x256xf32>
    %35 = arith.mulf %29, %34 : vector<48x256xf32>
    %c0_17 = arith.constant 0 : index
    %c0_18 = arith.constant 0 : index
    %36 = vector.load %arg7[%c0_17, %c0_18] : memref<48x256xf32, #tpu.memory_space<vmem>>, vector<48x256xf32>
    tpu.vector_store %arg7[%c0_17, %c0_18], %35 {strides = array<i32>} : memref<48x256xf32, #tpu.memory_space<vmem>>, vector<48x256xf32>,
    return
  }
  func.func @transform_0(%arg0: i32, %arg1: i32) -> (i32, i32) {
    %c0_i32 = arith.constant 0 : i32
    %c0_i32_0 = arith.constant 0 : i32
    return %arg0, %c0_i32 : i32, i32
  }
  func.func @transform_1(%arg0: i32, %arg1: i32) -> (i32, i32) {
    %c0_i32 = arith.constant 0 : i32
    %c0_i32_0 = arith.constant 0 : i32
    %c0_i32_1 = arith.constant 0 : i32
    return %c0_i32, %c0_i32_0 : i32, i32
  }
  func.func @transform_2(%arg0: i32, %arg1: i32) -> (i32, i32) {
    %c0_i32 = arith.constant 0 : i32
    %c0_i32_0 = arith.constant 0 : i32
    %c0_i32_1 = arith.constant 0 : i32
    return %c0_i32, %c0_i32_0 : i32, i32
  }
  func.func @transform_3(%arg0: i32, %arg1: i32) -> (i32, i32) {
    %c0_i32 = arith.constant 0 : i32
    %c0_i32_0 = arith.constant 0 : i32
    return %c0_i32, %arg1 : i32, i32
  }
  func.func @transform_4(%arg0: i32, %arg1: i32) -> (i32, i32) {
    %c0_i32 = arith.constant 0 : i32
    %c0_i32_0 = arith.constant 0 : i32
    return %c0_i32, %arg1 : i32, i32
  }
  func.func @transform_5(%arg0: i32, %arg1: i32) -> (i32, i32) {
    %c0_i32 = arith.constant 0 : i32
    return %arg0, %arg1 : i32, i32
  }
}

module attributes {stable_mosaic.version = 11 : i64} {
  func.func @_ln_kernel(%arg0: i32, %arg1: memref<48x128xf32, #tpu.memory_space<vmem>>, %arg2: memref<1x128xf32, #tpu.memory_space<vmem>>, %arg3: memref<1x128xf32, #tpu.memory_space<vmem>>, %arg4: memref<48x128xf32, #tpu.memory_space<vmem>>) attributes {dimension_semantics = [#tpu.dimension_semantics<parallel>], iteration_bounds = array<i64: 1>, scalar_prefetch = 0 : i64, scratch_operands = 0 : i64, tpu.core_type = #tpu.core_type<tc>, window_params = [{transform_indices = @transform_0, window_bounds = array<i64: 48, 128>}, {pipeline_mode = #tpu.pipeline_mode<synchronous>, transform_indices = @transform_1, window_bounds = array<i64: 1, 128>}, {pipeline_mode = #tpu.pipeline_mode<synchronous>, transform_indices = @transform_2, window_bounds = array<i64: 1, 128>}, {transform_indices = @transform_3, window_bounds = array<i64: 48, 128>}]} {
    %c0 = arith.constant 0 : index
    %c0_0 = arith.constant 0 : index
    %0 = vector.load %arg1[%c0, %c0_0] : memref<48x128xf32, #tpu.memory_space<vmem>>, vector<48x128xf32>
    %cst = arith.constant dense<0.000000e+00> : vector<48xf32>
    %1 = vector.multi_reduction <add>, %0, %cst [1] : vector<48x128xf32> to vector<48xf32>
    %2 = vector.shape_cast %1 : vector<48xf32> to vector<48x1xf32>
    %cst_1 = arith.constant 1.280000e+02 : f32
    %3 = vector.broadcast %cst_1 : f32 to vector<48x1xf32>
    %4 = arith.divf %2, %3 : vector<48x1xf32>
    %5 = vector.broadcast %4 : vector<48x1xf32> to vector<48x128xf32>
    %6 = arith.subf %0, %5 : vector<48x128xf32>
    %7 = arith.mulf %6, %6 : vector<48x128xf32>
    %cst_2 = arith.constant dense<0.000000e+00> : vector<48xf32>
    %8 = vector.multi_reduction <add>, %7, %cst_2 [1] : vector<48x128xf32> to vector<48xf32>
    %9 = vector.shape_cast %8 : vector<48xf32> to vector<48x1xf32>
    %cst_3 = arith.constant 1.280000e+02 : f32
    %10 = vector.broadcast %cst_3 : f32 to vector<48x1xf32>
    %11 = arith.divf %9, %10 : vector<48x1xf32>
    %cst_4 = arith.constant 9.99999974E-6 : f32
    %12 = vector.broadcast %cst_4 : f32 to vector<48x1xf32>
    %13 = arith.addf %11, %12 : vector<48x1xf32>
    %14 = math.rsqrt %13 : vector<48x1xf32>
    %15 = vector.broadcast %14 : vector<48x1xf32> to vector<48x128xf32>
    %16 = arith.mulf %6, %15 : vector<48x128xf32>
    %c0_5 = arith.constant 0 : index
    %c0_6 = arith.constant 0 : index
    %17 = vector.load %arg2[%c0_5, %c0_6] : memref<1x128xf32, #tpu.memory_space<vmem>>, vector<1x128xf32>
    %18 = vector.broadcast %17 : vector<1x128xf32> to vector<48x128xf32>
    %19 = arith.mulf %16, %18 : vector<48x128xf32>
    %c0_7 = arith.constant 0 : index
    %c0_8 = arith.constant 0 : index
    %20 = vector.load %arg3[%c0_7, %c0_8] : memref<1x128xf32, #tpu.memory_space<vmem>>, vector<1x128xf32>
    %21 = vector.broadcast %20 : vector<1x128xf32> to vector<48x128xf32>
    %22 = arith.addf %19, %21 : vector<48x128xf32>
    %c0_9 = arith.constant 0 : index
    %c0_10 = arith.constant 0 : index
    %23 = vector.load %arg4[%c0_9, %c0_10] : memref<48x128xf32, #tpu.memory_space<vmem>>, vector<48x128xf32>
    tpu.vector_store %arg4[%c0_9, %c0_10], %22 {strides = array<i32>} : memref<48x128xf32, #tpu.memory_space<vmem>>, vector<48x128xf32>,
    return
  }
  func.func @transform_0(%arg0: i32) -> (i32, i32) {
    %c0_i32 = arith.constant 0 : i32
    %c0_i32_0 = arith.constant 0 : i32
    return %arg0, %c0_i32 : i32, i32
  }
  func.func @transform_1(%arg0: i32) -> (i32, i32) {
    %c0_i32 = arith.constant 0 : i32
    %c0_i32_0 = arith.constant 0 : i32
    %c0_i32_1 = arith.constant 0 : i32
    return %c0_i32, %c0_i32_0 : i32, i32
  }
  func.func @transform_2(%arg0: i32) -> (i32, i32) {
    %c0_i32 = arith.constant 0 : i32
    %c0_i32_0 = arith.constant 0 : i32
    %c0_i32_1 = arith.constant 0 : i32
    return %c0_i32, %c0_i32_0 : i32, i32
  }
  func.func @transform_3(%arg0: i32) -> (i32, i32) {
    %c0_i32 = arith.constant 0 : i32
    %c0_i32_0 = arith.constant 0 : i32
    return %arg0, %c0_i32 : i32, i32
  }
}

module attributes {stable_mosaic.version = 11 : i64} {
  func.func @_ln_mm_kernel(%arg0: i32, %arg1: i32, %arg2: memref<48x128xf32, #tpu.memory_space<vmem>>, %arg3: memref<1x128xf32, #tpu.memory_space<vmem>>, %arg4: memref<1x128xf32, #tpu.memory_space<vmem>>, %arg5: memref<128x384xf32, #tpu.memory_space<vmem>>, %arg6: memref<1x384xf32, #tpu.memory_space<vmem>>, %arg7: memref<48x384xf32, #tpu.memory_space<vmem>>) attributes {dimension_semantics = [#tpu.dimension_semantics<parallel>, #tpu.dimension_semantics<parallel>], iteration_bounds = array<i64: 1, 1>, scalar_prefetch = 0 : i64, scratch_operands = 0 : i64, tpu.core_type = #tpu.core_type<tc>, window_params = [{transform_indices = @transform_0, window_bounds = array<i64: 48, 128>}, {pipeline_mode = #tpu.pipeline_mode<synchronous>, transform_indices = @transform_1, window_bounds = array<i64: 1, 128>}, {pipeline_mode = #tpu.pipeline_mode<synchronous>, transform_indices = @transform_2, window_bounds = array<i64: 1, 128>}, {transform_indices = @transform_3, window_bounds = array<i64: 128, 384>}, {transform_indices = @transform_4, window_bounds = array<i64: 1, 384>}, {transform_indices = @transform_5, window_bounds = array<i64: 48, 384>}]} {
    %c0 = arith.constant 0 : index
    %c0_0 = arith.constant 0 : index
    %0 = vector.load %arg2[%c0, %c0_0] : memref<48x128xf32, #tpu.memory_space<vmem>>, vector<48x128xf32>
    %cst = arith.constant dense<0.000000e+00> : vector<48xf32>
    %1 = vector.multi_reduction <add>, %0, %cst [1] : vector<48x128xf32> to vector<48xf32>
    %2 = vector.shape_cast %1 : vector<48xf32> to vector<48x1xf32>
    %cst_1 = arith.constant 1.280000e+02 : f32
    %3 = vector.broadcast %cst_1 : f32 to vector<48x1xf32>
    %4 = arith.divf %2, %3 : vector<48x1xf32>
    %5 = vector.broadcast %4 : vector<48x1xf32> to vector<48x128xf32>
    %6 = arith.subf %0, %5 : vector<48x128xf32>
    %7 = arith.mulf %6, %6 : vector<48x128xf32>
    %cst_2 = arith.constant dense<0.000000e+00> : vector<48xf32>
    %8 = vector.multi_reduction <add>, %7, %cst_2 [1] : vector<48x128xf32> to vector<48xf32>
    %9 = vector.shape_cast %8 : vector<48xf32> to vector<48x1xf32>
    %cst_3 = arith.constant 1.280000e+02 : f32
    %10 = vector.broadcast %cst_3 : f32 to vector<48x1xf32>
    %11 = arith.divf %9, %10 : vector<48x1xf32>
    %cst_4 = arith.constant 9.99999974E-6 : f32
    %12 = vector.broadcast %cst_4 : f32 to vector<48x1xf32>
    %13 = arith.addf %11, %12 : vector<48x1xf32>
    %14 = math.rsqrt %13 : vector<48x1xf32>
    %15 = vector.broadcast %14 : vector<48x1xf32> to vector<48x128xf32>
    %16 = arith.mulf %6, %15 : vector<48x128xf32>
    %c0_5 = arith.constant 0 : index
    %c0_6 = arith.constant 0 : index
    %17 = vector.load %arg3[%c0_5, %c0_6] : memref<1x128xf32, #tpu.memory_space<vmem>>, vector<1x128xf32>
    %18 = vector.broadcast %17 : vector<1x128xf32> to vector<48x128xf32>
    %19 = arith.mulf %16, %18 : vector<48x128xf32>
    %c0_7 = arith.constant 0 : index
    %c0_8 = arith.constant 0 : index
    %20 = vector.load %arg4[%c0_7, %c0_8] : memref<1x128xf32, #tpu.memory_space<vmem>>, vector<1x128xf32>
    %21 = vector.broadcast %20 : vector<1x128xf32> to vector<48x128xf32>
    %22 = arith.addf %19, %21 : vector<48x128xf32>
    %c0_9 = arith.constant 0 : index
    %c0_10 = arith.constant 0 : index
    %23 = vector.load %arg5[%c0_9, %c0_10] : memref<128x384xf32, #tpu.memory_space<vmem>>, vector<128x384xf32>
    %cst_11 = arith.constant dense<0.000000e+00> : vector<48x384xf32>
    %24 = tpu.matmul %22, %23, %cst_11 {dimension_numbers = #tpu.dot_dimension_numbers<[1], [0], [0], [1], [0, 0, 1, 1], [], []>} : vector<48x128xf32>, vector<128x384xf32>, vector<48x384xf32> -> vector<48x384xf32>
    %c0_12 = arith.constant 0 : index
    %c0_13 = arith.constant 0 : index
    %25 = vector.load %arg6[%c0_12, %c0_13] : memref<1x384xf32, #tpu.memory_space<vmem>>, vector<1x384xf32>
    %26 = vector.broadcast %25 : vector<1x384xf32> to vector<48x384xf32>
    %27 = arith.addf %24, %26 : vector<48x384xf32>
    %c0_14 = arith.constant 0 : index
    %c0_15 = arith.constant 0 : index
    %28 = vector.load %arg7[%c0_14, %c0_15] : memref<48x384xf32, #tpu.memory_space<vmem>>, vector<48x384xf32>
    tpu.vector_store %arg7[%c0_14, %c0_15], %27 {strides = array<i32>} : memref<48x384xf32, #tpu.memory_space<vmem>>, vector<48x384xf32>,
    return
  }
  func.func @transform_0(%arg0: i32, %arg1: i32) -> (i32, i32) {
    %c0_i32 = arith.constant 0 : i32
    %c0_i32_0 = arith.constant 0 : i32
    return %arg0, %c0_i32 : i32, i32
  }
  func.func @transform_1(%arg0: i32, %arg1: i32) -> (i32, i32) {
    %c0_i32 = arith.constant 0 : i32
    %c0_i32_0 = arith.constant 0 : i32
    %c0_i32_1 = arith.constant 0 : i32
    return %c0_i32, %c0_i32_0 : i32, i32
  }
  func.func @transform_2(%arg0: i32, %arg1: i32) -> (i32, i32) {
    %c0_i32 = arith.constant 0 : i32
    %c0_i32_0 = arith.constant 0 : i32
    %c0_i32_1 = arith.constant 0 : i32
    return %c0_i32, %c0_i32_0 : i32, i32
  }
  func.func @transform_3(%arg0: i32, %arg1: i32) -> (i32, i32) {
    %c0_i32 = arith.constant 0 : i32
    %c0_i32_0 = arith.constant 0 : i32
    return %c0_i32, %arg1 : i32, i32
  }
  func.func @transform_4(%arg0: i32, %arg1: i32) -> (i32, i32) {
    %c0_i32 = arith.constant 0 : i32
    %c0_i32_0 = arith.constant 0 : i32
    return %c0_i32, %arg1 : i32, i32
  }
  func.func @transform_5(%arg0: i32, %arg1: i32) -> (i32, i32) {
    %c0_i32 = arith.constant 0 : i32
    return %arg0, %arg1 : i32, i32
  }
}

module attributes {stable_mosaic.version = 11 : i64} {
  func.func @_mm_kernel(%arg0: i32, %arg1: i32, %arg2: i32, %arg3: memref<48x256xf32, #tpu.memory_space<vmem>>, %arg4: memref<256x128xf32, #tpu.memory_space<vmem>>, %arg5: memref<1x128xf32, #tpu.memory_space<vmem>>, %arg6: memref<48x128xf32, #tpu.memory_space<vmem>>, %arg7: memref<48x128xf32, #tpu.memory_space<vmem>>, %arg8: memref<48x128xf32, #tpu.memory_space<vmem>>) attributes {dimension_semantics = [#tpu.dimension_semantics<parallel>, #tpu.dimension_semantics<parallel>, #tpu.dimension_semantics<arbitrary>], iteration_bounds = array<i64: 1, 1, 1>, scalar_prefetch = 0 : i64, scratch_operands = 1 : i64, tpu.core_type = #tpu.core_type<tc>, window_params = [{transform_indices = @transform_0, window_bounds = array<i64: 48, 256>}, {transform_indices = @transform_1, window_bounds = array<i64: 256, 128>}, {transform_indices = @transform_2, window_bounds = array<i64: 1, 128>}, {transform_indices = @transform_3, window_bounds = array<i64: 48, 128>}, {transform_indices = @transform_4, window_bounds = array<i64: 48, 128>}]} {
    %c0_i32 = arith.constant 0 : i32
    %0 = arith.cmpi eq, %arg2, %c0_i32 : i32
    %1 = arith.extui %0 : i1 to i32
    %c0_i32_0 = arith.constant 0 : i32
    %2 = arith.cmpi ne, %1, %c0_i32_0 : i32
    scf.if %2 {
      %cst_10 = arith.constant 0.000000e+00 : f32
      %12 = vector.broadcast %cst_10 : f32 to vector<48x128xf32>
      %c0_11 = arith.constant 0 : index
      %c0_12 = arith.constant 0 : index
      %13 = vector.load %arg8[%c0_11, %c0_12] : memref<48x128xf32, #tpu.memory_space<vmem>>, vector<48x128xf32>
      tpu.vector_store %arg8[%c0_11, %c0_12], %12 {strides = array<i32>} : memref<48x128xf32, #tpu.memory_space<vmem>>, vector<48x128xf32>,
    } else {
    }
    %c0 = arith.constant 0 : index
    %c0_1 = arith.constant 0 : index
    %3 = vector.load %arg8[%c0, %c0_1] : memref<48x128xf32, #tpu.memory_space<vmem>>, vector<48x128xf32>
    %c0_2 = arith.constant 0 : index
    %c0_3 = arith.constant 0 : index
    %4 = vector.load %arg3[%c0_2, %c0_3] : memref<48x256xf32, #tpu.memory_space<vmem>>, vector<48x256xf32>
    %c0_4 = arith.constant 0 : index
    %c0_5 = arith.constant 0 : index
    %5 = vector.load %arg4[%c0_4, %c0_5] : memref<256x128xf32, #tpu.memory_space<vmem>>, vector<256x128xf32>
    %cst = arith.constant dense<0.000000e+00> : vector<48x128xf32>
    %6 = tpu.matmul %4, %5, %cst {dimension_numbers = #tpu.dot_dimension_numbers<[1], [0], [0], [1], [0, 0, 1, 1], [], []>} : vector<48x256xf32>, vector<256x128xf32>, vector<48x128xf32> -> vector<48x128xf32>
    %7 = arith.addf %3, %6 : vector<48x128xf32>
    %c0_6 = arith.constant 0 : index
    %c0_7 = arith.constant 0 : index
    %8 = vector.load %arg8[%c0_6, %c0_7] : memref<48x128xf32, #tpu.memory_space<vmem>>, vector<48x128xf32>
    tpu.vector_store %arg8[%c0_6, %c0_7], %7 {strides = array<i32>} : memref<48x128xf32, #tpu.memory_space<vmem>>, vector<48x128xf32>,
    %c0_i32_8 = arith.constant 0 : i32
    %9 = arith.cmpi eq, %arg2, %c0_i32_8 : i32
    %10 = arith.extui %9 : i1 to i32
    %c0_i32_9 = arith.constant 0 : i32
    %11 = arith.cmpi ne, %10, %c0_i32_9 : i32
    scf.if %11 {
      %c0_10 = arith.constant 0 : index
      %c0_11 = arith.constant 0 : index
      %12 = vector.load %arg8[%c0_10, %c0_11] : memref<48x128xf32, #tpu.memory_space<vmem>>, vector<48x128xf32>
      %c0_12 = arith.constant 0 : index
      %c0_13 = arith.constant 0 : index
      %13 = vector.load %arg5[%c0_12, %c0_13] : memref<1x128xf32, #tpu.memory_space<vmem>>, vector<1x128xf32>
      %14 = vector.broadcast %13 : vector<1x128xf32> to vector<48x128xf32>
      %15 = arith.addf %12, %14 : vector<48x128xf32>
      %c0_14 = arith.constant 0 : index
      %c0_15 = arith.constant 0 : index
      %16 = vector.load %arg6[%c0_14, %c0_15] : memref<48x128xf32, #tpu.memory_space<vmem>>, vector<48x128xf32>
      %17 = arith.addf %15, %16 : vector<48x128xf32>
      %c0_16 = arith.constant 0 : index
      %c0_17 = arith.constant 0 : index
      %18 = vector.load %arg7[%c0_16, %c0_17] : memref<48x128xf32, #tpu.memory_space<vmem>>, vector<48x128xf32>
      tpu.vector_store %arg7[%c0_16, %c0_17], %17 {strides = array<i32>} : memref<48x128xf32, #tpu.memory_space<vmem>>, vector<48x128xf32>,
    } else {
    }
    return
  }
  func.func @transform_0(%arg0: i32, %arg1: i32, %arg2: i32) -> (i32, i32) {
    %c0_i32 = arith.constant 0 : i32
    return %arg0, %arg2 : i32, i32
  }
  func.func @transform_1(%arg0: i32, %arg1: i32, %arg2: i32) -> (i32, i32) {
    %c0_i32 = arith.constant 0 : i32
    return %arg2, %arg1 : i32, i32
  }
  func.func @transform_2(%arg0: i32, %arg1: i32, %arg2: i32) -> (i32, i32) {
    %c0_i32 = arith.constant 0 : i32
    %c0_i32_0 = arith.constant 0 : i32
    return %c0_i32, %arg1 : i32, i32
  }
  func.func @transform_3(%arg0: i32, %arg1: i32, %arg2: i32) -> (i32, i32) {
    %c0_i32 = arith.constant 0 : i32
    return %arg0, %arg1 : i32, i32
  }
  func.func @transform_4(%arg0: i32, %arg1: i32, %arg2: i32) -> (i32, i32) {
    %c0_i32 = arith.constant 0 : i32
    return %arg0, %arg1 : i32, i32
  }
}

module attributes {stable_mosaic.version = 11 : i64} {
  func.func @_attn_kernel(%arg0: i32, %arg1: memref<1x24x384xf32, #tpu.memory_space<vmem>>, %arg2: memref<1x24x128xf32, #tpu.memory_space<vmem>>) attributes {dimension_semantics = [#tpu.dimension_semantics<parallel>], iteration_bounds = array<i64: 2>, scalar_prefetch = 0 : i64, scratch_operands = 0 : i64, tpu.core_type = #tpu.core_type<tc>, window_params = [{transform_indices = @transform_0, window_bounds = array<i64: 1, 24, 384>}, {transform_indices = @transform_1, window_bounds = array<i64: 1, 24, 128>}]} {
    %c0 = arith.constant 0 : index
    %c0_0 = arith.constant 0 : index
    %c0_1 = arith.constant 0 : index
    %0 = vector.load %arg1[%c0, %c0_0, %c0_1] : memref<1x24x384xf32, #tpu.memory_space<vmem>>, vector<1x24x64xf32>
    %1 = vector.shape_cast %0 : vector<1x24x64xf32> to vector<24x64xf32>
    %c0_2 = arith.constant 0 : index
    %c0_3 = arith.constant 0 : index
    %c128 = arith.constant 128 : index
    %2 = vector.load %arg1[%c0_2, %c0_3, %c128] : memref<1x24x384xf32, #tpu.memory_space<vmem>>, vector<1x24x64xf32>
    %3 = vector.shape_cast %2 : vector<1x24x64xf32> to vector<24x64xf32>
    %c0_4 = arith.constant 0 : index
    %c0_5 = arith.constant 0 : index
    %c256 = arith.constant 256 : index
    %4 = vector.load %arg1[%c0_4, %c0_5, %c256] : memref<1x24x384xf32, #tpu.memory_space<vmem>>, vector<1x24x64xf32>
    %5 = vector.shape_cast %4 : vector<1x24x64xf32> to vector<24x64xf32>
    %cst = arith.constant dense<0.000000e+00> : vector<24x24xf32>
    %6 = tpu.matmul %1, %3, %cst {dimension_numbers = #tpu.dot_dimension_numbers<[1], [1], [0], [0], [0, 0, 1, 0], [], []>} : vector<24x64xf32>, vector<24x64xf32>, vector<24x24xf32> -> vector<24x24xf32>
    %cst_6 = arith.constant 1.250000e-01 : f32
    %7 = vector.broadcast %cst_6 : f32 to vector<24x24xf32>
    %8 = arith.mulf %6, %7 : vector<24x24xf32>
    %9 = tpu.iota {dimensions = array<i32: 1>} : vector<24x24xi32>
    %c17_i32 = arith.constant 17 : i32
    %10 = vector.broadcast %c17_i32 : i32 to vector<24x24xi32>
    %11 = arith.cmpi slt, %9, %10 : vector<24x24xi32>
    %cst_7 = arith.constant -1.000000e+30 : f32
    %12 = vector.broadcast %cst_7 : f32 to vector<24x24xf32>
    %13 = arith.select %11, %8, %12 : vector<24x24xi1>, vector<24x24xf32>
    %cst_8 = arith.constant dense<0xFF800000> : vector<24xf32>
    %14 = vector.multi_reduction <maximumf>, %13, %cst_8 [1] : vector<24x24xf32> to vector<24xf32>
    %15 = vector.shape_cast %14 : vector<24xf32> to vector<24x1xf32>
    %16 = vector.broadcast %15 : vector<24x1xf32> to vector<24x24xf32>
    %17 = arith.subf %13, %16 : vector<24x24xf32>
    %18 = math.exp %17 : vector<24x24xf32>
    %cst_9 = arith.constant dense<0.000000e+00> : vector<24xf32>
    %19 = vector.multi_reduction <add>, %18, %cst_9 [1] : vector<24x24xf32> to vector<24xf32>
    %20 = vector.shape_cast %19 : vector<24xf32> to vector<24x1xf32>
    %21 = tpu.reciprocal %20 {approx = true} : vector<24x1xf32> -> vector<24x1xf32>
    %22 = vector.broadcast %21 : vector<24x1xf32> to vector<24x24xf32>
    %23 = arith.mulf %18, %22 : vector<24x24xf32>
    %cst_10 = arith.constant dense<0.000000e+00> : vector<24x64xf32>
    %24 = tpu.matmul %23, %5, %cst_10 {dimension_numbers = #tpu.dot_dimension_numbers<[1], [0], [0], [1], [0, 0, 1, 1], [], []>} : vector<24x24xf32>, vector<24x64xf32>, vector<24x64xf32> -> vector<24x64xf32>
    %c0_11 = arith.constant 0 : index
    %c0_12 = arith.constant 0 : index
    %c0_13 = arith.constant 0 : index
    %25 = vector.load %arg2[%c0_11, %c0_12, %c0_13] : memref<1x24x128xf32, #tpu.memory_space<vmem>>, vector<1x24x64xf32>
    %26 = vector.shape_cast %25 : vector<1x24x64xf32> to vector<24x64xf32>
    %27 = vector.shape_cast %24 : vector<24x64xf32> to vector<1x24x64xf32>
    tpu.vector_store %arg2[%c0_11, %c0_12, %c0_13], %27 {strides = array<i32>} : memref<1x24x128xf32, #tpu.memory_space<vmem>>, vector<1x24x64xf32>,
    %c0_14 = arith.constant 0 : index
    %c0_15 = arith.constant 0 : index
    %c64 = arith.constant 64 : index
    %28 = vector.load %arg1[%c0_14, %c0_15, %c64] : memref<1x24x384xf32, #tpu.memory_space<vmem>>, vector<1x24x64xf32>
    %29 = vector.shape_cast %28 : vector<1x24x64xf32> to vector<24x64xf32>
    %c0_16 = arith.constant 0 : index
    %c0_17 = arith.constant 0 : index
    %c192 = arith.constant 192 : index
    %30 = vector.load %arg1[%c0_16, %c0_17, %c192] : memref<1x24x384xf32, #tpu.memory_space<vmem>>, vector<1x24x64xf32>
    %31 = vector.shape_cast %30 : vector<1x24x64xf32> to vector<24x64xf32>
    %c0_18 = arith.constant 0 : index
    %c0_19 = arith.constant 0 : index
    %c320 = arith.constant 320 : index
    %32 = vector.load %arg1[%c0_18, %c0_19, %c320] : memref<1x24x384xf32, #tpu.memory_space<vmem>>, vector<1x24x64xf32>
    %33 = vector.shape_cast %32 : vector<1x24x64xf32> to vector<24x64xf32>
    %cst_20 = arith.constant dense<0.000000e+00> : vector<24x24xf32>
    %34 = tpu.matmul %29, %31, %cst_20 {dimension_numbers = #tpu.dot_dimension_numbers<[1], [1], [0], [0], [0, 0, 1, 0], [], []>} : vector<24x64xf32>, vector<24x64xf32>, vector<24x24xf32> -> vector<24x24xf32>
    %cst_21 = arith.constant 1.250000e-01 : f32
    %35 = vector.broadcast %cst_21 : f32 to vector<24x24xf32>
    %36 = arith.mulf %34, %35 : vector<24x24xf32>
    %37 = tpu.iota {dimensions = array<i32: 1>} : vector<24x24xi32>
    %c17_i32_22 = arith.constant 17 : i32
    %38 = vector.broadcast %c17_i32_22 : i32 to vector<24x24xi32>
    %39 = arith.cmpi slt, %37, %38 : vector<24x24xi32>
    %cst_23 = arith.constant -1.000000e+30 : f32
    %40 = vector.broadcast %cst_23 : f32 to vector<24x24xf32>
    %41 = arith.select %39, %36, %40 : vector<24x24xi1>, vector<24x24xf32>
    %cst_24 = arith.constant dense<0xFF800000> : vector<24xf32>
    %42 = vector.multi_reduction <maximumf>, %41, %cst_24 [1] : vector<24x24xf32> to vector<24xf32>
    %43 = vector.shape_cast %42 : vector<24xf32> to vector<24x1xf32>
    %44 = vector.broadcast %43 : vector<24x1xf32> to vector<24x24xf32>
    %45 = arith.subf %41, %44 : vector<24x24xf32>
    %46 = math.exp %45 : vector<24x24xf32>
    %cst_25 = arith.constant dense<0.000000e+00> : vector<24xf32>
    %47 = vector.multi_reduction <add>, %46, %cst_25 [1] : vector<24x24xf32> to vector<24xf32>
    %48 = vector.shape_cast %47 : vector<24xf32> to vector<24x1xf32>
    %49 = tpu.reciprocal %48 {approx = true} : vector<24x1xf32> -> vector<24x1xf32>
    %50 = vector.broadcast %49 : vector<24x1xf32> to vector<24x24xf32>
    %51 = arith.mulf %46, %50 : vector<24x24xf32>
    %cst_26 = arith.constant dense<0.000000e+00> : vector<24x64xf32>
    %52 = tpu.matmul %51, %33, %cst_26 {dimension_numbers = #tpu.dot_dimension_numbers<[1], [0], [0], [1], [0, 0, 1, 1], [], []>} : vector<24x24xf32>, vector<24x64xf32>, vector<24x64xf32> -> vector<24x64xf32>
    %c0_27 = arith.constant 0 : index
    %c0_28 = arith.constant 0 : index
    %c64_29 = arith.constant 64 : index
    %53 = vector.load %arg2[%c0_27, %c0_28, %c64_29] : memref<1x24x128xf32, #tpu.memory_space<vmem>>, vector<1x24x64xf32>
    %54 = vector.shape_cast %53 : vector<1x24x64xf32> to vector<24x64xf32>
    %55 = vector.shape_cast %52 : vector<24x64xf32> to vector<1x24x64xf32>
    tpu.vector_store %arg2[%c0_27, %c0_28, %c64_29], %55 {strides = array<i32>} : memref<1x24x128xf32, #tpu.memory_space<vmem>>, vector<1x24x64xf32>,
    return
  }
  func.func @transform_0(%arg0: i32) -> (i32, i32, i32) {
    %c0_i32 = arith.constant 0 : i32
    %c0_i32_0 = arith.constant 0 : i32
    %c0_i32_1 = arith.constant 0 : i32
    return %arg0, %c0_i32, %c0_i32_0 : i32, i32, i32
  }
  func.func @transform_1(%arg0: i32) -> (i32, i32, i32) {
    %c0_i32 = arith.constant 0 : i32
    %c0_i32_0 = arith.constant 0 : i32
    %c0_i32_1 = arith.constant 0 : i32
    return %arg0, %c0_i32, %c0_i32_0 : i32, i32, i32
  }
}

module attributes {stable_mosaic.version = 11 : i64} {
  func.func @_mm_kernel(%arg0: i32, %arg1: i32, %arg2: i32, %arg3: memref<48x128xf32, #tpu.memory_space<vmem>>, %arg4: memref<128x128xf32, #tpu.memory_space<vmem>>, %arg5: memref<1x128xf32, #tpu.memory_space<vmem>>, %arg6: memref<48x128xf32, #tpu.memory_space<vmem>>, %arg7: memref<48x128xf32, #tpu.memory_space<vmem>>, %arg8: memref<48x128xf32, #tpu.memory_space<vmem>>) attributes {dimension_semantics = [#tpu.dimension_semantics<parallel>, #tpu.dimension_semantics<parallel>, #tpu.dimension_semantics<arbitrary>], iteration_bounds = array<i64: 1, 1, 1>, scalar_prefetch = 0 : i64, scratch_operands = 1 : i64, tpu.core_type = #tpu.core_type<tc>, window_params = [{transform_indices = @transform_0, window_bounds = array<i64: 48, 128>}, {transform_indices = @transform_1, window_bounds = array<i64: 128, 128>}, {transform_indices = @transform_2, window_bounds = array<i64: 1, 128>}, {transform_indices = @transform_3, window_bounds = array<i64: 48, 128>}, {transform_indices = @transform_4, window_bounds = array<i64: 48, 128>}]} {
    %c0_i32 = arith.constant 0 : i32
    %0 = arith.cmpi eq, %arg2, %c0_i32 : i32
    %1 = arith.extui %0 : i1 to i32
    %c0_i32_0 = arith.constant 0 : i32
    %2 = arith.cmpi ne, %1, %c0_i32_0 : i32
    scf.if %2 {
      %cst_10 = arith.constant 0.000000e+00 : f32
      %12 = vector.broadcast %cst_10 : f32 to vector<48x128xf32>
      %c0_11 = arith.constant 0 : index
      %c0_12 = arith.constant 0 : index
      %13 = vector.load %arg8[%c0_11, %c0_12] : memref<48x128xf32, #tpu.memory_space<vmem>>, vector<48x128xf32>
      tpu.vector_store %arg8[%c0_11, %c0_12], %12 {strides = array<i32>} : memref<48x128xf32, #tpu.memory_space<vmem>>, vector<48x128xf32>,
    } else {
    }
    %c0 = arith.constant 0 : index
    %c0_1 = arith.constant 0 : index
    %3 = vector.load %arg8[%c0, %c0_1] : memref<48x128xf32, #tpu.memory_space<vmem>>, vector<48x128xf32>
    %c0_2 = arith.constant 0 : index
    %c0_3 = arith.constant 0 : index
    %4 = vector.load %arg3[%c0_2, %c0_3] : memref<48x128xf32, #tpu.memory_space<vmem>>, vector<48x128xf32>
    %c0_4 = arith.constant 0 : index
    %c0_5 = arith.constant 0 : index
    %5 = vector.load %arg4[%c0_4, %c0_5] : memref<128x128xf32, #tpu.memory_space<vmem>>, vector<128x128xf32>
    %cst = arith.constant dense<0.000000e+00> : vector<48x128xf32>
    %6 = tpu.matmul %4, %5, %cst {dimension_numbers = #tpu.dot_dimension_numbers<[1], [0], [0], [1], [0, 0, 1, 1], [], []>} : vector<48x128xf32>, vector<128x128xf32>, vector<48x128xf32> -> vector<48x128xf32>
    %7 = arith.addf %3, %6 : vector<48x128xf32>
    %c0_6 = arith.constant 0 : index
    %c0_7 = arith.constant 0 : index
    %8 = vector.load %arg8[%c0_6, %c0_7] : memref<48x128xf32, #tpu.memory_space<vmem>>, vector<48x128xf32>
    tpu.vector_store %arg8[%c0_6, %c0_7], %7 {strides = array<i32>} : memref<48x128xf32, #tpu.memory_space<vmem>>, vector<48x128xf32>,
    %c0_i32_8 = arith.constant 0 : i32
    %9 = arith.cmpi eq, %arg2, %c0_i32_8 : i32
    %10 = arith.extui %9 : i1 to i32
    %c0_i32_9 = arith.constant 0 : i32
    %11 = arith.cmpi ne, %10, %c0_i32_9 : i32
    scf.if %11 {
      %c0_10 = arith.constant 0 : index
      %c0_11 = arith.constant 0 : index
      %12 = vector.load %arg8[%c0_10, %c0_11] : memref<48x128xf32, #tpu.memory_space<vmem>>, vector<48x128xf32>
      %c0_12 = arith.constant 0 : index
      %c0_13 = arith.constant 0 : index
      %13 = vector.load %arg5[%c0_12, %c0_13] : memref<1x128xf32, #tpu.memory_space<vmem>>, vector<1x128xf32>
      %14 = vector.broadcast %13 : vector<1x128xf32> to vector<48x128xf32>
      %15 = arith.addf %12, %14 : vector<48x128xf32>
      %c0_14 = arith.constant 0 : index
      %c0_15 = arith.constant 0 : index
      %16 = vector.load %arg6[%c0_14, %c0_15] : memref<48x128xf32, #tpu.memory_space<vmem>>, vector<48x128xf32>
      %17 = arith.addf %15, %16 : vector<48x128xf32>
      %c0_16 = arith.constant 0 : index
      %c0_17 = arith.constant 0 : index
      %18 = vector.load %arg7[%c0_16, %c0_17] : memref<48x128xf32, #tpu.memory_space<vmem>>, vector<48x128xf32>
      tpu.vector_store %arg7[%c0_16, %c0_17], %17 {strides = array<i32>} : memref<48x128xf32, #tpu.memory_space<vmem>>, vector<48x128xf32>,
    } else {
    }
    return
  }
  func.func @transform_0(%arg0: i32, %arg1: i32, %arg2: i32) -> (i32, i32) {
    %c0_i32 = arith.constant 0 : i32
    return %arg0, %arg2 : i32, i32
  }
  func.func @transform_1(%arg0: i32, %arg1: i32, %arg2: i32) -> (i32, i32) {
    %c0_i32 = arith.constant 0 : i32
    return %arg2, %arg1 : i32, i32
  }
  func.func @transform_2(%arg0: i32, %arg1: i32, %arg2: i32) -> (i32, i32) {
    %c0_i32 = arith.constant 0 : i32
    %c0_i32_0 = arith.constant 0 : i32
    return %c0_i32, %arg1 : i32, i32
  }
  func.func @transform_3(%arg0: i32, %arg1: i32, %arg2: i32) -> (i32, i32) {
    %c0_i32 = arith.constant 0 : i32
    return %arg0, %arg1 : i32, i32
  }
  func.func @transform_4(%arg0: i32, %arg1: i32, %arg2: i32) -> (i32, i32) {
    %c0_i32 = arith.constant 0 : i32
    return %arg0, %arg1 : i32, i32
  }
}

module attributes {stable_mosaic.version = 11 : i64} {
  func.func @_ln_mm_kernel(%arg0: i32, %arg1: i32, %arg2: memref<48x128xf32, #tpu.memory_space<vmem>>, %arg3: memref<1x128xf32, #tpu.memory_space<vmem>>, %arg4: memref<1x128xf32, #tpu.memory_space<vmem>>, %arg5: memref<128x512xf32, #tpu.memory_space<vmem>>, %arg6: memref<1x512xf32, #tpu.memory_space<vmem>>, %arg7: memref<48x512xf32, #tpu.memory_space<vmem>>) attributes {dimension_semantics = [#tpu.dimension_semantics<parallel>, #tpu.dimension_semantics<parallel>], iteration_bounds = array<i64: 1, 1>, scalar_prefetch = 0 : i64, scratch_operands = 0 : i64, tpu.core_type = #tpu.core_type<tc>, window_params = [{transform_indices = @transform_0, window_bounds = array<i64: 48, 128>}, {pipeline_mode = #tpu.pipeline_mode<synchronous>, transform_indices = @transform_1, window_bounds = array<i64: 1, 128>}, {pipeline_mode = #tpu.pipeline_mode<synchronous>, transform_indices = @transform_2, window_bounds = array<i64: 1, 128>}, {transform_indices = @transform_3, window_bounds = array<i64: 128, 512>}, {transform_indices = @transform_4, window_bounds = array<i64: 1, 512>}, {transform_indices = @transform_5, window_bounds = array<i64: 48, 512>}]} {
    %c0 = arith.constant 0 : index
    %c0_0 = arith.constant 0 : index
    %0 = vector.load %arg2[%c0, %c0_0] : memref<48x128xf32, #tpu.memory_space<vmem>>, vector<48x128xf32>
    %cst = arith.constant dense<0.000000e+00> : vector<48xf32>
    %1 = vector.multi_reduction <add>, %0, %cst [1] : vector<48x128xf32> to vector<48xf32>
    %2 = vector.shape_cast %1 : vector<48xf32> to vector<48x1xf32>
    %cst_1 = arith.constant 1.280000e+02 : f32
    %3 = vector.broadcast %cst_1 : f32 to vector<48x1xf32>
    %4 = arith.divf %2, %3 : vector<48x1xf32>
    %5 = vector.broadcast %4 : vector<48x1xf32> to vector<48x128xf32>
    %6 = arith.subf %0, %5 : vector<48x128xf32>
    %7 = arith.mulf %6, %6 : vector<48x128xf32>
    %cst_2 = arith.constant dense<0.000000e+00> : vector<48xf32>
    %8 = vector.multi_reduction <add>, %7, %cst_2 [1] : vector<48x128xf32> to vector<48xf32>
    %9 = vector.shape_cast %8 : vector<48xf32> to vector<48x1xf32>
    %cst_3 = arith.constant 1.280000e+02 : f32
    %10 = vector.broadcast %cst_3 : f32 to vector<48x1xf32>
    %11 = arith.divf %9, %10 : vector<48x1xf32>
    %cst_4 = arith.constant 9.99999974E-6 : f32
    %12 = vector.broadcast %cst_4 : f32 to vector<48x1xf32>
    %13 = arith.addf %11, %12 : vector<48x1xf32>
    %14 = math.rsqrt %13 : vector<48x1xf32>
    %15 = vector.broadcast %14 : vector<48x1xf32> to vector<48x128xf32>
    %16 = arith.mulf %6, %15 : vector<48x128xf32>
    %c0_5 = arith.constant 0 : index
    %c0_6 = arith.constant 0 : index
    %17 = vector.load %arg3[%c0_5, %c0_6] : memref<1x128xf32, #tpu.memory_space<vmem>>, vector<1x128xf32>
    %18 = vector.broadcast %17 : vector<1x128xf32> to vector<48x128xf32>
    %19 = arith.mulf %16, %18 : vector<48x128xf32>
    %c0_7 = arith.constant 0 : index
    %c0_8 = arith.constant 0 : index
    %20 = vector.load %arg4[%c0_7, %c0_8] : memref<1x128xf32, #tpu.memory_space<vmem>>, vector<1x128xf32>
    %21 = vector.broadcast %20 : vector<1x128xf32> to vector<48x128xf32>
    %22 = arith.addf %19, %21 : vector<48x128xf32>
    %c0_9 = arith.constant 0 : index
    %c0_10 = arith.constant 0 : index
    %23 = vector.load %arg5[%c0_9, %c0_10] : memref<128x512xf32, #tpu.memory_space<vmem>>, vector<128x512xf32>
    %cst_11 = arith.constant dense<0.000000e+00> : vector<48x512xf32>
    %24 = tpu.matmul %22, %23, %cst_11 {dimension_numbers = #tpu.dot_dimension_numbers<[1], [0], [0], [1], [0, 0, 1, 1], [], []>} : vector<48x128xf32>, vector<128x512xf32>, vector<48x512xf32> -> vector<48x512xf32>
    %c0_12 = arith.constant 0 : index
    %c0_13 = arith.constant 0 : index
    %25 = vector.load %arg6[%c0_12, %c0_13] : memref<1x512xf32, #tpu.memory_space<vmem>>, vector<1x512xf32>
    %26 = vector.broadcast %25 : vector<1x512xf32> to vector<48x512xf32>
    %27 = arith.addf %24, %26 : vector<48x512xf32>
    %cst_14 = arith.constant 5.000000e-01 : f32
    %28 = vector.broadcast %cst_14 : f32 to vector<48x512xf32>
    %29 = arith.mulf %28, %27 : vector<48x512xf32>
    %cst_15 = arith.constant 0.707106769 : f32
    %30 = vector.broadcast %cst_15 : f32 to vector<48x512xf32>
    %31 = arith.mulf %27, %30 : vector<48x512xf32>
    %32 = math.erf %31 : vector<48x512xf32>
    %cst_16 = arith.constant 1.000000e+00 : f32
    %33 = vector.broadcast %cst_16 : f32 to vector<48x512xf32>
    %34 = arith.addf %33, %32 : vector<48x512xf32>
    %35 = arith.mulf %29, %34 : vector<48x512xf32>
    %c0_17 = arith.constant 0 : index
    %c0_18 = arith.constant 0 : index
    %36 = vector.load %arg7[%c0_17, %c0_18] : memref<48x512xf32, #tpu.memory_space<vmem>>, vector<48x512xf32>
    tpu.vector_store %arg7[%c0_17, %c0_18], %35 {strides = array<i32>} : memref<48x512xf32, #tpu.memory_space<vmem>>, vector<48x512xf32>,
    return
  }
  func.func @transform_0(%arg0: i32, %arg1: i32) -> (i32, i32) {
    %c0_i32 = arith.constant 0 : i32
    %c0_i32_0 = arith.constant 0 : i32
    return %arg0, %c0_i32 : i32, i32
  }
  func.func @transform_1(%arg0: i32, %arg1: i32) -> (i32, i32) {
    %c0_i32 = arith.constant 0 : i32
    %c0_i32_0 = arith.constant 0 : i32
    %c0_i32_1 = arith.constant 0 : i32
    return %c0_i32, %c0_i32_0 : i32, i32
  }
  func.func @transform_2(%arg0: i32, %arg1: i32) -> (i32, i32) {
    %c0_i32 = arith.constant 0 : i32
    %c0_i32_0 = arith.constant 0 : i32
    %c0_i32_1 = arith.constant 0 : i32
    return %c0_i32, %c0_i32_0 : i32, i32
  }
  func.func @transform_3(%arg0: i32, %arg1: i32) -> (i32, i32) {
    %c0_i32 = arith.constant 0 : i32
    %c0_i32_0 = arith.constant 0 : i32
    return %c0_i32, %arg1 : i32, i32
  }
  func.func @transform_4(%arg0: i32, %arg1: i32) -> (i32, i32) {
    %c0_i32 = arith.constant 0 : i32
    %c0_i32_0 = arith.constant 0 : i32
    return %c0_i32, %arg1 : i32, i32
  }
  func.func @transform_5(%arg0: i32, %arg1: i32) -> (i32, i32) {
    %c0_i32 = arith.constant 0 : i32
    return %arg0, %arg1 : i32, i32
  }
}

module attributes {stable_mosaic.version = 11 : i64} {
  func.func @_mm_kernel(%arg0: i32, %arg1: i32, %arg2: i32, %arg3: memref<48x512xf32, #tpu.memory_space<vmem>>, %arg4: memref<512x128xf32, #tpu.memory_space<vmem>>, %arg5: memref<1x128xf32, #tpu.memory_space<vmem>>, %arg6: memref<48x128xf32, #tpu.memory_space<vmem>>, %arg7: memref<48x128xf32, #tpu.memory_space<vmem>>, %arg8: memref<48x128xf32, #tpu.memory_space<vmem>>) attributes {dimension_semantics = [#tpu.dimension_semantics<parallel>, #tpu.dimension_semantics<parallel>, #tpu.dimension_semantics<arbitrary>], iteration_bounds = array<i64: 1, 1, 1>, scalar_prefetch = 0 : i64, scratch_operands = 1 : i64, tpu.core_type = #tpu.core_type<tc>, window_params = [{transform_indices = @transform_0, window_bounds = array<i64: 48, 512>}, {transform_indices = @transform_1, window_bounds = array<i64: 512, 128>}, {transform_indices = @transform_2, window_bounds = array<i64: 1, 128>}, {transform_indices = @transform_3, window_bounds = array<i64: 48, 128>}, {transform_indices = @transform_4, window_bounds = array<i64: 48, 128>}]} {
    %c0_i32 = arith.constant 0 : i32
    %0 = arith.cmpi eq, %arg2, %c0_i32 : i32
    %1 = arith.extui %0 : i1 to i32
    %c0_i32_0 = arith.constant 0 : i32
    %2 = arith.cmpi ne, %1, %c0_i32_0 : i32
    scf.if %2 {
      %cst_10 = arith.constant 0.000000e+00 : f32
      %12 = vector.broadcast %cst_10 : f32 to vector<48x128xf32>
      %c0_11 = arith.constant 0 : index
      %c0_12 = arith.constant 0 : index
      %13 = vector.load %arg8[%c0_11, %c0_12] : memref<48x128xf32, #tpu.memory_space<vmem>>, vector<48x128xf32>
      tpu.vector_store %arg8[%c0_11, %c0_12], %12 {strides = array<i32>} : memref<48x128xf32, #tpu.memory_space<vmem>>, vector<48x128xf32>,
    } else {
    }
    %c0 = arith.constant 0 : index
    %c0_1 = arith.constant 0 : index
    %3 = vector.load %arg8[%c0, %c0_1] : memref<48x128xf32, #tpu.memory_space<vmem>>, vector<48x128xf32>
    %c0_2 = arith.constant 0 : index
    %c0_3 = arith.constant 0 : index
    %4 = vector.load %arg3[%c0_2, %c0_3] : memref<48x512xf32, #tpu.memory_space<vmem>>, vector<48x512xf32>
    %c0_4 = arith.constant 0 : index
    %c0_5 = arith.constant 0 : index
    %5 = vector.load %arg4[%c0_4, %c0_5] : memref<512x128xf32, #tpu.memory_space<vmem>>, vector<512x128xf32>
    %cst = arith.constant dense<0.000000e+00> : vector<48x128xf32>
    %6 = tpu.matmul %4, %5, %cst {dimension_numbers = #tpu.dot_dimension_numbers<[1], [0], [0], [1], [0, 0, 1, 1], [], []>} : vector<48x512xf32>, vector<512x128xf32>, vector<48x128xf32> -> vector<48x128xf32>
    %7 = arith.addf %3, %6 : vector<48x128xf32>
    %c0_6 = arith.constant 0 : index
    %c0_7 = arith.constant 0 : index
    %8 = vector.load %arg8[%c0_6, %c0_7] : memref<48x128xf32, #tpu.memory_space<vmem>>, vector<48x128xf32>
    tpu.vector_store %arg8[%c0_6, %c0_7], %7 {strides = array<i32>} : memref<48x128xf32, #tpu.memory_space<vmem>>, vector<48x128xf32>,
    %c0_i32_8 = arith.constant 0 : i32
    %9 = arith.cmpi eq, %arg2, %c0_i32_8 : i32
    %10 = arith.extui %9 : i1 to i32
    %c0_i32_9 = arith.constant 0 : i32
    %11 = arith.cmpi ne, %10, %c0_i32_9 : i32
    scf.if %11 {
      %c0_10 = arith.constant 0 : index
      %c0_11 = arith.constant 0 : index
      %12 = vector.load %arg8[%c0_10, %c0_11] : memref<48x128xf32, #tpu.memory_space<vmem>>, vector<48x128xf32>
      %c0_12 = arith.constant 0 : index
      %c0_13 = arith.constant 0 : index
      %13 = vector.load %arg5[%c0_12, %c0_13] : memref<1x128xf32, #tpu.memory_space<vmem>>, vector<1x128xf32>
      %14 = vector.broadcast %13 : vector<1x128xf32> to vector<48x128xf32>
      %15 = arith.addf %12, %14 : vector<48x128xf32>
      %c0_14 = arith.constant 0 : index
      %c0_15 = arith.constant 0 : index
      %16 = vector.load %arg6[%c0_14, %c0_15] : memref<48x128xf32, #tpu.memory_space<vmem>>, vector<48x128xf32>
      %17 = arith.addf %15, %16 : vector<48x128xf32>
      %c0_16 = arith.constant 0 : index
      %c0_17 = arith.constant 0 : index
      %18 = vector.load %arg7[%c0_16, %c0_17] : memref<48x128xf32, #tpu.memory_space<vmem>>, vector<48x128xf32>
      tpu.vector_store %arg7[%c0_16, %c0_17], %17 {strides = array<i32>} : memref<48x128xf32, #tpu.memory_space<vmem>>, vector<48x128xf32>,
    } else {
    }
    return
  }
  func.func @transform_0(%arg0: i32, %arg1: i32, %arg2: i32) -> (i32, i32) {
    %c0_i32 = arith.constant 0 : i32
    return %arg0, %arg2 : i32, i32
  }
  func.func @transform_1(%arg0: i32, %arg1: i32, %arg2: i32) -> (i32, i32) {
    %c0_i32 = arith.constant 0 : i32
    return %arg2, %arg1 : i32, i32
  }
  func.func @transform_2(%arg0: i32, %arg1: i32, %arg2: i32) -> (i32, i32) {
    %c0_i32 = arith.constant 0 : i32
    %c0_i32_0 = arith.constant 0 : i32
    return %c0_i32, %arg1 : i32, i32
  }
  func.func @transform_3(%arg0: i32, %arg1: i32, %arg2: i32) -> (i32, i32) {
    %c0_i32 = arith.constant 0 : i32
    return %arg0, %arg1 : i32, i32
  }
  func.func @transform_4(%arg0: i32, %arg1: i32, %arg2: i32) -> (i32, i32) {
    %c0_i32 = arith.constant 0 : i32
    return %arg0, %arg1 : i32, i32
  }
}

module attributes {stable_mosaic.version = 11 : i64} {
  func.func @_upsample_kernel(%arg0: i32, %arg1: memref<256x16xf32, #tpu.memory_space<vmem>>, %arg2: memref<1x16x128xf32, #tpu.memory_space<vmem>>, %arg3: memref<1x256x128xf32, #tpu.memory_space<vmem>>) attributes {dimension_semantics = [#tpu.dimension_semantics<parallel>], iteration_bounds = array<i64: 2>, scalar_prefetch = 0 : i64, scratch_operands = 0 : i64, tpu.core_type = #tpu.core_type<tc>, window_params = [{pipeline_mode = #tpu.pipeline_mode<synchronous>, transform_indices = @transform_0, window_bounds = array<i64: 256, 16>}, {transform_indices = @transform_1, window_bounds = array<i64: 1, 16, 128>}, {transform_indices = @transform_2, window_bounds = array<i64: 1, 256, 128>}]} {
    %c0 = arith.constant 0 : index
    %c0_0 = arith.constant 0 : index
    %0 = vector.load %arg1[%c0, %c0_0] : memref<256x16xf32, #tpu.memory_space<vmem>>, vector<256x16xf32>
    %c0_1 = arith.constant 0 : index
    %c0_2 = arith.constant 0 : index
    %c0_3 = arith.constant 0 : index
    %1 = vector.load %arg2[%c0_1, %c0_2, %c0_3] : memref<1x16x128xf32, #tpu.memory_space<vmem>>, vector<1x16x128xf32>
    %2 = vector.shape_cast %1 : vector<1x16x128xf32> to vector<16x128xf32>
    %cst = arith.constant dense<0.000000e+00> : vector<256x128xf32>
    %3 = tpu.matmul %0, %2, %cst {dimension_numbers = #tpu.dot_dimension_numbers<[1], [0], [0], [1], [0, 0, 1, 1], [], []>} : vector<256x16xf32>, vector<16x128xf32>, vector<256x128xf32> -> vector<256x128xf32>
    %c0_4 = arith.constant 0 : index
    %c0_5 = arith.constant 0 : index
    %c0_6 = arith.constant 0 : index
    %4 = vector.load %arg3[%c0_4, %c0_5, %c0_6] : memref<1x256x128xf32, #tpu.memory_space<vmem>>, vector<1x256x128xf32>
    %5 = vector.shape_cast %4 : vector<1x256x128xf32> to vector<256x128xf32>
    %6 = vector.shape_cast %3 : vector<256x128xf32> to vector<1x256x128xf32>
    tpu.vector_store %arg3[%c0_4, %c0_5, %c0_6], %6 {strides = array<i32>} : memref<1x256x128xf32, #tpu.memory_space<vmem>>, vector<1x256x128xf32>,
    return
  }
  func.func @transform_0(%arg0: i32) -> (i32, i32) {
    %c0_i32 = arith.constant 0 : i32
    %c0_i32_0 = arith.constant 0 : i32
    %c0_i32_1 = arith.constant 0 : i32
    return %c0_i32, %c0_i32_0 : i32, i32
  }
  func.func @transform_1(%arg0: i32) -> (i32, i32, i32) {
    %c0_i32 = arith.constant 0 : i32
    %c0_i32_0 = arith.constant 0 : i32
    %c0_i32_1 = arith.constant 0 : i32
    return %arg0, %c0_i32, %c0_i32_0 : i32, i32, i32
  }
  func.func @transform_2(%arg0: i32) -> (i32, i32, i32) {
    %c0_i32 = arith.constant 0 : i32
    %c0_i32_0 = arith.constant 0 : i32
    %c0_i32_1 = arith.constant 0 : i32
    return %arg0, %c0_i32, %c0_i32_0 : i32, i32, i32
  }
}

</mosaic_0001>

<llo_original>
// kernel: vit_forward.24
$region0: #{vit_forward.24}
  #allocation0 [shape = 'u32[]', space=smem, size = 0x4, offset = 0x4, fixed_abs, tag = 'smem constant byte address 0x4 - core index']
  #allocation1 [shape = 'u32[144,128]{1,0:T(1,128)}', space=vmem, size = 0x12000, scoped, tag = 'internal scratch']
  %s0 = inlined_call_operand.vmem [shape: f32[32,48], index: 0, kind: input, shape index: {}]
  %s1 = inlined_call_operand.vmem [shape: f32[1,48], index: 1, kind: input, shape index: {}]
  %s2 = inlined_call_operand.vmem [shape: f32[1,48], index: 2, kind: input, shape index: {}]
  %s3 = inlined_call_operand.vmem [shape: f32[48,128], index: 3, kind: input, shape index: {}]
  %s4 = inlined_call_operand.vmem [shape: f32[1,128], index: 4, kind: input, shape index: {}]
  %s5 = inlined_call_operand.vmem [shape: f32[1,128], index: 5, kind: input, shape index: {}]
  %s6 = inlined_call_operand.vmem [shape: f32[1,128], index: 6, kind: input, shape index: {}]
  %s7 = inlined_call_operand.vmem [shape: f32[32,128], index: 7, kind: output, shape index: {}]
  %s8 = sld [smem:[#allocation0]]
  $region38: #{vit_forward.24} parent=0
    _
  %s10 = ssub.s32 1, %s8
  %s11 = scalar_select 0, %s10, %s8
  // Predicated region
  $region2: #{vit_forward.24} parent=0 // pred_check
    _
  $region3: #{vit_forward.24} parent=0 // pred_check_branch
    %13 = sbr.rel (0) target = $region5
  $region4: #{vit_forward.24} parent=0 // pred_region
    _
  $region5: #{vit_forward.24} parent=0 // pred_fallthru
    _
  // Predicated region
  $region6: #{vit_forward.24} parent=0 // pred_check
    _
  $region7: #{vit_forward.24} parent=0 // pred_check_branch
    %15 = sbr.rel (0) target = $region9
  $region8: #{vit_forward.24} parent=0 // pred_region
    _
  $region9: #{vit_forward.24} parent=0 // pred_fallthru
    _
  // Predicated region
  $region10: #{vit_forward.24} parent=0 // pred_check
    _
  $region11: #{vit_forward.24} parent=0 // pred_check_branch
    %17 = sbr.rel (0) target = $region13
  $region12: #{vit_forward.24} parent=0 // pred_region
    _
  $region13: #{vit_forward.24} parent=0 // pred_fallthru
    _
  // Predicated region
  $region14: #{vit_forward.24} parent=0 // pred_check
    _
  $region15: #{vit_forward.24} parent=0 // pred_check_branch
    %19 = sbr.rel (0) target = $region17
  $region16: #{vit_forward.24} parent=0 // pred_region
    _
  $region17: #{vit_forward.24} parent=0 // pred_fallthru
    _
  // Predicated region
  $region18: #{vit_forward.24} parent=0 // pred_check
    _
  $region19: #{vit_forward.24} parent=0 // pred_check_branch
    %21 = sbr.rel (0) target = $region21
  $region20: #{vit_forward.24} parent=0 // pred_region
    _
  $region21: #{vit_forward.24} parent=0 // pred_fallthru
    _
  // Predicated region
  $region22: #{vit_forward.24} parent=0 // pred_check
    _
  $region23: #{vit_forward.24} parent=0 // pred_check_branch
    %23 = sbr.rel (0) target = $region25
  $region24: #{vit_forward.24} parent=0 // pred_region
    _
  $region25: #{vit_forward.24} parent=0 // pred_fallthru
    _
  // Predicated region
  $region26: #{vit_forward.24} parent=0 // pred_check
    _
  $region27: #{vit_forward.24} parent=0 // pred_check_branch
    %25 = sbr.rel (0) target = $region29
  $region28: #{vit_forward.24} parent=0 // pred_region
    _
  $region29: #{vit_forward.24} parent=0 // pred_fallthru
    _
  %v26 = vld [vmem:[%s0] sm:$0xff]
  %v27 = vld [vmem:[%s0 + $0x8] sm:$0xff]
  %v28 = vld [vmem:[%s0 + $0x10] sm:$0xff]
  %v29 = vld [vmem:[%s0 + $0x18] sm:$0xff]
  %vm30 = vcmask 392192
  %v31 = vsel %vm30, %v26, 0.0
  %32 = vadd.xlane.f32.xlu0 %v31
  %v33 = vpop.xlane.xlu0 %32
  %v34 = vsel %vm30, %v27, 0.0
  %35 = vadd.xlane.f32.xlu0 %v34
  %v36 = vpop.xlane.xlu0 %35
  %v37 = vsel %vm30, %v28, 0.0
  %38 = vadd.xlane.f32.xlu0 %v37
  %v39 = vpop.xlane.xlu0 %38
  %v40 = vsel %vm30, %v29, 0.0
  %41 = vadd.xlane.f32.xlu0 %v40
  %v42 = vpop.xlane.xlu0 %41
  %v43 = vrcp.pop 48.0
  %v44 = vmul.f32 %v33, %v43
  %v45 = vmul.f32 %v36, %v43
  %v46 = vmul.f32 %v39, %v43
  %v47 = vmul.f32 %v42, %v43
  %v48 = vsub.f32 %v26, %v44
  %v49 = vsub.f32 %v27, %v45
  %v50 = vsub.f32 %v28, %v46
  %v51 = vsub.f32 %v29, %v47
  %v52 = vmul.f32 %v48, %v48
  %v53 = vmul.f32 %v49, %v49
  %v54 = vmul.f32 %v50, %v50
  %v55 = vmul.f32 %v51, %v51
  %v56 = vsel %vm30, %v52, 0.0
  %57 = vadd.xlane.f32.xlu0 %v56
  %v58 = vpop.xlane.xlu0 %57
  %v59 = vsel %vm30, %v53, 0.0
  %60 = vadd.xlane.f32.xlu0 %v59
  %v61 = vpop.xlane.xlu0 %60
  %v62 = vsel %vm30, %v54, 0.0
  %63 = vadd.xlane.f32.xlu0 %v62
  %v64 = vpop.xlane.xlu0 %63
  %v65 = vsel %vm30, %v55, 0.0
  %66 = vadd.xlane.f32.xlu0 %v65
  %v67 = vpop.xlane.xlu0 %66
  %v68 = vmul.f32 %v58, %v43
  %v69 = vmul.f32 %v61, %v43
  %v70 = vmul.f32 %v64, %v43
  %v71 = vmul.f32 %v67, %v43
  %v72 = vadd.f32 %v68, 1e-05
  %v73 = vadd.f32 %v69, 1e-05
  %v74 = vadd.f32 %v70, 1e-05
  %v75 = vadd.f32 %v71, 1e-05
  %v76 = vrsqrt.pop %v72
  %v77 = vrsqrt.pop %v73
  %v78 = vrsqrt.pop %v74
  %v79 = vrsqrt.pop %v75
  %v80 = vmul.f32 %v48, %v76
  %v81 = vmul.f32 %v49, %v77
  %v82 = vmul.f32 %v50, %v78
  %v83 = vmul.f32 %v51, %v79
  %v84 = vld [vmem:[%s1] sm:$0x1]
  %v86 = vlaneseq
  %v87 = vshrl.u32 %v86, 7
  %v88 = vsub.s32 0, %v87
  %v89 = vrot.slane %v84, %v88
  %v91 = vmul.f32 %v80, %v89
  %v92 = vmul.f32 %v81, %v89
  %v93 = vmul.f32 %v82, %v89
  %v94 = vmul.f32 %v83, %v89
  %v95 = vld [vmem:[%s2] sm:$0x1]
  %v97 = vlaneseq
  %v98 = vshrl.u32 %v97, 7
  %v99 = vsub.s32 0, %v98
  %v100 = vrot.slane %v95, %v99
  %v102 = vadd.f32 %v91, %v100
  %v103 = vadd.f32 %v92, %v100
  %v104 = vadd.f32 %v93, %v100
  %v105 = vadd.f32 %v94, %v100
  %v106 = vld [vmem:[%s3] sm:$0xff]
  %v107 = vld [vmem:[%s3 + $0x8] sm:$0xff]
  %v108 = vld [vmem:[%s3 + $0x10] sm:$0xff]
  %v109 = vld [vmem:[%s3 + $0x18] sm:$0xff]
  %v110 = vld [vmem:[%s3 + $0x20] sm:$0xff]
  %v111 = vld [vmem:[%s3 + $0x28] sm:$0xff]
  %v112 = vld [vmem:[%s4] sm:$0x1]
  %v114 = vlaneseq
  %v115 = vshrl.u32 %v114, 7
  %v116 = vsub.s32 0, %v115
  %v117 = vrot.slane %v112, %v116
  %v120 = vsel %vm30, %v102, 0
  %v123 = vsel %vm30, %v103, 0
  %v126 = vsel %vm30, %v104, 0
  %v129 = vsel %vm30, %v105, 0
  %131 = vmatprep.subr.mxu0 0.0
  %132 = vmatpush1.msra.mxu0 %v106
  %133 = vmatprep.subr.mxu0 0.0
  %134 = vmatpush1.msra.mxu0 %v107
  %135 = vmatprep.subr.mxu0 0.0
  %136 = vmatpush1.msra.mxu0 %v108
  %137 = vmatprep.subr.mxu0 0.0
  %138 = vmatpush1.msra.mxu0 %v109
  %139 = vmatprep.subr.mxu0 0.0
  %140 = vmatpush1.msra.mxu0 %v110
  %141 = vmatprep.subr.mxu0 0.0
  %142 = vmatpush1.msra.mxu0 %v111
  %143 = vmatprep.subr.mxu0 0.0
  %144 = vmatpush1.msra.mxu0 0.0
  %145 = vmatprep.subr.mxu0 0.0
  %146 = vmatpush1.msra.mxu0 0.0
  %147 = vmatprep.subr.mxu0 0.0
  %148 = vmatpush1.msra.mxu0 0.0
  %149 = vmatprep.subr.mxu0 0.0
  %150 = vmatpush1.msra.mxu0 0.0
  %151 = vmatprep.subr.mxu0 0.0
  %152 = vmatpush1.msra.mxu0 0.0
  %153 = vmatprep.subr.mxu0 0.0
  %154 = vmatpush1.msra.mxu0 0.0
  %155 = vmatprep.subr.mxu0 0.0
  %156 = vmatpush1.msra.mxu0 0.0
  %157 = vmatprep.subr.mxu0 0.0
  %158 = vmatpush1.msra.mxu0 0.0
  %159 = vmatprep.subr.mxu0 0.0
  %160 = vmatpush1.msra.mxu0 0.0
  %161 = vmatprep.subr.mxu0 0.0
  %162 = vmatpush1.msra.mxu0 0.0
  %163 = vmatprep.subr.mxu0 0.0
  %164 = vmatpush1.msra.mxu0 0.0
  %165 = vmatprep.subr.mxu0 0.0
  %166 = vmatpush1.msra.mxu0 0.0
  %167 = vmatprep.subr.mxu0 0.0
  %168 = vmatpush1.msra.mxu0 0.0
  %169 = vmatprep.subr.mxu0 0.0
  %170 = vmatpush1.msra.mxu0 0.0
  %171 = vmatprep.subr.mxu0 0.0
  %172 = vmatpush1.msra.mxu0 0.0
  %173 = vmatprep.subr.mxu0 0.0
  %174 = vmatpush1.msra.mxu0 0.0
  %175 = vmatprep.subr.mxu0 0.0
  %176 = vmatpush1.msra.mxu0 0.0
  %177 = vmatprep.subr.mxu0 0.0
  %178 = vmatpush1.msra.mxu0 0.0
  %179 = vmatprep.subr.mxu0 0.0
  %180 = vmatpush1.msra.mxu0 0.0
  %181 = vmatprep.subr.mxu0 0.0
  %182 = vmatpush1.msra.mxu0 0.0
  %183 = vmatprep.subr.mxu0 0.0
  %184 = vmatpush1.msra.mxu0 0.0
  %185 = vmatprep.subr.mxu0 0.0
  %186 = vmatpush1.msra.mxu0 0.0
  %187 = vmatprep.subr.mxu0 0.0
  %188 = vmatpush1.msra.mxu0 0.0
  %189 = vmatprep.subr.mxu0 0.0
  %190 = vmatpush1.msra.mxu0 0.0
  %191 = vmatprep.subr.mxu0 0.0
  %192 = vmatpush1.msra.mxu0 0.0
  %193 = vmatprep.subr.mxu0 0.0
  %194 = vmatpush1.msra.mxu0 0.0
  %195 = vmatprep.mubr.f32.mxu0 0.0
  %196 = vmatmul.mubr.f32.gmra.mrb[0].mxu0 %v120
  %v197 = vpop.f32.mrb[0].mxu0
  %v198 = vadd.f32 %v117, %v197
  %v199 = vpop.f32.mrb[0].mxu0
  %200 = vmatprep.mubr.f32.mxu0 0.0
  %201 = vmatmul.mubr.f32.gmra.mrb[0].mxu0 %v123
  %v202 = vpop.f32.mrb[0].mxu0
  %v203 = vadd.f32 %v117, %v202
  %v204 = vpop.f32.mrb[0].mxu0
  %205 = vmatprep.mubr.f32.mxu0 0.0
  %206 = vmatmul.mubr.f32.gmra.mrb[0].mxu0 %v126
  %v207 = vpop.f32.mrb[0].mxu0
  %v208 = vadd.f32 %v117, %v207
  %v209 = vpop.f32.mrb[0].mxu0
  %210 = vmatprep.mubr.f32.mxu0 0.0
  %211 = vmatmul.mubr.f32.gmra.mrb[0].mxu0 %v129
  %v212 = vpop.f32.mrb[0].mxu0
  %v213 = vadd.f32 %v117, %v212
  %v214 = vpop.f32.mrb[0].mxu0
  %215 = vdwg.mxu0
  %216 = vadd.xlane.f32.xlu0 %v198
  %v217 = vpop.xlane.xlu0 %216
  %218 = vadd.xlane.f32.xlu0 %v203
  %v219 = vpop.xlane.xlu0 %218
  %220 = vadd.xlane.f32.xlu0 %v208
  %v221 = vpop.xlane.xlu0 %220
  %222 = vadd.xlane.f32.xlu0 %v213
  %v223 = vpop.xlane.xlu0 %222
  %v224 = vrcp.pop 128.0
  %v225 = vmul.f32 %v217, %v224
  %v226 = vmul.f32 %v219, %v224
  %v227 = vmul.f32 %v221, %v224
  %v228 = vmul.f32 %v223, %v224
  %v229 = vsub.f32 %v198, %v225
  %v230 = vsub.f32 %v203, %v226
  %v231 = vsub.f32 %v208, %v227
  %v232 = vsub.f32 %v213, %v228
  %v233 = vmul.f32 %v229, %v229
  %v234 = vmul.f32 %v230, %v230
  %v235 = vmul.f32 %v231, %v231
  %v236 = vmul.f32 %v232, %v232
  %237 = vadd.xlane.f32.xlu0 %v233
  %v238 = vpop.xlane.xlu0 %237
  %239 = vadd.xlane.f32.xlu0 %v234
  %v240 = vpop.xlane.xlu0 %239
  %241 = vadd.xlane.f32.xlu0 %v235
  %v242 = vpop.xlane.xlu0 %241
  %243 = vadd.xlane.f32.xlu0 %v236
  %v244 = vpop.xlane.xlu0 %243
  %v245 = vmul.f32 %v238, %v224
  %v246 = vmul.f32 %v240, %v224
  %v247 = vmul.f32 %v242, %v224
  %v248 = vmul.f32 %v244, %v224
  %v249 = vadd.f32 %v245, 1e-05
  %v250 = vadd.f32 %v246, 1e-05
  %v251 = vadd.f32 %v247, 1e-05
  %v252 = vadd.f32 %v248, 1e-05
  %v253 = vrsqrt.pop %v249
  %v254 = vrsqrt.pop %v250
  %v255 = vrsqrt.pop %v251
  %v256 = vrsqrt.pop %v252
  %v257 = vmul.f32 %v229, %v253
  %v258 = vmul.f32 %v230, %v254
  %v259 = vmul.f32 %v231, %v255
  %v260 = vmul.f32 %v232, %v256
  %v261 = vld [vmem:[%s5] sm:$0x1]
  %v263 = vlaneseq
  %v264 = vshrl.u32 %v263, 7
  %v265 = vsub.s32 0, %v264
  %v266 = vrot.slane %v261, %v265
  %v268 = vmul.f32 %v257, %v266
  %v269 = vmul.f32 %v258, %v266
  %v270 = vmul.f32 %v259, %v266
  %v271 = vmul.f32 %v260, %v266
  %v272 = vld [vmem:[%s6] sm:$0x1]
  %v274 = vlaneseq
  %v275 = vshrl.u32 %v274, 7
  %v276 = vsub.s32 0, %v275
  %v277 = vrot.slane %v272, %v276
  %v279 = vadd.f32 %v268, %v277
  %v280 = vadd.f32 %v269, %v277
  %v281 = vadd.f32 %v270, %v277
  %v282 = vadd.f32 %v271, %v277
  %283 = vst [vmem:[%s7] sm:$0xff] %v279
  %284 = vst [vmem:[%s7 + $0x8] sm:$0xff] %v280
  %285 = vst [vmem:[%s7 + $0x10] sm:$0xff] %v281
  %286 = vst [vmem:[%s7 + $0x18] sm:$0xff] %v282
  // Predicated region
  $region30: #{vit_forward.24} parent=0 // pred_check
    _
  $region31: #{vit_forward.24} parent=0 // pred_check_branch
    %288 = sbr.rel (0) target = $region33
  $region32: #{vit_forward.24} parent=0 // pred_region
    _
  $region33: #{vit_forward.24} parent=0 // pred_fallthru
    _
  // Predicated region
  $region34: #{vit_forward.24} parent=0 // pred_check
    _
  $region35: #{vit_forward.24} parent=0 // pred_check_branch
    %290 = sbr.rel (0) target = $region37
  $region36: #{vit_forward.24} parent=0 // pred_region
    _
  $region37: #{vit_forward.24} parent=0 // pred_fallthru
    _

// kernel: vit_forward.25
$region0: #{vit_forward.25}
  #allocation0 [shape = 'u32[]', space=smem, size = 0x4, offset = 0x4, fixed_abs, tag = 'smem constant byte address 0x4 - core index']
  #allocation1 [shape = 'u32[144,128]{1,0:T(1,128)}', space=vmem, size = 0x12000, scoped, tag = 'internal scratch']
  %s0 = inlined_call_operand.vmem [shape: f32[48,128], index: 0, kind: input, shape index: {}]
  %s1 = inlined_call_operand.vmem [shape: f32[1,128], index: 1, kind: input, shape index: {}]
  %s2 = inlined_call_operand.vmem [shape: f32[1,128], index: 2, kind: input, shape index: {}]
  %s3 = inlined_call_operand.vmem [shape: f32[128,192], index: 3, kind: input, shape index: {}]
  %s4 = inlined_call_operand.vmem [shape: f32[48,192], index: 4, kind: output, shape index: {}]
  %s5 = sld [smem:[#allocation0]]
  $region26: #{vit_forward.25} parent=0
    _
  %s7 = ssub.s32 1, %s5
  %s8 = scalar_select 0, %s7, %s5
  // Predicated region
  $region2: #{vit_forward.25} parent=0 // pred_check
    _
  $region3: #{vit_forward.25} parent=0 // pred_check_branch
    %10 = sbr.rel (0) target = $region5
  $region4: #{vit_forward.25} parent=0 // pred_region
    _
  $region5: #{vit_forward.25} parent=0 // pred_fallthru
    _
  // Predicated region
  $region6: #{vit_forward.25} parent=0 // pred_check
    _
  $region7: #{vit_forward.25} parent=0 // pred_check_branch
    %12 = sbr.rel (0) target = $region9
  $region8: #{vit_forward.25} parent=0 // pred_region
    _
  $region9: #{vit_forward.25} parent=0 // pred_fallthru
    _
  // Predicated region
  $region10: #{vit_forward.25} parent=0 // pred_check
    _
  $region11: #{vit_forward.25} parent=0 // pred_check_branch
    %14 = sbr.rel (0) target = $region13
  $region12: #{vit_forward.25} parent=0 // pred_region
    _
  $region13: #{vit_forward.25} parent=0 // pred_fallthru
    _
  // Predicated region
  $region14: #{vit_forward.25} parent=0 // pred_check
    _
  $region15: #{vit_forward.25} parent=0 // pred_check_branch
    %16 = sbr.rel (0) target = $region17
  $region16: #{vit_forward.25} parent=0 // pred_region
    _
  $region17: #{vit_forward.25} parent=0 // pred_fallthru
    _
  %v17 = vld [vmem:[%s0] sm:$0xff]
  %v18 = vld [vmem:[%s0 + $0x8] sm:$0xff]
  %v19 = vld [vmem:[%s0 + $0x10] sm:$0xff]
  %v20 = vld [vmem:[%s0 + $0x18] sm:$0xff]
  %v21 = vld [vmem:[%s0 + $0x20] sm:$0xff]
  %v22 = vld [vmem:[%s0 + $0x28] sm:$0xff]
  %23 = vadd.xlane.f32.xlu0 %v17
  %v24 = vpop.xlane.xlu0 %23
  %25 = vadd.xlane.f32.xlu0 %v18
  %v26 = vpop.xlane.xlu0 %25
  %27 = vadd.xlane.f32.xlu0 %v19
  %v28 = vpop.xlane.xlu0 %27
  %29 = vadd.xlane.f32.xlu0 %v20
  %v30 = vpop.xlane.xlu0 %29
  %31 = vadd.xlane.f32.xlu0 %v21
  %v32 = vpop.xlane.xlu0 %31
  %33 = vadd.xlane.f32.xlu0 %v22
  %v34 = vpop.xlane.xlu0 %33
  %v35 = vrcp.pop 128.0
  %v36 = vmul.f32 %v24, %v35
  %v37 = vmul.f32 %v26, %v35
  %v38 = vmul.f32 %v28, %v35
  %v39 = vmul.f32 %v30, %v35
  %v40 = vmul.f32 %v32, %v35
  %v41 = vmul.f32 %v34, %v35
  %v42 = vsub.f32 %v17, %v36
  %v43 = vsub.f32 %v18, %v37
  %v44 = vsub.f32 %v19, %v38
  %v45 = vsub.f32 %v20, %v39
  %v46 = vsub.f32 %v21, %v40
  %v47 = vsub.f32 %v22, %v41
  %v48 = vmul.f32 %v42, %v42
  %v49 = vmul.f32 %v43, %v43
  %v50 = vmul.f32 %v44, %v44
  %v51 = vmul.f32 %v45, %v45
  %v52 = vmul.f32 %v46, %v46
  %v53 = vmul.f32 %v47, %v47
  %54 = vadd.xlane.f32.xlu0 %v48
  %v55 = vpop.xlane.xlu0 %54
  %56 = vadd.xlane.f32.xlu0 %v49
  %v57 = vpop.xlane.xlu0 %56
  %58 = vadd.xlane.f32.xlu0 %v50
  %v59 = vpop.xlane.xlu0 %58
  %60 = vadd.xlane.f32.xlu0 %v51
  %v61 = vpop.xlane.xlu0 %60
  %62 = vadd.xlane.f32.xlu0 %v52
  %v63 = vpop.xlane.xlu0 %62
  %64 = vadd.xlane.f32.xlu0 %v53
  %v65 = vpop.xlane.xlu0 %64
  %v66 = vmul.f32 %v55, %v35
  %v67 = vmul.f32 %v57, %v35
  %v68 = vmul.f32 %v59, %v35
  %v69 = vmul.f32 %v61, %v35
  %v70 = vmul.f32 %v63, %v35
  %v71 = vmul.f32 %v65, %v35
  %v72 = vadd.f32 %v66, 1e-05
  %v73 = vadd.f32 %v67, 1e-05
  %v74 = vadd.f32 %v68, 1e-05
  %v75 = vadd.f32 %v69, 1e-05
  %v76 = vadd.f32 %v70, 1e-05
  %v77 = vadd.f32 %v71, 1e-05
  %v78 = vrsqrt.pop %v72
  %v79 = vrsqrt.pop %v73
  %v80 = vrsqrt.pop %v74
  %v81 = vrsqrt.pop %v75
  %v82 = vrsqrt.pop %v76
  %v83 = vrsqrt.pop %v77
  %v84 = vmul.f32 %v42, %v78
  %v85 = vmul.f32 %v43, %v79
  %v86 = vmul.f32 %v44, %v80
  %v87 = vmul.f32 %v45, %v81
  %v88 = vmul.f32 %v46, %v82
  %v89 = vmul.f32 %v47, %v83
  %v90 = vld [vmem:[%s1] sm:$0x1]
  %v92 = vlaneseq
  %v93 = vshrl.u32 %v92, 7
  %v94 = vsub.s32 0, %v93
  %v95 = vrot.slane %v90, %v94
  %v97 = vmul.f32 %v84, %v95
  %v98 = vmul.f32 %v85, %v95
  %v99 = vmul.f32 %v86, %v95
  %v100 = vmul.f32 %v87, %v95
  %v101 = vmul.f32 %v88, %v95
  %v102 = vmul.f32 %v89, %v95
  %v103 = vld [vmem:[%s2] sm:$0x1]
  %v105 = vlaneseq
  %v106 = vshrl.u32 %v105, 7
  %v107 = vsub.s32 0, %v106
  %v108 = vrot.slane %v103, %v107
  %v110 = vadd.f32 %v97, %v108
  %v111 = vadd.f32 %v98, %v108
  %v112 = vadd.f32 %v99, %v108
  %v113 = vadd.f32 %v100, %v108
  %v114 = vadd.f32 %v101, %v108
  %v115 = vadd.f32 %v102, %v108
  %v116 = vld [vmem:[%s3] sm:$0xff]
  %v117 = vld [vmem:[%s3 + $0x8] sm:$0xff]
  %v118 = vld [vmem:[%s3 + $0x10] sm:$0xff]
  %v119 = vld [vmem:[%s3 + $0x18] sm:$0xff]
  %v120 = vld [vmem:[%s3 + $0x20] sm:$0xff]
  %v121 = vld [vmem:[%s3 + $0x28] sm:$0xff]
  %v122 = vld [vmem:[%s3 + $0x30] sm:$0xff]
  %v123 = vld [vmem:[%s3 + $0x38] sm:$0xff]
  %v124 = vld [vmem:[%s3 + $0x40] sm:$0xff]
  %v125 = vld [vmem:[%s3 + $0x48] sm:$0xff]
  %v126 = vld [vmem:[%s3 + $0x50] sm:$0xff]
  %v127 = vld [vmem:[%s3 + $0x58] sm:$0xff]
  %v128 = vld [vmem:[%s3 + $0x60] sm:$0xff]
  %v129 = vld [vmem:[%s3 + $0x68] sm:$0xff]
  %v130 = vld [vmem:[%s3 + $0x70] sm:$0xff]
  %v131 = vld [vmem:[%s3 + $0x78] sm:$0xff]
  %v132 = vld [vmem:[%s3 + $0x80] sm:$0xff]
  %v133 = vld [vmem:[%s3 + $0x88] sm:$0xff]
  %v134 = vld [vmem:[%s3 + $0x90] sm:$0xff]
  %v135 = vld [vmem:[%s3 + $0x98] sm:$0xff]
  %v136 = vld [vmem:[%s3 + $0xa0] sm:$0xff]
  %v137 = vld [vmem:[%s3 + $0xa8] sm:$0xff]
  %v138 = vld [vmem:[%s3 + $0xb0] sm:$0xff]
  %v139 = vld [vmem:[%s3 + $0xb8] sm:$0xff]
  %v140 = vld [vmem:[%s3 + $0xc0] sm:$0xff]
  %v141 = vld [vmem:[%s3 + $0xc8] sm:$0xff]
  %v142 = vld [vmem:[%s3 + $0xd0] sm:$0xff]
  %v143 = vld [vmem:[%s3 + $0xd8] sm:$0xff]
  %v144 = vld [vmem:[%s3 + $0xe0] sm:$0xff]
  %v145 = vld [vmem:[%s3 + $0xe8] sm:$0xff]
  %v146 = vld [vmem:[%s3 + $0xf0] sm:$0xff]
  %v147 = vld [vmem:[%s3 + $0xf8] sm:$0xff]
  %148 = vmatprep.subr.mxu0 %v117
  %149 = vmatpush1.msra.mxu0 %v116
  %150 = vmatprep.subr.mxu0 %v119
  %151 = vmatpush1.msra.mxu0 %v118
  %152 = vmatprep.subr.mxu0 %v121
  %153 = vmatpush1.msra.mxu0 %v120
  %154 = vmatprep.subr.mxu0 %v123
  %155 = vmatpush1.msra.mxu0 %v122
  %156 = vmatprep.subr.mxu0 %v125
  %157 = vmatpush1.msra.mxu0 %v124
  %158 = vmatprep.subr.mxu0 %v127
  %159 = vmatpush1.msra.mxu0 %v126
  %160 = vmatprep.subr.mxu0 %v129
  %161 = vmatpush1.msra.mxu0 %v128
  %162 = vmatprep.subr.mxu0 %v131
  %163 = vmatpush1.msra.mxu0 %v130
  %164 = vmatprep.subr.mxu0 %v133
  %165 = vmatpush1.msra.mxu0 %v132
  %166 = vmatprep.subr.mxu0 %v135
  %167 = vmatpush1.msra.mxu0 %v134
  %168 = vmatprep.subr.mxu0 %v137
  %169 = vmatpush1.msra.mxu0 %v136
  %170 = vmatprep.subr.mxu0 %v139
  %171 = vmatpush1.msra.mxu0 %v138
  %172 = vmatprep.subr.mxu0 %v141
  %173 = vmatpush1.msra.mxu0 %v140
  %174 = vmatprep.subr.mxu0 %v143
  %175 = vmatpush1.msra.mxu0 %v142
  %176 = vmatprep.subr.mxu0 %v145
  %177 = vmatpush1.msra.mxu0 %v144
  %178 = vmatprep.subr.mxu0 %v147
  %179 = vmatpush1.msra.mxu0 %v146
  %180 = vmatprep.subr.mxu0 0.0
  %181 = vmatpush1.msra.mxu0 0.0
  %182 = vmatprep.subr.mxu0 0.0
  %183 = vmatpush1.msra.mxu0 0.0
  %184 = vmatprep.subr.mxu0 0.0
  %185 = vmatpush1.msra.mxu0 0.0
  %186 = vmatprep.subr.mxu0 0.0
  %187 = vmatpush1.msra.mxu0 0.0
  %188 = vmatprep.subr.mxu0 0.0
  %189 = vmatpush1.msra.mxu0 0.0
  %190 = vmatprep.subr.mxu0 0.0
  %191 = vmatpush1.msra.mxu0 0.0
  %192 = vmatprep.subr.mxu0 0.0
  %193 = vmatpush1.msra.mxu0 0.0
  %194 = vmatprep.subr.mxu0 0.0
  %195 = vmatpush1.msra.mxu0 0.0
  %196 = vmatprep.subr.mxu0 0.0
  %197 = vmatpush1.msra.mxu0 0.0
  %198 = vmatprep.subr.mxu0 0.0
  %199 = vmatpush1.msra.mxu0 0.0
  %200 = vmatprep.subr.mxu0 0.0
  %201 = vmatpush1.msra.mxu0 0.0
  %202 = vmatprep.subr.mxu0 0.0
  %203 = vmatpush1.msra.mxu0 0.0
  %204 = vmatprep.subr.mxu0 0.0
  %205 = vmatpush1.msra.mxu0 0.0
  %206 = vmatprep.subr.mxu0 0.0
  %207 = vmatpush1.msra.mxu0 0.0
  %208 = vmatprep.subr.mxu0 0.0
  %209 = vmatpush1.msra.mxu0 0.0
  %210 = vmatprep.subr.mxu0 0.0
  %211 = vmatpush1.msra.mxu0 0.0
  %212 = vmatprep.mubr.f32.mxu0 0.0
  %213 = vmatmul.mubr.f32.gmra.mrb[0].mxu0 %v110
  %v214 = vpop.f32.mrb[0].mxu0
  %v215 = vadd.f32 0.0, %v214
  %v216 = vpop.f32.mrb[0].mxu0
  %v217 = vadd.f32 0.0, %v216
  %218 = vmatprep.mubr.f32.mxu0 0.0
  %219 = vmatmul.mubr.f32.gmra.mrb[0].mxu0 %v111
  %v220 = vpop.f32.mrb[0].mxu0
  %v221 = vadd.f32 0.0, %v220
  %v222 = vpop.f32.mrb[0].mxu0
  %v223 = vadd.f32 0.0, %v222
  %224 = vmatprep.mubr.f32.mxu0 0.0
  %225 = vmatmul.mubr.f32.gmra.mrb[0].mxu0 %v112
  %v226 = vpop.f32.mrb[0].mxu0
  %v227 = vadd.f32 0.0, %v226
  %v228 = vpop.f32.mrb[0].mxu0
  %v229 = vadd.f32 0.0, %v228
  %230 = vmatprep.mubr.f32.mxu0 0.0
  %231 = vmatmul.mubr.f32.gmra.mrb[0].mxu0 %v113
  %v232 = vpop.f32.mrb[0].mxu0
  %v233 = vadd.f32 0.0, %v232
  %v234 = vpop.f32.mrb[0].mxu0
  %v235 = vadd.f32 0.0, %v234
  %236 = vmatprep.mubr.f32.mxu0 0.0
  %237 = vmatmul.mubr.f32.gmra.mrb[0].mxu0 %v114
  %v238 = vpop.f32.mrb[0].mxu0
  %v239 = vadd.f32 0.0, %v238
  %v240 = vpop.f32.mrb[0].mxu0
  %v241 = vadd.f32 0.0, %v240
  %242 = vmatprep.mubr.f32.mxu0 0.0
  %243 = vmatmul.mubr.f32.gmra.mrb[0].mxu0 %v115
  %v244 = vpop.f32.mrb[0].mxu0
  %v245 = vadd.f32 0.0, %v244
  %v246 = vpop.f32.mrb[0].mxu0
  %v247 = vadd.f32 0.0, %v246
  %248 = vdwg.mxu0
  %249 = vst [vmem:[%s4] sm:$0xff] %v215
  %vm250 = vcmask 523264
  %251 = vst.msk [vmem:[%s4 + $0x8] sm:$0xff] %vm250, %v217
  %252 = vst [vmem:[%s4 + $0x10] sm:$0xff] %v221
  %253 = vst.msk [vmem:[%s4 + $0x18] sm:$0xff] %vm250, %v223
  %254 = vst [vmem:[%s4 + $0x20] sm:$0xff] %v227
  %255 = vst.msk [vmem:[%s4 + $0x28] sm:$0xff] %vm250, %v229
  %256 = vst [vmem:[%s4 + $0x30] sm:$0xff] %v233
  %257 = vst.msk [vmem:[%s4 + $0x38] sm:$0xff] %vm250, %v235
  %258 = vst [vmem:[%s4 + $0x40] sm:$0xff] %v239
  %259 = vst.msk [vmem:[%s4 + $0x48] sm:$0xff] %vm250, %v241
  %260 = vst [vmem:[%s4 + $0x50] sm:$0xff] %v245
  %261 = vst.msk [vmem:[%s4 + $0x58] sm:$0xff] %vm250, %v247
  // Predicated region
  $region18: #{vit_forward.25} parent=0 // pred_check
    _
  $region19: #{vit_forward.25} parent=0 // pred_check_branch
    %263 = sbr.rel (0) target = $region21
  $region20: #{vit_forward.25} parent=0 // pred_region
    _
  $region21: #{vit_forward.25} parent=0 // pred_fallthru
    _
  // Predicated region
  $region22: #{vit_forward.25} parent=0 // pred_check
    _
  $region23: #{vit_forward.25} parent=0 // pred_check_branch
    %265 = sbr.rel (0) target = $region25
  $region24: #{vit_forward.25} parent=0 // pred_region
    _
  $region25: #{vit_forward.25} parent=0 // pred_fallthru
    _

// kernel: vit_forward.26
$region0: #{vit_forward.26}
  #allocation0 [shape = 'u32[]', space=smem, size = 0x4, offset = 0x4, fixed_abs, tag = 'smem constant byte address 0x4 - core index']
  #allocation1 [shape = 'u32[144,128]{1,0:T(1,128)}', space=vmem, size = 0x12000, scoped, tag = 'internal scratch']
  %s0 = inlined_call_operand.vmem [shape: f32[2,24,192], index: 0, kind: input, shape index: {}]
  %s1 = inlined_call_operand.vmem [shape: f32[2,24,64], index: 1, kind: output, shape index: {}]
  %s2 = sld [smem:[#allocation0]]
  $region37: #{vit_forward.26} parent=0
    _
  %s4 = ssub.s32 1, %s2
  %s5 = scalar_select 0, %s4, %s2
  loop: start=0, step=1, limit=4
  $region2: #{vit_forward.26} parent=0 // loop_pre_header
    _
  $region3: #{vit_forward.26} parent=0 // loop_header
    %s7 = sphi 0, %s11
    %p8 = scmp.ge.s32.totalorder %s7, 4
    %s17 = sphi 0, %s19
    %s20 = sphi 0, %s17
    %s21 = sphi 0, %s20
    %s37 = sphi 0, %s21
    %s43 = sphi 0, %s45
    %s46 = sphi 0, %s43
    %s47 = sphi 0, %s46
    %s63 = sphi 0, %s47
  $region4: #{vit_forward.26} parent=0 // loop_header_branch
    %10 = sbr.rel (%p8) target = $region8
  $region5: #{vit_forward.26} parent=0 // loop_body
    %s12 = ssub.s32 %s7, 1
    %s13 = ssub.s32 %s7, 2
    %s14 = sadd.s32 %s7, 1
    %s15 = ssub.s32 %s7, %s14
    %p16 = scmp.eq.s32.totalorder %s15, 0
    %s18 = sadd.s32 %s17, 1
    %s19 = scalar_select %p16, %s17, %s18
    %p22 = pneg %p16
    %p23 = scmp.eq.s32.totalorder %s7, 1
    %p24 = por %p22, %p23
    %p25 = scmp.ne.s32.totalorder %s17, %s20
    %p26 = scmp.eq.s32.totalorder %s7, 0
    %p27 = por %p25, %p26
    %p28 = scmp.ne.s32.totalorder %s17, %s20
    %p29 = scmp.eq.s32.totalorder %s12, 1
    %p30 = por %p28, %p29
    %p31 = scmp.ne.s32.totalorder %s20, %s21
    %p32 = scmp.eq.s32.totalorder %s12, 0
    %p33 = por %p31, %p32
    %p34 = scmp.ne.s32.totalorder %s20, %s21
    %p35 = scmp.eq.s32.totalorder %s13, 1
    %p36 = por %p34, %p35
    %p38 = scmp.ne.s32.totalorder %s21, %s37
    %p39 = scmp.eq.s32.totalorder %s13, 0
    %p40 = por %p38, %p39
    %s41 = ssub.s32 %s7, %s14
    %p42 = scmp.eq.s32.totalorder %s41, 0
    %s44 = sadd.s32 %s43, 1
    %s45 = scalar_select %p42, %s43, %s44
    %p48 = pneg %p42
    %p49 = scmp.eq.s32.totalorder %s7, 1
    %p50 = por %p48, %p49
    %p51 = scmp.ne.s32.totalorder %s43, %s46
    %p52 = scmp.eq.s32.totalorder %s7, 0
    %p53 = por %p51, %p52
    %p54 = scmp.ne.s32.totalorder %s43, %s46
    %p55 = scmp.eq.s32.totalorder %s12, 1
    %p56 = por %p54, %p55
    %p57 = scmp.ne.s32.totalorder %s46, %s47
    %p58 = scmp.eq.s32.totalorder %s12, 0
    %p59 = por %p57, %p58
    %p60 = scmp.ne.s32.totalorder %s46, %s47
    %p61 = scmp.eq.s32.totalorder %s13, 1
    %p62 = por %p60, %p61
    %p64 = scmp.ne.s32.totalorder %s47, %s63
    %p65 = scmp.eq.s32.totalorder %s13, 0
    %p66 = por %p64, %p65
    %p67 = scmp.le.s32.totalorder 1, %s7
    %p68 = scmp.lt.s32.totalorder %s7, 3
    %p69 = pnand %p67, %p68
    %p70 = pneg %p69
    // Predicated region
    $region9: #{vit_forward.26} parent=5 // pred_check
      _
    $region10: #{vit_forward.26} parent=5 // pred_check_branch
      %72 = sbr.rel (%p69) target = $region12
    $region11: #{vit_forward.26} parent=5 // pred_region
      %s73 = ssub.s32 %s7, 1
    $region12: #{vit_forward.26} parent=5 // pred_fallthru
      _
    %p74 = scmp.lt.s32.totalorder %s7, 2
    // Predicated region
    $region13: #{vit_forward.26} parent=5 // pred_check
      %p75 = pneg %p74
    $region14: #{vit_forward.26} parent=5 // pred_check_branch
      %77 = sbr.rel (%p75) target = $region16
    $region15: #{vit_forward.26} parent=5 // pred_region
      // Predicated region
      $region17: #{vit_forward.26} parent=15 // pred_check
        %p78 = pneg %p27
      $region18: #{vit_forward.26} parent=15 // pred_check_branch
        %80 = sbr.rel (%p78) target = $region20
      $region19: #{vit_forward.26} parent=15 // pred_region
        %p81 = scmp.lt.s32.totalorder %s7, 1
        %s82 = scalar_select %p81, %s7, 1
        %s83 = smul.addr %s82, 6
        %s84 = smul.addr %s83, 8
        %s85 = scalar_lea.vmem %s0, %s84
      $region20: #{vit_forward.26} parent=15 // pred_fallthru
        _
    $region16: #{vit_forward.26} parent=5 // pred_fallthru
      _
    %p86 = scmp.le.s32.totalorder 1, %s7
    %p87 = scmp.lt.s32.totalorder %s7, 3
    %p88 = pnand %p86, %p87
    %p89 = pneg %p88
    // Predicated region
    $region21: #{vit_forward.26} parent=5 // pred_check
      _
    $region22: #{vit_forward.26} parent=5 // pred_check_branch
      %91 = sbr.rel (%p88) target = $region24
    $region23: #{vit_forward.26} parent=5 // pred_region
      %s92 = ssub.s32 %s7, 1
      %p93 = scmp.lt.s32.totalorder %s12, 1
      %s94 = scalar_select %p93, %s12, 1
      %s95 = smul.addr %s94, 6
      %s96 = smul.addr %s95, 8
      %s97 = scalar_lea.vmem %s0, %s96
      %p98 = pneg %p33
      %p99 = pneg %p30
      %p100 = pneg %p59
      %p101 = pneg %p56
      %p102 = scmp.lt.s32.totalorder %s12, 1
      %s103 = scalar_select %p102, %s12, 1
      %s104 = smul.addr %s103, 3
      %s105 = smul.addr %s104, 8
      %s106 = scalar_lea.vmem %s1, %s105
      %p107 = scmp.lt.s32.totalorder %s12, 1
      %s108 = scalar_select %p107, %s12, 1
      %s109 = smul.addr %s108, 6
      %s110 = smul.addr %s109, 8
      %s111 = scalar_lea.vmem %s0, %s110
      %p112 = scmp.lt.s32.totalorder %s12, 1
      %s113 = scalar_select %p112, %s12, 1
      %s114 = smul.addr %s113, 3
      %s115 = smul.addr %s114, 8
      %s116 = scalar_lea.vmem %s1, %s115
      %v117 = vld [vmem:[%s111] sm:$0xff]
      %v118 = vld [vmem:[%s111 + $0x10] sm:$0xff]
      %v119 = vld [vmem:[%s111 + $0x20] sm:$0xff]
      %v120 = vld [vmem:[%s111 + $0x8] sm:$0xff]
      %v121 = vld [vmem:[%s111 + $0x18] sm:$0xff]
      %v122 = vld [vmem:[%s111 + $0x28] sm:$0xff]
      %126 = vrot.lane.b32.xlu0 %v117, 64
      %v127 = vpop.permute.xlu0 %126
      %128 = vrot.lane.b32.xlu0 %v118, 64
      %v129 = vpop.permute.xlu0 %128
      %130 = vrot.lane.b32.xlu0 %v119, 64
      %v131 = vpop.permute.xlu0 %130
      %vm132 = vcmask 261120
      %v133 = vsel %vm132, %v117, 0
      %v135 = vsel %vm132, %v118, 0
      %v137 = vsel %vm132, %v119, 0
      %v139 = vsel %vm132, %v127, 0
      %v141 = vsel %vm132, %v129, 0
      %v143 = vsel %vm132, %v131, 0
      %145 = vmatprep.subr.mxu0 0.0
      %146 = vmatpush1.xpose.msra.mxu0 %v139
      %147 = vmatprep.subr.mxu0 0.0
      %148 = vmatpush1.xpose.msra.mxu0 %v141
      %149 = vmatprep.subr.mxu0 0.0
      %150 = vmatpush1.xpose.msra.mxu0 %v143
      %151 = vmatprep.subr.mxu0 0.0
      %152 = vmatpush1.xpose.msra.mxu0 0.0
      %153 = vmatprep.subr.mxu0 0.0
      %154 = vmatpush1.xpose.msra.mxu0 0.0
      %155 = vmatprep.subr.mxu0 0.0
      %156 = vmatpush1.xpose.msra.mxu0 0.0
      %157 = vmatprep.subr.mxu0 0.0
      %158 = vmatpush1.xpose.msra.mxu0 0.0
      %159 = vmatprep.subr.mxu0 0.0
      %160 = vmatpush1.xpose.msra.mxu0 0.0
      %161 = vmatprep.subr.mxu0 0.0
      %162 = vmatpush1.xpose.msra.mxu0 0.0
      %163 = vmatprep.subr.mxu0 0.0
      %164 = vmatpush1.xpose.msra.mxu0 0.0
      %165 = vmatprep.subr.mxu0 0.0
      %166 = vmatpush1.xpose.msra.mxu0 0.0
      %167 = vmatprep.subr.mxu0 0.0
      %168 = vmatpush1.xpose.msra.mxu0 0.0
      %169 = vmatprep.subr.mxu0 0.0
      %170 = vmatpush1.xpose.msra.mxu0 0.0
      %171 = vmatprep.subr.mxu0 0.0
      %172 = vmatpush1.xpose.msra.mxu0 0.0
      %173 = vmatprep.subr.mxu0 0.0
      %174 = vmatpush1.xpose.msra.mxu0 0.0
      %175 = vmatprep.subr.mxu0 0.0
      %176 = vmatpush1.xpose.msra.mxu0 0.0
      %177 = vmatprep.subr.mxu0 0.0
      %178 = vmatpush1.xpose.msra.mxu0 0.0
      %179 = vmatprep.subr.mxu0 0.0
      %180 = vmatpush1.xpose.msra.mxu0 0.0
      %181 = vmatprep.subr.mxu0 0.0
      %182 = vmatpush1.xpose.msra.mxu0 0.0
      %183 = vmatprep.subr.mxu0 0.0
      %184 = vmatpush1.xpose.msra.mxu0 0.0
      %185 = vmatprep.subr.mxu0 0.0
      %186 = vmatpush1.xpose.msra.mxu0 0.0
      %187 = vmatprep.subr.mxu0 0.0
      %188 = vmatpush1.xpose.msra.mxu0 0.0
      %189 = vmatprep.subr.mxu0 0.0
      %190 = vmatpush1.xpose.msra.mxu0 0.0
      %191 = vmatprep.subr.mxu0 0.0
      %192 = vmatpush1.xpose.msra.mxu0 0.0
      %193 = vmatprep.subr.mxu0 0.0
      %194 = vmatpush1.xpose.msra.mxu0 0.0
      %195 = vmatprep.subr.mxu0 0.0
      %196 = vmatpush1.xpose.msra.mxu0 0.0
      %197 = vmatprep.subr.mxu0 0.0
      %198 = vmatpush1.xpose.msra.mxu0 0.0
      %199 = vmatprep.subr.mxu0 0.0
      %200 = vmatpush1.xpose.msra.mxu0 0.0
      %201 = vmatprep.subr.mxu0 0.0
      %202 = vmatpush1.xpose.msra.mxu0 0.0
      %203 = vmatprep.subr.mxu0 0.0
      %204 = vmatpush1.xpose.msra.mxu0 0.0
      %205 = vmatprep.subr.mxu0 0.0
      %206 = vmatpush1.xpose.msra.mxu0 0.0
      %207 = vmatprep.subr.mxu0 0.0
      %208 = vmatpush1.xpose.msra.mxu0 0.0
      %209 = vmatprep.mubr.f32.mxu0 0.0
      %210 = vmatmul.mubr.f32.gmra.mrb[0].mxu0 %v133
      %v211 = vpop.f32.mrb[0].mxu0
      %v212 = vadd.f32 0.0, %v211
      %v213 = vpop.f32.mrb[0].mxu0
      %214 = vmatprep.mubr.f32.mxu0 0.0
      %215 = vmatmul.mubr.f32.gmra.mrb[0].mxu0 %v135
      %v216 = vpop.f32.mrb[0].mxu0
      %v217 = vadd.f32 0.0, %v216
      %v218 = vpop.f32.mrb[0].mxu0
      %219 = vmatprep.mubr.f32.mxu0 0.0
      %220 = vmatmul.mubr.f32.gmra.mrb[0].mxu0 %v137
      %v221 = vpop.f32.mrb[0].mxu0
      %v222 = vadd.f32 0.0, %v221
      %v223 = vpop.f32.mrb[0].mxu0
      %224 = vdwg.mxu0
      %v225 = vmul.f32 %v212, 0.17677669
      %v226 = vmul.f32 %v217, 0.17677669
      %v227 = vmul.f32 %v222, 0.17677669
      %v228 = vlaneseq
      %v229 = vand.u32 %v228, 127
      %vm230 = vcmp.lt.s32.totalorder %v229, 17
      %v231 = vsel %vm230, %v225, -1e+30
      %v232 = vsel %vm230, %v226, -1e+30
      %v233 = vsel %vm230, %v227, -1e+30
      %vm234 = vcmask 195584
      %v235 = vsel %vm234, %v231, -inf
      %236 = vmax.xlane.f32.xlu0 %v235
      %v237 = vpop.xlane.xlu0 %236
      %v238 = vsel %vm234, %v232, -inf
      %239 = vmax.xlane.f32.xlu0 %v238
      %v240 = vpop.xlane.xlu0 %239
      %v241 = vsel %vm234, %v233, -inf
      %242 = vmax.xlane.f32.xlu0 %v241
      %v243 = vpop.xlane.xlu0 %242
      %v244 = vsub.f32 %v231, %v237
      %v245 = vsub.f32 %v232, %v240
      %v246 = vsub.f32 %v233, %v243
      %v247 = vmul.f32 %v244, 1.442695
      %v248 = vpow.pop %v247
      %v249 = vmul.f32 %v245, 1.442695
      %v250 = vpow.pop %v249
      %v251 = vmul.f32 %v246, 1.442695
      %v252 = vpow.pop %v251
      %v253 = vsel %vm234, %v248, 0.0
      %254 = vadd.xlane.f32.xlu0 %v253
      %v255 = vpop.xlane.xlu0 %254
      %v256 = vsel %vm234, %v250, 0.0
      %257 = vadd.xlane.f32.xlu0 %v256
      %v258 = vpop.xlane.xlu0 %257
      %v259 = vsel %vm234, %v252, 0.0
      %260 = vadd.xlane.f32.xlu0 %v259
      %v261 = vpop.xlane.xlu0 %260
      %v262 = vrcp.pop %v255
      %v263 = vrcp.pop %v258
      %v264 = vrcp.pop %v261
      %v265 = vmul.f32 %v248, %v262
      %v266 = vmul.f32 %v250, %v263
      %v267 = vmul.f32 %v252, %v264
      %v269 = vsel %vm234, %v265, 0
      %v272 = vsel %vm234, %v266, 0
      %v275 = vsel %vm234, %v267, 0
      %277 = vmatprep.subr.mxu0 0.0
      %278 = vmatpush1.msra.mxu0 %v120
      %279 = vmatprep.subr.mxu0 0.0
      %280 = vmatpush1.msra.mxu0 %v121
      %281 = vmatprep.subr.mxu0 0.0
      %282 = vmatpush1.msra.mxu0 %v122
      %283 = vmatprep.subr.mxu0 0.0
      %284 = vmatpush1.msra.mxu0 0.0
      %285 = vmatprep.subr.mxu0 0.0
      %286 = vmatpush1.msra.mxu0 0.0
      %287 = vmatprep.subr.mxu0 0.0
      %288 = vmatpush1.msra.mxu0 0.0
      %289 = vmatprep.subr.mxu0 0.0
      %290 = vmatpush1.msra.mxu0 0.0
      %291 = vmatprep.subr.mxu0 0.0
      %292 = vmatpush1.msra.mxu0 0.0
      %293 = vmatprep.subr.mxu0 0.0
      %294 = vmatpush1.msra.mxu0 0.0
      %295 = vmatprep.subr.mxu0 0.0
      %296 = vmatpush1.msra.mxu0 0.0
      %297 = vmatprep.subr.mxu0 0.0
      %298 = vmatpush1.msra.mxu0 0.0
      %299 = vmatprep.subr.mxu0 0.0
      %300 = vmatpush1.msra.mxu0 0.0
      %301 = vmatprep.subr.mxu0 0.0
      %302 = vmatpush1.msra.mxu0 0.0
      %303 = vmatprep.subr.mxu0 0.0
      %304 = vmatpush1.msra.mxu0 0.0
      %305 = vmatprep.subr.mxu0 0.0
      %306 = vmatpush1.msra.mxu0 0.0
      %307 = vmatprep.subr.mxu0 0.0
      %308 = vmatpush1.msra.mxu0 0.0
      %309 = vmatprep.subr.mxu0 0.0
      %310 = vmatpush1.msra.mxu0 0.0
      %311 = vmatprep.subr.mxu0 0.0
      %312 = vmatpush1.msra.mxu0 0.0
      %313 = vmatprep.subr.mxu0 0.0
      %314 = vmatpush1.msra.mxu0 0.0
      %315 = vmatprep.subr.mxu0 0.0
      %316 = vmatpush1.msra.mxu0 0.0
      %317 = vmatprep.subr.mxu0 0.0
      %318 = vmatpush1.msra.mxu0 0.0
      %319 = vmatprep.subr.mxu0 0.0
      %320 = vmatpush1.msra.mxu0 0.0
      %321 = vmatprep.subr.mxu0 0.0
      %322 = vmatpush1.msra.mxu0 0.0
      %323 = vmatprep.subr.mxu0 0.0
      %324 = vmatpush1.msra.mxu0 0.0
      %325 = vmatprep.subr.mxu0 0.0
      %326 = vmatpush1.msra.mxu0 0.0
      %327 = vmatprep.subr.mxu0 0.0
      %328 = vmatpush1.msra.mxu0 0.0
      %329 = vmatprep.subr.mxu0 0.0
      %330 = vmatpush1.msra.mxu0 0.0
      %331 = vmatprep.subr.mxu0 0.0
      %332 = vmatpush1.msra.mxu0 0.0
      %333 = vmatprep.subr.mxu0 0.0
      %334 = vmatpush1.msra.mxu0 0.0
      %335 = vmatprep.subr.mxu0 0.0
      %336 = vmatpush1.msra.mxu0 0.0
      %337 = vmatprep.subr.mxu0 0.0
      %338 = vmatpush1.msra.mxu0 0.0
      %339 = vmatprep.subr.mxu0 0.0
      %340 = vmatpush1.msra.mxu0 0.0
      %341 = vmatprep.mubr.f32.mxu0 0.0
      %342 = vmatmul.mubr.f32.gmra.mrb[0].mxu0 %v269
      %v343 = vpop.f32.mrb[0].mxu0
      %v344 = vadd.f32 0.0, %v343
      %v345 = vpop.f32.mrb[0].mxu0
      %346 = vmatprep.mubr.f32.mxu0 0.0
      %347 = vmatmul.mubr.f32.gmra.mrb[0].mxu0 %v272
      %v348 = vpop.f32.mrb[0].mxu0
      %v349 = vadd.f32 0.0, %v348
      %v350 = vpop.f32.mrb[0].mxu0
      %351 = vmatprep.mubr.f32.mxu0 0.0
      %352 = vmatmul.mubr.f32.gmra.mrb[0].mxu0 %v275
      %v353 = vpop.f32.mrb[0].mxu0
      %v354 = vadd.f32 0.0, %v353
      %v355 = vpop.f32.mrb[0].mxu0
      %356 = vdwg.mxu0
      %357 = vst.msk [vmem:[%s116] sm:$0xff] %vm132, %v344
      %358 = vst.msk [vmem:[%s116 + $0x8] sm:$0xff] %vm132, %v349
      %359 = vst.msk [vmem:[%s116 + $0x10] sm:$0xff] %vm132, %v354
      %v360 = vld [vmem:[%s111] sm:$0xff]
      %v361 = vld [vmem:[%s111 + $0x10] sm:$0xff]
      %v362 = vld [vmem:[%s111 + $0x20] sm:$0xff]
      %v363 = vld [vmem:[%s111 + $0x8] sm:$0xff]
      %v364 = vld [vmem:[%s111 + $0x18] sm:$0xff]
      %v365 = vld [vmem:[%s111 + $0x28] sm:$0xff]
      %369 = vrot.lane.b32.xlu0 %v360, 96
      %v370 = vpop.permute.xlu0 %369
      %371 = vrot.lane.b32.xlu0 %v361, 96
      %v372 = vpop.permute.xlu0 %371
      %373 = vrot.lane.b32.xlu0 %v362, 96
      %v374 = vpop.permute.xlu0 %373
      %375 = vrot.lane.b32.xlu0 %v360, 32
      %v376 = vpop.permute.xlu0 %375
      %377 = vrot.lane.b32.xlu0 %v361, 32
      %v378 = vpop.permute.xlu0 %377
      %379 = vrot.lane.b32.xlu0 %v362, 32
      %v380 = vpop.permute.xlu0 %379
      %v381 = vsel %vm132, %v370, 0
      %v383 = vsel %vm132, %v372, 0
      %v385 = vsel %vm132, %v374, 0
      %v387 = vsel %vm132, %v376, 0
      %v389 = vsel %vm132, %v378, 0
      %v391 = vsel %vm132, %v380, 0
      %393 = vmatprep.subr.mxu0 0.0
      %394 = vmatpush1.xpose.msra.mxu0 %v387
      %395 = vmatprep.subr.mxu0 0.0
      %396 = vmatpush1.xpose.msra.mxu0 %v389
      %397 = vmatprep.subr.mxu0 0.0
      %398 = vmatpush1.xpose.msra.mxu0 %v391
      %399 = vmatprep.subr.mxu0 0.0
      %400 = vmatpush1.xpose.msra.mxu0 0.0
      %401 = vmatprep.subr.mxu0 0.0
      %402 = vmatpush1.xpose.msra.mxu0 0.0
      %403 = vmatprep.subr.mxu0 0.0
      %404 = vmatpush1.xpose.msra.mxu0 0.0
      %405 = vmatprep.subr.mxu0 0.0
      %406 = vmatpush1.xpose.msra.mxu0 0.0
      %407 = vmatprep.subr.mxu0 0.0
      %408 = vmatpush1.xpose.msra.mxu0 0.0
      %409 = vmatprep.subr.mxu0 0.0
      %410 = vmatpush1.xpose.msra.mxu0 0.0
      %411 = vmatprep.subr.mxu0 0.0
      %412 = vmatpush1.xpose.msra.mxu0 0.0
      %413 = vmatprep.subr.mxu0 0.0
      %414 = vmatpush1.xpose.msra.mxu0 0.0
      %415 = vmatprep.subr.mxu0 0.0
      %416 = vmatpush1.xpose.msra.mxu0 0.0
      %417 = vmatprep.subr.mxu0 0.0
      %418 = vmatpush1.xpose.msra.mxu0 0.0
      %419 = vmatprep.subr.mxu0 0.0
      %420 = vmatpush1.xpose.msra.mxu0 0.0
      %421 = vmatprep.subr.mxu0 0.0
      %422 = vmatpush1.xpose.msra.mxu0 0.0
      %423 = vmatprep.subr.mxu0 0.0
      %424 = vmatpush1.xpose.msra.mxu0 0.0
      %425 = vmatprep.subr.mxu0 0.0
      %426 = vmatpush1.xpose.msra.mxu0 0.0
      %427 = vmatprep.subr.mxu0 0.0
      %428 = vmatpush1.xpose.msra.mxu0 0.0
      %429 = vmatprep.subr.mxu0 0.0
      %430 = vmatpush1.xpose.msra.mxu0 0.0
      %431 = vmatprep.subr.mxu0 0.0
      %432 = vmatpush1.xpose.msra.mxu0 0.0
      %433 = vmatprep.subr.mxu0 0.0
      %434 = vmatpush1.xpose.msra.mxu0 0.0
      %435 = vmatprep.subr.mxu0 0.0
      %436 = vmatpush1.xpose.msra.mxu0 0.0
      %437 = vmatprep.subr.mxu0 0.0
      %438 = vmatpush1.xpose.msra.mxu0 0.0
      %439 = vmatprep.subr.mxu0 0.0
      %440 = vmatpush1.xpose.msra.mxu0 0.0
      %441 = vmatprep.subr.mxu0 0.0
      %442 = vmatpush1.xpose.msra.mxu0 0.0
      %443 = vmatprep.subr.mxu0 0.0
      %444 = vmatpush1.xpose.msra.mxu0 0.0
      %445 = vmatprep.subr.mxu0 0.0
      %446 = vmatpush1.xpose.msra.mxu0 0.0
      %447 = vmatprep.subr.mxu0 0.0
      %448 = vmatpush1.xpose.msra.mxu0 0.0
      %449 = vmatprep.subr.mxu0 0.0
      %450 = vmatpush1.xpose.msra.mxu0 0.0
      %451 = vmatprep.subr.mxu0 0.0
      %452 = vmatpush1.xpose.msra.mxu0 0.0
      %453 = vmatprep.subr.mxu0 0.0
      %454 = vmatpush1.xpose.msra.mxu0 0.0
      %455 = vmatprep.subr.mxu0 0.0
      %456 = vmatpush1.xpose.msra.mxu0 0.0
      %457 = vmatprep.mubr.f32.mxu0 0.0
      %458 = vmatmul.mubr.f32.gmra.mrb[0].mxu0 %v381
      %v459 = vpop.f32.mrb[0].mxu0
      %v460 = vadd.f32 0.0, %v459
      %v461 = vpop.f32.mrb[0].mxu0
      %462 = vmatprep.mubr.f32.mxu0 0.0
      %463 = vmatmul.mubr.f32.gmra.mrb[0].mxu0 %v383
      %v464 = vpop.f32.mrb[0].mxu0
      %v465 = vadd.f32 0.0, %v464
      %v466 = vpop.f32.mrb[0].mxu0
      %467 = vmatprep.mubr.f32.mxu0 0.0
      %468 = vmatmul.mubr.f32.gmra.mrb[0].mxu0 %v385
      %v469 = vpop.f32.mrb[0].mxu0
      %v470 = vadd.f32 0.0, %v469
      %v471 = vpop.f32.mrb[0].mxu0
      %472 = vdwg.mxu0
      %v473 = vmul.f32 %v460, 0.17677669
      %v474 = vmul.f32 %v465, 0.17677669
      %v475 = vmul.f32 %v470, 0.17677669
      %v476 = vsel %vm230, %v473, -1e+30
      %v477 = vsel %vm230, %v474, -1e+30
      %v478 = vsel %vm230, %v475, -1e+30
      %v479 = vsel %vm234, %v476, -inf
      %480 = vmax.xlane.f32.xlu0 %v479
      %v481 = vpop.xlane.xlu0 %480
      %v482 = vsel %vm234, %v477, -inf
      %483 = vmax.xlane.f32.xlu0 %v482
      %v484 = vpop.xlane.xlu0 %483
      %v485 = vsel %vm234, %v478, -inf
      %486 = vmax.xlane.f32.xlu0 %v485
      %v487 = vpop.xlane.xlu0 %486
      %v488 = vsub.f32 %v476, %v481
      %v489 = vsub.f32 %v477, %v484
      %v490 = vsub.f32 %v478, %v487
      %v491 = vmul.f32 %v488, 1.442695
      %v492 = vpow.pop %v491
      %v493 = vmul.f32 %v489, 1.442695
      %v494 = vpow.pop %v493
      %v495 = vmul.f32 %v490, 1.442695
      %v496 = vpow.pop %v495
      %v497 = vsel %vm234, %v492, 0.0
      %498 = vadd.xlane.f32.xlu0 %v497
      %v499 = vpop.xlane.xlu0 %498
      %v500 = vsel %vm234, %v494, 0.0
      %501 = vadd.xlane.f32.xlu0 %v500
      %v502 = vpop.xlane.xlu0 %501
      %v503 = vsel %vm234, %v496, 0.0
      %504 = vadd.xlane.f32.xlu0 %v503
      %v505 = vpop.xlane.xlu0 %504
      %v506 = vrcp.pop %v499
      %v507 = vrcp.pop %v502
      %v508 = vrcp.pop %v505
      %v509 = vmul.f32 %v492, %v506
      %v510 = vmul.f32 %v494, %v507
      %v511 = vmul.f32 %v496, %v508
      %515 = vrot.lane.b32.xlu0 %v363, 96
      %v516 = vpop.permute.xlu0 %515
      %517 = vrot.lane.b32.xlu0 %v364, 96
      %v518 = vpop.permute.xlu0 %517
      %519 = vrot.lane.b32.xlu0 %v365, 96
      %v520 = vpop.permute.xlu0 %519
      %v525 = vsel %vm234, %v509, 0
      %v528 = vsel %vm234, %v510, 0
      %v531 = vsel %vm234, %v511, 0
      %533 = vmatprep.subr.mxu0 0.0
      %534 = vmatpush1.msra.mxu0 %v516
      %535 = vmatprep.subr.mxu0 0.0
      %536 = vmatpush1.msra.mxu0 %v518
      %537 = vmatprep.subr.mxu0 0.0
      %538 = vmatpush1.msra.mxu0 %v520
      %539 = vmatprep.subr.mxu0 0.0
      %540 = vmatpush1.msra.mxu0 0.0
      %541 = vmatprep.subr.mxu0 0.0
      %542 = vmatpush1.msra.mxu0 0.0
      %543 = vmatprep.subr.mxu0 0.0
      %544 = vmatpush1.msra.mxu0 0.0
      %545 = vmatprep.subr.mxu0 0.0
      %546 = vmatpush1.msra.mxu0 0.0
      %547 = vmatprep.subr.mxu0 0.0
      %548 = vmatpush1.msra.mxu0 0.0
      %549 = vmatprep.subr.mxu0 0.0
      %550 = vmatpush1.msra.mxu0 0.0
      %551 = vmatprep.subr.mxu0 0.0
      %552 = vmatpush1.msra.mxu0 0.0
      %553 = vmatprep.subr.mxu0 0.0
      %554 = vmatpush1.msra.mxu0 0.0
      %555 = vmatprep.subr.mxu0 0.0
      %556 = vmatpush1.msra.mxu0 0.0
      %557 = vmatprep.subr.mxu0 0.0
      %558 = vmatpush1.msra.mxu0 0.0
      %559 = vmatprep.subr.mxu0 0.0
      %560 = vmatpush1.msra.mxu0 0.0
      %561 = vmatprep.subr.mxu0 0.0
      %562 = vmatpush1.msra.mxu0 0.0
      %563 = vmatprep.subr.mxu0 0.0
      %564 = vmatpush1.msra.mxu0 0.0
      %565 = vmatprep.subr.mxu0 0.0
      %566 = vmatpush1.msra.mxu0 0.0
      %567 = vmatprep.subr.mxu0 0.0
      %568 = vmatpush1.msra.mxu0 0.0
      %569 = vmatprep.subr.mxu0 0.0
      %570 = vmatpush1.msra.mxu0 0.0
      %571 = vmatprep.subr.mxu0 0.0
      %572 = vmatpush1.msra.mxu0 0.0
      %573 = vmatprep.subr.mxu0 0.0
      %574 = vmatpush1.msra.mxu0 0.0
      %575 = vmatprep.subr.mxu0 0.0
      %576 = vmatpush1.msra.mxu0 0.0
      %577 = vmatprep.subr.mxu0 0.0
      %578 = vmatpush1.msra.mxu0 0.0
      %579 = vmatprep.subr.mxu0 0.0
      %580 = vmatpush1.msra.mxu0 0.0
      %581 = vmatprep.subr.mxu0 0.0
      %582 = vmatpush1.msra.mxu0 0.0
      %583 = vmatprep.subr.mxu0 0.0
      %584 = vmatpush1.msra.mxu0 0.0
      %585 = vmatprep.subr.mxu0 0.0
      %586 = vmatpush1.msra.mxu0 0.0
      %587 = vmatprep.subr.mxu0 0.0
      %588 = vmatpush1.msra.mxu0 0.0
      %589 = vmatprep.subr.mxu0 0.0
      %590 = vmatpush1.msra.mxu0 0.0
      %591 = vmatprep.subr.mxu0 0.0
      %592 = vmatpush1.msra.mxu0 0.0
      %593 = vmatprep.subr.mxu0 0.0
      %594 = vmatpush1.msra.mxu0 0.0
      %595 = vmatprep.subr.mxu0 0.0
      %596 = vmatpush1.msra.mxu0 0.0
      %597 = vmatprep.mubr.f32.mxu0 0.0
      %598 = vmatmul.mubr.f32.gmra.mrb[0].mxu0 %v525
      %v599 = vpop.f32.mrb[0].mxu0
      %v600 = vadd.f32 0.0, %v599
      %v601 = vpop.f32.mrb[0].mxu0
      %602 = vmatprep.mubr.f32.mxu0 0.0
      %603 = vmatmul.mubr.f32.gmra.mrb[0].mxu0 %v528
      %v604 = vpop.f32.mrb[0].mxu0
      %v605 = vadd.f32 0.0, %v604
      %v606 = vpop.f32.mrb[0].mxu0
      %607 = vmatprep.mubr.f32.mxu0 0.0
      %608 = vmatmul.mubr.f32.gmra.mrb[0].mxu0 %v531
      %v609 = vpop.f32.mrb[0].mxu0
      %v610 = vadd.f32 0.0, %v609
      %v611 = vpop.f32.mrb[0].mxu0
      %612 = vdwg.mxu0
      %616 = vrot.lane.b32.xlu0 %v600, 32
      %v617 = vpop.permute.xlu0 %616
      %618 = vrot.lane.b32.xlu0 %v605, 32
      %v619 = vpop.permute.xlu0 %618
      %620 = vrot.lane.b32.xlu0 %v610, 32
      %v621 = vpop.permute.xlu0 %620
      %vm625 = vcmask 523520
      %626 = vst.msk [vmem:[%s116] sm:$0xff] %vm625, %v617
      %627 = vst.msk [vmem:[%s116 + $0x8] sm:$0xff] %vm625, %v619
      %628 = vst.msk [vmem:[%s116 + $0x10] sm:$0xff] %vm625, %v621
      %p629 = scmp.lt.s32.totalorder %s12, 1
      %s630 = scalar_select %p629, %s12, 1
      %s631 = smul.addr %s630, 3
      %s632 = smul.addr %s631, 8
      %s633 = scalar_lea.vmem %s1, %s632
      // Predicated region
      $region25: #{vit_forward.26} parent=23 // pred_check
        %p634 = pneg %p56
      $region26: #{vit_forward.26} parent=23 // pred_check_branch
        %636 = sbr.rel (%p634) target = $region28
      $region27: #{vit_forward.26} parent=23 // pred_region
        _
      $region28: #{vit_forward.26} parent=23 // pred_fallthru
        _
    $region24: #{vit_forward.26} parent=5 // pred_fallthru
      _
    %p637 = scmp.le.s32.totalorder 2, %s7
    // Predicated region
    $region29: #{vit_forward.26} parent=5 // pred_check
      %p638 = pneg %p637
    $region30: #{vit_forward.26} parent=5 // pred_check_branch
      %640 = sbr.rel (%p638) target = $region32
    $region31: #{vit_forward.26} parent=5 // pred_region
      %s641 = ssub.s32 %s7, 2
      // Predicated region
      $region33: #{vit_forward.26} parent=31 // pred_check
        %p642 = pneg %p62
      $region34: #{vit_forward.26} parent=31 // pred_check_branch
        %644 = sbr.rel (%p642) target = $region36
      $region35: #{vit_forward.26} parent=31 // pred_region
        %p645 = scmp.lt.s32.totalorder %s13, 1
        %s646 = scalar_select %p645, %s13, 1
        %s647 = smul.addr %s646, 3
        %s648 = smul.addr %s647, 8
        %s649 = scalar_lea.vmem %s1, %s648
      $region36: #{vit_forward.26} parent=31 // pred_fallthru
        _
    $region32: #{vit_forward.26} parent=5 // pred_fallthru
      _
  $region6: #{vit_forward.26} parent=0 // loop_footer
    %s11 = sadd.s32 1, %s7
  $region7: #{vit_forward.26} parent=0 // loop_footer_branch
    %6 = sbr.rel target = $region3
  $region8: #{vit_forward.26} parent=0 // loop_exit
    _

// kernel: vit_forward.27
$region0: #{vit_forward.27}
  #allocation0 [shape = 'u32[]', space=smem, size = 0x4, offset = 0x4, fixed_abs, tag = 'smem constant byte address 0x4 - core index']
  #allocation1 [shape = 'u32[144,128]{1,0:T(1,128)}', space=vmem, size = 0x12000, scoped, tag = 'internal scratch']
  #allocation2 [shape = 'f32[48,128]{1,0:T(8,128)}', space=vmem, size = 0x6000, scoped, tag = 'scratch operand']
  %s0 = inlined_call_operand.vmem [shape: f32[48,64], index: 0, kind: input, shape index: {}]
  %s1 = inlined_call_operand.vmem [shape: f32[64,128], index: 1, kind: input, shape index: {}]
  %s2 = inlined_call_operand.vmem [shape: f32[1,128], index: 2, kind: input, shape index: {}]
  %s3 = inlined_call_operand.vmem [shape: f32[48,128], index: 3, kind: input, shape index: {}]
  %s4 = inlined_call_operand.vmem [shape: f32[48,128], index: 4, kind: output, shape index: {}]
  %s5 = sld [smem:[#allocation0]]
  $region34: #{vit_forward.27} parent=0
    _
  %s7 = ssub.s32 1, %s5
  %s8 = scalar_select 0, %s7, %s5
  // Predicated region
  $region2: #{vit_forward.27} parent=0 // pred_check
    _
  $region3: #{vit_forward.27} parent=0 // pred_check_branch
    %10 = sbr.rel (0) target = $region5
  $region4: #{vit_forward.27} parent=0 // pred_region
    _
  $region5: #{vit_forward.27} parent=0 // pred_fallthru
    _
  // Predicated region
  $region6: #{vit_forward.27} parent=0 // pred_check
    _
  $region7: #{vit_forward.27} parent=0 // pred_check_branch
    %12 = sbr.rel (0) target = $region9
  $region8: #{vit_forward.27} parent=0 // pred_region
    _
  $region9: #{vit_forward.27} parent=0 // pred_fallthru
    _
  // Predicated region
  $region10: #{vit_forward.27} parent=0 // pred_check
    _
  $region11: #{vit_forward.27} parent=0 // pred_check_branch
    %14 = sbr.rel (0) target = $region13
  $region12: #{vit_forward.27} parent=0 // pred_region
    _
  $region13: #{vit_forward.27} parent=0 // pred_fallthru
    _
  // Predicated region
  $region14: #{vit_forward.27} parent=0 // pred_check
    _
  $region15: #{vit_forward.27} parent=0 // pred_check_branch
    %16 = sbr.rel (0) target = $region17
  $region16: #{vit_forward.27} parent=0 // pred_region
    _
  $region17: #{vit_forward.27} parent=0 // pred_fallthru
    _
  %p17 = scmp.eq.s32.totalorder 0, 0
  // Predicated region
  $region18: #{vit_forward.27} parent=0 // pred_check
    %p18 = pneg %p17
  $region19: #{vit_forward.27} parent=0 // pred_check_branch
    %20 = sbr.rel (%p18) target = $region21
  $region20: #{vit_forward.27} parent=0 // pred_region
    %21 = vst [vmem:[#allocation2] sm:$0xff] 0.0
    %22 = vst [vmem:[#allocation2 + $0x8] sm:$0xff] 0.0
    %23 = vst [vmem:[#allocation2 + $0x10] sm:$0xff] 0.0
    %24 = vst [vmem:[#allocation2 + $0x18] sm:$0xff] 0.0
    %25 = vst [vmem:[#allocation2 + $0x20] sm:$0xff] 0.0
    %26 = vst [vmem:[#allocation2 + $0x28] sm:$0xff] 0.0
  $region21: #{vit_forward.27} parent=0 // pred_fallthru
    _
  %v27 = vld [vmem:[#allocation2] sm:$0xff]
  %v28 = vld [vmem:[#allocation2 + $0x8] sm:$0xff]
  %v29 = vld [vmem:[#allocation2 + $0x10] sm:$0xff]
  %v30 = vld [vmem:[#allocation2 + $0x18] sm:$0xff]
  %v31 = vld [vmem:[#allocation2 + $0x20] sm:$0xff]
  %v32 = vld [vmem:[#allocation2 + $0x28] sm:$0xff]
  %v33 = vld [vmem:[%s0] sm:$0xff]
  %v34 = vld [vmem:[%s0 + $0x8] sm:$0xff]
  %v35 = vld [vmem:[%s0 + $0x10] sm:$0xff]
  %v36 = vld [vmem:[%s0 + $0x18] sm:$0xff]
  %v37 = vld [vmem:[%s0 + $0x20] sm:$0xff]
  %v38 = vld [vmem:[%s0 + $0x28] sm:$0xff]
  %v39 = vld [vmem:[%s1] sm:$0xff]
  %v40 = vld [vmem:[%s1 + $0x8] sm:$0xff]
  %v41 = vld [vmem:[%s1 + $0x10] sm:$0xff]
  %v42 = vld [vmem:[%s1 + $0x18] sm:$0xff]
  %v43 = vld [vmem:[%s1 + $0x20] sm:$0xff]
  %v44 = vld [vmem:[%s1 + $0x28] sm:$0xff]
  %v45 = vld [vmem:[%s1 + $0x30] sm:$0xff]
  %v46 = vld [vmem:[%s1 + $0x38] sm:$0xff]
  %vm47 = vcmask 523264
  %v49 = vsel %vm47, %v33, 0
  %v52 = vsel %vm47, %v34, 0
  %v55 = vsel %vm47, %v35, 0
  %v58 = vsel %vm47, %v36, 0
  %v61 = vsel %vm47, %v37, 0
  %v64 = vsel %vm47, %v38, 0
  %66 = vmatprep.subr.mxu0 0.0
  %67 = vmatpush1.msra.mxu0 %v39
  %68 = vmatprep.subr.mxu0 0.0
  %69 = vmatpush1.msra.mxu0 %v40
  %70 = vmatprep.subr.mxu0 0.0
  %71 = vmatpush1.msra.mxu0 %v41
  %72 = vmatprep.subr.mxu0 0.0
  %73 = vmatpush1.msra.mxu0 %v42
  %74 = vmatprep.subr.mxu0 0.0
  %75 = vmatpush1.msra.mxu0 %v43
  %76 = vmatprep.subr.mxu0 0.0
  %77 = vmatpush1.msra.mxu0 %v44
  %78 = vmatprep.subr.mxu0 0.0
  %79 = vmatpush1.msra.mxu0 %v45
  %80 = vmatprep.subr.mxu0 0.0
  %81 = vmatpush1.msra.mxu0 %v46
  %82 = vmatprep.subr.mxu0 0.0
  %83 = vmatpush1.msra.mxu0 0.0
  %84 = vmatprep.subr.mxu0 0.0
  %85 = vmatpush1.msra.mxu0 0.0
  %86 = vmatprep.subr.mxu0 0.0
  %87 = vmatpush1.msra.mxu0 0.0
  %88 = vmatprep.subr.mxu0 0.0
  %89 = vmatpush1.msra.mxu0 0.0
  %90 = vmatprep.subr.mxu0 0.0
  %91 = vmatpush1.msra.mxu0 0.0
  %92 = vmatprep.subr.mxu0 0.0
  %93 = vmatpush1.msra.mxu0 0.0
  %94 = vmatprep.subr.mxu0 0.0
  %95 = vmatpush1.msra.mxu0 0.0
  %96 = vmatprep.subr.mxu0 0.0
  %97 = vmatpush1.msra.mxu0 0.0
  %98 = vmatprep.subr.mxu0 0.0
  %99 = vmatpush1.msra.mxu0 0.0
  %100 = vmatprep.subr.mxu0 0.0
  %101 = vmatpush1.msra.mxu0 0.0
  %102 = vmatprep.subr.mxu0 0.0
  %103 = vmatpush1.msra.mxu0 0.0
  %104 = vmatprep.subr.mxu0 0.0
  %105 = vmatpush1.msra.mxu0 0.0
  %106 = vmatprep.subr.mxu0 0.0
  %107 = vmatpush1.msra.mxu0 0.0
  %108 = vmatprep.subr.mxu0 0.0
  %109 = vmatpush1.msra.mxu0 0.0
  %110 = vmatprep.subr.mxu0 0.0
  %111 = vmatpush1.msra.mxu0 0.0
  %112 = vmatprep.subr.mxu0 0.0
  %113 = vmatpush1.msra.mxu0 0.0
  %114 = vmatprep.subr.mxu0 0.0
  %115 = vmatpush1.msra.mxu0 0.0
  %116 = vmatprep.subr.mxu0 0.0
  %117 = vmatpush1.msra.mxu0 0.0
  %118 = vmatprep.subr.mxu0 0.0
  %119 = vmatpush1.msra.mxu0 0.0
  %120 = vmatprep.subr.mxu0 0.0
  %121 = vmatpush1.msra.mxu0 0.0
  %122 = vmatprep.subr.mxu0 0.0
  %123 = vmatpush1.msra.mxu0 0.0
  %124 = vmatprep.subr.mxu0 0.0
  %125 = vmatpush1.msra.mxu0 0.0
  %126 = vmatprep.subr.mxu0 0.0
  %127 = vmatpush1.msra.mxu0 0.0
  %128 = vmatprep.subr.mxu0 0.0
  %129 = vmatpush1.msra.mxu0 0.0
  %130 = vmatprep.mubr.f32.mxu0 0.0
  %131 = vmatmul.mubr.f32.gmra.mrb[0].mxu0 %v49
  %v132 = vpop.f32.mrb[0].mxu0
  %v133 = vadd.f32 0.0, %v132
  %v134 = vpop.f32.mrb[0].mxu0
  %135 = vmatprep.mubr.f32.mxu0 0.0
  %136 = vmatmul.mubr.f32.gmra.mrb[0].mxu0 %v52
  %v137 = vpop.f32.mrb[0].mxu0
  %v138 = vadd.f32 0.0, %v137
  %v139 = vpop.f32.mrb[0].mxu0
  %140 = vmatprep.mubr.f32.mxu0 0.0
  %141 = vmatmul.mubr.f32.gmra.mrb[0].mxu0 %v55
  %v142 = vpop.f32.mrb[0].mxu0
  %v143 = vadd.f32 0.0, %v142
  %v144 = vpop.f32.mrb[0].mxu0
  %145 = vmatprep.mubr.f32.mxu0 0.0
  %146 = vmatmul.mubr.f32.gmra.mrb[0].mxu0 %v58
  %v147 = vpop.f32.mrb[0].mxu0
  %v148 = vadd.f32 0.0, %v147
  %v149 = vpop.f32.mrb[0].mxu0
  %150 = vmatprep.mubr.f32.mxu0 0.0
  %151 = vmatmul.mubr.f32.gmra.mrb[0].mxu0 %v61
  %v152 = vpop.f32.mrb[0].mxu0
  %v153 = vadd.f32 0.0, %v152
  %v154 = vpop.f32.mrb[0].mxu0
  %155 = vmatprep.mubr.f32.mxu0 0.0
  %156 = vmatmul.mubr.f32.gmra.mrb[0].mxu0 %v64
  %v157 = vpop.f32.mrb[0].mxu0
  %v158 = vadd.f32 0.0, %v157
  %v159 = vpop.f32.mrb[0].mxu0
  %160 = vdwg.mxu0
  %v161 = vadd.f32 %v27, %v133
  %v162 = vadd.f32 %v28, %v138
  %v163 = vadd.f32 %v29, %v143
  %v164 = vadd.f32 %v30, %v148
  %v165 = vadd.f32 %v31, %v153
  %v166 = vadd.f32 %v32, %v158
  %167 = vst [vmem:[#allocation2] sm:$0xff] %v161
  %168 = vst [vmem:[#allocation2 + $0x8] sm:$0xff] %v162
  %169 = vst [vmem:[#allocation2 + $0x10] sm:$0xff] %v163
  %170 = vst [vmem:[#allocation2 + $0x18] sm:$0xff] %v164
  %171 = vst [vmem:[#allocation2 + $0x20] sm:$0xff] %v165
  %172 = vst [vmem:[#allocation2 + $0x28] sm:$0xff] %v166
  // Predicated region
  $region22: #{vit_forward.27} parent=0 // pred_check
    %p173 = pneg %p17
  $region23: #{vit_forward.27} parent=0 // pred_check_branch
    %175 = sbr.rel (%p173) target = $region25
  $region24: #{vit_forward.27} parent=0 // pred_region
    %v176 = vld [vmem:[#allocation2] sm:$0xff]
    %v177 = vld [vmem:[#allocation2 + $0x8] sm:$0xff]
    %v178 = vld [vmem:[#allocation2 + $0x10] sm:$0xff]
    %v179 = vld [vmem:[#allocation2 + $0x18] sm:$0xff]
    %v180 = vld [vmem:[#allocation2 + $0x20] sm:$0xff]
    %v181 = vld [vmem:[#allocation2 + $0x28] sm:$0xff]
    %v182 = vld [vmem:[%s2] sm:$0x1]
    %v184 = vlaneseq
    %v185 = vshrl.u32 %v184, 7
    %v186 = vsub.s32 0, %v185
    %v187 = vrot.slane %v182, %v186
    %v189 = vadd.f32 %v176, %v187
    %v190 = vadd.f32 %v177, %v187
    %v191 = vadd.f32 %v178, %v187
    %v192 = vadd.f32 %v179, %v187
    %v193 = vadd.f32 %v180, %v187
    %v194 = vadd.f32 %v181, %v187
    %v195 = vld [vmem:[%s3] sm:$0xff]
    %v196 = vld [vmem:[%s3 + $0x8] sm:$0xff]
    %v197 = vld [vmem:[%s3 + $0x10] sm:$0xff]
    %v198 = vld [vmem:[%s3 + $0x18] sm:$0xff]
    %v199 = vld [vmem:[%s3 + $0x20] sm:$0xff]
    %v200 = vld [vmem:[%s3 + $0x28] sm:$0xff]
    %v201 = vadd.f32 %v189, %v195
    %v202 = vadd.f32 %v190, %v196
    %v203 = vadd.f32 %v191, %v197
    %v204 = vadd.f32 %v192, %v198
    %v205 = vadd.f32 %v193, %v199
    %v206 = vadd.f32 %v194, %v200
    %207 = vst [vmem:[%s4] sm:$0xff] %v201
    %208 = vst [vmem:[%s4 + $0x8] sm:$0xff] %v202
    %209 = vst [vmem:[%s4 + $0x10] sm:$0xff] %v203
    %210 = vst [vmem:[%s4 + $0x18] sm:$0xff] %v204
    %211 = vst [vmem:[%s4 + $0x20] sm:$0xff] %v205
    %212 = vst [vmem:[%s4 + $0x28] sm:$0xff] %v206
  $region25: #{vit_forward.27} parent=0 // pred_fallthru
    _
  // Predicated region
  $region26: #{vit_forward.27} parent=0 // pred_check
    _
  $region27: #{vit_forward.27} parent=0 // pred_check_branch
    %214 = sbr.rel (0) target = $region29
  $region28: #{vit_forward.27} parent=0 // pred_region
    _
  $region29: #{vit_forward.27} parent=0 // pred_fallthru
    _
  // Predicated region
  $region30: #{vit_forward.27} parent=0 // pred_check
    _
  $region31: #{vit_forward.27} parent=0 // pred_check_branch
    %216 = sbr.rel (0) target = $region33
  $region32: #{vit_forward.27} parent=0 // pred_region
    _
  $region33: #{vit_forward.27} parent=0 // pred_fallthru
    _

// kernel: vit_forward.35
$region0: #{vit_forward.35}
  #allocation0 [shape = 'u32[]', space=smem, size = 0x4, offset = 0x4, fixed_abs, tag = 'smem constant byte address 0x4 - core index']
  #allocation1 [shape = 'u32[144,128]{1,0:T(1,128)}', space=vmem, size = 0x12000, scoped, tag = 'internal scratch']
  %s0 = inlined_call_operand.vmem [shape: f32[48,128], index: 0, kind: input, shape index: {}]
  %s1 = inlined_call_operand.vmem [shape: f32[1,128], index: 1, kind: input, shape index: {}]
  %s2 = inlined_call_operand.vmem [shape: f32[1,128], index: 2, kind: input, shape index: {}]
  %s3 = inlined_call_operand.vmem [shape: f32[48,128], index: 3, kind: output, shape index: {}]
  %s4 = sld [smem:[#allocation0]]
  $region22: #{vit_forward.35} parent=0
    _
  %s6 = ssub.s32 1, %s4
  %s7 = scalar_select 0, %s6, %s4
  // Predicated region
  $region2: #{vit_forward.35} parent=0 // pred_check
    _
  $region3: #{vit_forward.35} parent=0 // pred_check_branch
    %9 = sbr.rel (0) target = $region5
  $region4: #{vit_forward.35} parent=0 // pred_region
    _
  $region5: #{vit_forward.35} parent=0 // pred_fallthru
    _
  // Predicated region
  $region6: #{vit_forward.35} parent=0 // pred_check
    _
  $region7: #{vit_forward.35} parent=0 // pred_check_branch
    %11 = sbr.rel (0) target = $region9
  $region8: #{vit_forward.35} parent=0 // pred_region
    _
  $region9: #{vit_forward.35} parent=0 // pred_fallthru
    _
  // Predicated region
  $region10: #{vit_forward.35} parent=0 // pred_check
    _
  $region11: #{vit_forward.35} parent=0 // pred_check_branch
    %13 = sbr.rel (0) target = $region13
  $region12: #{vit_forward.35} parent=0 // pred_region
    _
  $region13: #{vit_forward.35} parent=0 // pred_fallthru
    _
  %v14 = vld [vmem:[%s0] sm:$0xff]
  %v15 = vld [vmem:[%s0 + $0x8] sm:$0xff]
  %v16 = vld [vmem:[%s0 + $0x10] sm:$0xff]
  %v17 = vld [vmem:[%s0 + $0x18] sm:$0xff]
  %v18 = vld [vmem:[%s0 + $0x20] sm:$0xff]
  %v19 = vld [vmem:[%s0 + $0x28] sm:$0xff]
  %20 = vadd.xlane.f32.xlu0 %v14
  %v21 = vpop.xlane.xlu0 %20
  %22 = vadd.xlane.f32.xlu0 %v15
  %v23 = vpop.xlane.xlu0 %22
  %24 = vadd.xlane.f32.xlu0 %v16
  %v25 = vpop.xlane.xlu0 %24
  %26 = vadd.xlane.f32.xlu0 %v17
  %v27 = vpop.xlane.xlu0 %26
  %28 = vadd.xlane.f32.xlu0 %v18
  %v29 = vpop.xlane.xlu0 %28
  %30 = vadd.xlane.f32.xlu0 %v19
  %v31 = vpop.xlane.xlu0 %30
  %v32 = vrcp.pop 128.0
  %v33 = vmul.f32 %v21, %v32
  %v34 = vmul.f32 %v23, %v32
  %v35 = vmul.f32 %v25, %v32
  %v36 = vmul.f32 %v27, %v32
  %v37 = vmul.f32 %v29, %v32
  %v38 = vmul.f32 %v31, %v32
  %v39 = vsub.f32 %v14, %v33
  %v40 = vsub.f32 %v15, %v34
  %v41 = vsub.f32 %v16, %v35
  %v42 = vsub.f32 %v17, %v36
  %v43 = vsub.f32 %v18, %v37
  %v44 = vsub.f32 %v19, %v38
  %v45 = vmul.f32 %v39, %v39
  %v46 = vmul.f32 %v40, %v40
  %v47 = vmul.f32 %v41, %v41
  %v48 = vmul.f32 %v42, %v42
  %v49 = vmul.f32 %v43, %v43
  %v50 = vmul.f32 %v44, %v44
  %51 = vadd.xlane.f32.xlu0 %v45
  %v52 = vpop.xlane.xlu0 %51
  %53 = vadd.xlane.f32.xlu0 %v46
  %v54 = vpop.xlane.xlu0 %53
  %55 = vadd.xlane.f32.xlu0 %v47
  %v56 = vpop.xlane.xlu0 %55
  %57 = vadd.xlane.f32.xlu0 %v48
  %v58 = vpop.xlane.xlu0 %57
  %59 = vadd.xlane.f32.xlu0 %v49
  %v60 = vpop.xlane.xlu0 %59
  %61 = vadd.xlane.f32.xlu0 %v50
  %v62 = vpop.xlane.xlu0 %61
  %v63 = vmul.f32 %v52, %v32
  %v64 = vmul.f32 %v54, %v32
  %v65 = vmul.f32 %v56, %v32
  %v66 = vmul.f32 %v58, %v32
  %v67 = vmul.f32 %v60, %v32
  %v68 = vmul.f32 %v62, %v32
  %v69 = vadd.f32 %v63, 1e-05
  %v70 = vadd.f32 %v64, 1e-05
  %v71 = vadd.f32 %v65, 1e-05
  %v72 = vadd.f32 %v66, 1e-05
  %v73 = vadd.f32 %v67, 1e-05
  %v74 = vadd.f32 %v68, 1e-05
  %v75 = vrsqrt.pop %v69
  %v76 = vrsqrt.pop %v70
  %v77 = vrsqrt.pop %v71
  %v78 = vrsqrt.pop %v72
  %v79 = vrsqrt.pop %v73
  %v80 = vrsqrt.pop %v74
  %v81 = vmul.f32 %v39, %v75
  %v82 = vmul.f32 %v40, %v76
  %v83 = vmul.f32 %v41, %v77
  %v84 = vmul.f32 %v42, %v78
  %v85 = vmul.f32 %v43, %v79
  %v86 = vmul.f32 %v44, %v80
  %v87 = vld [vmem:[%s1] sm:$0x1]
  %v89 = vlaneseq
  %v90 = vshrl.u32 %v89, 7
  %v91 = vsub.s32 0, %v90
  %v92 = vrot.slane %v87, %v91
  %v94 = vmul.f32 %v81, %v92
  %v95 = vmul.f32 %v82, %v92
  %v96 = vmul.f32 %v83, %v92
  %v97 = vmul.f32 %v84, %v92
  %v98 = vmul.f32 %v85, %v92
  %v99 = vmul.f32 %v86, %v92
  %v100 = vld [vmem:[%s2] sm:$0x1]
  %v102 = vlaneseq
  %v103 = vshrl.u32 %v102, 7
  %v104 = vsub.s32 0, %v103
  %v105 = vrot.slane %v100, %v104
  %v107 = vadd.f32 %v94, %v105
  %v108 = vadd.f32 %v95, %v105
  %v109 = vadd.f32 %v96, %v105
  %v110 = vadd.f32 %v97, %v105
  %v111 = vadd.f32 %v98, %v105
  %v112 = vadd.f32 %v99, %v105
  %113 = vst [vmem:[%s3] sm:$0xff] %v107
  %114 = vst [vmem:[%s3 + $0x8] sm:$0xff] %v108
  %115 = vst [vmem:[%s3 + $0x10] sm:$0xff] %v109
  %116 = vst [vmem:[%s3 + $0x18] sm:$0xff] %v110
  %117 = vst [vmem:[%s3 + $0x20] sm:$0xff] %v111
  %118 = vst [vmem:[%s3 + $0x28] sm:$0xff] %v112
  // Predicated region
  $region14: #{vit_forward.35} parent=0 // pred_check
    _
  $region15: #{vit_forward.35} parent=0 // pred_check_branch
    %120 = sbr.rel (0) target = $region17
  $region16: #{vit_forward.35} parent=0 // pred_region
    _
  $region17: #{vit_forward.35} parent=0 // pred_fallthru
    _
  // Predicated region
  $region18: #{vit_forward.35} parent=0 // pred_check
    _
  $region19: #{vit_forward.35} parent=0 // pred_check_branch
    %122 = sbr.rel (0) target = $region21
  $region20: #{vit_forward.35} parent=0 // pred_region
    _
  $region21: #{vit_forward.35} parent=0 // pred_fallthru
    _

// kernel: vit_forward.28
$region0: #{vit_forward.28}
  #allocation0 [shape = 'u32[]', space=smem, size = 0x4, offset = 0x4, fixed_abs, tag = 'smem constant byte address 0x4 - core index']
  #allocation1 [shape = 'u32[144,128]{1,0:T(1,128)}', space=vmem, size = 0x12000, scoped, tag = 'internal scratch']
  %s0 = inlined_call_operand.vmem [shape: f32[48,128], index: 0, kind: input, shape index: {}]
  %s1 = inlined_call_operand.vmem [shape: f32[1,128], index: 1, kind: input, shape index: {}]
  %s2 = inlined_call_operand.vmem [shape: f32[1,128], index: 2, kind: input, shape index: {}]
  %s3 = inlined_call_operand.vmem [shape: f32[128,256], index: 3, kind: input, shape index: {}]
  %s4 = inlined_call_operand.vmem [shape: f32[1,256], index: 4, kind: input, shape index: {}]
  %s5 = inlined_call_operand.vmem [shape: f32[48,256], index: 5, kind: output, shape index: {}]
  %s6 = sld [smem:[#allocation0]]
  $region30: #{vit_forward.28} parent=0
    _
  %s8 = ssub.s32 1, %s6
  %s9 = scalar_select 0, %s8, %s6
  // Predicated region
  $region2: #{vit_forward.28} parent=0 // pred_check
    _
  $region3: #{vit_forward.28} parent=0 // pred_check_branch
    %11 = sbr.rel (0) target = $region5
  $region4: #{vit_forward.28} parent=0 // pred_region
    _
  $region5: #{vit_forward.28} parent=0 // pred_fallthru
    _
  // Predicated region
  $region6: #{vit_forward.28} parent=0 // pred_check
    _
  $region7: #{vit_forward.28} parent=0 // pred_check_branch
    %13 = sbr.rel (0) target = $region9
  $region8: #{vit_forward.28} parent=0 // pred_region
    _
  $region9: #{vit_forward.28} parent=0 // pred_fallthru
    _
  // Predicated region
  $region10: #{vit_forward.28} parent=0 // pred_check
    _
  $region11: #{vit_forward.28} parent=0 // pred_check_branch
    %15 = sbr.rel (0) target = $region13
  $region12: #{vit_forward.28} parent=0 // pred_region
    _
  $region13: #{vit_forward.28} parent=0 // pred_fallthru
    _
  // Predicated region
  $region14: #{vit_forward.28} parent=0 // pred_check
    _
  $region15: #{vit_forward.28} parent=0 // pred_check_branch
    %17 = sbr.rel (0) target = $region17
  $region16: #{vit_forward.28} parent=0 // pred_region
    _
  $region17: #{vit_forward.28} parent=0 // pred_fallthru
    _
  // Predicated region
  $region18: #{vit_forward.28} parent=0 // pred_check
    _
  $region19: #{vit_forward.28} parent=0 // pred_check_branch
    %19 = sbr.rel (0) target = $region21
  $region20: #{vit_forward.28} parent=0 // pred_region
    _
  $region21: #{vit_forward.28} parent=0 // pred_fallthru
    _
  %v20 = vld [vmem:[%s0] sm:$0xff]
  %v21 = vld [vmem:[%s0 + $0x8] sm:$0xff]
  %v22 = vld [vmem:[%s0 + $0x10] sm:$0xff]
  %v23 = vld [vmem:[%s0 + $0x18] sm:$0xff]
  %v24 = vld [vmem:[%s0 + $0x20] sm:$0xff]
  %v25 = vld [vmem:[%s0 + $0x28] sm:$0xff]
  %26 = vadd.xlane.f32.xlu0 %v20
  %v27 = vpop.xlane.xlu0 %26
  %28 = vadd.xlane.f32.xlu0 %v21
  %v29 = vpop.xlane.xlu0 %28
  %30 = vadd.xlane.f32.xlu0 %v22
  %v31 = vpop.xlane.xlu0 %30
  %32 = vadd.xlane.f32.xlu0 %v23
  %v33 = vpop.xlane.xlu0 %32
  %34 = vadd.xlane.f32.xlu0 %v24
  %v35 = vpop.xlane.xlu0 %34
  %36 = vadd.xlane.f32.xlu0 %v25
  %v37 = vpop.xlane.xlu0 %36
  %v38 = vrcp.pop 128.0
  %v39 = vmul.f32 %v27, %v38
  %v40 = vmul.f32 %v29, %v38
  %v41 = vmul.f32 %v31, %v38
  %v42 = vmul.f32 %v33, %v38
  %v43 = vmul.f32 %v35, %v38
  %v44 = vmul.f32 %v37, %v38
  %v45 = vsub.f32 %v20, %v39
  %v46 = vsub.f32 %v21, %v40
  %v47 = vsub.f32 %v22, %v41
  %v48 = vsub.f32 %v23, %v42
  %v49 = vsub.f32 %v24, %v43
  %v50 = vsub.f32 %v25, %v44
  %v51 = vmul.f32 %v45, %v45
  %v52 = vmul.f32 %v46, %v46
  %v53 = vmul.f32 %v47, %v47
  %v54 = vmul.f32 %v48, %v48
  %v55 = vmul.f32 %v49, %v49
  %v56 = vmul.f32 %v50, %v50
  %57 = vadd.xlane.f32.xlu0 %v51
  %v58 = vpop.xlane.xlu0 %57
  %59 = vadd.xlane.f32.xlu0 %v52
  %v60 = vpop.xlane.xlu0 %59
  %61 = vadd.xlane.f32.xlu0 %v53
  %v62 = vpop.xlane.xlu0 %61
  %63 = vadd.xlane.f32.xlu0 %v54
  %v64 = vpop.xlane.xlu0 %63
  %65 = vadd.xlane.f32.xlu0 %v55
  %v66 = vpop.xlane.xlu0 %65
  %67 = vadd.xlane.f32.xlu0 %v56
  %v68 = vpop.xlane.xlu0 %67
  %v69 = vmul.f32 %v58, %v38
  %v70 = vmul.f32 %v60, %v38
  %v71 = vmul.f32 %v62, %v38
  %v72 = vmul.f32 %v64, %v38
  %v73 = vmul.f32 %v66, %v38
  %v74 = vmul.f32 %v68, %v38
  %v75 = vadd.f32 %v69, 1e-05
  %v76 = vadd.f32 %v70, 1e-05
  %v77 = vadd.f32 %v71, 1e-05
  %v78 = vadd.f32 %v72, 1e-05
  %v79 = vadd.f32 %v73, 1e-05
  %v80 = vadd.f32 %v74, 1e-05
  %v81 = vrsqrt.pop %v75
  %v82 = vrsqrt.pop %v76
  %v83 = vrsqrt.pop %v77
  %v84 = vrsqrt.pop %v78
  %v85 = vrsqrt.pop %v79
  %v86 = vrsqrt.pop %v80
  %v87 = vmul.f32 %v45, %v81
  %v88 = vmul.f32 %v46, %v82
  %v89 = vmul.f32 %v47, %v83
  %v90 = vmul.f32 %v48, %v84
  %v91 = vmul.f32 %v49, %v85
  %v92 = vmul.f32 %v50, %v86
  %v93 = vld [vmem:[%s1] sm:$0x1]
  %v95 = vlaneseq
  %v96 = vshrl.u32 %v95, 7
  %v97 = vsub.s32 0, %v96
  %v98 = vrot.slane %v93, %v97
  %v100 = vmul.f32 %v87, %v98
  %v101 = vmul.f32 %v88, %v98
  %v102 = vmul.f32 %v89, %v98
  %v103 = vmul.f32 %v90, %v98
  %v104 = vmul.f32 %v91, %v98
  %v105 = vmul.f32 %v92, %v98
  %v106 = vld [vmem:[%s2] sm:$0x1]
  %v108 = vlaneseq
  %v109 = vshrl.u32 %v108, 7
  %v110 = vsub.s32 0, %v109
  %v111 = vrot.slane %v106, %v110
  %v113 = vadd.f32 %v100, %v111
  %v114 = vadd.f32 %v101, %v111
  %v115 = vadd.f32 %v102, %v111
  %v116 = vadd.f32 %v103, %v111
  %v117 = vadd.f32 %v104, %v111
  %v118 = vadd.f32 %v105, %v111
  %v119 = vld [vmem:[%s3] sm:$0xff]
  %v120 = vld [vmem:[%s3 + $0x8] sm:$0xff]
  %v121 = vld [vmem:[%s3 + $0x10] sm:$0xff]
  %v122 = vld [vmem:[%s3 + $0x18] sm:$0xff]
  %v123 = vld [vmem:[%s3 + $0x20] sm:$0xff]
  %v124 = vld [vmem:[%s3 + $0x28] sm:$0xff]
  %v125 = vld [vmem:[%s3 + $0x30] sm:$0xff]
  %v126 = vld [vmem:[%s3 + $0x38] sm:$0xff]
  %v127 = vld [vmem:[%s3 + $0x40] sm:$0xff]
  %v128 = vld [vmem:[%s3 + $0x48] sm:$0xff]
  %v129 = vld [vmem:[%s3 + $0x50] sm:$0xff]
  %v130 = vld [vmem:[%s3 + $0x58] sm:$0xff]
  %v131 = vld [vmem:[%s3 + $0x60] sm:$0xff]
  %v132 = vld [vmem:[%s3 + $0x68] sm:$0xff]
  %v133 = vld [vmem:[%s3 + $0x70] sm:$0xff]
  %v134 = vld [vmem:[%s3 + $0x78] sm:$0xff]
  %v135 = vld [vmem:[%s3 + $0x80] sm:$0xff]
  %v136 = vld [vmem:[%s3 + $0x88] sm:$0xff]
  %v137 = vld [vmem:[%s3 + $0x90] sm:$0xff]
  %v138 = vld [vmem:[%s3 + $0x98] sm:$0xff]
  %v139 = vld [vmem:[%s3 + $0xa0] sm:$0xff]
  %v140 = vld [vmem:[%s3 + $0xa8] sm:$0xff]
  %v141 = vld [vmem:[%s3 + $0xb0] sm:$0xff]
  %v142 = vld [vmem:[%s3 + $0xb8] sm:$0xff]
  %v143 = vld [vmem:[%s3 + $0xc0] sm:$0xff]
  %v144 = vld [vmem:[%s3 + $0xc8] sm:$0xff]
  %v145 = vld [vmem:[%s3 + $0xd0] sm:$0xff]
  %v146 = vld [vmem:[%s3 + $0xd8] sm:$0xff]
  %v147 = vld [vmem:[%s3 + $0xe0] sm:$0xff]
  %v148 = vld [vmem:[%s3 + $0xe8] sm:$0xff]
  %v149 = vld [vmem:[%s3 + $0xf0] sm:$0xff]
  %v150 = vld [vmem:[%s3 + $0xf8] sm:$0xff]
  %v151 = vld [vmem:[%s4] sm:$0x3]
  %v153 = vlaneseq
  %v154 = vshrl.u32 %v153, 7
  %v155 = vsub.s32 0, %v154
  %v156 = vrot.slane %v151, %v155
  %v157 = vlaneseq
  %v158 = vshrl.u32 %v157, 7
  %v159 = vsub.s32 1, %v158
  %v160 = vrot.slane %v151, %v159
  %163 = vmatprep.subr.mxu0 %v120
  %164 = vmatpush1.msra.mxu0 %v119
  %165 = vmatprep.subr.mxu0 %v122
  %166 = vmatpush1.msra.mxu0 %v121
  %167 = vmatprep.subr.mxu0 %v124
  %168 = vmatpush1.msra.mxu0 %v123
  %169 = vmatprep.subr.mxu0 %v126
  %170 = vmatpush1.msra.mxu0 %v125
  %171 = vmatprep.subr.mxu0 %v128
  %172 = vmatpush1.msra.mxu0 %v127
  %173 = vmatprep.subr.mxu0 %v130
  %174 = vmatpush1.msra.mxu0 %v129
  %175 = vmatprep.subr.mxu0 %v132
  %176 = vmatpush1.msra.mxu0 %v131
  %177 = vmatprep.subr.mxu0 %v134
  %178 = vmatpush1.msra.mxu0 %v133
  %179 = vmatprep.subr.mxu0 %v136
  %180 = vmatpush1.msra.mxu0 %v135
  %181 = vmatprep.subr.mxu0 %v138
  %182 = vmatpush1.msra.mxu0 %v137
  %183 = vmatprep.subr.mxu0 %v140
  %184 = vmatpush1.msra.mxu0 %v139
  %185 = vmatprep.subr.mxu0 %v142
  %186 = vmatpush1.msra.mxu0 %v141
  %187 = vmatprep.subr.mxu0 %v144
  %188 = vmatpush1.msra.mxu0 %v143
  %189 = vmatprep.subr.mxu0 %v146
  %190 = vmatpush1.msra.mxu0 %v145
  %191 = vmatprep.subr.mxu0 %v148
  %192 = vmatpush1.msra.mxu0 %v147
  %193 = vmatprep.subr.mxu0 %v150
  %194 = vmatpush1.msra.mxu0 %v149
  %195 = vmatprep.subr.mxu0 0.0
  %196 = vmatpush1.msra.mxu0 0.0
  %197 = vmatprep.subr.mxu0 0.0
  %198 = vmatpush1.msra.mxu0 0.0
  %199 = vmatprep.subr.mxu0 0.0
  %200 = vmatpush1.msra.mxu0 0.0
  %201 = vmatprep.subr.mxu0 0.0
  %202 = vmatpush1.msra.mxu0 0.0
  %203 = vmatprep.subr.mxu0 0.0
  %204 = vmatpush1.msra.mxu0 0.0
  %205 = vmatprep.subr.mxu0 0.0
  %206 = vmatpush1.msra.mxu0 0.0
  %207 = vmatprep.subr.mxu0 0.0
  %208 = vmatpush1.msra.mxu0 0.0
  %209 = vmatprep.subr.mxu0 0.0
  %210 = vmatpush1.msra.mxu0 0.0
  %211 = vmatprep.subr.mxu0 0.0
  %212 = vmatpush1.msra.mxu0 0.0
  %213 = vmatprep.subr.mxu0 0.0
  %214 = vmatpush1.msra.mxu0 0.0
  %215 = vmatprep.subr.mxu0 0.0
  %216 = vmatpush1.msra.mxu0 0.0
  %217 = vmatprep.subr.mxu0 0.0
  %218 = vmatpush1.msra.mxu0 0.0
  %219 = vmatprep.subr.mxu0 0.0
  %220 = vmatpush1.msra.mxu0 0.0
  %221 = vmatprep.subr.mxu0 0.0
  %222 = vmatpush1.msra.mxu0 0.0
  %223 = vmatprep.subr.mxu0 0.0
  %224 = vmatpush1.msra.mxu0 0.0
  %225 = vmatprep.subr.mxu0 0.0
  %226 = vmatpush1.msra.mxu0 0.0
  %227 = vmatprep.mubr.f32.mxu0 0.0
  %228 = vmatmul.mubr.f32.gmra.mrb[0].mxu0 %v113
  %v229 = vpop.f32.mrb[0].mxu0
  %v230 = vadd.f32 %v156, %v229
  %v231 = vpop.f32.mrb[0].mxu0
  %v232 = vadd.f32 %v160, %v231
  %233 = vmatprep.mubr.f32.mxu0 0.0
  %234 = vmatmul.mubr.f32.gmra.mrb[0].mxu0 %v114
  %v235 = vpop.f32.mrb[0].mxu0
  %v236 = vadd.f32 %v156, %v235
  %v237 = vpop.f32.mrb[0].mxu0
  %v238 = vadd.f32 %v160, %v237
  %239 = vmatprep.mubr.f32.mxu0 0.0
  %240 = vmatmul.mubr.f32.gmra.mrb[0].mxu0 %v115
  %v241 = vpop.f32.mrb[0].mxu0
  %v242 = vadd.f32 %v156, %v241
  %v243 = vpop.f32.mrb[0].mxu0
  %v244 = vadd.f32 %v160, %v243
  %245 = vmatprep.mubr.f32.mxu0 0.0
  %246 = vmatmul.mubr.f32.gmra.mrb[0].mxu0 %v116
  %v247 = vpop.f32.mrb[0].mxu0
  %v248 = vadd.f32 %v156, %v247
  %v249 = vpop.f32.mrb[0].mxu0
  %v250 = vadd.f32 %v160, %v249
  %251 = vmatprep.mubr.f32.mxu0 0.0
  %252 = vmatmul.mubr.f32.gmra.mrb[0].mxu0 %v117
  %v253 = vpop.f32.mrb[0].mxu0
  %v254 = vadd.f32 %v156, %v253
  %v255 = vpop.f32.mrb[0].mxu0
  %v256 = vadd.f32 %v160, %v255
  %257 = vmatprep.mubr.f32.mxu0 0.0
  %258 = vmatmul.mubr.f32.gmra.mrb[0].mxu0 %v118
  %v259 = vpop.f32.mrb[0].mxu0
  %v260 = vadd.f32 %v156, %v259
  %v261 = vpop.f32.mrb[0].mxu0
  %v262 = vadd.f32 %v160, %v261
  %263 = vdwg.mxu0
  %v264 = vmul.f32 %v230, 0.5
  %v265 = vmul.f32 %v232, 0.5
  %v266 = vmul.f32 %v236, 0.5
  %v267 = vmul.f32 %v238, 0.5
  %v268 = vmul.f32 %v242, 0.5
  %v269 = vmul.f32 %v244, 0.5
  %v270 = vmul.f32 %v248, 0.5
  %v271 = vmul.f32 %v250, 0.5
  %v272 = vmul.f32 %v254, 0.5
  %v273 = vmul.f32 %v256, 0.5
  %v274 = vmul.f32 %v260, 0.5
  %v275 = vmul.f32 %v262, 0.5
  %v276 = vmul.f32 %v230, 0.70710677
  %v277 = vmul.f32 %v232, 0.70710677
  %v278 = vmul.f32 %v236, 0.70710677
  %v279 = vmul.f32 %v238, 0.70710677
  %v280 = vmul.f32 %v242, 0.70710677
  %v281 = vmul.f32 %v244, 0.70710677
  %v282 = vmul.f32 %v248, 0.70710677
  %v283 = vmul.f32 %v250, 0.70710677
  %v284 = vmul.f32 %v254, 0.70710677
  %v285 = vmul.f32 %v256, 0.70710677
  %v286 = vmul.f32 %v260, 0.70710677
  %v287 = vmul.f32 %v262, 0.70710677
  %v288 = verf.f32.pop %v276
  %v289 = verf.f32.pop %v277
  %v290 = verf.f32.pop %v278
  %v291 = verf.f32.pop %v279
  %v292 = verf.f32.pop %v280
  %v293 = verf.f32.pop %v281
  %v294 = verf.f32.pop %v282
  %v295 = verf.f32.pop %v283
  %v296 = verf.f32.pop %v284
  %v297 = verf.f32.pop %v285
  %v298 = verf.f32.pop %v286
  %v299 = verf.f32.pop %v287
  %v300 = vadd.f32 %v288, 1.0
  %v301 = vadd.f32 %v289, 1.0
  %v302 = vadd.f32 %v290, 1.0
  %v303 = vadd.f32 %v291, 1.0
  %v304 = vadd.f32 %v292, 1.0
  %v305 = vadd.f32 %v293, 1.0
  %v306 = vadd.f32 %v294, 1.0
  %v307 = vadd.f32 %v295, 1.0
  %v308 = vadd.f32 %v296, 1.0
  %v309 = vadd.f32 %v297, 1.0
  %v310 = vadd.f32 %v298, 1.0
  %v311 = vadd.f32 %v299, 1.0
  %v312 = vmul.f32 %v264, %v300
  %v313 = vmul.f32 %v265, %v301
  %v314 = vmul.f32 %v266, %v302
  %v315 = vmul.f32 %v267, %v303
  %v316 = vmul.f32 %v268, %v304
  %v317 = vmul.f32 %v269, %v305
  %v318 = vmul.f32 %v270, %v306
  %v319 = vmul.f32 %v271, %v307
  %v320 = vmul.f32 %v272, %v308
  %v321 = vmul.f32 %v273, %v309
  %v322 = vmul.f32 %v274, %v310
  %v323 = vmul.f32 %v275, %v311
  %324 = vst [vmem:[%s5] sm:$0xff] %v312
  %325 = vst [vmem:[%s5 + $0x8] sm:$0xff] %v313
  %326 = vst [vmem:[%s5 + $0x10] sm:$0xff] %v314
  %327 = vst [vmem:[%s5 + $0x18] sm:$0xff] %v315
  %328 = vst [vmem:[%s5 + $0x20] sm:$0xff] %v316
  %329 = vst [vmem:[%s5 + $0x28] sm:$0xff] %v317
  %330 = vst [vmem:[%s5 + $0x30] sm:$0xff] %v318
  %331 = vst [vmem:[%s5 + $0x38] sm:$0xff] %v319
  %332 = vst [vmem:[%s5 + $0x40] sm:$0xff] %v320
  %333 = vst [vmem:[%s5 + $0x48] sm:$0xff] %v321
  %334 = vst [vmem:[%s5 + $0x50] sm:$0xff] %v322
  %335 = vst [vmem:[%s5 + $0x58] sm:$0xff] %v323
  // Predicated region
  $region22: #{vit_forward.28} parent=0 // pred_check
    _
  $region23: #{vit_forward.28} parent=0 // pred_check_branch
    %337 = sbr.rel (0) target = $region25
  $region24: #{vit_forward.28} parent=0 // pred_region
    _
  $region25: #{vit_forward.28} parent=0 // pred_fallthru
    _
  // Predicated region
  $region26: #{vit_forward.28} parent=0 // pred_check
    _
  $region27: #{vit_forward.28} parent=0 // pred_check_branch
    %339 = sbr.rel (0) target = $region29
  $region28: #{vit_forward.28} parent=0 // pred_region
    _
  $region29: #{vit_forward.28} parent=0 // pred_fallthru
    _

// kernel: vit_forward.29
$region0: #{vit_forward.29}
  #allocation0 [shape = 'u32[]', space=smem, size = 0x4, offset = 0x4, fixed_abs, tag = 'smem constant byte address 0x4 - core index']
  #allocation1 [shape = 'u32[144,128]{1,0:T(1,128)}', space=vmem, size = 0x12000, scoped, tag = 'internal scratch']
  #allocation2 [shape = 'f32[48,128]{1,0:T(8,128)}', space=vmem, size = 0x6000, scoped, tag = 'scratch operand']
  %s0 = inlined_call_operand.vmem [shape: f32[48,256], index: 0, kind: input, shape index: {}]
  %s1 = inlined_call_operand.vmem [shape: f32[256,128], index: 1, kind: input, shape index: {}]
  %s2 = inlined_call_operand.vmem [shape: f32[1,128], index: 2, kind: input, shape index: {}]
  %s3 = inlined_call_operand.vmem [shape: f32[48,128], index: 3, kind: input, shape index: {}]
  %s4 = inlined_call_operand.vmem [shape: f32[48,128], index: 4, kind: output, shape index: {}]
  %s5 = sld [smem:[#allocation0]]
  $region34: #{vit_forward.29} parent=0
    _
  %s7 = ssub.s32 1, %s5
  %s8 = scalar_select 0, %s7, %s5
  // Predicated region
  $region2: #{vit_forward.29} parent=0 // pred_check
    _
  $region3: #{vit_forward.29} parent=0 // pred_check_branch
    %10 = sbr.rel (0) target = $region5
  $region4: #{vit_forward.29} parent=0 // pred_region
    _
  $region5: #{vit_forward.29} parent=0 // pred_fallthru
    _
  // Predicated region
  $region6: #{vit_forward.29} parent=0 // pred_check
    _
  $region7: #{vit_forward.29} parent=0 // pred_check_branch
    %12 = sbr.rel (0) target = $region9
  $region8: #{vit_forward.29} parent=0 // pred_region
    _
  $region9: #{vit_forward.29} parent=0 // pred_fallthru
    _
  // Predicated region
  $region10: #{vit_forward.29} parent=0 // pred_check
    _
  $region11: #{vit_forward.29} parent=0 // pred_check_branch
    %14 = sbr.rel (0) target = $region13
  $region12: #{vit_forward.29} parent=0 // pred_region
    _
  $region13: #{vit_forward.29} parent=0 // pred_fallthru
    _
  // Predicated region
  $region14: #{vit_forward.29} parent=0 // pred_check
    _
  $region15: #{vit_forward.29} parent=0 // pred_check_branch
    %16 = sbr.rel (0) target = $region17
  $region16: #{vit_forward.29} parent=0 // pred_region
    _
  $region17: #{vit_forward.29} parent=0 // pred_fallthru
    _
  %p17 = scmp.eq.s32.totalorder 0, 0
  // Predicated region
  $region18: #{vit_forward.29} parent=0 // pred_check
    %p18 = pneg %p17
  $region19: #{vit_forward.29} parent=0 // pred_check_branch
    %20 = sbr.rel (%p18) target = $region21
  $region20: #{vit_forward.29} parent=0 // pred_region
    %21 = vst [vmem:[#allocation2] sm:$0xff] 0.0
    %22 = vst [vmem:[#allocation2 + $0x8] sm:$0xff] 0.0
    %23 = vst [vmem:[#allocation2 + $0x10] sm:$0xff] 0.0
    %24 = vst [vmem:[#allocation2 + $0x18] sm:$0xff] 0.0
    %25 = vst [vmem:[#allocation2 + $0x20] sm:$0xff] 0.0
    %26 = vst [vmem:[#allocation2 + $0x28] sm:$0xff] 0.0
  $region21: #{vit_forward.29} parent=0 // pred_fallthru
    _
  %v27 = vld [vmem:[#allocation2] sm:$0xff]
  %v28 = vld [vmem:[#allocation2 + $0x8] sm:$0xff]
  %v29 = vld [vmem:[#allocation2 + $0x10] sm:$0xff]
  %v30 = vld [vmem:[#allocation2 + $0x18] sm:$0xff]
  %v31 = vld [vmem:[#allocation2 + $0x20] sm:$0xff]
  %v32 = vld [vmem:[#allocation2 + $0x28] sm:$0xff]
  %v33 = vld [vmem:[%s0] sm:$0xff]
  %v34 = vld [vmem:[%s0 + $0x8] sm:$0xff]
  %v35 = vld [vmem:[%s0 + $0x10] sm:$0xff]
  %v36 = vld [vmem:[%s0 + $0x18] sm:$0xff]
  %v37 = vld [vmem:[%s0 + $0x20] sm:$0xff]
  %v38 = vld [vmem:[%s0 + $0x28] sm:$0xff]
  %v39 = vld [vmem:[%s0 + $0x30] sm:$0xff]
  %v40 = vld [vmem:[%s0 + $0x38] sm:$0xff]
  %v41 = vld [vmem:[%s0 + $0x40] sm:$0xff]
  %v42 = vld [vmem:[%s0 + $0x48] sm:$0xff]
  %v43 = vld [vmem:[%s0 + $0x50] sm:$0xff]
  %v44 = vld [vmem:[%s0 + $0x58] sm:$0xff]
  %v45 = vld [vmem:[%s1] sm:$0xff]
  %v46 = vld [vmem:[%s1 + $0x8] sm:$0xff]
  %v47 = vld [vmem:[%s1 + $0x10] sm:$0xff]
  %v48 = vld [vmem:[%s1 + $0x18] sm:$0xff]
  %v49 = vld [vmem:[%s1 + $0x20] sm:$0xff]
  %v50 = vld [vmem:[%s1 + $0x28] sm:$0xff]
  %v51 = vld [vmem:[%s1 + $0x30] sm:$0xff]
  %v52 = vld [vmem:[%s1 + $0x38] sm:$0xff]
  %v53 = vld [vmem:[%s1 + $0x40] sm:$0xff]
  %v54 = vld [vmem:[%s1 + $0x48] sm:$0xff]
  %v55 = vld [vmem:[%s1 + $0x50] sm:$0xff]
  %v56 = vld [vmem:[%s1 + $0x58] sm:$0xff]
  %v57 = vld [vmem:[%s1 + $0x60] sm:$0xff]
  %v58 = vld [vmem:[%s1 + $0x68] sm:$0xff]
  %v59 = vld [vmem:[%s1 + $0x70] sm:$0xff]
  %v60 = vld [vmem:[%s1 + $0x78] sm:$0xff]
  %v61 = vld [vmem:[%s1 + $0x80] sm:$0xff]
  %v62 = vld [vmem:[%s1 + $0x88] sm:$0xff]
  %v63 = vld [vmem:[%s1 + $0x90] sm:$0xff]
  %v64 = vld [vmem:[%s1 + $0x98] sm:$0xff]
  %v65 = vld [vmem:[%s1 + $0xa0] sm:$0xff]
  %v66 = vld [vmem:[%s1 + $0xa8] sm:$0xff]
  %v67 = vld [vmem:[%s1 + $0xb0] sm:$0xff]
  %v68 = vld [vmem:[%s1 + $0xb8] sm:$0xff]
  %v69 = vld [vmem:[%s1 + $0xc0] sm:$0xff]
  %v70 = vld [vmem:[%s1 + $0xc8] sm:$0xff]
  %v71 = vld [vmem:[%s1 + $0xd0] sm:$0xff]
  %v72 = vld [vmem:[%s1 + $0xd8] sm:$0xff]
  %v73 = vld [vmem:[%s1 + $0xe0] sm:$0xff]
  %v74 = vld [vmem:[%s1 + $0xe8] sm:$0xff]
  %v75 = vld [vmem:[%s1 + $0xf0] sm:$0xff]
  %v76 = vld [vmem:[%s1 + $0xf8] sm:$0xff]
  %77 = vmatprep.subr.mxu0 0.0
  %78 = vmatpush1.msra.mxu0 %v45
  %79 = vmatprep.subr.mxu0 0.0
  %80 = vmatpush1.msra.mxu0 %v46
  %81 = vmatprep.subr.mxu0 0.0
  %82 = vmatpush1.msra.mxu0 %v47
  %83 = vmatprep.subr.mxu0 0.0
  %84 = vmatpush1.msra.mxu0 %v48
  %85 = vmatprep.subr.mxu0 0.0
  %86 = vmatpush1.msra.mxu0 %v49
  %87 = vmatprep.subr.mxu0 0.0
  %88 = vmatpush1.msra.mxu0 %v50
  %89 = vmatprep.subr.mxu0 0.0
  %90 = vmatpush1.msra.mxu0 %v51
  %91 = vmatprep.subr.mxu0 0.0
  %92 = vmatpush1.msra.mxu0 %v52
  %93 = vmatprep.subr.mxu0 0.0
  %94 = vmatpush1.msra.mxu0 %v53
  %95 = vmatprep.subr.mxu0 0.0
  %96 = vmatpush1.msra.mxu0 %v54
  %97 = vmatprep.subr.mxu0 0.0
  %98 = vmatpush1.msra.mxu0 %v55
  %99 = vmatprep.subr.mxu0 0.0
  %100 = vmatpush1.msra.mxu0 %v56
  %101 = vmatprep.subr.mxu0 0.0
  %102 = vmatpush1.msra.mxu0 %v57
  %103 = vmatprep.subr.mxu0 0.0
  %104 = vmatpush1.msra.mxu0 %v58
  %105 = vmatprep.subr.mxu0 0.0
  %106 = vmatpush1.msra.mxu0 %v59
  %107 = vmatprep.subr.mxu0 0.0
  %108 = vmatpush1.msra.mxu0 %v60
  %109 = vmatprep.subr.mxu0 0.0
  %110 = vmatpush1.msra.mxu0 %v61
  %111 = vmatprep.subr.mxu0 0.0
  %112 = vmatpush1.msra.mxu0 %v62
  %113 = vmatprep.subr.mxu0 0.0
  %114 = vmatpush1.msra.mxu0 %v63
  %115 = vmatprep.subr.mxu0 0.0
  %116 = vmatpush1.msra.mxu0 %v64
  %117 = vmatprep.subr.mxu0 0.0
  %118 = vmatpush1.msra.mxu0 %v65
  %119 = vmatprep.subr.mxu0 0.0
  %120 = vmatpush1.msra.mxu0 %v66
  %121 = vmatprep.subr.mxu0 0.0
  %122 = vmatpush1.msra.mxu0 %v67
  %123 = vmatprep.subr.mxu0 0.0
  %124 = vmatpush1.msra.mxu0 %v68
  %125 = vmatprep.subr.mxu0 0.0
  %126 = vmatpush1.msra.mxu0 %v69
  %127 = vmatprep.subr.mxu0 0.0
  %128 = vmatpush1.msra.mxu0 %v70
  %129 = vmatprep.subr.mxu0 0.0
  %130 = vmatpush1.msra.mxu0 %v71
  %131 = vmatprep.subr.mxu0 0.0
  %132 = vmatpush1.msra.mxu0 %v72
  %133 = vmatprep.subr.mxu0 0.0
  %134 = vmatpush1.msra.mxu0 %v73
  %135 = vmatprep.subr.mxu0 0.0
  %136 = vmatpush1.msra.mxu0 %v74
  %137 = vmatprep.subr.mxu0 0.0
  %138 = vmatpush1.msra.mxu0 %v75
  %139 = vmatprep.subr.mxu0 0.0
  %140 = vmatpush1.msra.mxu0 %v76
  %141 = vmatprep.mubr.f32.mxu0 %v34
  %142 = vmatmul.mubr.f32.gmra.mrb[0].mxu0 %v33
  %v143 = vpop.f32.mrb[0].mxu0
  %v144 = vadd.f32 0.0, %v143
  %v145 = vpop.f32.mrb[0].mxu0
  %146 = vmatprep.mubr.f32.mxu0 %v36
  %147 = vmatmul.mubr.f32.gmra.mrb[0].mxu0 %v35
  %v148 = vpop.f32.mrb[0].mxu0
  %v149 = vadd.f32 0.0, %v148
  %v150 = vpop.f32.mrb[0].mxu0
  %151 = vmatprep.mubr.f32.mxu0 %v38
  %152 = vmatmul.mubr.f32.gmra.mrb[0].mxu0 %v37
  %v153 = vpop.f32.mrb[0].mxu0
  %v154 = vadd.f32 0.0, %v153
  %v155 = vpop.f32.mrb[0].mxu0
  %156 = vmatprep.mubr.f32.mxu0 %v40
  %157 = vmatmul.mubr.f32.gmra.mrb[0].mxu0 %v39
  %v158 = vpop.f32.mrb[0].mxu0
  %v159 = vadd.f32 0.0, %v158
  %v160 = vpop.f32.mrb[0].mxu0
  %161 = vmatprep.mubr.f32.mxu0 %v42
  %162 = vmatmul.mubr.f32.gmra.mrb[0].mxu0 %v41
  %v163 = vpop.f32.mrb[0].mxu0
  %v164 = vadd.f32 0.0, %v163
  %v165 = vpop.f32.mrb[0].mxu0
  %166 = vmatprep.mubr.f32.mxu0 %v44
  %167 = vmatmul.mubr.f32.gmra.mrb[0].mxu0 %v43
  %v168 = vpop.f32.mrb[0].mxu0
  %v169 = vadd.f32 0.0, %v168
  %v170 = vpop.f32.mrb[0].mxu0
  %171 = vdwg.mxu0
  %v172 = vadd.f32 %v27, %v144
  %v173 = vadd.f32 %v28, %v149
  %v174 = vadd.f32 %v29, %v154
  %v175 = vadd.f32 %v30, %v159
  %v176 = vadd.f32 %v31, %v164
  %v177 = vadd.f32 %v32, %v169
  %178 = vst [vmem:[#allocation2] sm:$0xff] %v172
  %179 = vst [vmem:[#allocation2 + $0x8] sm:$0xff] %v173
  %180 = vst [vmem:[#allocation2 + $0x10] sm:$0xff] %v174
  %181 = vst [vmem:[#allocation2 + $0x18] sm:$0xff] %v175
  %182 = vst [vmem:[#allocation2 + $0x20] sm:$0xff] %v176
  %183 = vst [vmem:[#allocation2 + $0x28] sm:$0xff] %v177
  // Predicated region
  $region22: #{vit_forward.29} parent=0 // pred_check
    %p184 = pneg %p17
  $region23: #{vit_forward.29} parent=0 // pred_check_branch
    %186 = sbr.rel (%p184) target = $region25
  $region24: #{vit_forward.29} parent=0 // pred_region
    %v187 = vld [vmem:[#allocation2] sm:$0xff]
    %v188 = vld [vmem:[#allocation2 + $0x8] sm:$0xff]
    %v189 = vld [vmem:[#allocation2 + $0x10] sm:$0xff]
    %v190 = vld [vmem:[#allocation2 + $0x18] sm:$0xff]
    %v191 = vld [vmem:[#allocation2 + $0x20] sm:$0xff]
    %v192 = vld [vmem:[#allocation2 + $0x28] sm:$0xff]
    %v193 = vld [vmem:[%s2] sm:$0x1]
    %v195 = vlaneseq
    %v196 = vshrl.u32 %v195, 7
    %v197 = vsub.s32 0, %v196
    %v198 = vrot.slane %v193, %v197
    %v200 = vadd.f32 %v187, %v198
    %v201 = vadd.f32 %v188, %v198
    %v202 = vadd.f32 %v189, %v198
    %v203 = vadd.f32 %v190, %v198
    %v204 = vadd.f32 %v191, %v198
    %v205 = vadd.f32 %v192, %v198
    %v206 = vld [vmem:[%s3] sm:$0xff]
    %v207 = vld [vmem:[%s3 + $0x8] sm:$0xff]
    %v208 = vld [vmem:[%s3 + $0x10] sm:$0xff]
    %v209 = vld [vmem:[%s3 + $0x18] sm:$0xff]
    %v210 = vld [vmem:[%s3 + $0x20] sm:$0xff]
    %v211 = vld [vmem:[%s3 + $0x28] sm:$0xff]
    %v212 = vadd.f32 %v200, %v206
    %v213 = vadd.f32 %v201, %v207
    %v214 = vadd.f32 %v202, %v208
    %v215 = vadd.f32 %v203, %v209
    %v216 = vadd.f32 %v204, %v210
    %v217 = vadd.f32 %v205, %v211
    %218 = vst [vmem:[%s4] sm:$0xff] %v212
    %219 = vst [vmem:[%s4 + $0x8] sm:$0xff] %v213
    %220 = vst [vmem:[%s4 + $0x10] sm:$0xff] %v214
    %221 = vst [vmem:[%s4 + $0x18] sm:$0xff] %v215
    %222 = vst [vmem:[%s4 + $0x20] sm:$0xff] %v216
    %223 = vst [vmem:[%s4 + $0x28] sm:$0xff] %v217
  $region25: #{vit_forward.29} parent=0 // pred_fallthru
    _
  // Predicated region
  $region26: #{vit_forward.29} parent=0 // pred_check
    _
  $region27: #{vit_forward.29} parent=0 // pred_check_branch
    %225 = sbr.rel (0) target = $region29
  $region28: #{vit_forward.29} parent=0 // pred_region
    _
  $region29: #{vit_forward.29} parent=0 // pred_fallthru
    _
  // Predicated region
  $region30: #{vit_forward.29} parent=0 // pred_check
    _
  $region31: #{vit_forward.29} parent=0 // pred_check_branch
    %227 = sbr.rel (0) target = $region33
  $region32: #{vit_forward.29} parent=0 // pred_region
    _
  $region33: #{vit_forward.29} parent=0 // pred_fallthru
    _

// kernel: vit_forward.36
$region0: #{vit_forward.36}
  #allocation0 [shape = 'u32[]', space=smem, size = 0x4, offset = 0x4, fixed_abs, tag = 'smem constant byte address 0x4 - core index']
  #allocation1 [shape = 'u32[144,128]{1,0:T(1,128)}', space=vmem, size = 0x12000, scoped, tag = 'internal scratch']
  %s0 = inlined_call_operand.vmem [shape: f32[48,128], index: 0, kind: input, shape index: {}]
  %s1 = inlined_call_operand.vmem [shape: f32[1,128], index: 1, kind: input, shape index: {}]
  %s2 = inlined_call_operand.vmem [shape: f32[1,128], index: 2, kind: input, shape index: {}]
  %s3 = inlined_call_operand.vmem [shape: f32[128,384], index: 3, kind: input, shape index: {}]
  %s4 = inlined_call_operand.vmem [shape: f32[1,384], index: 4, kind: input, shape index: {}]
  %s5 = inlined_call_operand.vmem [shape: f32[48,384], index: 5, kind: output, shape index: {}]
  %s6 = sld [smem:[#allocation0]]
  $region30: #{vit_forward.36} parent=0
    _
  %s8 = ssub.s32 1, %s6
  %s9 = scalar_select 0, %s8, %s6
  // Predicated region
  $region2: #{vit_forward.36} parent=0 // pred_check
    _
  $region3: #{vit_forward.36} parent=0 // pred_check_branch
    %11 = sbr.rel (0) target = $region5
  $region4: #{vit_forward.36} parent=0 // pred_region
    _
  $region5: #{vit_forward.36} parent=0 // pred_fallthru
    _
  // Predicated region
  $region6: #{vit_forward.36} parent=0 // pred_check
    _
  $region7: #{vit_forward.36} parent=0 // pred_check_branch
    %13 = sbr.rel (0) target = $region9
  $region8: #{vit_forward.36} parent=0 // pred_region
    _
  $region9: #{vit_forward.36} parent=0 // pred_fallthru
    _
  // Predicated region
  $region10: #{vit_forward.36} parent=0 // pred_check
    _
  $region11: #{vit_forward.36} parent=0 // pred_check_branch
    %15 = sbr.rel (0) target = $region13
  $region12: #{vit_forward.36} parent=0 // pred_region
    _
  $region13: #{vit_forward.36} parent=0 // pred_fallthru
    _
  // Predicated region
  $region14: #{vit_forward.36} parent=0 // pred_check
    _
  $region15: #{vit_forward.36} parent=0 // pred_check_branch
    %17 = sbr.rel (0) target = $region17
  $region16: #{vit_forward.36} parent=0 // pred_region
    _
  $region17: #{vit_forward.36} parent=0 // pred_fallthru
    _
  // Predicated region
  $region18: #{vit_forward.36} parent=0 // pred_check
    _
  $region19: #{vit_forward.36} parent=0 // pred_check_branch
    %19 = sbr.rel (0) target = $region21
  $region20: #{vit_forward.36} parent=0 // pred_region
    _
  $region21: #{vit_forward.36} parent=0 // pred_fallthru
    _
  %v20 = vld [vmem:[%s0] sm:$0xff]
  %v21 = vld [vmem:[%s0 + $0x8] sm:$0xff]
  %v22 = vld [vmem:[%s0 + $0x10] sm:$0xff]
  %v23 = vld [vmem:[%s0 + $0x18] sm:$0xff]
  %v24 = vld [vmem:[%s0 + $0x20] sm:$0xff]
  %v25 = vld [vmem:[%s0 + $0x28] sm:$0xff]
  %26 = vadd.xlane.f32.xlu0 %v20
  %v27 = vpop.xlane.xlu0 %26
  %28 = vadd.xlane.f32.xlu0 %v21
  %v29 = vpop.xlane.xlu0 %28
  %30 = vadd.xlane.f32.xlu0 %v22
  %v31 = vpop.xlane.xlu0 %30
  %32 = vadd.xlane.f32.xlu0 %v23
  %v33 = vpop.xlane.xlu0 %32
  %34 = vadd.xlane.f32.xlu0 %v24
  %v35 = vpop.xlane.xlu0 %34
  %36 = vadd.xlane.f32.xlu0 %v25
  %v37 = vpop.xlane.xlu0 %36
  %v38 = vrcp.pop 128.0
  %v39 = vmul.f32 %v27, %v38
  %v40 = vmul.f32 %v29, %v38
  %v41 = vmul.f32 %v31, %v38
  %v42 = vmul.f32 %v33, %v38
  %v43 = vmul.f32 %v35, %v38
  %v44 = vmul.f32 %v37, %v38
  %v45 = vsub.f32 %v20, %v39
  %v46 = vsub.f32 %v21, %v40
  %v47 = vsub.f32 %v22, %v41
  %v48 = vsub.f32 %v23, %v42
  %v49 = vsub.f32 %v24, %v43
  %v50 = vsub.f32 %v25, %v44
  %v51 = vmul.f32 %v45, %v45
  %v52 = vmul.f32 %v46, %v46
  %v53 = vmul.f32 %v47, %v47
  %v54 = vmul.f32 %v48, %v48
  %v55 = vmul.f32 %v49, %v49
  %v56 = vmul.f32 %v50, %v50
  %57 = vadd.xlane.f32.xlu0 %v51
  %v58 = vpop.xlane.xlu0 %57
  %59 = vadd.xlane.f32.xlu0 %v52
  %v60 = vpop.xlane.xlu0 %59
  %61 = vadd.xlane.f32.xlu0 %v53
  %v62 = vpop.xlane.xlu0 %61
  %63 = vadd.xlane.f32.xlu0 %v54
  %v64 = vpop.xlane.xlu0 %63
  %65 = vadd.xlane.f32.xlu0 %v55
  %v66 = vpop.xlane.xlu0 %65
  %67 = vadd.xlane.f32.xlu0 %v56
  %v68 = vpop.xlane.xlu0 %67
  %v69 = vmul.f32 %v58, %v38
  %v70 = vmul.f32 %v60, %v38
  %v71 = vmul.f32 %v62, %v38
  %v72 = vmul.f32 %v64, %v38
  %v73 = vmul.f32 %v66, %v38
  %v74 = vmul.f32 %v68, %v38
  %v75 = vadd.f32 %v69, 1e-05
  %v76 = vadd.f32 %v70, 1e-05
  %v77 = vadd.f32 %v71, 1e-05
  %v78 = vadd.f32 %v72, 1e-05
  %v79 = vadd.f32 %v73, 1e-05
  %v80 = vadd.f32 %v74, 1e-05
  %v81 = vrsqrt.pop %v75
  %v82 = vrsqrt.pop %v76
  %v83 = vrsqrt.pop %v77
  %v84 = vrsqrt.pop %v78
  %v85 = vrsqrt.pop %v79
  %v86 = vrsqrt.pop %v80
  %v87 = vmul.f32 %v45, %v81
  %v88 = vmul.f32 %v46, %v82
  %v89 = vmul.f32 %v47, %v83
  %v90 = vmul.f32 %v48, %v84
  %v91 = vmul.f32 %v49, %v85
  %v92 = vmul.f32 %v50, %v86
  %v93 = vld [vmem:[%s1] sm:$0x1]
  %v95 = vlaneseq
  %v96 = vshrl.u32 %v95, 7
  %v97 = vsub.s32 0, %v96
  %v98 = vrot.slane %v93, %v97
  %v100 = vmul.f32 %v87, %v98
  %v101 = vmul.f32 %v88, %v98
  %v102 = vmul.f32 %v89, %v98
  %v103 = vmul.f32 %v90, %v98
  %v104 = vmul.f32 %v91, %v98
  %v105 = vmul.f32 %v92, %v98
  %v106 = vld [vmem:[%s2] sm:$0x1]
  %v108 = vlaneseq
  %v109 = vshrl.u32 %v108, 7
  %v110 = vsub.s32 0, %v109
  %v111 = vrot.slane %v106, %v110
  %v113 = vadd.f32 %v100, %v111
  %v114 = vadd.f32 %v101, %v111
  %v115 = vadd.f32 %v102, %v111
  %v116 = vadd.f32 %v103, %v111
  %v117 = vadd.f32 %v104, %v111
  %v118 = vadd.f32 %v105, %v111
  %v119 = vld [vmem:[%s3] sm:$0xff]
  %v120 = vld [vmem:[%s3 + $0x8] sm:$0xff]
  %v121 = vld [vmem:[%s3 + $0x10] sm:$0xff]
  %v122 = vld [vmem:[%s3 + $0x18] sm:$0xff]
  %v123 = vld [vmem:[%s3 + $0x20] sm:$0xff]
  %v124 = vld [vmem:[%s3 + $0x28] sm:$0xff]
  %v125 = vld [vmem:[%s3 + $0x30] sm:$0xff]
  %v126 = vld [vmem:[%s3 + $0x38] sm:$0xff]
  %v127 = vld [vmem:[%s3 + $0x40] sm:$0xff]
  %v128 = vld [vmem:[%s3 + $0x48] sm:$0xff]
  %v129 = vld [vmem:[%s3 + $0x50] sm:$0xff]
  %v130 = vld [vmem:[%s3 + $0x58] sm:$0xff]
  %v131 = vld [vmem:[%s3 + $0x60] sm:$0xff]
  %v132 = vld [vmem:[%s3 + $0x68] sm:$0xff]
  %v133 = vld [vmem:[%s3 + $0x70] sm:$0xff]
  %v134 = vld [vmem:[%s3 + $0x78] sm:$0xff]
  %v135 = vld [vmem:[%s3 + $0x80] sm:$0xff]
  %v136 = vld [vmem:[%s3 + $0x88] sm:$0xff]
  %v137 = vld [vmem:[%s3 + $0x90] sm:$0xff]
  %v138 = vld [vmem:[%s3 + $0x98] sm:$0xff]
  %v139 = vld [vmem:[%s3 + $0xa0] sm:$0xff]
  %v140 = vld [vmem:[%s3 + $0xa8] sm:$0xff]
  %v141 = vld [vmem:[%s3 + $0xb0] sm:$0xff]
  %v142 = vld [vmem:[%s3 + $0xb8] sm:$0xff]
  %v143 = vld [vmem:[%s3 + $0xc0] sm:$0xff]
  %v144 = vld [vmem:[%s3 + $0xc8] sm:$0xff]
  %v145 = vld [vmem:[%s3 + $0xd0] sm:$0xff]
  %v146 = vld [vmem:[%s3 + $0xd8] sm:$0xff]
  %v147 = vld [vmem:[%s3 + $0xe0] sm:$0xff]
  %v148 = vld [vmem:[%s3 + $0xe8] sm:$0xff]
  %v149 = vld [vmem:[%s3 + $0xf0] sm:$0xff]
  %v150 = vld [vmem:[%s3 + $0xf8] sm:$0xff]
  %v151 = vld [vmem:[%s3 + $0x100] sm:$0xff]
  %v152 = vld [vmem:[%s3 + $0x108] sm:$0xff]
  %v153 = vld [vmem:[%s3 + $0x110] sm:$0xff]
  %v154 = vld [vmem:[%s3 + $0x118] sm:$0xff]
  %v155 = vld [vmem:[%s3 + $0x120] sm:$0xff]
  %v156 = vld [vmem:[%s3 + $0x128] sm:$0xff]
  %v157 = vld [vmem:[%s3 + $0x130] sm:$0xff]
  %v158 = vld [vmem:[%s3 + $0x138] sm:$0xff]
  %v159 = vld [vmem:[%s3 + $0x140] sm:$0xff]
  %v160 = vld [vmem:[%s3 + $0x148] sm:$0xff]
  %v161 = vld [vmem:[%s3 + $0x150] sm:$0xff]
  %v162 = vld [vmem:[%s3 + $0x158] sm:$0xff]
  %v163 = vld [vmem:[%s3 + $0x160] sm:$0xff]
  %v164 = vld [vmem:[%s3 + $0x168] sm:$0xff]
  %v165 = vld [vmem:[%s3 + $0x170] sm:$0xff]
  %v166 = vld [vmem:[%s3 + $0x178] sm:$0xff]
  %v167 = vld [vmem:[%s4] sm:$0x7]
  %v169 = vlaneseq
  %v170 = vshrl.u32 %v169, 7
  %v171 = vsub.s32 0, %v170
  %v172 = vrot.slane %v167, %v171
  %v173 = vlaneseq
  %v174 = vshrl.u32 %v173, 7
  %v175 = vsub.s32 1, %v174
  %v176 = vrot.slane %v167, %v175
  %v177 = vlaneseq
  %v178 = vshrl.u32 %v177, 7
  %v179 = vsub.s32 2, %v178
  %v180 = vrot.slane %v167, %v179
  %184 = vmatprep.subr.mxu0 %v120
  %185 = vmatpush1.msra.mxu0 %v119
  %186 = vmatprep.subr.mxu0 %v123
  %187 = vmatpush1.msra.mxu0 %v122
  %188 = vmatprep.subr.mxu0 %v126
  %189 = vmatpush1.msra.mxu0 %v125
  %190 = vmatprep.subr.mxu0 %v129
  %191 = vmatpush1.msra.mxu0 %v128
  %192 = vmatprep.subr.mxu0 %v132
  %193 = vmatpush1.msra.mxu0 %v131
  %194 = vmatprep.subr.mxu0 %v135
  %195 = vmatpush1.msra.mxu0 %v134
  %196 = vmatprep.subr.mxu0 %v138
  %197 = vmatpush1.msra.mxu0 %v137
  %198 = vmatprep.subr.mxu0 %v141
  %199 = vmatpush1.msra.mxu0 %v140
  %200 = vmatprep.subr.mxu0 %v144
  %201 = vmatpush1.msra.mxu0 %v143
  %202 = vmatprep.subr.mxu0 %v147
  %203 = vmatpush1.msra.mxu0 %v146
  %204 = vmatprep.subr.mxu0 %v150
  %205 = vmatpush1.msra.mxu0 %v149
  %206 = vmatprep.subr.mxu0 %v153
  %207 = vmatpush1.msra.mxu0 %v152
  %208 = vmatprep.subr.mxu0 %v156
  %209 = vmatpush1.msra.mxu0 %v155
  %210 = vmatprep.subr.mxu0 %v159
  %211 = vmatpush1.msra.mxu0 %v158
  %212 = vmatprep.subr.mxu0 %v162
  %213 = vmatpush1.msra.mxu0 %v161
  %214 = vmatprep.subr.mxu0 %v165
  %215 = vmatpush1.msra.mxu0 %v164
  %216 = vmatprep.subr.mxu0 0.0
  %217 = vmatpush1.msra.mxu0 0.0
  %218 = vmatprep.subr.mxu0 0.0
  %219 = vmatpush1.msra.mxu0 0.0
  %220 = vmatprep.subr.mxu0 0.0
  %221 = vmatpush1.msra.mxu0 0.0
  %222 = vmatprep.subr.mxu0 0.0
  %223 = vmatpush1.msra.mxu0 0.0
  %224 = vmatprep.subr.mxu0 0.0
  %225 = vmatpush1.msra.mxu0 0.0
  %226 = vmatprep.subr.mxu0 0.0
  %227 = vmatpush1.msra.mxu0 0.0
  %228 = vmatprep.subr.mxu0 0.0
  %229 = vmatpush1.msra.mxu0 0.0
  %230 = vmatprep.subr.mxu0 0.0
  %231 = vmatpush1.msra.mxu0 0.0
  %232 = vmatprep.subr.mxu0 0.0
  %233 = vmatpush1.msra.mxu0 0.0
  %234 = vmatprep.subr.mxu0 0.0
  %235 = vmatpush1.msra.mxu0 0.0
  %236 = vmatprep.subr.mxu0 0.0
  %237 = vmatpush1.msra.mxu0 0.0
  %238 = vmatprep.subr.mxu0 0.0
  %239 = vmatpush1.msra.mxu0 0.0
  %240 = vmatprep.subr.mxu0 0.0
  %241 = vmatpush1.msra.mxu0 0.0
  %242 = vmatprep.subr.mxu0 0.0
  %243 = vmatpush1.msra.mxu0 0.0
  %244 = vmatprep.subr.mxu0 0.0
  %245 = vmatpush1.msra.mxu0 0.0
  %246 = vmatprep.subr.mxu0 0.0
  %247 = vmatpush1.msra.mxu0 0.0
  %248 = vmatprep.mubr.f32.mxu0 0.0
  %249 = vmatmul.mubr.f32.gmra.mrb[0].mxu0 %v113
  %v250 = vpop.f32.mrb[0].mxu0
  %v251 = vadd.f32 %v172, %v250
  %v252 = vpop.f32.mrb[0].mxu0
  %v253 = vadd.f32 %v176, %v252
  %254 = vmatprep.mubr.f32.mxu0 0.0
  %255 = vmatmul.mubr.f32.gmra.mrb[0].mxu0 %v114
  %v256 = vpop.f32.mrb[0].mxu0
  %v257 = vadd.f32 %v172, %v256
  %v258 = vpop.f32.mrb[0].mxu0
  %v259 = vadd.f32 %v176, %v258
  %260 = vmatprep.mubr.f32.mxu0 0.0
  %261 = vmatmul.mubr.f32.gmra.mrb[0].mxu0 %v115
  %v262 = vpop.f32.mrb[0].mxu0
  %v263 = vadd.f32 %v172, %v262
  %v264 = vpop.f32.mrb[0].mxu0
  %v265 = vadd.f32 %v176, %v264
  %266 = vmatprep.mubr.f32.mxu0 0.0
  %267 = vmatmul.mubr.f32.gmra.mrb[0].mxu0 %v116
  %v268 = vpop.f32.mrb[0].mxu0
  %v269 = vadd.f32 %v172, %v268
  %v270 = vpop.f32.mrb[0].mxu0
  %v271 = vadd.f32 %v176, %v270
  %272 = vmatprep.mubr.f32.mxu0 0.0
  %273 = vmatmul.mubr.f32.gmra.mrb[0].mxu0 %v117
  %v274 = vpop.f32.mrb[0].mxu0
  %v275 = vadd.f32 %v172, %v274
  %v276 = vpop.f32.mrb[0].mxu0
  %v277 = vadd.f32 %v176, %v276
  %278 = vmatprep.mubr.f32.mxu0 0.0
  %279 = vmatmul.mubr.f32.gmra.mrb[0].mxu0 %v118
  %v280 = vpop.f32.mrb[0].mxu0
  %v281 = vadd.f32 %v172, %v280
  %v282 = vpop.f32.mrb[0].mxu0
  %v283 = vadd.f32 %v176, %v282
  %284 = vdwg.mxu0
  %285 = vmatprep.subr.mxu0 0.0
  %286 = vmatpush1.msra.mxu0 %v121
  %287 = vmatprep.subr.mxu0 0.0
  %288 = vmatpush1.msra.mxu0 %v124
  %289 = vmatprep.subr.mxu0 0.0
  %290 = vmatpush1.msra.mxu0 %v127
  %291 = vmatprep.subr.mxu0 0.0
  %292 = vmatpush1.msra.mxu0 %v130
  %293 = vmatprep.subr.mxu0 0.0
  %294 = vmatpush1.msra.mxu0 %v133
  %295 = vmatprep.subr.mxu0 0.0
  %296 = vmatpush1.msra.mxu0 %v136
  %297 = vmatprep.subr.mxu0 0.0
  %298 = vmatpush1.msra.mxu0 %v139
  %299 = vmatprep.subr.mxu0 0.0
  %300 = vmatpush1.msra.mxu0 %v142
  %301 = vmatprep.subr.mxu0 0.0
  %302 = vmatpush1.msra.mxu0 %v145
  %303 = vmatprep.subr.mxu0 0.0
  %304 = vmatpush1.msra.mxu0 %v148
  %305 = vmatprep.subr.mxu0 0.0
  %306 = vmatpush1.msra.mxu0 %v151
  %307 = vmatprep.subr.mxu0 0.0
  %308 = vmatpush1.msra.mxu0 %v154
  %309 = vmatprep.subr.mxu0 0.0
  %310 = vmatpush1.msra.mxu0 %v157
  %311 = vmatprep.subr.mxu0 0.0
  %312 = vmatpush1.msra.mxu0 %v160
  %313 = vmatprep.subr.mxu0 0.0
  %314 = vmatpush1.msra.mxu0 %v163
  %315 = vmatprep.subr.mxu0 0.0
  %316 = vmatpush1.msra.mxu0 %v166
  %317 = vmatprep.subr.mxu0 0.0
  %318 = vmatpush1.msra.mxu0 0.0
  %319 = vmatprep.subr.mxu0 0.0
  %320 = vmatpush1.msra.mxu0 0.0
  %321 = vmatprep.subr.mxu0 0.0
  %322 = vmatpush1.msra.mxu0 0.0
  %323 = vmatprep.subr.mxu0 0.0
  %324 = vmatpush1.msra.mxu0 0.0
  %325 = vmatprep.subr.mxu0 0.0
  %326 = vmatpush1.msra.mxu0 0.0
  %327 = vmatprep.subr.mxu0 0.0
  %328 = vmatpush1.msra.mxu0 0.0
  %329 = vmatprep.subr.mxu0 0.0
  %330 = vmatpush1.msra.mxu0 0.0
  %331 = vmatprep.subr.mxu0 0.0
  %332 = vmatpush1.msra.mxu0 0.0
  %333 = vmatprep.subr.mxu0 0.0
  %334 = vmatpush1.msra.mxu0 0.0
  %335 = vmatprep.subr.mxu0 0.0
  %336 = vmatpush1.msra.mxu0 0.0
  %337 = vmatprep.subr.mxu0 0.0
  %338 = vmatpush1.msra.mxu0 0.0
  %339 = vmatprep.subr.mxu0 0.0
  %340 = vmatpush1.msra.mxu0 0.0
  %341 = vmatprep.subr.mxu0 0.0
  %342 = vmatpush1.msra.mxu0 0.0
  %343 = vmatprep.subr.mxu0 0.0
  %344 = vmatpush1.msra.mxu0 0.0
  %345 = vmatprep.subr.mxu0 0.0
  %346 = vmatpush1.msra.mxu0 0.0
  %347 = vmatprep.subr.mxu0 0.0
  %348 = vmatpush1.msra.mxu0 0.0
  %349 = vmatprep.mubr.f32.mxu0 0.0
  %350 = vmatmul.mubr.f32.gmra.mrb[0].mxu0 %v113
  %v351 = vpop.f32.mrb[0].mxu0
  %v352 = vadd.f32 %v180, %v351
  %v353 = vpop.f32.mrb[0].mxu0
  %354 = vmatprep.mubr.f32.mxu0 0.0
  %355 = vmatmul.mubr.f32.gmra.mrb[0].mxu0 %v114
  %v356 = vpop.f32.mrb[0].mxu0
  %v357 = vadd.f32 %v180, %v356
  %v358 = vpop.f32.mrb[0].mxu0
  %359 = vmatprep.mubr.f32.mxu0 0.0
  %360 = vmatmul.mubr.f32.gmra.mrb[0].mxu0 %v115
  %v361 = vpop.f32.mrb[0].mxu0
  %v362 = vadd.f32 %v180, %v361
  %v363 = vpop.f32.mrb[0].mxu0
  %364 = vmatprep.mubr.f32.mxu0 0.0
  %365 = vmatmul.mubr.f32.gmra.mrb[0].mxu0 %v116
  %v366 = vpop.f32.mrb[0].mxu0
  %v367 = vadd.f32 %v180, %v366
  %v368 = vpop.f32.mrb[0].mxu0
  %369 = vmatprep.mubr.f32.mxu0 0.0
  %370 = vmatmul.mubr.f32.gmra.mrb[0].mxu0 %v117
  %v371 = vpop.f32.mrb[0].mxu0
  %v372 = vadd.f32 %v180, %v371
  %v373 = vpop.f32.mrb[0].mxu0
  %374 = vmatprep.mubr.f32.mxu0 0.0
  %375 = vmatmul.mubr.f32.gmra.mrb[0].mxu0 %v118
  %v376 = vpop.f32.mrb[0].mxu0
  %v377 = vadd.f32 %v180, %v376
  %v378 = vpop.f32.mrb[0].mxu0
  %379 = vdwg.mxu0
  %380 = vst [vmem:[%s5] sm:$0xff] %v251
  %381 = vst [vmem:[%s5 + $0x8] sm:$0xff] %v253
  %382 = vst [vmem:[%s5 + $0x10] sm:$0xff] %v352
  %383 = vst [vmem:[%s5 + $0x18] sm:$0xff] %v257
  %384 = vst [vmem:[%s5 + $0x20] sm:$0xff] %v259
  %385 = vst [vmem:[%s5 + $0x28] sm:$0xff] %v357
  %386 = vst [vmem:[%s5 + $0x30] sm:$0xff] %v263
  %387 = vst [vmem:[%s5 + $0x38] sm:$0xff] %v265
  %388 = vst [vmem:[%s5 + $0x40] sm:$0xff] %v362
  %389 = vst [vmem:[%s5 + $0x48] sm:$0xff] %v269
  %390 = vst [vmem:[%s5 + $0x50] sm:$0xff] %v271
  %391 = vst [vmem:[%s5 + $0x58] sm:$0xff] %v367
  %392 = vst [vmem:[%s5 + $0x60] sm:$0xff] %v275
  %393 = vst [vmem:[%s5 + $0x68] sm:$0xff] %v277
  %394 = vst [vmem:[%s5 + $0x70] sm:$0xff] %v372
  %395 = vst [vmem:[%s5 + $0x78] sm:$0xff] %v281
  %396 = vst [vmem:[%s5 + $0x80] sm:$0xff] %v283
  %397 = vst [vmem:[%s5 + $0x88] sm:$0xff] %v377
  // Predicated region
  $region22: #{vit_forward.36} parent=0 // pred_check
    _
  $region23: #{vit_forward.36} parent=0 // pred_check_branch
    %399 = sbr.rel (0) target = $region25
  $region24: #{vit_forward.36} parent=0 // pred_region
    _
  $region25: #{vit_forward.36} parent=0 // pred_fallthru
    _
  // Predicated region
  $region26: #{vit_forward.36} parent=0 // pred_check
    _
  $region27: #{vit_forward.36} parent=0 // pred_check_branch
    %401 = sbr.rel (0) target = $region29
  $region28: #{vit_forward.36} parent=0 // pred_region
    _
  $region29: #{vit_forward.36} parent=0 // pred_fallthru
    _

// kernel: vit_forward.37
$region0: #{vit_forward.37}
  #allocation0 [shape = 'u32[]', space=smem, size = 0x4, offset = 0x4, fixed_abs, tag = 'smem constant byte address 0x4 - core index']
  #allocation1 [shape = 'u32[144,128]{1,0:T(1,128)}', space=vmem, size = 0x12000, scoped, tag = 'internal scratch']
  %s0 = inlined_call_operand.vmem [shape: f32[2,24,384], index: 0, kind: input, shape index: {}]
  %s1 = inlined_call_operand.vmem [shape: f32[2,24,128], index: 1, kind: output, shape index: {}]
  %s2 = sld [smem:[#allocation0]]
  $region37: #{vit_forward.37} parent=0
    _
  %s4 = ssub.s32 1, %s2
  %s5 = scalar_select 0, %s4, %s2
  loop: start=0, step=1, limit=4
  $region2: #{vit_forward.37} parent=0 // loop_pre_header
    _
  $region3: #{vit_forward.37} parent=0 // loop_header
    %s7 = sphi 0, %s11
    %p8 = scmp.ge.s32.totalorder %s7, 4
    %s17 = sphi 0, %s19
    %s20 = sphi 0, %s17
    %s21 = sphi 0, %s20
    %s37 = sphi 0, %s21
    %s43 = sphi 0, %s45
    %s46 = sphi 0, %s43
    %s47 = sphi 0, %s46
    %s63 = sphi 0, %s47
  $region4: #{vit_forward.37} parent=0 // loop_header_branch
    %10 = sbr.rel (%p8) target = $region8
  $region5: #{vit_forward.37} parent=0 // loop_body
    %s12 = ssub.s32 %s7, 1
    %s13 = ssub.s32 %s7, 2
    %s14 = sadd.s32 %s7, 1
    %s15 = ssub.s32 %s7, %s14
    %p16 = scmp.eq.s32.totalorder %s15, 0
    %s18 = sadd.s32 %s17, 1
    %s19 = scalar_select %p16, %s17, %s18
    %p22 = pneg %p16
    %p23 = scmp.eq.s32.totalorder %s7, 1
    %p24 = por %p22, %p23
    %p25 = scmp.ne.s32.totalorder %s17, %s20
    %p26 = scmp.eq.s32.totalorder %s7, 0
    %p27 = por %p25, %p26
    %p28 = scmp.ne.s32.totalorder %s17, %s20
    %p29 = scmp.eq.s32.totalorder %s12, 1
    %p30 = por %p28, %p29
    %p31 = scmp.ne.s32.totalorder %s20, %s21
    %p32 = scmp.eq.s32.totalorder %s12, 0
    %p33 = por %p31, %p32
    %p34 = scmp.ne.s32.totalorder %s20, %s21
    %p35 = scmp.eq.s32.totalorder %s13, 1
    %p36 = por %p34, %p35
    %p38 = scmp.ne.s32.totalorder %s21, %s37
    %p39 = scmp.eq.s32.totalorder %s13, 0
    %p40 = por %p38, %p39
    %s41 = ssub.s32 %s7, %s14
    %p42 = scmp.eq.s32.totalorder %s41, 0
    %s44 = sadd.s32 %s43, 1
    %s45 = scalar_select %p42, %s43, %s44
    %p48 = pneg %p42
    %p49 = scmp.eq.s32.totalorder %s7, 1
    %p50 = por %p48, %p49
    %p51 = scmp.ne.s32.totalorder %s43, %s46
    %p52 = scmp.eq.s32.totalorder %s7, 0
    %p53 = por %p51, %p52
    %p54 = scmp.ne.s32.totalorder %s43, %s46
    %p55 = scmp.eq.s32.totalorder %s12, 1
    %p56 = por %p54, %p55
    %p57 = scmp.ne.s32.totalorder %s46, %s47
    %p58 = scmp.eq.s32.totalorder %s12, 0
    %p59 = por %p57, %p58
    %p60 = scmp.ne.s32.totalorder %s46, %s47
    %p61 = scmp.eq.s32.totalorder %s13, 1
    %p62 = por %p60, %p61
    %p64 = scmp.ne.s32.totalorder %s47, %s63
    %p65 = scmp.eq.s32.totalorder %s13, 0
    %p66 = por %p64, %p65
    %p67 = scmp.le.s32.totalorder 1, %s7
    %p68 = scmp.lt.s32.totalorder %s7, 3
    %p69 = pnand %p67, %p68
    %p70 = pneg %p69
    // Predicated region
    $region9: #{vit_forward.37} parent=5 // pred_check
      _
    $region10: #{vit_forward.37} parent=5 // pred_check_branch
      %72 = sbr.rel (%p69) target = $region12
    $region11: #{vit_forward.37} parent=5 // pred_region
      %s73 = ssub.s32 %s7, 1
    $region12: #{vit_forward.37} parent=5 // pred_fallthru
      _
    %p74 = scmp.lt.s32.totalorder %s7, 2
    // Predicated region
    $region13: #{vit_forward.37} parent=5 // pred_check
      %p75 = pneg %p74
    $region14: #{vit_forward.37} parent=5 // pred_check_branch
      %77 = sbr.rel (%p75) target = $region16
    $region15: #{vit_forward.37} parent=5 // pred_region
      // Predicated region
      $region17: #{vit_forward.37} parent=15 // pred_check
        %p78 = pneg %p27
      $region18: #{vit_forward.37} parent=15 // pred_check_branch
        %80 = sbr.rel (%p78) target = $region20
      $region19: #{vit_forward.37} parent=15 // pred_region
        %p81 = scmp.lt.s32.totalorder %s7, 1
        %s82 = scalar_select %p81, %s7, 1
        %s83 = smul.addr %s82, 9
        %s84 = smul.addr %s83, 8
        %s85 = scalar_lea.vmem %s0, %s84
      $region20: #{vit_forward.37} parent=15 // pred_fallthru
        _
    $region16: #{vit_forward.37} parent=5 // pred_fallthru
      _
    %p86 = scmp.le.s32.totalorder 1, %s7
    %p87 = scmp.lt.s32.totalorder %s7, 3
    %p88 = pnand %p86, %p87
    %p89 = pneg %p88
    // Predicated region
    $region21: #{vit_forward.37} parent=5 // pred_check
      _
    $region22: #{vit_forward.37} parent=5 // pred_check_branch
      %91 = sbr.rel (%p88) target = $region24
    $region23: #{vit_forward.37} parent=5 // pred_region
      %s92 = ssub.s32 %s7, 1
      %p93 = scmp.lt.s32.totalorder %s12, 1
      %s94 = scalar_select %p93, %s12, 1
      %s95 = smul.addr %s94, 9
      %s96 = smul.addr %s95, 8
      %s97 = scalar_lea.vmem %s0, %s96
      %p98 = pneg %p33
      %p99 = pneg %p30
      %p100 = pneg %p59
      %p101 = pneg %p56
      %p102 = scmp.lt.s32.totalorder %s12, 1
      %s103 = scalar_select %p102, %s12, 1
      %s104 = smul.addr %s103, 3
      %s105 = smul.addr %s104, 8
      %s106 = scalar_lea.vmem %s1, %s105
      %p107 = scmp.lt.s32.totalorder %s12, 1
      %s108 = scalar_select %p107, %s12, 1
      %s109 = smul.addr %s108, 9
      %s110 = smul.addr %s109, 8
      %s111 = scalar_lea.vmem %s0, %s110
      %p112 = scmp.lt.s32.totalorder %s12, 1
      %s113 = scalar_select %p112, %s12, 1
      %s114 = smul.addr %s113, 3
      %s115 = smul.addr %s114, 8
      %s116 = scalar_lea.vmem %s1, %s115
      %v117 = vld [vmem:[%s111] sm:$0xff]
      %v118 = vld [vmem:[%s111 + $0x18] sm:$0xff]
      %v119 = vld [vmem:[%s111 + $0x30] sm:$0xff]
      %v120 = vld [vmem:[%s111 + $0x8] sm:$0xff]
      %v121 = vld [vmem:[%s111 + $0x20] sm:$0xff]
      %v122 = vld [vmem:[%s111 + $0x38] sm:$0xff]
      %v123 = vld [vmem:[%s111 + $0x10] sm:$0xff]
      %v124 = vld [vmem:[%s111 + $0x28] sm:$0xff]
      %v125 = vld [vmem:[%s111 + $0x40] sm:$0xff]
      %vm126 = vcmask 523264
      %v128 = vsel %vm126, %v117, 0
      %v131 = vsel %vm126, %v118, 0
      %v134 = vsel %vm126, %v119, 0
      %v137 = vsel %vm126, %v120, 0
      %v140 = vsel %vm126, %v121, 0
      %v143 = vsel %vm126, %v122, 0
      %145 = vmatprep.subr.mxu0 0.0
      %146 = vmatpush1.xpose.msra.mxu0 %v137
      %147 = vmatprep.subr.mxu0 0.0
      %148 = vmatpush1.xpose.msra.mxu0 %v140
      %149 = vmatprep.subr.mxu0 0.0
      %150 = vmatpush1.xpose.msra.mxu0 %v143
      %151 = vmatprep.subr.mxu0 0.0
      %152 = vmatpush1.xpose.msra.mxu0 0.0
      %153 = vmatprep.subr.mxu0 0.0
      %154 = vmatpush1.xpose.msra.mxu0 0.0
      %155 = vmatprep.subr.mxu0 0.0
      %156 = vmatpush1.xpose.msra.mxu0 0.0
      %157 = vmatprep.subr.mxu0 0.0
      %158 = vmatpush1.xpose.msra.mxu0 0.0
      %159 = vmatprep.subr.mxu0 0.0
      %160 = vmatpush1.xpose.msra.mxu0 0.0
      %161 = vmatprep.subr.mxu0 0.0
      %162 = vmatpush1.xpose.msra.mxu0 0.0
      %163 = vmatprep.subr.mxu0 0.0
      %164 = vmatpush1.xpose.msra.mxu0 0.0
      %165 = vmatprep.subr.mxu0 0.0
      %166 = vmatpush1.xpose.msra.mxu0 0.0
      %167 = vmatprep.subr.mxu0 0.0
      %168 = vmatpush1.xpose.msra.mxu0 0.0
      %169 = vmatprep.subr.mxu0 0.0
      %170 = vmatpush1.xpose.msra.mxu0 0.0
      %171 = vmatprep.subr.mxu0 0.0
      %172 = vmatpush1.xpose.msra.mxu0 0.0
      %173 = vmatprep.subr.mxu0 0.0
      %174 = vmatpush1.xpose.msra.mxu0 0.0
      %175 = vmatprep.subr.mxu0 0.0
      %176 = vmatpush1.xpose.msra.mxu0 0.0
      %177 = vmatprep.subr.mxu0 0.0
      %178 = vmatpush1.xpose.msra.mxu0 0.0
      %179 = vmatprep.subr.mxu0 0.0
      %180 = vmatpush1.xpose.msra.mxu0 0.0
      %181 = vmatprep.subr.mxu0 0.0
      %182 = vmatpush1.xpose.msra.mxu0 0.0
      %183 = vmatprep.subr.mxu0 0.0
      %184 = vmatpush1.xpose.msra.mxu0 0.0
      %185 = vmatprep.subr.mxu0 0.0
      %186 = vmatpush1.xpose.msra.mxu0 0.0
      %187 = vmatprep.subr.mxu0 0.0
      %188 = vmatpush1.xpose.msra.mxu0 0.0
      %189 = vmatprep.subr.mxu0 0.0
      %190 = vmatpush1.xpose.msra.mxu0 0.0
      %191 = vmatprep.subr.mxu0 0.0
      %192 = vmatpush1.xpose.msra.mxu0 0.0
      %193 = vmatprep.subr.mxu0 0.0
      %194 = vmatpush1.xpose.msra.mxu0 0.0
      %195 = vmatprep.subr.mxu0 0.0
      %196 = vmatpush1.xpose.msra.mxu0 0.0
      %197 = vmatprep.subr.mxu0 0.0
      %198 = vmatpush1.xpose.msra.mxu0 0.0
      %199 = vmatprep.subr.mxu0 0.0
      %200 = vmatpush1.xpose.msra.mxu0 0.0
      %201 = vmatprep.subr.mxu0 0.0
      %202 = vmatpush1.xpose.msra.mxu0 0.0
      %203 = vmatprep.subr.mxu0 0.0
      %204 = vmatpush1.xpose.msra.mxu0 0.0
      %205 = vmatprep.subr.mxu0 0.0
      %206 = vmatpush1.xpose.msra.mxu0 0.0
      %207 = vmatprep.subr.mxu0 0.0
      %208 = vmatpush1.xpose.msra.mxu0 0.0
      %209 = vmatprep.mubr.f32.mxu0 0.0
      %210 = vmatmul.mubr.f32.gmra.mrb[0].mxu0 %v128
      %v211 = vpop.f32.mrb[0].mxu0
      %v212 = vadd.f32 0.0, %v211
      %v213 = vpop.f32.mrb[0].mxu0
      %214 = vmatprep.mubr.f32.mxu0 0.0
      %215 = vmatmul.mubr.f32.gmra.mrb[0].mxu0 %v131
      %v216 = vpop.f32.mrb[0].mxu0
      %v217 = vadd.f32 0.0, %v216
      %v218 = vpop.f32.mrb[0].mxu0
      %219 = vmatprep.mubr.f32.mxu0 0.0
      %220 = vmatmul.mubr.f32.gmra.mrb[0].mxu0 %v134
      %v221 = vpop.f32.mrb[0].mxu0
      %v222 = vadd.f32 0.0, %v221
      %v223 = vpop.f32.mrb[0].mxu0
      %224 = vdwg.mxu0
      %v225 = vmul.f32 %v212, 0.125
      %v226 = vmul.f32 %v217, 0.125
      %v227 = vmul.f32 %v222, 0.125
      %v228 = vlaneseq
      %v229 = vand.u32 %v228, 127
      %vm230 = vcmp.lt.s32.totalorder %v229, 17
      %v231 = vsel %vm230, %v225, -1e+30
      %v232 = vsel %vm230, %v226, -1e+30
      %v233 = vsel %vm230, %v227, -1e+30
      %vm234 = vcmask 195584
      %v235 = vsel %vm234, %v231, -inf
      %236 = vmax.xlane.f32.xlu0 %v235
      %v237 = vpop.xlane.xlu0 %236
      %v238 = vsel %vm234, %v232, -inf
      %239 = vmax.xlane.f32.xlu0 %v238
      %v240 = vpop.xlane.xlu0 %239
      %v241 = vsel %vm234, %v233, -inf
      %242 = vmax.xlane.f32.xlu0 %v241
      %v243 = vpop.xlane.xlu0 %242
      %v244 = vsub.f32 %v231, %v237
      %v245 = vsub.f32 %v232, %v240
      %v246 = vsub.f32 %v233, %v243
      %v247 = vmul.f32 %v244, 1.442695
      %v248 = vpow.pop %v247
      %v249 = vmul.f32 %v245, 1.442695
      %v250 = vpow.pop %v249
      %v251 = vmul.f32 %v246, 1.442695
      %v252 = vpow.pop %v251
      %v253 = vsel %vm234, %v248, 0.0
      %254 = vadd.xlane.f32.xlu0 %v253
      %v255 = vpop.xlane.xlu0 %254
      %v256 = vsel %vm234, %v250, 0.0
      %257 = vadd.xlane.f32.xlu0 %v256
      %v258 = vpop.xlane.xlu0 %257
      %v259 = vsel %vm234, %v252, 0.0
      %260 = vadd.xlane.f32.xlu0 %v259
      %v261 = vpop.xlane.xlu0 %260
      %v262 = vrcp.pop %v255
      %v263 = vrcp.pop %v258
      %v264 = vrcp.pop %v261
      %v265 = vmul.f32 %v248, %v262
      %v266 = vmul.f32 %v250, %v263
      %v267 = vmul.f32 %v252, %v264
      %v269 = vsel %vm234, %v265, 0
      %v272 = vsel %vm234, %v266, 0
      %v275 = vsel %vm234, %v267, 0
      %277 = vmatprep.subr.mxu0 0.0
      %278 = vmatpush1.msra.mxu0 %v123
      %279 = vmatprep.subr.mxu0 0.0
      %280 = vmatpush1.msra.mxu0 %v124
      %281 = vmatprep.subr.mxu0 0.0
      %282 = vmatpush1.msra.mxu0 %v125
      %283 = vmatprep.subr.mxu0 0.0
      %284 = vmatpush1.msra.mxu0 0.0
      %285 = vmatprep.subr.mxu0 0.0
      %286 = vmatpush1.msra.mxu0 0.0
      %287 = vmatprep.subr.mxu0 0.0
      %288 = vmatpush1.msra.mxu0 0.0
      %289 = vmatprep.subr.mxu0 0.0
      %290 = vmatpush1.msra.mxu0 0.0
      %291 = vmatprep.subr.mxu0 0.0
      %292 = vmatpush1.msra.mxu0 0.0
      %293 = vmatprep.subr.mxu0 0.0
      %294 = vmatpush1.msra.mxu0 0.0
      %295 = vmatprep.subr.mxu0 0.0
      %296 = vmatpush1.msra.mxu0 0.0
      %297 = vmatprep.subr.mxu0 0.0
      %298 = vmatpush1.msra.mxu0 0.0
      %299 = vmatprep.subr.mxu0 0.0
      %300 = vmatpush1.msra.mxu0 0.0
      %301 = vmatprep.subr.mxu0 0.0
      %302 = vmatpush1.msra.mxu0 0.0
      %303 = vmatprep.subr.mxu0 0.0
      %304 = vmatpush1.msra.mxu0 0.0
      %305 = vmatprep.subr.mxu0 0.0
      %306 = vmatpush1.msra.mxu0 0.0
      %307 = vmatprep.subr.mxu0 0.0
      %308 = vmatpush1.msra.mxu0 0.0
      %309 = vmatprep.subr.mxu0 0.0
      %310 = vmatpush1.msra.mxu0 0.0
      %311 = vmatprep.subr.mxu0 0.0
      %312 = vmatpush1.msra.mxu0 0.0
      %313 = vmatprep.subr.mxu0 0.0
      %314 = vmatpush1.msra.mxu0 0.0
      %315 = vmatprep.subr.mxu0 0.0
      %316 = vmatpush1.msra.mxu0 0.0
      %317 = vmatprep.subr.mxu0 0.0
      %318 = vmatpush1.msra.mxu0 0.0
      %319 = vmatprep.subr.mxu0 0.0
      %320 = vmatpush1.msra.mxu0 0.0
      %321 = vmatprep.subr.mxu0 0.0
      %322 = vmatpush1.msra.mxu0 0.0
      %323 = vmatprep.subr.mxu0 0.0
      %324 = vmatpush1.msra.mxu0 0.0
      %325 = vmatprep.subr.mxu0 0.0
      %326 = vmatpush1.msra.mxu0 0.0
      %327 = vmatprep.subr.mxu0 0.0
      %328 = vmatpush1.msra.mxu0 0.0
      %329 = vmatprep.subr.mxu0 0.0
      %330 = vmatpush1.msra.mxu0 0.0
      %331 = vmatprep.subr.mxu0 0.0
      %332 = vmatpush1.msra.mxu0 0.0
      %333 = vmatprep.subr.mxu0 0.0
      %334 = vmatpush1.msra.mxu0 0.0
      %335 = vmatprep.subr.mxu0 0.0
      %336 = vmatpush1.msra.mxu0 0.0
      %337 = vmatprep.subr.mxu0 0.0
      %338 = vmatpush1.msra.mxu0 0.0
      %339 = vmatprep.subr.mxu0 0.0
      %340 = vmatpush1.msra.mxu0 0.0
      %341 = vmatprep.mubr.f32.mxu0 0.0
      %342 = vmatmul.mubr.f32.gmra.mrb[0].mxu0 %v269
      %v343 = vpop.f32.mrb[0].mxu0
      %v344 = vadd.f32 0.0, %v343
      %v345 = vpop.f32.mrb[0].mxu0
      %346 = vmatprep.mubr.f32.mxu0 0.0
      %347 = vmatmul.mubr.f32.gmra.mrb[0].mxu0 %v272
      %v348 = vpop.f32.mrb[0].mxu0
      %v349 = vadd.f32 0.0, %v348
      %v350 = vpop.f32.mrb[0].mxu0
      %351 = vmatprep.mubr.f32.mxu0 0.0
      %352 = vmatmul.mubr.f32.gmra.mrb[0].mxu0 %v275
      %v353 = vpop.f32.mrb[0].mxu0
      %v354 = vadd.f32 0.0, %v353
      %v355 = vpop.f32.mrb[0].mxu0
      %356 = vdwg.mxu0
      %357 = vst.msk [vmem:[%s116] sm:$0xff] %vm126, %v344
      %358 = vst.msk [vmem:[%s116 + $0x8] sm:$0xff] %vm126, %v349
      %359 = vst.msk [vmem:[%s116 + $0x10] sm:$0xff] %vm126, %v354
      %v360 = vld [vmem:[%s111] sm:$0xff]
      %v361 = vld [vmem:[%s111 + $0x18] sm:$0xff]
      %v362 = vld [vmem:[%s111 + $0x30] sm:$0xff]
      %v363 = vld [vmem:[%s111 + $0x8] sm:$0xff]
      %v364 = vld [vmem:[%s111 + $0x20] sm:$0xff]
      %v365 = vld [vmem:[%s111 + $0x38] sm:$0xff]
      %v366 = vld [vmem:[%s111 + $0x10] sm:$0xff]
      %v367 = vld [vmem:[%s111 + $0x28] sm:$0xff]
      %v368 = vld [vmem:[%s111 + $0x40] sm:$0xff]
      %372 = vrot.lane.b32.xlu0 %v360, 64
      %v373 = vpop.permute.xlu0 %372
      %374 = vrot.lane.b32.xlu0 %v361, 64
      %v375 = vpop.permute.xlu0 %374
      %376 = vrot.lane.b32.xlu0 %v362, 64
      %v377 = vpop.permute.xlu0 %376
      %381 = vrot.lane.b32.xlu0 %v363, 64
      %v382 = vpop.permute.xlu0 %381
      %383 = vrot.lane.b32.xlu0 %v364, 64
      %v384 = vpop.permute.xlu0 %383
      %385 = vrot.lane.b32.xlu0 %v365, 64
      %v386 = vpop.permute.xlu0 %385
      %v387 = vsel %vm126, %v373, 0
      %v389 = vsel %vm126, %v375, 0
      %v391 = vsel %vm126, %v377, 0
      %v393 = vsel %vm126, %v382, 0
      %v395 = vsel %vm126, %v384, 0
      %v397 = vsel %vm126, %v386, 0
      %399 = vmatprep.subr.mxu0 0.0
      %400 = vmatpush1.xpose.msra.mxu0 %v393
      %401 = vmatprep.subr.mxu0 0.0
      %402 = vmatpush1.xpose.msra.mxu0 %v395
      %403 = vmatprep.subr.mxu0 0.0
      %404 = vmatpush1.xpose.msra.mxu0 %v397
      %405 = vmatprep.subr.mxu0 0.0
      %406 = vmatpush1.xpose.msra.mxu0 0.0
      %407 = vmatprep.subr.mxu0 0.0
      %408 = vmatpush1.xpose.msra.mxu0 0.0
      %409 = vmatprep.subr.mxu0 0.0
      %410 = vmatpush1.xpose.msra.mxu0 0.0
      %411 = vmatprep.subr.mxu0 0.0
      %412 = vmatpush1.xpose.msra.mxu0 0.0
      %413 = vmatprep.subr.mxu0 0.0
      %414 = vmatpush1.xpose.msra.mxu0 0.0
      %415 = vmatprep.subr.mxu0 0.0
      %416 = vmatpush1.xpose.msra.mxu0 0.0
      %417 = vmatprep.subr.mxu0 0.0
      %418 = vmatpush1.xpose.msra.mxu0 0.0
      %419 = vmatprep.subr.mxu0 0.0
      %420 = vmatpush1.xpose.msra.mxu0 0.0
      %421 = vmatprep.subr.mxu0 0.0
      %422 = vmatpush1.xpose.msra.mxu0 0.0
      %423 = vmatprep.subr.mxu0 0.0
      %424 = vmatpush1.xpose.msra.mxu0 0.0
      %425 = vmatprep.subr.mxu0 0.0
      %426 = vmatpush1.xpose.msra.mxu0 0.0
      %427 = vmatprep.subr.mxu0 0.0
      %428 = vmatpush1.xpose.msra.mxu0 0.0
      %429 = vmatprep.subr.mxu0 0.0
      %430 = vmatpush1.xpose.msra.mxu0 0.0
      %431 = vmatprep.subr.mxu0 0.0
      %432 = vmatpush1.xpose.msra.mxu0 0.0
      %433 = vmatprep.subr.mxu0 0.0
      %434 = vmatpush1.xpose.msra.mxu0 0.0
      %435 = vmatprep.subr.mxu0 0.0
      %436 = vmatpush1.xpose.msra.mxu0 0.0
      %437 = vmatprep.subr.mxu0 0.0
      %438 = vmatpush1.xpose.msra.mxu0 0.0
      %439 = vmatprep.subr.mxu0 0.0
      %440 = vmatpush1.xpose.msra.mxu0 0.0
      %441 = vmatprep.subr.mxu0 0.0
      %442 = vmatpush1.xpose.msra.mxu0 0.0
      %443 = vmatprep.subr.mxu0 0.0
      %444 = vmatpush1.xpose.msra.mxu0 0.0
      %445 = vmatprep.subr.mxu0 0.0
      %446 = vmatpush1.xpose.msra.mxu0 0.0
      %447 = vmatprep.subr.mxu0 0.0
      %448 = vmatpush1.xpose.msra.mxu0 0.0
      %449 = vmatprep.subr.mxu0 0.0
      %450 = vmatpush1.xpose.msra.mxu0 0.0
      %451 = vmatprep.subr.mxu0 0.0
      %452 = vmatpush1.xpose.msra.mxu0 0.0
      %453 = vmatprep.subr.mxu0 0.0
      %454 = vmatpush1.xpose.msra.mxu0 0.0
      %455 = vmatprep.subr.mxu0 0.0
      %456 = vmatpush1.xpose.msra.mxu0 0.0
      %457 = vmatprep.subr.mxu0 0.0
      %458 = vmatpush1.xpose.msra.mxu0 0.0
      %459 = vmatprep.subr.mxu0 0.0
      %460 = vmatpush1.xpose.msra.mxu0 0.0
      %461 = vmatprep.subr.mxu0 0.0
      %462 = vmatpush1.xpose.msra.mxu0 0.0
      %463 = vmatprep.mubr.f32.mxu0 0.0
      %464 = vmatmul.mubr.f32.gmra.mrb[0].mxu0 %v387
      %v465 = vpop.f32.mrb[0].mxu0
      %v466 = vadd.f32 0.0, %v465
      %v467 = vpop.f32.mrb[0].mxu0
      %468 = vmatprep.mubr.f32.mxu0 0.0
      %469 = vmatmul.mubr.f32.gmra.mrb[0].mxu0 %v389
      %v470 = vpop.f32.mrb[0].mxu0
      %v471 = vadd.f32 0.0, %v470
      %v472 = vpop.f32.mrb[0].mxu0
      %473 = vmatprep.mubr.f32.mxu0 0.0
      %474 = vmatmul.mubr.f32.gmra.mrb[0].mxu0 %v391
      %v475 = vpop.f32.mrb[0].mxu0
      %v476 = vadd.f32 0.0, %v475
      %v477 = vpop.f32.mrb[0].mxu0
      %478 = vdwg.mxu0
      %v479 = vmul.f32 %v466, 0.125
      %v480 = vmul.f32 %v471, 0.125
      %v481 = vmul.f32 %v476, 0.125
      %v482 = vsel %vm230, %v479, -1e+30
      %v483 = vsel %vm230, %v480, -1e+30
      %v484 = vsel %vm230, %v481, -1e+30
      %v485 = vsel %vm234, %v482, -inf
      %486 = vmax.xlane.f32.xlu0 %v485
      %v487 = vpop.xlane.xlu0 %486
      %v488 = vsel %vm234, %v483, -inf
      %489 = vmax.xlane.f32.xlu0 %v488
      %v490 = vpop.xlane.xlu0 %489
      %v491 = vsel %vm234, %v484, -inf
      %492 = vmax.xlane.f32.xlu0 %v491
      %v493 = vpop.xlane.xlu0 %492
      %v494 = vsub.f32 %v482, %v487
      %v495 = vsub.f32 %v483, %v490
      %v496 = vsub.f32 %v484, %v493
      %v497 = vmul.f32 %v494, 1.442695
      %v498 = vpow.pop %v497
      %v499 = vmul.f32 %v495, 1.442695
      %v500 = vpow.pop %v499
      %v501 = vmul.f32 %v496, 1.442695
      %v502 = vpow.pop %v501
      %v503 = vsel %vm234, %v498, 0.0
      %504 = vadd.xlane.f32.xlu0 %v503
      %v505 = vpop.xlane.xlu0 %504
      %v506 = vsel %vm234, %v500, 0.0
      %507 = vadd.xlane.f32.xlu0 %v506
      %v508 = vpop.xlane.xlu0 %507
      %v509 = vsel %vm234, %v502, 0.0
      %510 = vadd.xlane.f32.xlu0 %v509
      %v511 = vpop.xlane.xlu0 %510
      %v512 = vrcp.pop %v505
      %v513 = vrcp.pop %v508
      %v514 = vrcp.pop %v511
      %v515 = vmul.f32 %v498, %v512
      %v516 = vmul.f32 %v500, %v513
      %v517 = vmul.f32 %v502, %v514
      %521 = vrot.lane.b32.xlu0 %v366, 64
      %v522 = vpop.permute.xlu0 %521
      %523 = vrot.lane.b32.xlu0 %v367, 64
      %v524 = vpop.permute.xlu0 %523
      %525 = vrot.lane.b32.xlu0 %v368, 64
      %v526 = vpop.permute.xlu0 %525
      %v531 = vsel %vm234, %v515, 0
      %v534 = vsel %vm234, %v516, 0
      %v537 = vsel %vm234, %v517, 0
      %539 = vmatprep.subr.mxu0 0.0
      %540 = vmatpush1.msra.mxu0 %v522
      %541 = vmatprep.subr.mxu0 0.0
      %542 = vmatpush1.msra.mxu0 %v524
      %543 = vmatprep.subr.mxu0 0.0
      %544 = vmatpush1.msra.mxu0 %v526
      %545 = vmatprep.subr.mxu0 0.0
      %546 = vmatpush1.msra.mxu0 0.0
      %547 = vmatprep.subr.mxu0 0.0
      %548 = vmatpush1.msra.mxu0 0.0
      %549 = vmatprep.subr.mxu0 0.0
      %550 = vmatpush1.msra.mxu0 0.0
      %551 = vmatprep.subr.mxu0 0.0
      %552 = vmatpush1.msra.mxu0 0.0
      %553 = vmatprep.subr.mxu0 0.0
      %554 = vmatpush1.msra.mxu0 0.0
      %555 = vmatprep.subr.mxu0 0.0
      %556 = vmatpush1.msra.mxu0 0.0
      %557 = vmatprep.subr.mxu0 0.0
      %558 = vmatpush1.msra.mxu0 0.0
      %559 = vmatprep.subr.mxu0 0.0
      %560 = vmatpush1.msra.mxu0 0.0
      %561 = vmatprep.subr.mxu0 0.0
      %562 = vmatpush1.msra.mxu0 0.0
      %563 = vmatprep.subr.mxu0 0.0
      %564 = vmatpush1.msra.mxu0 0.0
      %565 = vmatprep.subr.mxu0 0.0
      %566 = vmatpush1.msra.mxu0 0.0
      %567 = vmatprep.subr.mxu0 0.0
      %568 = vmatpush1.msra.mxu0 0.0
      %569 = vmatprep.subr.mxu0 0.0
      %570 = vmatpush1.msra.mxu0 0.0
      %571 = vmatprep.subr.mxu0 0.0
      %572 = vmatpush1.msra.mxu0 0.0
      %573 = vmatprep.subr.mxu0 0.0
      %574 = vmatpush1.msra.mxu0 0.0
      %575 = vmatprep.subr.mxu0 0.0
      %576 = vmatpush1.msra.mxu0 0.0
      %577 = vmatprep.subr.mxu0 0.0
      %578 = vmatpush1.msra.mxu0 0.0
      %579 = vmatprep.subr.mxu0 0.0
      %580 = vmatpush1.msra.mxu0 0.0
      %581 = vmatprep.subr.mxu0 0.0
      %582 = vmatpush1.msra.mxu0 0.0
      %583 = vmatprep.subr.mxu0 0.0
      %584 = vmatpush1.msra.mxu0 0.0
      %585 = vmatprep.subr.mxu0 0.0
      %586 = vmatpush1.msra.mxu0 0.0
      %587 = vmatprep.subr.mxu0 0.0
      %588 = vmatpush1.msra.mxu0 0.0
      %589 = vmatprep.subr.mxu0 0.0
      %590 = vmatpush1.msra.mxu0 0.0
      %591 = vmatprep.subr.mxu0 0.0
      %592 = vmatpush1.msra.mxu0 0.0
      %593 = vmatprep.subr.mxu0 0.0
      %594 = vmatpush1.msra.mxu0 0.0
      %595 = vmatprep.subr.mxu0 0.0
      %596 = vmatpush1.msra.mxu0 0.0
      %597 = vmatprep.subr.mxu0 0.0
      %598 = vmatpush1.msra.mxu0 0.0
      %599 = vmatprep.subr.mxu0 0.0
      %600 = vmatpush1.msra.mxu0 0.0
      %601 = vmatprep.subr.mxu0 0.0
      %602 = vmatpush1.msra.mxu0 0.0
      %603 = vmatprep.mubr.f32.mxu0 0.0
      %604 = vmatmul.mubr.f32.gmra.mrb[0].mxu0 %v531
      %v605 = vpop.f32.mrb[0].mxu0
      %v606 = vadd.f32 0.0, %v605
      %v607 = vpop.f32.mrb[0].mxu0
      %608 = vmatprep.mubr.f32.mxu0 0.0
      %609 = vmatmul.mubr.f32.gmra.mrb[0].mxu0 %v534
      %v610 = vpop.f32.mrb[0].mxu0
      %v611 = vadd.f32 0.0, %v610
      %v612 = vpop.f32.mrb[0].mxu0
      %613 = vmatprep.mubr.f32.mxu0 0.0
      %614 = vmatmul.mubr.f32.gmra.mrb[0].mxu0 %v537
      %v615 = vpop.f32.mrb[0].mxu0
      %v616 = vadd.f32 0.0, %v615
      %v617 = vpop.f32.mrb[0].mxu0
      %618 = vdwg.mxu0
      %622 = vrot.lane.b32.xlu0 %v606, 64
      %v623 = vpop.permute.xlu0 %622
      %624 = vrot.lane.b32.xlu0 %v611, 64
      %v625 = vpop.permute.xlu0 %624
      %626 = vrot.lane.b32.xlu0 %v616, 64
      %v627 = vpop.permute.xlu0 %626
      %vm631 = vcmask 1048064
      %632 = vst.msk [vmem:[%s116] sm:$0xff] %vm631, %v623
      %633 = vst.msk [vmem:[%s116 + $0x8] sm:$0xff] %vm631, %v625
      %634 = vst.msk [vmem:[%s116 + $0x10] sm:$0xff] %vm631, %v627
      %p635 = scmp.lt.s32.totalorder %s12, 1
      %s636 = scalar_select %p635, %s12, 1
      %s637 = smul.addr %s636, 3
      %s638 = smul.addr %s637, 8
      %s639 = scalar_lea.vmem %s1, %s638
      // Predicated region
      $region25: #{vit_forward.37} parent=23 // pred_check
        %p640 = pneg %p56
      $region26: #{vit_forward.37} parent=23 // pred_check_branch
        %642 = sbr.rel (%p640) target = $region28
      $region27: #{vit_forward.37} parent=23 // pred_region
        _
      $region28: #{vit_forward.37} parent=23 // pred_fallthru
        _
    $region24: #{vit_forward.37} parent=5 // pred_fallthru
      _
    %p643 = scmp.le.s32.totalorder 2, %s7
    // Predicated region
    $region29: #{vit_forward.37} parent=5 // pred_check
      %p644 = pneg %p643
    $region30: #{vit_forward.37} parent=5 // pred_check_branch
      %646 = sbr.rel (%p644) target = $region32
    $region31: #{vit_forward.37} parent=5 // pred_region
      %s647 = ssub.s32 %s7, 2
      // Predicated region
      $region33: #{vit_forward.37} parent=31 // pred_check
        %p648 = pneg %p62
      $region34: #{vit_forward.37} parent=31 // pred_check_branch
        %650 = sbr.rel (%p648) target = $region36
      $region35: #{vit_forward.37} parent=31 // pred_region
        %p651 = scmp.lt.s32.totalorder %s13, 1
        %s652 = scalar_select %p651, %s13, 1
        %s653 = smul.addr %s652, 3
        %s654 = smul.addr %s653, 8
        %s655 = scalar_lea.vmem %s1, %s654
      $region36: #{vit_forward.37} parent=31 // pred_fallthru
        _
    $region32: #{vit_forward.37} parent=5 // pred_fallthru
      _
  $region6: #{vit_forward.37} parent=0 // loop_footer
    %s11 = sadd.s32 1, %s7
  $region7: #{vit_forward.37} parent=0 // loop_footer_branch
    %6 = sbr.rel target = $region3
  $region8: #{vit_forward.37} parent=0 // loop_exit
    _

// kernel: vit_forward.38
$region0: #{vit_forward.38}
  #allocation0 [shape = 'u32[]', space=smem, size = 0x4, offset = 0x4, fixed_abs, tag = 'smem constant byte address 0x4 - core index']
  #allocation1 [shape = 'u32[144,128]{1,0:T(1,128)}', space=vmem, size = 0x12000, scoped, tag = 'internal scratch']
  #allocation2 [shape = 'f32[48,128]{1,0:T(8,128)}', space=vmem, size = 0x6000, scoped, tag = 'scratch operand']
  %s0 = inlined_call_operand.vmem [shape: f32[48,128], index: 0, kind: input, shape index: {}]
  %s1 = inlined_call_operand.vmem [shape: f32[128,128], index: 1, kind: input, shape index: {}]
  %s2 = inlined_call_operand.vmem [shape: f32[1,128], index: 2, kind: input, shape index: {}]
  %s3 = inlined_call_operand.vmem [shape: f32[48,128], index: 3, kind: input, shape index: {}]
  %s4 = inlined_call_operand.vmem [shape: f32[48,128], index: 4, kind: output, shape index: {}]
  %s5 = sld [smem:[#allocation0]]
  $region34: #{vit_forward.38} parent=0
    _
  %s7 = ssub.s32 1, %s5
  %s8 = scalar_select 0, %s7, %s5
  // Predicated region
  $region2: #{vit_forward.38} parent=0 // pred_check
    _
  $region3: #{vit_forward.38} parent=0 // pred_check_branch
    %10 = sbr.rel (0) target = $region5
  $region4: #{vit_forward.38} parent=0 // pred_region
    _
  $region5: #{vit_forward.38} parent=0 // pred_fallthru
    _
  // Predicated region
  $region6: #{vit_forward.38} parent=0 // pred_check
    _
  $region7: #{vit_forward.38} parent=0 // pred_check_branch
    %12 = sbr.rel (0) target = $region9
  $region8: #{vit_forward.38} parent=0 // pred_region
    _
  $region9: #{vit_forward.38} parent=0 // pred_fallthru
    _
  // Predicated region
  $region10: #{vit_forward.38} parent=0 // pred_check
    _
  $region11: #{vit_forward.38} parent=0 // pred_check_branch
    %14 = sbr.rel (0) target = $region13
  $region12: #{vit_forward.38} parent=0 // pred_region
    _
  $region13: #{vit_forward.38} parent=0 // pred_fallthru
    _
  // Predicated region
  $region14: #{vit_forward.38} parent=0 // pred_check
    _
  $region15: #{vit_forward.38} parent=0 // pred_check_branch
    %16 = sbr.rel (0) target = $region17
  $region16: #{vit_forward.38} parent=0 // pred_region
    _
  $region17: #{vit_forward.38} parent=0 // pred_fallthru
    _
  %p17 = scmp.eq.s32.totalorder 0, 0
  // Predicated region
  $region18: #{vit_forward.38} parent=0 // pred_check
    %p18 = pneg %p17
  $region19: #{vit_forward.38} parent=0 // pred_check_branch
    %20 = sbr.rel (%p18) target = $region21
  $region20: #{vit_forward.38} parent=0 // pred_region
    %21 = vst [vmem:[#allocation2] sm:$0xff] 0.0
    %22 = vst [vmem:[#allocation2 + $0x8] sm:$0xff] 0.0
    %23 = vst [vmem:[#allocation2 + $0x10] sm:$0xff] 0.0
    %24 = vst [vmem:[#allocation2 + $0x18] sm:$0xff] 0.0
    %25 = vst [vmem:[#allocation2 + $0x20] sm:$0xff] 0.0
    %26 = vst [vmem:[#allocation2 + $0x28] sm:$0xff] 0.0
  $region21: #{vit_forward.38} parent=0 // pred_fallthru
    _
  %v27 = vld [vmem:[#allocation2] sm:$0xff]
  %v28 = vld [vmem:[#allocation2 + $0x8] sm:$0xff]
  %v29 = vld [vmem:[#allocation2 + $0x10] sm:$0xff]
  %v30 = vld [vmem:[#allocation2 + $0x18] sm:$0xff]
  %v31 = vld [vmem:[#allocation2 + $0x20] sm:$0xff]
  %v32 = vld [vmem:[#allocation2 + $0x28] sm:$0xff]
  %v33 = vld [vmem:[%s0] sm:$0xff]
  %v34 = vld [vmem:[%s0 + $0x8] sm:$0xff]
  %v35 = vld [vmem:[%s0 + $0x10] sm:$0xff]
  %v36 = vld [vmem:[%s0 + $0x18] sm:$0xff]
  %v37 = vld [vmem:[%s0 + $0x20] sm:$0xff]
  %v38 = vld [vmem:[%s0 + $0x28] sm:$0xff]
  %v39 = vld [vmem:[%s1] sm:$0xff]
  %v40 = vld [vmem:[%s1 + $0x8] sm:$0xff]
  %v41 = vld [vmem:[%s1 + $0x10] sm:$0xff]
  %v42 = vld [vmem:[%s1 + $0x18] sm:$0xff]
  %v43 = vld [vmem:[%s1 + $0x20] sm:$0xff]
  %v44 = vld [vmem:[%s1 + $0x28] sm:$0xff]
  %v45 = vld [vmem:[%s1 + $0x30] sm:$0xff]
  %v46 = vld [vmem:[%s1 + $0x38] sm:$0xff]
  %v47 = vld [vmem:[%s1 + $0x40] sm:$0xff]
  %v48 = vld [vmem:[%s1 + $0x48] sm:$0xff]
  %v49 = vld [vmem:[%s1 + $0x50] sm:$0xff]
  %v50 = vld [vmem:[%s1 + $0x58] sm:$0xff]
  %v51 = vld [vmem:[%s1 + $0x60] sm:$0xff]
  %v52 = vld [vmem:[%s1 + $0x68] sm:$0xff]
  %v53 = vld [vmem:[%s1 + $0x70] sm:$0xff]
  %v54 = vld [vmem:[%s1 + $0x78] sm:$0xff]
  %55 = vmatprep.subr.mxu0 0.0
  %56 = vmatpush1.msra.mxu0 %v39
  %57 = vmatprep.subr.mxu0 0.0
  %58 = vmatpush1.msra.mxu0 %v40
  %59 = vmatprep.subr.mxu0 0.0
  %60 = vmatpush1.msra.mxu0 %v41
  %61 = vmatprep.subr.mxu0 0.0
  %62 = vmatpush1.msra.mxu0 %v42
  %63 = vmatprep.subr.mxu0 0.0
  %64 = vmatpush1.msra.mxu0 %v43
  %65 = vmatprep.subr.mxu0 0.0
  %66 = vmatpush1.msra.mxu0 %v44
  %67 = vmatprep.subr.mxu0 0.0
  %68 = vmatpush1.msra.mxu0 %v45
  %69 = vmatprep.subr.mxu0 0.0
  %70 = vmatpush1.msra.mxu0 %v46
  %71 = vmatprep.subr.mxu0 0.0
  %72 = vmatpush1.msra.mxu0 %v47
  %73 = vmatprep.subr.mxu0 0.0
  %74 = vmatpush1.msra.mxu0 %v48
  %75 = vmatprep.subr.mxu0 0.0
  %76 = vmatpush1.msra.mxu0 %v49
  %77 = vmatprep.subr.mxu0 0.0
  %78 = vmatpush1.msra.mxu0 %v50
  %79 = vmatprep.subr.mxu0 0.0
  %80 = vmatpush1.msra.mxu0 %v51
  %81 = vmatprep.subr.mxu0 0.0
  %82 = vmatpush1.msra.mxu0 %v52
  %83 = vmatprep.subr.mxu0 0.0
  %84 = vmatpush1.msra.mxu0 %v53
  %85 = vmatprep.subr.mxu0 0.0
  %86 = vmatpush1.msra.mxu0 %v54
  %87 = vmatprep.subr.mxu0 0.0
  %88 = vmatpush1.msra.mxu0 0.0
  %89 = vmatprep.subr.mxu0 0.0
  %90 = vmatpush1.msra.mxu0 0.0
  %91 = vmatprep.subr.mxu0 0.0
  %92 = vmatpush1.msra.mxu0 0.0
  %93 = vmatprep.subr.mxu0 0.0
  %94 = vmatpush1.msra.mxu0 0.0
  %95 = vmatprep.subr.mxu0 0.0
  %96 = vmatpush1.msra.mxu0 0.0
  %97 = vmatprep.subr.mxu0 0.0
  %98 = vmatpush1.msra.mxu0 0.0
  %99 = vmatprep.subr.mxu0 0.0
  %100 = vmatpush1.msra.mxu0 0.0
  %101 = vmatprep.subr.mxu0 0.0
  %102 = vmatpush1.msra.mxu0 0.0
  %103 = vmatprep.subr.mxu0 0.0
  %104 = vmatpush1.msra.mxu0 0.0
  %105 = vmatprep.subr.mxu0 0.0
  %106 = vmatpush1.msra.mxu0 0.0
  %107 = vmatprep.subr.mxu0 0.0
  %108 = vmatpush1.msra.mxu0 0.0
  %109 = vmatprep.subr.mxu0 0.0
  %110 = vmatpush1.msra.mxu0 0.0
  %111 = vmatprep.subr.mxu0 0.0
  %112 = vmatpush1.msra.mxu0 0.0
  %113 = vmatprep.subr.mxu0 0.0
  %114 = vmatpush1.msra.mxu0 0.0
  %115 = vmatprep.subr.mxu0 0.0
  %116 = vmatpush1.msra.mxu0 0.0
  %117 = vmatprep.subr.mxu0 0.0
  %118 = vmatpush1.msra.mxu0 0.0
  %119 = vmatprep.mubr.f32.mxu0 0.0
  %120 = vmatmul.mubr.f32.gmra.mrb[0].mxu0 %v33
  %v121 = vpop.f32.mrb[0].mxu0
  %v122 = vadd.f32 0.0, %v121
  %v123 = vpop.f32.mrb[0].mxu0
  %124 = vmatprep.mubr.f32.mxu0 0.0
  %125 = vmatmul.mubr.f32.gmra.mrb[0].mxu0 %v34
  %v126 = vpop.f32.mrb[0].mxu0
  %v127 = vadd.f32 0.0, %v126
  %v128 = vpop.f32.mrb[0].mxu0
  %129 = vmatprep.mubr.f32.mxu0 0.0
  %130 = vmatmul.mubr.f32.gmra.mrb[0].mxu0 %v35
  %v131 = vpop.f32.mrb[0].mxu0
  %v132 = vadd.f32 0.0, %v131
  %v133 = vpop.f32.mrb[0].mxu0
  %134 = vmatprep.mubr.f32.mxu0 0.0
  %135 = vmatmul.mubr.f32.gmra.mrb[0].mxu0 %v36
  %v136 = vpop.f32.mrb[0].mxu0
  %v137 = vadd.f32 0.0, %v136
  %v138 = vpop.f32.mrb[0].mxu0
  %139 = vmatprep.mubr.f32.mxu0 0.0
  %140 = vmatmul.mubr.f32.gmra.mrb[0].mxu0 %v37
  %v141 = vpop.f32.mrb[0].mxu0
  %v142 = vadd.f32 0.0, %v141
  %v143 = vpop.f32.mrb[0].mxu0
  %144 = vmatprep.mubr.f32.mxu0 0.0
  %145 = vmatmul.mubr.f32.gmra.mrb[0].mxu0 %v38
  %v146 = vpop.f32.mrb[0].mxu0
  %v147 = vadd.f32 0.0, %v146
  %v148 = vpop.f32.mrb[0].mxu0
  %149 = vdwg.mxu0
  %v150 = vadd.f32 %v27, %v122
  %v151 = vadd.f32 %v28, %v127
  %v152 = vadd.f32 %v29, %v132
  %v153 = vadd.f32 %v30, %v137
  %v154 = vadd.f32 %v31, %v142
  %v155 = vadd.f32 %v32, %v147
  %156 = vst [vmem:[#allocation2] sm:$0xff] %v150
  %157 = vst [vmem:[#allocation2 + $0x8] sm:$0xff] %v151
  %158 = vst [vmem:[#allocation2 + $0x10] sm:$0xff] %v152
  %159 = vst [vmem:[#allocation2 + $0x18] sm:$0xff] %v153
  %160 = vst [vmem:[#allocation2 + $0x20] sm:$0xff] %v154
  %161 = vst [vmem:[#allocation2 + $0x28] sm:$0xff] %v155
  // Predicated region
  $region22: #{vit_forward.38} parent=0 // pred_check
    %p162 = pneg %p17
  $region23: #{vit_forward.38} parent=0 // pred_check_branch
    %164 = sbr.rel (%p162) target = $region25
  $region24: #{vit_forward.38} parent=0 // pred_region
    %v165 = vld [vmem:[#allocation2] sm:$0xff]
    %v166 = vld [vmem:[#allocation2 + $0x8] sm:$0xff]
    %v167 = vld [vmem:[#allocation2 + $0x10] sm:$0xff]
    %v168 = vld [vmem:[#allocation2 + $0x18] sm:$0xff]
    %v169 = vld [vmem:[#allocation2 + $0x20] sm:$0xff]
    %v170 = vld [vmem:[#allocation2 + $0x28] sm:$0xff]
    %v171 = vld [vmem:[%s2] sm:$0x1]
    %v173 = vlaneseq
    %v174 = vshrl.u32 %v173, 7
    %v175 = vsub.s32 0, %v174
    %v176 = vrot.slane %v171, %v175
    %v178 = vadd.f32 %v165, %v176
    %v179 = vadd.f32 %v166, %v176
    %v180 = vadd.f32 %v167, %v176
    %v181 = vadd.f32 %v168, %v176
    %v182 = vadd.f32 %v169, %v176
    %v183 = vadd.f32 %v170, %v176
    %v184 = vld [vmem:[%s3] sm:$0xff]
    %v185 = vld [vmem:[%s3 + $0x8] sm:$0xff]
    %v186 = vld [vmem:[%s3 + $0x10] sm:$0xff]
    %v187 = vld [vmem:[%s3 + $0x18] sm:$0xff]
    %v188 = vld [vmem:[%s3 + $0x20] sm:$0xff]
    %v189 = vld [vmem:[%s3 + $0x28] sm:$0xff]
    %v190 = vadd.f32 %v178, %v184
    %v191 = vadd.f32 %v179, %v185
    %v192 = vadd.f32 %v180, %v186
    %v193 = vadd.f32 %v181, %v187
    %v194 = vadd.f32 %v182, %v188
    %v195 = vadd.f32 %v183, %v189
    %196 = vst [vmem:[%s4] sm:$0xff] %v190
    %197 = vst [vmem:[%s4 + $0x8] sm:$0xff] %v191
    %198 = vst [vmem:[%s4 + $0x10] sm:$0xff] %v192
    %199 = vst [vmem:[%s4 + $0x18] sm:$0xff] %v193
    %200 = vst [vmem:[%s4 + $0x20] sm:$0xff] %v194
    %201 = vst [vmem:[%s4 + $0x28] sm:$0xff] %v195
  $region25: #{vit_forward.38} parent=0 // pred_fallthru
    _
  // Predicated region
  $region26: #{vit_forward.38} parent=0 // pred_check
    _
  $region27: #{vit_forward.38} parent=0 // pred_check_branch
    %203 = sbr.rel (0) target = $region29
  $region28: #{vit_forward.38} parent=0 // pred_region
    _
  $region29: #{vit_forward.38} parent=0 // pred_fallthru
    _
  // Predicated region
  $region30: #{vit_forward.38} parent=0 // pred_check
    _
  $region31: #{vit_forward.38} parent=0 // pred_check_branch
    %205 = sbr.rel (0) target = $region33
  $region32: #{vit_forward.38} parent=0 // pred_region
    _
  $region33: #{vit_forward.38} parent=0 // pred_fallthru
    _

// kernel: vit_forward.40
$region0: #{vit_forward.40}
  #allocation0 [shape = 'u32[]', space=smem, size = 0x4, offset = 0x4, fixed_abs, tag = 'smem constant byte address 0x4 - core index']
  #allocation1 [shape = 'u32[144,128]{1,0:T(1,128)}', space=vmem, size = 0x12000, scoped, tag = 'internal scratch']
  #allocation2 [shape = 'f32[48,128]{1,0:T(8,128)}', space=vmem, size = 0x6000, scoped, tag = 'scratch operand']
  %s0 = inlined_call_operand.vmem [shape: f32[48,512], index: 0, kind: input, shape index: {}]
  %s1 = inlined_call_operand.vmem [shape: f32[512,128], index: 1, kind: input, shape index: {}]
  %s2 = inlined_call_operand.vmem [shape: f32[1,128], index: 2, kind: input, shape index: {}]
  %s3 = inlined_call_operand.vmem [shape: f32[48,128], index: 3, kind: input, shape index: {}]
  %s4 = inlined_call_operand.vmem [shape: f32[48,128], index: 4, kind: output, shape index: {}]
  %s5 = sld [smem:[#allocation0]]
  $region34: #{vit_forward.40} parent=0
    _
  %s7 = ssub.s32 1, %s5
  %s8 = scalar_select 0, %s7, %s5
  // Predicated region
  $region2: #{vit_forward.40} parent=0 // pred_check
    _
  $region3: #{vit_forward.40} parent=0 // pred_check_branch
    %10 = sbr.rel (0) target = $region5
  $region4: #{vit_forward.40} parent=0 // pred_region
    _
  $region5: #{vit_forward.40} parent=0 // pred_fallthru
    _
  // Predicated region
  $region6: #{vit_forward.40} parent=0 // pred_check
    _
  $region7: #{vit_forward.40} parent=0 // pred_check_branch
    %12 = sbr.rel (0) target = $region9
  $region8: #{vit_forward.40} parent=0 // pred_region
    _
  $region9: #{vit_forward.40} parent=0 // pred_fallthru
    _
  // Predicated region
  $region10: #{vit_forward.40} parent=0 // pred_check
    _
  $region11: #{vit_forward.40} parent=0 // pred_check_branch
    %14 = sbr.rel (0) target = $region13
  $region12: #{vit_forward.40} parent=0 // pred_region
    _
  $region13: #{vit_forward.40} parent=0 // pred_fallthru
    _
  // Predicated region
  $region14: #{vit_forward.40} parent=0 // pred_check
    _
  $region15: #{vit_forward.40} parent=0 // pred_check_branch
    %16 = sbr.rel (0) target = $region17
  $region16: #{vit_forward.40} parent=0 // pred_region
    _
  $region17: #{vit_forward.40} parent=0 // pred_fallthru
    _
  %p17 = scmp.eq.s32.totalorder 0, 0
  // Predicated region
  $region18: #{vit_forward.40} parent=0 // pred_check
    %p18 = pneg %p17
  $region19: #{vit_forward.40} parent=0 // pred_check_branch
    %20 = sbr.rel (%p18) target = $region21
  $region20: #{vit_forward.40} parent=0 // pred_region
    %21 = vst [vmem:[#allocation2] sm:$0xff] 0.0
    %22 = vst [vmem:[#allocation2 + $0x8] sm:$0xff] 0.0
    %23 = vst [vmem:[#allocation2 + $0x10] sm:$0xff] 0.0
    %24 = vst [vmem:[#allocation2 + $0x18] sm:$0xff] 0.0
    %25 = vst [vmem:[#allocation2 + $0x20] sm:$0xff] 0.0
    %26 = vst [vmem:[#allocation2 + $0x28] sm:$0xff] 0.0
  $region21: #{vit_forward.40} parent=0 // pred_fallthru
    _
  %v27 = vld [vmem:[#allocation2] sm:$0xff]
  %v28 = vld [vmem:[#allocation2 + $0x8] sm:$0xff]
  %v29 = vld [vmem:[#allocation2 + $0x10] sm:$0xff]
  %v30 = vld [vmem:[#allocation2 + $0x18] sm:$0xff]
  %v31 = vld [vmem:[#allocation2 + $0x20] sm:$0xff]
  %v32 = vld [vmem:[#allocation2 + $0x28] sm:$0xff]
  %v33 = vld [vmem:[%s0] sm:$0xff]
  %v34 = vld [vmem:[%s0 + $0x8] sm:$0xff]
  %v35 = vld [vmem:[%s0 + $0x10] sm:$0xff]
  %v36 = vld [vmem:[%s0 + $0x18] sm:$0xff]
  %v37 = vld [vmem:[%s0 + $0x20] sm:$0xff]
  %v38 = vld [vmem:[%s0 + $0x28] sm:$0xff]
  %v39 = vld [vmem:[%s0 + $0x30] sm:$0xff]
  %v40 = vld [vmem:[%s0 + $0x38] sm:$0xff]
  %v41 = vld [vmem:[%s0 + $0x40] sm:$0xff]
  %v42 = vld [vmem:[%s0 + $0x48] sm:$0xff]
  %v43 = vld [vmem:[%s0 + $0x50] sm:$0xff]
  %v44 = vld [vmem:[%s0 + $0x58] sm:$0xff]
  %v45 = vld [vmem:[%s0 + $0x60] sm:$0xff]
  %v46 = vld [vmem:[%s0 + $0x68] sm:$0xff]
  %v47 = vld [vmem:[%s0 + $0x70] sm:$0xff]
  %v48 = vld [vmem:[%s0 + $0x78] sm:$0xff]
  %v49 = vld [vmem:[%s0 + $0x80] sm:$0xff]
  %v50 = vld [vmem:[%s0 + $0x88] sm:$0xff]
  %v51 = vld [vmem:[%s0 + $0x90] sm:$0xff]
  %v52 = vld [vmem:[%s0 + $0x98] sm:$0xff]
  %v53 = vld [vmem:[%s0 + $0xa0] sm:$0xff]
  %v54 = vld [vmem:[%s0 + $0xa8] sm:$0xff]
  %v55 = vld [vmem:[%s0 + $0xb0] sm:$0xff]
  %v56 = vld [vmem:[%s0 + $0xb8] sm:$0xff]
  %v57 = vld [vmem:[%s1] sm:$0xff]
  %v58 = vld [vmem:[%s1 + $0x8] sm:$0xff]
  %v59 = vld [vmem:[%s1 + $0x10] sm:$0xff]
  %v60 = vld [vmem:[%s1 + $0x18] sm:$0xff]
  %v61 = vld [vmem:[%s1 + $0x20] sm:$0xff]
  %v62 = vld [vmem:[%s1 + $0x28] sm:$0xff]
  %v63 = vld [vmem:[%s1 + $0x30] sm:$0xff]
  %v64 = vld [vmem:[%s1 + $0x38] sm:$0xff]
  %v65 = vld [vmem:[%s1 + $0x40] sm:$0xff]
  %v66 = vld [vmem:[%s1 + $0x48] sm:$0xff]
  %v67 = vld [vmem:[%s1 + $0x50] sm:$0xff]
  %v68 = vld [vmem:[%s1 + $0x58] sm:$0xff]
  %v69 = vld [vmem:[%s1 + $0x60] sm:$0xff]
  %v70 = vld [vmem:[%s1 + $0x68] sm:$0xff]
  %v71 = vld [vmem:[%s1 + $0x70] sm:$0xff]
  %v72 = vld [vmem:[%s1 + $0x78] sm:$0xff]
  %v73 = vld [vmem:[%s1 + $0x80] sm:$0xff]
  %v74 = vld [vmem:[%s1 + $0x88] sm:$0xff]
  %v75 = vld [vmem:[%s1 + $0x90] sm:$0xff]
  %v76 = vld [vmem:[%s1 + $0x98] sm:$0xff]
  %v77 = vld [vmem:[%s1 + $0xa0] sm:$0xff]
  %v78 = vld [vmem:[%s1 + $0xa8] sm:$0xff]
  %v79 = vld [vmem:[%s1 + $0xb0] sm:$0xff]
  %v80 = vld [vmem:[%s1 + $0xb8] sm:$0xff]
  %v81 = vld [vmem:[%s1 + $0xc0] sm:$0xff]
  %v82 = vld [vmem:[%s1 + $0xc8] sm:$0xff]
  %v83 = vld [vmem:[%s1 + $0xd0] sm:$0xff]
  %v84 = vld [vmem:[%s1 + $0xd8] sm:$0xff]
  %v85 = vld [vmem:[%s1 + $0xe0] sm:$0xff]
  %v86 = vld [vmem:[%s1 + $0xe8] sm:$0xff]
  %v87 = vld [vmem:[%s1 + $0xf0] sm:$0xff]
  %v88 = vld [vmem:[%s1 + $0xf8] sm:$0xff]
  %v89 = vld [vmem:[%s1 + $0x100] sm:$0xff]
  %v90 = vld [vmem:[%s1 + $0x108] sm:$0xff]
  %v91 = vld [vmem:[%s1 + $0x110] sm:$0xff]
  %v92 = vld [vmem:[%s1 + $0x118] sm:$0xff]
  %v93 = vld [vmem:[%s1 + $0x120] sm:$0xff]
  %v94 = vld [vmem:[%s1 + $0x128] sm:$0xff]
  %v95 = vld [vmem:[%s1 + $0x130] sm:$0xff]
  %v96 = vld [vmem:[%s1 + $0x138] sm:$0xff]
  %v97 = vld [vmem:[%s1 + $0x140] sm:$0xff]
  %v98 = vld [vmem:[%s1 + $0x148] sm:$0xff]
  %v99 = vld [vmem:[%s1 + $0x150] sm:$0xff]
  %v100 = vld [vmem:[%s1 + $0x158] sm:$0xff]
  %v101 = vld [vmem:[%s1 + $0x160] sm:$0xff]
  %v102 = vld [vmem:[%s1 + $0x168] sm:$0xff]
  %v103 = vld [vmem:[%s1 + $0x170] sm:$0xff]
  %v104 = vld [vmem:[%s1 + $0x178] sm:$0xff]
  %v105 = vld [vmem:[%s1 + $0x180] sm:$0xff]
  %v106 = vld [vmem:[%s1 + $0x188] sm:$0xff]
  %v107 = vld [vmem:[%s1 + $0x190] sm:$0xff]
  %v108 = vld [vmem:[%s1 + $0x198] sm:$0xff]
  %v109 = vld [vmem:[%s1 + $0x1a0] sm:$0xff]
  %v110 = vld [vmem:[%s1 + $0x1a8] sm:$0xff]
  %v111 = vld [vmem:[%s1 + $0x1b0] sm:$0xff]
  %v112 = vld [vmem:[%s1 + $0x1b8] sm:$0xff]
  %v113 = vld [vmem:[%s1 + $0x1c0] sm:$0xff]
  %v114 = vld [vmem:[%s1 + $0x1c8] sm:$0xff]
  %v115 = vld [vmem:[%s1 + $0x1d0] sm:$0xff]
  %v116 = vld [vmem:[%s1 + $0x1d8] sm:$0xff]
  %v117 = vld [vmem:[%s1 + $0x1e0] sm:$0xff]
  %v118 = vld [vmem:[%s1 + $0x1e8] sm:$0xff]
  %v119 = vld [vmem:[%s1 + $0x1f0] sm:$0xff]
  %v120 = vld [vmem:[%s1 + $0x1f8] sm:$0xff]
  %121 = vmatprep.subr.mxu0 0.0
  %122 = vmatpush1.msra.mxu0 %v57
  %123 = vmatprep.subr.mxu0 0.0
  %124 = vmatpush1.msra.mxu0 %v58
  %125 = vmatprep.subr.mxu0 0.0
  %126 = vmatpush1.msra.mxu0 %v59
  %127 = vmatprep.subr.mxu0 0.0
  %128 = vmatpush1.msra.mxu0 %v60
  %129 = vmatprep.subr.mxu0 0.0
  %130 = vmatpush1.msra.mxu0 %v61
  %131 = vmatprep.subr.mxu0 0.0
  %132 = vmatpush1.msra.mxu0 %v62
  %133 = vmatprep.subr.mxu0 0.0
  %134 = vmatpush1.msra.mxu0 %v63
  %135 = vmatprep.subr.mxu0 0.0
  %136 = vmatpush1.msra.mxu0 %v64
  %137 = vmatprep.subr.mxu0 0.0
  %138 = vmatpush1.msra.mxu0 %v65
  %139 = vmatprep.subr.mxu0 0.0
  %140 = vmatpush1.msra.mxu0 %v66
  %141 = vmatprep.subr.mxu0 0.0
  %142 = vmatpush1.msra.mxu0 %v67
  %143 = vmatprep.subr.mxu0 0.0
  %144 = vmatpush1.msra.mxu0 %v68
  %145 = vmatprep.subr.mxu0 0.0
  %146 = vmatpush1.msra.mxu0 %v69
  %147 = vmatprep.subr.mxu0 0.0
  %148 = vmatpush1.msra.mxu0 %v70
  %149 = vmatprep.subr.mxu0 0.0
  %150 = vmatpush1.msra.mxu0 %v71
  %151 = vmatprep.subr.mxu0 0.0
  %152 = vmatpush1.msra.mxu0 %v72
  %153 = vmatprep.subr.mxu0 0.0
  %154 = vmatpush1.msra.mxu0 %v73
  %155 = vmatprep.subr.mxu0 0.0
  %156 = vmatpush1.msra.mxu0 %v74
  %157 = vmatprep.subr.mxu0 0.0
  %158 = vmatpush1.msra.mxu0 %v75
  %159 = vmatprep.subr.mxu0 0.0
  %160 = vmatpush1.msra.mxu0 %v76
  %161 = vmatprep.subr.mxu0 0.0
  %162 = vmatpush1.msra.mxu0 %v77
  %163 = vmatprep.subr.mxu0 0.0
  %164 = vmatpush1.msra.mxu0 %v78
  %165 = vmatprep.subr.mxu0 0.0
  %166 = vmatpush1.msra.mxu0 %v79
  %167 = vmatprep.subr.mxu0 0.0
  %168 = vmatpush1.msra.mxu0 %v80
  %169 = vmatprep.subr.mxu0 0.0
  %170 = vmatpush1.msra.mxu0 %v81
  %171 = vmatprep.subr.mxu0 0.0
  %172 = vmatpush1.msra.mxu0 %v82
  %173 = vmatprep.subr.mxu0 0.0
  %174 = vmatpush1.msra.mxu0 %v83
  %175 = vmatprep.subr.mxu0 0.0
  %176 = vmatpush1.msra.mxu0 %v84
  %177 = vmatprep.subr.mxu0 0.0
  %178 = vmatpush1.msra.mxu0 %v85
  %179 = vmatprep.subr.mxu0 0.0
  %180 = vmatpush1.msra.mxu0 %v86
  %181 = vmatprep.subr.mxu0 0.0
  %182 = vmatpush1.msra.mxu0 %v87
  %183 = vmatprep.subr.mxu0 0.0
  %184 = vmatpush1.msra.mxu0 %v88
  %185 = vmatprep.mubr.f32.mxu0 %v34
  %186 = vmatmul.mubr.f32.gmra.mrb[0].mxu0 %v33
  %v187 = vpop.f32.mrb[0].mxu0
  %v188 = vadd.f32 0.0, %v187
  %v189 = vpop.f32.mrb[0].mxu0
  %190 = vmatprep.mubr.f32.mxu0 %v38
  %191 = vmatmul.mubr.f32.gmra.mrb[0].mxu0 %v37
  %v192 = vpop.f32.mrb[0].mxu0
  %v193 = vadd.f32 0.0, %v192
  %v194 = vpop.f32.mrb[0].mxu0
  %195 = vmatprep.mubr.f32.mxu0 %v42
  %196 = vmatmul.mubr.f32.gmra.mrb[0].mxu0 %v41
  %v197 = vpop.f32.mrb[0].mxu0
  %v198 = vadd.f32 0.0, %v197
  %v199 = vpop.f32.mrb[0].mxu0
  %200 = vmatprep.mubr.f32.mxu0 %v46
  %201 = vmatmul.mubr.f32.gmra.mrb[0].mxu0 %v45
  %v202 = vpop.f32.mrb[0].mxu0
  %v203 = vadd.f32 0.0, %v202
  %v204 = vpop.f32.mrb[0].mxu0
  %205 = vmatprep.mubr.f32.mxu0 %v50
  %206 = vmatmul.mubr.f32.gmra.mrb[0].mxu0 %v49
  %v207 = vpop.f32.mrb[0].mxu0
  %v208 = vadd.f32 0.0, %v207
  %v209 = vpop.f32.mrb[0].mxu0
  %210 = vmatprep.mubr.f32.mxu0 %v54
  %211 = vmatmul.mubr.f32.gmra.mrb[0].mxu0 %v53
  %v212 = vpop.f32.mrb[0].mxu0
  %v213 = vadd.f32 0.0, %v212
  %v214 = vpop.f32.mrb[0].mxu0
  %215 = vdwg.mxu0
  %216 = vmatprep.subr.mxu0 0.0
  %217 = vmatpush1.msra.mxu0 %v89
  %218 = vmatprep.subr.mxu0 0.0
  %219 = vmatpush1.msra.mxu0 %v90
  %220 = vmatprep.subr.mxu0 0.0
  %221 = vmatpush1.msra.mxu0 %v91
  %222 = vmatprep.subr.mxu0 0.0
  %223 = vmatpush1.msra.mxu0 %v92
  %224 = vmatprep.subr.mxu0 0.0
  %225 = vmatpush1.msra.mxu0 %v93
  %226 = vmatprep.subr.mxu0 0.0
  %227 = vmatpush1.msra.mxu0 %v94
  %228 = vmatprep.subr.mxu0 0.0
  %229 = vmatpush1.msra.mxu0 %v95
  %230 = vmatprep.subr.mxu0 0.0
  %231 = vmatpush1.msra.mxu0 %v96
  %232 = vmatprep.subr.mxu0 0.0
  %233 = vmatpush1.msra.mxu0 %v97
  %234 = vmatprep.subr.mxu0 0.0
  %235 = vmatpush1.msra.mxu0 %v98
  %236 = vmatprep.subr.mxu0 0.0
  %237 = vmatpush1.msra.mxu0 %v99
  %238 = vmatprep.subr.mxu0 0.0
  %239 = vmatpush1.msra.mxu0 %v100
  %240 = vmatprep.subr.mxu0 0.0
  %241 = vmatpush1.msra.mxu0 %v101
  %242 = vmatprep.subr.mxu0 0.0
  %243 = vmatpush1.msra.mxu0 %v102
  %244 = vmatprep.subr.mxu0 0.0
  %245 = vmatpush1.msra.mxu0 %v103
  %246 = vmatprep.subr.mxu0 0.0
  %247 = vmatpush1.msra.mxu0 %v104
  %248 = vmatprep.subr.mxu0 0.0
  %249 = vmatpush1.msra.mxu0 %v105
  %250 = vmatprep.subr.mxu0 0.0
  %251 = vmatpush1.msra.mxu0 %v106
  %252 = vmatprep.subr.mxu0 0.0
  %253 = vmatpush1.msra.mxu0 %v107
  %254 = vmatprep.subr.mxu0 0.0
  %255 = vmatpush1.msra.mxu0 %v108
  %256 = vmatprep.subr.mxu0 0.0
  %257 = vmatpush1.msra.mxu0 %v109
  %258 = vmatprep.subr.mxu0 0.0
  %259 = vmatpush1.msra.mxu0 %v110
  %260 = vmatprep.subr.mxu0 0.0
  %261 = vmatpush1.msra.mxu0 %v111
  %262 = vmatprep.subr.mxu0 0.0
  %263 = vmatpush1.msra.mxu0 %v112
  %264 = vmatprep.subr.mxu0 0.0
  %265 = vmatpush1.msra.mxu0 %v113
  %266 = vmatprep.subr.mxu0 0.0
  %267 = vmatpush1.msra.mxu0 %v114
  %268 = vmatprep.subr.mxu0 0.0
  %269 = vmatpush1.msra.mxu0 %v115
  %270 = vmatprep.subr.mxu0 0.0
  %271 = vmatpush1.msra.mxu0 %v116
  %272 = vmatprep.subr.mxu0 0.0
  %273 = vmatpush1.msra.mxu0 %v117
  %274 = vmatprep.subr.mxu0 0.0
  %275 = vmatpush1.msra.mxu0 %v118
  %276 = vmatprep.subr.mxu0 0.0
  %277 = vmatpush1.msra.mxu0 %v119
  %278 = vmatprep.subr.mxu0 0.0
  %279 = vmatpush1.msra.mxu0 %v120
  %280 = vmatprep.mubr.f32.mxu0 %v36
  %281 = vmatmul.mubr.f32.gmra.mrb[0].mxu0 %v35
  %v282 = vpop.f32.mrb[0].mxu0
  %v283 = vadd.f32 %v188, %v282
  %v284 = vpop.f32.mrb[0].mxu0
  %285 = vmatprep.mubr.f32.mxu0 %v40
  %286 = vmatmul.mubr.f32.gmra.mrb[0].mxu0 %v39
  %v287 = vpop.f32.mrb[0].mxu0
  %v288 = vadd.f32 %v193, %v287
  %v289 = vpop.f32.mrb[0].mxu0
  %290 = vmatprep.mubr.f32.mxu0 %v44
  %291 = vmatmul.mubr.f32.gmra.mrb[0].mxu0 %v43
  %v292 = vpop.f32.mrb[0].mxu0
  %v293 = vadd.f32 %v198, %v292
  %v294 = vpop.f32.mrb[0].mxu0
  %295 = vmatprep.mubr.f32.mxu0 %v48
  %296 = vmatmul.mubr.f32.gmra.mrb[0].mxu0 %v47
  %v297 = vpop.f32.mrb[0].mxu0
  %v298 = vadd.f32 %v203, %v297
  %v299 = vpop.f32.mrb[0].mxu0
  %300 = vmatprep.mubr.f32.mxu0 %v52
  %301 = vmatmul.mubr.f32.gmra.mrb[0].mxu0 %v51
  %v302 = vpop.f32.mrb[0].mxu0
  %v303 = vadd.f32 %v208, %v302
  %v304 = vpop.f32.mrb[0].mxu0
  %305 = vmatprep.mubr.f32.mxu0 %v56
  %306 = vmatmul.mubr.f32.gmra.mrb[0].mxu0 %v55
  %v307 = vpop.f32.mrb[0].mxu0
  %v308 = vadd.f32 %v213, %v307
  %v309 = vpop.f32.mrb[0].mxu0
  %310 = vdwg.mxu0
  %v311 = vadd.f32 %v27, %v283
  %v312 = vadd.f32 %v28, %v288
  %v313 = vadd.f32 %v29, %v293
  %v314 = vadd.f32 %v30, %v298
  %v315 = vadd.f32 %v31, %v303
  %v316 = vadd.f32 %v32, %v308
  %317 = vst [vmem:[#allocation2] sm:$0xff] %v311
  %318 = vst [vmem:[#allocation2 + $0x8] sm:$0xff] %v312
  %319 = vst [vmem:[#allocation2 + $0x10] sm:$0xff] %v313
  %320 = vst [vmem:[#allocation2 + $0x18] sm:$0xff] %v314
  %321 = vst [vmem:[#allocation2 + $0x20] sm:$0xff] %v315
  %322 = vst [vmem:[#allocation2 + $0x28] sm:$0xff] %v316
  // Predicated region
  $region22: #{vit_forward.40} parent=0 // pred_check
    %p323 = pneg %p17
  $region23: #{vit_forward.40} parent=0 // pred_check_branch
    %325 = sbr.rel (%p323) target = $region25
  $region24: #{vit_forward.40} parent=0 // pred_region
    %v326 = vld [vmem:[#allocation2] sm:$0xff]
    %v327 = vld [vmem:[#allocation2 + $0x8] sm:$0xff]
    %v328 = vld [vmem:[#allocation2 + $0x10] sm:$0xff]
    %v329 = vld [vmem:[#allocation2 + $0x18] sm:$0xff]
    %v330 = vld [vmem:[#allocation2 + $0x20] sm:$0xff]
    %v331 = vld [vmem:[#allocation2 + $0x28] sm:$0xff]
    %v332 = vld [vmem:[%s2] sm:$0x1]
    %v334 = vlaneseq
    %v335 = vshrl.u32 %v334, 7
    %v336 = vsub.s32 0, %v335
    %v337 = vrot.slane %v332, %v336
    %v339 = vadd.f32 %v326, %v337
    %v340 = vadd.f32 %v327, %v337
    %v341 = vadd.f32 %v328, %v337
    %v342 = vadd.f32 %v329, %v337
    %v343 = vadd.f32 %v330, %v337
    %v344 = vadd.f32 %v331, %v337
    %v345 = vld [vmem:[%s3] sm:$0xff]
    %v346 = vld [vmem:[%s3 + $0x8] sm:$0xff]
    %v347 = vld [vmem:[%s3 + $0x10] sm:$0xff]
    %v348 = vld [vmem:[%s3 + $0x18] sm:$0xff]
    %v349 = vld [vmem:[%s3 + $0x20] sm:$0xff]
    %v350 = vld [vmem:[%s3 + $0x28] sm:$0xff]
    %v351 = vadd.f32 %v339, %v345
    %v352 = vadd.f32 %v340, %v346
    %v353 = vadd.f32 %v341, %v347
    %v354 = vadd.f32 %v342, %v348
    %v355 = vadd.f32 %v343, %v349
    %v356 = vadd.f32 %v344, %v350
    %357 = vst [vmem:[%s4] sm:$0xff] %v351
    %358 = vst [vmem:[%s4 + $0x8] sm:$0xff] %v352
    %359 = vst [vmem:[%s4 + $0x10] sm:$0xff] %v353
    %360 = vst [vmem:[%s4 + $0x18] sm:$0xff] %v354
    %361 = vst [vmem:[%s4 + $0x20] sm:$0xff] %v355
    %362 = vst [vmem:[%s4 + $0x28] sm:$0xff] %v356
  $region25: #{vit_forward.40} parent=0 // pred_fallthru
    _
  // Predicated region
  $region26: #{vit_forward.40} parent=0 // pred_check
    _
  $region27: #{vit_forward.40} parent=0 // pred_check_branch
    %364 = sbr.rel (0) target = $region29
  $region28: #{vit_forward.40} parent=0 // pred_region
    _
  $region29: #{vit_forward.40} parent=0 // pred_fallthru
    _
  // Predicated region
  $region30: #{vit_forward.40} parent=0 // pred_check
    _
  $region31: #{vit_forward.40} parent=0 // pred_check_branch
    %366 = sbr.rel (0) target = $region33
  $region32: #{vit_forward.40} parent=0 // pred_region
    _
  $region33: #{vit_forward.40} parent=0 // pred_fallthru
    _

// kernel: vit_forward.47
$region0: #{vit_forward.47}
  #allocation0 [shape = 'u32[]', space=smem, size = 0x4, offset = 0x4, fixed_abs, tag = 'smem constant byte address 0x4 - core index']
  #allocation1 [shape = 'u32[144,128]{1,0:T(1,128)}', space=vmem, size = 0x12000, scoped, tag = 'internal scratch']
  %s0 = inlined_call_operand.vmem [shape: f32[256,16], index: 0, kind: input, shape index: {}]
  %s1 = inlined_call_operand.vmem [shape: f32[2,16,128], index: 1, kind: input, shape index: {}]
  %s2 = inlined_call_operand.hbm [shape: f32[2,256,128], index: 2, kind: output, shape index: {}]
  %s3 = sld [smem:[#allocation0]]
  $region41: #{vit_forward.47} parent=0
    _
  %s5 = ssub.s32 1, %s3
  %s6 = scalar_select 0, %s5, %s3
  $region1: #{vit_forward.47} parent=0
    #allocation2 [shape = 'u8[262144]{0}', space=vmem, size = 0x40000, scoped, tag = 'output window, operand 0']
    #allocation3 [shape = 's32[2]{0}', space=sflag, size = 0x8, scoped, tag = 'scoped memory for vit_forward.47']
    %7 = vsyncpa [#allocation3], 0
    %s8 = scalar_lea.sflag [#allocation3], 1
    %9 = vsyncpa %s8, 0
    loop: start=0, step=1, limit=4
    $region2: #{vit_forward.47} parent=1 // loop_pre_header
      _
    $region3: #{vit_forward.47} parent=1 // loop_header
      %s11 = sphi 0, %s15
      %p12 = scmp.ge.s32.totalorder %s11, 4
      %s19 = sphi 0, %s19
      %s21 = sphi 0, %s19
      %s22 = sphi 0, %s21
      %s36 = sphi 0, %s22
      %s42 = sphi 0, %s44
      %s45 = sphi 0, %s42
      %s46 = sphi 0, %s45
      %s62 = sphi 0, %s46
      %s68 = sphi 0, %s70
      %s71 = sphi 0, %s68
      %s72 = sphi 0, %s71
      %s88 = sphi 0, %s72
    $region4: #{vit_forward.47} parent=1 // loop_header_branch
      %14 = sbr.rel (%p12) target = $region8
    $region5: #{vit_forward.47} parent=1 // loop_body
      %s16 = ssub.s32 %s11, 1
      %s17 = ssub.s32 %s11, 2
      %s18 = sadd.s32 %s11, 1
      %s20 = sadd.s32 %s19, 1
      %p23 = scmp.eq.s32.totalorder %s11, 1
      %p24 = scmp.ne.s32.totalorder %s19, %s21
      %p25 = scmp.eq.s32.totalorder %s11, 0
      %p26 = por %p24, %p25
      %p27 = scmp.ne.s32.totalorder %s19, %s21
      %p28 = scmp.eq.s32.totalorder %s16, 1
      %p29 = por %p27, %p28
      %p30 = scmp.ne.s32.totalorder %s21, %s22
      %p31 = scmp.eq.s32.totalorder %s16, 0
      %p32 = por %p30, %p31
      %p33 = scmp.ne.s32.totalorder %s21, %s22
      %p34 = scmp.eq.s32.totalorder %s17, 1
      %p35 = por %p33, %p34
      %p37 = scmp.ne.s32.totalorder %s22, %s36
      %p38 = scmp.eq.s32.totalorder %s17, 0
      %p39 = por %p37, %p38
      %s40 = ssub.s32 %s11, %s18
      %p41 = scmp.eq.s32.totalorder %s40, 0
      %s43 = sadd.s32 %s42, 1
      %s44 = scalar_select %p41, %s42, %s43
      %p47 = pneg %p41
      %p48 = scmp.eq.s32.totalorder %s11, 1
      %p49 = por %p47, %p48
      %p50 = scmp.ne.s32.totalorder %s42, %s45
      %p51 = scmp.eq.s32.totalorder %s11, 0
      %p52 = por %p50, %p51
      %p53 = scmp.ne.s32.totalorder %s42, %s45
      %p54 = scmp.eq.s32.totalorder %s16, 1
      %p55 = por %p53, %p54
      %p56 = scmp.ne.s32.totalorder %s45, %s46
      %p57 = scmp.eq.s32.totalorder %s16, 0
      %p58 = por %p56, %p57
      %p59 = scmp.ne.s32.totalorder %s45, %s46
      %p60 = scmp.eq.s32.totalorder %s17, 1
      %p61 = por %p59, %p60
      %p63 = scmp.ne.s32.totalorder %s46, %s62
      %p64 = scmp.eq.s32.totalorder %s17, 0
      %p65 = por %p63, %p64
      %s66 = ssub.s32 %s11, %s18
      %p67 = scmp.eq.s32.totalorder %s66, 0
      %s69 = sadd.s32 %s68, 1
      %s70 = scalar_select %p67, %s68, %s69
      %p73 = pneg %p67
      %p74 = scmp.eq.s32.totalorder %s11, 1
      %p75 = por %p73, %p74
      %p76 = scmp.ne.s32.totalorder %s68, %s71
      %p77 = scmp.eq.s32.totalorder %s11, 0
      %p78 = por %p76, %p77
      %p79 = scmp.ne.s32.totalorder %s68, %s71
      %p80 = scmp.eq.s32.totalorder %s16, 1
      %p81 = por %p79, %p80
      %p82 = scmp.ne.s32.totalorder %s71, %s72
      %p83 = scmp.eq.s32.totalorder %s16, 0
      %p84 = por %p82, %p83
      %p85 = scmp.ne.s32.totalorder %s71, %s72
      %p86 = scmp.eq.s32.totalorder %s17, 1
      %p87 = por %p85, %p86
      %p89 = scmp.ne.s32.totalorder %s72, %s88
      %p90 = scmp.eq.s32.totalorder %s17, 0
      %p91 = por %p89, %p90
      %p92 = scmp.le.s32.totalorder 1, %s11
      %p93 = scmp.lt.s32.totalorder %s11, 3
      %p94 = pnand %p92, %p93
      %p95 = pneg %p94
      // Predicated region
      $region9: #{vit_forward.47} parent=5 // pred_check
        _
      $region10: #{vit_forward.47} parent=5 // pred_check_branch
        %97 = sbr.rel (%p94) target = $region12
      $region11: #{vit_forward.47} parent=5 // pred_region
        %s98 = ssub.s32 %s11, 1
        // Predicated region
        $region13: #{vit_forward.47} parent=11 // pred_check
          %p99 = pneg %p32
        $region14: #{vit_forward.47} parent=11 // pred_check_branch
          %101 = sbr.rel (%p99) target = $region16
        $region15: #{vit_forward.47} parent=11 // pred_region
          _
        $region16: #{vit_forward.47} parent=11 // pred_fallthru
          _
      $region12: #{vit_forward.47} parent=5 // pred_fallthru
        _
      %p102 = scmp.lt.s32.totalorder %s11, 2
      // Predicated region
      $region17: #{vit_forward.47} parent=5 // pred_check
        %p103 = pneg %p102
      $region18: #{vit_forward.47} parent=5 // pred_check_branch
        %105 = sbr.rel (%p103) target = $region20
      $region19: #{vit_forward.47} parent=5 // pred_region
        // Predicated region
        $region21: #{vit_forward.47} parent=19 // pred_check
          %p106 = pneg %p52
        $region22: #{vit_forward.47} parent=19 // pred_check_branch
          %108 = sbr.rel (%p106) target = $region24
        $region23: #{vit_forward.47} parent=19 // pred_region
          %p109 = scmp.lt.s32.totalorder %s11, 1
          %s110 = scalar_select %p109, %s11, 1
          %s111 = smul.addr %s110, 2
          %s112 = smul.addr %s111, 8
          %s113 = scalar_lea.vmem %s1, %s112
        $region24: #{vit_forward.47} parent=19 // pred_fallthru
          _
      $region20: #{vit_forward.47} parent=5 // pred_fallthru
        _
      %p114 = scmp.le.s32.totalorder 1, %s11
      %p115 = scmp.lt.s32.totalorder %s11, 3
      %p116 = pnand %p114, %p115
      %p117 = pneg %p116
      // Predicated region
      $region25: #{vit_forward.47} parent=5 // pred_check
        _
      $region26: #{vit_forward.47} parent=5 // pred_check_branch
        %119 = sbr.rel (%p116) target = $region28
      $region27: #{vit_forward.47} parent=5 // pred_region
        %s120 = ssub.s32 %s11, 1
        %p121 = pneg %p32
        %p122 = pneg %p29
        %p123 = scmp.lt.s32.totalorder %s16, 1
        %s124 = scalar_select %p123, %s16, 1
        %s125 = smul.addr %s124, 2
        %s126 = smul.addr %s125, 8
        %s127 = scalar_lea.vmem %s1, %s126
        %p128 = pneg %p58
        %p129 = pneg %p55
        %p130 = pneg %p84
        %p131 = pneg %p81
        %s132 = sand.u32 %s71, 1
        %s133 = scalar_lea.sflag [#allocation3], %s132
        %s134 = sand.u32 %s71, 1
        %s135 = smul.addr %s134, 256
        %s136 = scalar_lea.vmem [#allocation2], %s135
        %p137 = scmp.lt.s32.totalorder %s16, 1
        %s138 = scalar_select %p137, %s16, 1
        %s139 = smul.addr %s138, 2
        %s140 = smul.addr %s139, 8
        %s141 = scalar_lea.vmem %s1, %s140
        %v142 = vld [vmem:[%s0] sm:$0xff]
        %v143 = vld [vmem:[%s0 + $0x8] sm:$0xff]
        %v144 = vld [vmem:[%s0 + $0x10] sm:$0xff]
        %v145 = vld [vmem:[%s0 + $0x18] sm:$0xff]
        %v146 = vld [vmem:[%s0 + $0x20] sm:$0xff]
        %v147 = vld [vmem:[%s0 + $0x28] sm:$0xff]
        %v148 = vld [vmem:[%s0 + $0x30] sm:$0xff]
        %v149 = vld [vmem:[%s0 + $0x38] sm:$0xff]
        %v150 = vld [vmem:[%s0 + $0x40] sm:$0xff]
        %v151 = vld [vmem:[%s0 + $0x48] sm:$0xff]
        %v152 = vld [vmem:[%s0 + $0x50] sm:$0xff]
        %v153 = vld [vmem:[%s0 + $0x58] sm:$0xff]
        %v154 = vld [vmem:[%s0 + $0x60] sm:$0xff]
        %v155 = vld [vmem:[%s0 + $0x68] sm:$0xff]
        %v156 = vld [vmem:[%s0 + $0x70] sm:$0xff]
        %v157 = vld [vmem:[%s0 + $0x78] sm:$0xff]
        %v158 = vld [vmem:[%s0 + $0x80] sm:$0xff]
        %v159 = vld [vmem:[%s0 + $0x88] sm:$0xff]
        %v160 = vld [vmem:[%s0 + $0x90] sm:$0xff]
        %v161 = vld [vmem:[%s0 + $0x98] sm:$0xff]
        %v162 = vld [vmem:[%s0 + $0xa0] sm:$0xff]
        %v163 = vld [vmem:[%s0 + $0xa8] sm:$0xff]
        %v164 = vld [vmem:[%s0 + $0xb0] sm:$0xff]
        %v165 = vld [vmem:[%s0 + $0xb8] sm:$0xff]
        %v166 = vld [vmem:[%s0 + $0xc0] sm:$0xff]
        %v167 = vld [vmem:[%s0 + $0xc8] sm:$0xff]
        %v168 = vld [vmem:[%s0 + $0xd0] sm:$0xff]
        %v169 = vld [vmem:[%s0 + $0xd8] sm:$0xff]
        %v170 = vld [vmem:[%s0 + $0xe0] sm:$0xff]
        %v171 = vld [vmem:[%s0 + $0xe8] sm:$0xff]
        %v172 = vld [vmem:[%s0 + $0xf0] sm:$0xff]
        %v173 = vld [vmem:[%s0 + $0xf8] sm:$0xff]
        %v174 = vld [vmem:[%s141] sm:$0xff]
        %v175 = vld [vmem:[%s141 + $0x8] sm:$0xff]
        %vm176 = vcmask 130048
        %v178 = vsel %vm176, %v142, 0
        %v181 = vsel %vm176, %v143, 0
        %v184 = vsel %vm176, %v144, 0
        %v187 = vsel %vm176, %v145, 0
        %v190 = vsel %vm176, %v146, 0
        %v193 = vsel %vm176, %v147, 0
        %v196 = vsel %vm176, %v148, 0
        %v199 = vsel %vm176, %v149, 0
        %v202 = vsel %vm176, %v150, 0
        %v205 = vsel %vm176, %v151, 0
        %v208 = vsel %vm176, %v152, 0
        %v211 = vsel %vm176, %v153, 0
        %v214 = vsel %vm176, %v154, 0
        %v217 = vsel %vm176, %v155, 0
        %v220 = vsel %vm176, %v156, 0
        %v223 = vsel %vm176, %v157, 0
        %v226 = vsel %vm176, %v158, 0
        %v229 = vsel %vm176, %v159, 0
        %v232 = vsel %vm176, %v160, 0
        %v235 = vsel %vm176, %v161, 0
        %v238 = vsel %vm176, %v162, 0
        %v241 = vsel %vm176, %v163, 0
        %v244 = vsel %vm176, %v164, 0
        %v247 = vsel %vm176, %v165, 0
        %v250 = vsel %vm176, %v166, 0
        %v253 = vsel %vm176, %v167, 0
        %v256 = vsel %vm176, %v168, 0
        %v259 = vsel %vm176, %v169, 0
        %v262 = vsel %vm176, %v170, 0
        %v265 = vsel %vm176, %v171, 0
        %v268 = vsel %vm176, %v172, 0
        %v271 = vsel %vm176, %v173, 0
        %273 = vmatprep.subr.mxu0 0.0
        %274 = vmatpush1.msra.mxu0 %v174
        %275 = vmatprep.subr.mxu0 0.0
        %276 = vmatpush1.msra.mxu0 %v175
        %277 = vmatprep.subr.mxu0 0.0
        %278 = vmatpush1.msra.mxu0 0.0
        %279 = vmatprep.subr.mxu0 0.0
        %280 = vmatpush1.msra.mxu0 0.0
        %281 = vmatprep.subr.mxu0 0.0
        %282 = vmatpush1.msra.mxu0 0.0
        %283 = vmatprep.subr.mxu0 0.0
        %284 = vmatpush1.msra.mxu0 0.0
        %285 = vmatprep.subr.mxu0 0.0
        %286 = vmatpush1.msra.mxu0 0.0
        %287 = vmatprep.subr.mxu0 0.0
        %288 = vmatpush1.msra.mxu0 0.0
        %289 = vmatprep.subr.mxu0 0.0
        %290 = vmatpush1.msra.mxu0 0.0
        %291 = vmatprep.subr.mxu0 0.0
        %292 = vmatpush1.msra.mxu0 0.0
        %293 = vmatprep.subr.mxu0 0.0
        %294 = vmatpush1.msra.mxu0 0.0
        %295 = vmatprep.subr.mxu0 0.0
        %296 = vmatpush1.msra.mxu0 0.0
        %297 = vmatprep.subr.mxu0 0.0
        %298 = vmatpush1.msra.mxu0 0.0
        %299 = vmatprep.subr.mxu0 0.0
        %300 = vmatpush1.msra.mxu0 0.0
        %301 = vmatprep.subr.mxu0 0.0
        %302 = vmatpush1.msra.mxu0 0.0
        %303 = vmatprep.subr.mxu0 0.0
        %304 = vmatpush1.msra.mxu0 0.0
        %305 = vmatprep.subr.mxu0 0.0
        %306 = vmatpush1.msra.mxu0 0.0
        %307 = vmatprep.subr.mxu0 0.0
        %308 = vmatpush1.msra.mxu0 0.0
        %309 = vmatprep.subr.mxu0 0.0
        %310 = vmatpush1.msra.mxu0 0.0
        %311 = vmatprep.subr.mxu0 0.0
        %312 = vmatpush1.msra.mxu0 0.0
        %313 = vmatprep.subr.mxu0 0.0
        %314 = vmatpush1.msra.mxu0 0.0
        %315 = vmatprep.subr.mxu0 0.0
        %316 = vmatpush1.msra.mxu0 0.0
        %317 = vmatprep.subr.mxu0 0.0
        %318 = vmatpush1.msra.mxu0 0.0
        %319 = vmatprep.subr.mxu0 0.0
        %320 = vmatpush1.msra.mxu0 0.0
        %321 = vmatprep.subr.mxu0 0.0
        %322 = vmatpush1.msra.mxu0 0.0
        %323 = vmatprep.subr.mxu0 0.0
        %324 = vmatpush1.msra.mxu0 0.0
        %325 = vmatprep.subr.mxu0 0.0
        %326 = vmatpush1.msra.mxu0 0.0
        %327 = vmatprep.subr.mxu0 0.0
        %328 = vmatpush1.msra.mxu0 0.0
        %329 = vmatprep.subr.mxu0 0.0
        %330 = vmatpush1.msra.mxu0 0.0
        %331 = vmatprep.subr.mxu0 0.0
        %332 = vmatpush1.msra.mxu0 0.0
        %333 = vmatprep.subr.mxu0 0.0
        %334 = vmatpush1.msra.mxu0 0.0
        %335 = vmatprep.subr.mxu0 0.0
        %336 = vmatpush1.msra.mxu0 0.0
        %337 = vmatprep.mubr.f32.mxu0 0.0
        %338 = vmatmul.mubr.f32.gmra.mrb[0].mxu0 %v178
        %v339 = vpop.f32.mrb[0].mxu0
        %v340 = vadd.f32 0.0, %v339
        %v341 = vpop.f32.mrb[0].mxu0
        %342 = vmatprep.mubr.f32.mxu0 0.0
        %343 = vmatmul.mubr.f32.gmra.mrb[0].mxu0 %v181
        %v344 = vpop.f32.mrb[0].mxu0
        %v345 = vadd.f32 0.0, %v344
        %v346 = vpop.f32.mrb[0].mxu0
        %347 = vmatprep.mubr.f32.mxu0 0.0
        %348 = vmatmul.mubr.f32.gmra.mrb[0].mxu0 %v184
        %v349 = vpop.f32.mrb[0].mxu0
        %v350 = vadd.f32 0.0, %v349
        %v351 = vpop.f32.mrb[0].mxu0
        %352 = vmatprep.mubr.f32.mxu0 0.0
        %353 = vmatmul.mubr.f32.gmra.mrb[0].mxu0 %v187
        %v354 = vpop.f32.mrb[0].mxu0
        %v355 = vadd.f32 0.0, %v354
        %v356 = vpop.f32.mrb[0].mxu0
        %357 = vmatprep.mubr.f32.mxu0 0.0
        %358 = vmatmul.mubr.f32.gmra.mrb[0].mxu0 %v190
        %v359 = vpop.f32.mrb[0].mxu0
        %v360 = vadd.f32 0.0, %v359
        %v361 = vpop.f32.mrb[0].mxu0
        %362 = vmatprep.mubr.f32.mxu0 0.0
        %363 = vmatmul.mubr.f32.gmra.mrb[0].mxu0 %v193
        %v364 = vpop.f32.mrb[0].mxu0
        %v365 = vadd.f32 0.0, %v364
        %v366 = vpop.f32.mrb[0].mxu0
        %367 = vmatprep.mubr.f32.mxu0 0.0
        %368 = vmatmul.mubr.f32.gmra.mrb[0].mxu0 %v196
        %v369 = vpop.f32.mrb[0].mxu0
        %v370 = vadd.f32 0.0, %v369
        %v371 = vpop.f32.mrb[0].mxu0
        %372 = vmatprep.mubr.f32.mxu0 0.0
        %373 = vmatmul.mubr.f32.gmra.mrb[0].mxu0 %v199
        %v374 = vpop.f32.mrb[0].mxu0
        %v375 = vadd.f32 0.0, %v374
        %v376 = vpop.f32.mrb[0].mxu0
        %377 = vmatprep.mubr.f32.mxu0 0.0
        %378 = vmatmul.mubr.f32.gmra.mrb[0].mxu0 %v202
        %v379 = vpop.f32.mrb[0].mxu0
        %v380 = vadd.f32 0.0, %v379
        %v381 = vpop.f32.mrb[0].mxu0
        %382 = vmatprep.mubr.f32.mxu0 0.0
        %383 = vmatmul.mubr.f32.gmra.mrb[0].mxu0 %v205
        %v384 = vpop.f32.mrb[0].mxu0
        %v385 = vadd.f32 0.0, %v384
        %v386 = vpop.f32.mrb[0].mxu0
        %387 = vmatprep.mubr.f32.mxu0 0.0
        %388 = vmatmul.mubr.f32.gmra.mrb[0].mxu0 %v208
        %v389 = vpop.f32.mrb[0].mxu0
        %v390 = vadd.f32 0.0, %v389
        %v391 = vpop.f32.mrb[0].mxu0
        %392 = vmatprep.mubr.f32.mxu0 0.0
        %393 = vmatmul.mubr.f32.gmra.mrb[0].mxu0 %v211
        %v394 = vpop.f32.mrb[0].mxu0
        %v395 = vadd.f32 0.0, %v394
        %v396 = vpop.f32.mrb[0].mxu0
        %397 = vmatprep.mubr.f32.mxu0 0.0
        %398 = vmatmul.mubr.f32.gmra.mrb[0].mxu0 %v214
        %v399 = vpop.f32.mrb[0].mxu0
        %v400 = vadd.f32 0.0, %v399
        %v401 = vpop.f32.mrb[0].mxu0
        %402 = vmatprep.mubr.f32.mxu0 0.0
        %403 = vmatmul.mubr.f32.gmra.mrb[0].mxu0 %v217
        %v404 = vpop.f32.mrb[0].mxu0
        %v405 = vadd.f32 0.0, %v404
        %v406 = vpop.f32.mrb[0].mxu0
        %407 = vmatprep.mubr.f32.mxu0 0.0
        %408 = vmatmul.mubr.f32.gmra.mrb[0].mxu0 %v220
        %v409 = vpop.f32.mrb[0].mxu0
        %v410 = vadd.f32 0.0, %v409
        %v411 = vpop.f32.mrb[0].mxu0
        %412 = vmatprep.mubr.f32.mxu0 0.0
        %413 = vmatmul.mubr.f32.gmra.mrb[0].mxu0 %v223
        %v414 = vpop.f32.mrb[0].mxu0
        %v415 = vadd.f32 0.0, %v414
        %v416 = vpop.f32.mrb[0].mxu0
        %417 = vmatprep.mubr.f32.mxu0 0.0
        %418 = vmatmul.mubr.f32.gmra.mrb[0].mxu0 %v226
        %v419 = vpop.f32.mrb[0].mxu0
        %v420 = vadd.f32 0.0, %v419
        %v421 = vpop.f32.mrb[0].mxu0
        %422 = vmatprep.mubr.f32.mxu0 0.0
        %423 = vmatmul.mubr.f32.gmra.mrb[0].mxu0 %v229
        %v424 = vpop.f32.mrb[0].mxu0
        %v425 = vadd.f32 0.0, %v424
        %v426 = vpop.f32.mrb[0].mxu0
        %427 = vmatprep.mubr.f32.mxu0 0.0
        %428 = vmatmul.mubr.f32.gmra.mrb[0].mxu0 %v232
        %v429 = vpop.f32.mrb[0].mxu0
        %v430 = vadd.f32 0.0, %v429
        %v431 = vpop.f32.mrb[0].mxu0
        %432 = vmatprep.mubr.f32.mxu0 0.0
        %433 = vmatmul.mubr.f32.gmra.mrb[0].mxu0 %v235
        %v434 = vpop.f32.mrb[0].mxu0
        %v435 = vadd.f32 0.0, %v434
        %v436 = vpop.f32.mrb[0].mxu0
        %437 = vmatprep.mubr.f32.mxu0 0.0
        %438 = vmatmul.mubr.f32.gmra.mrb[0].mxu0 %v238
        %v439 = vpop.f32.mrb[0].mxu0
        %v440 = vadd.f32 0.0, %v439
        %v441 = vpop.f32.mrb[0].mxu0
        %442 = vmatprep.mubr.f32.mxu0 0.0
        %443 = vmatmul.mubr.f32.gmra.mrb[0].mxu0 %v241
        %v444 = vpop.f32.mrb[0].mxu0
        %v445 = vadd.f32 0.0, %v444
        %v446 = vpop.f32.mrb[0].mxu0
        %447 = vmatprep.mubr.f32.mxu0 0.0
        %448 = vmatmul.mubr.f32.gmra.mrb[0].mxu0 %v244
        %v449 = vpop.f32.mrb[0].mxu0
        %v450 = vadd.f32 0.0, %v449
        %v451 = vpop.f32.mrb[0].mxu0
        %452 = vmatprep.mubr.f32.mxu0 0.0
        %453 = vmatmul.mubr.f32.gmra.mrb[0].mxu0 %v247
        %v454 = vpop.f32.mrb[0].mxu0
        %v455 = vadd.f32 0.0, %v454
        %v456 = vpop.f32.mrb[0].mxu0
        %457 = vmatprep.mubr.f32.mxu0 0.0
        %458 = vmatmul.mubr.f32.gmra.mrb[0].mxu0 %v250
        %v459 = vpop.f32.mrb[0].mxu0
        %v460 = vadd.f32 0.0, %v459
        %v461 = vpop.f32.mrb[0].mxu0
        %462 = vmatprep.mubr.f32.mxu0 0.0
        %463 = vmatmul.mubr.f32.gmra.mrb[0].mxu0 %v253
        %v464 = vpop.f32.mrb[0].mxu0
        %v465 = vadd.f32 0.0, %v464
        %v466 = vpop.f32.mrb[0].mxu0
        %467 = vmatprep.mubr.f32.mxu0 0.0
        %468 = vmatmul.mubr.f32.gmra.mrb[0].mxu0 %v256
        %v469 = vpop.f32.mrb[0].mxu0
        %v470 = vadd.f32 0.0, %v469
        %v471 = vpop.f32.mrb[0].mxu0
        %472 = vmatprep.mubr.f32.mxu0 0.0
        %473 = vmatmul.mubr.f32.gmra.mrb[0].mxu0 %v259
        %v474 = vpop.f32.mrb[0].mxu0
        %v475 = vadd.f32 0.0, %v474
        %v476 = vpop.f32.mrb[0].mxu0
        %477 = vmatprep.mubr.f32.mxu0 0.0
        %478 = vmatmul.mubr.f32.gmra.mrb[0].mxu0 %v262
        %v479 = vpop.f32.mrb[0].mxu0
        %v480 = vadd.f32 0.0, %v479
        %v481 = vpop.f32.mrb[0].mxu0
        %482 = vmatprep.mubr.f32.mxu0 0.0
        %483 = vmatmul.mubr.f32.gmra.mrb[0].mxu0 %v265
        %v484 = vpop.f32.mrb[0].mxu0
        %v485 = vadd.f32 0.0, %v484
        %v486 = vpop.f32.mrb[0].mxu0
        %487 = vmatprep.mubr.f32.mxu0 0.0
        %488 = vmatmul.mubr.f32.gmra.mrb[0].mxu0 %v268
        %v489 = vpop.f32.mrb[0].mxu0
        %v490 = vadd.f32 0.0, %v489
        %v491 = vpop.f32.mrb[0].mxu0
        %492 = vmatprep.mubr.f32.mxu0 0.0
        %493 = vmatmul.mubr.f32.gmra.mrb[0].mxu0 %v271
        %v494 = vpop.f32.mrb[0].mxu0
        %v495 = vadd.f32 0.0, %v494
        %v496 = vpop.f32.mrb[0].mxu0
        %497 = vdwg.mxu0
        %498 = vst [vmem:[%s136] sm:$0xff] %v340
        %499 = vst [vmem:[%s136 + $0x8] sm:$0xff] %v345
        %500 = vst [vmem:[%s136 + $0x10] sm:$0xff] %v350
        %501 = vst [vmem:[%s136 + $0x18] sm:$0xff] %v355
        %502 = vst [vmem:[%s136 + $0x20] sm:$0xff] %v360
        %503 = vst [vmem:[%s136 + $0x28] sm:$0xff] %v365
        %504 = vst [vmem:[%s136 + $0x30] sm:$0xff] %v370
        %505 = vst [vmem:[%s136 + $0x38] sm:$0xff] %v375
        %506 = vst [vmem:[%s136 + $0x40] sm:$0xff] %v380
        %507 = vst [vmem:[%s136 + $0x48] sm:$0xff] %v385
        %508 = vst [vmem:[%s136 + $0x50] sm:$0xff] %v390
        %509 = vst [vmem:[%s136 + $0x58] sm:$0xff] %v395
        %510 = vst [vmem:[%s136 + $0x60] sm:$0xff] %v400
        %511 = vst [vmem:[%s136 + $0x68] sm:$0xff] %v405
        %512 = vst [vmem:[%s136 + $0x70] sm:$0xff] %v410
        %513 = vst [vmem:[%s136 + $0x78] sm:$0xff] %v415
        %514 = vst [vmem:[%s136 + $0x80] sm:$0xff] %v420
        %515 = vst [vmem:[%s136 + $0x88] sm:$0xff] %v425
        %516 = vst [vmem:[%s136 + $0x90] sm:$0xff] %v430
        %517 = vst [vmem:[%s136 + $0x98] sm:$0xff] %v435
        %518 = vst [vmem:[%s136 + $0xa0] sm:$0xff] %v440
        %519 = vst [vmem:[%s136 + $0xa8] sm:$0xff] %v445
        %520 = vst [vmem:[%s136 + $0xb0] sm:$0xff] %v450
        %521 = vst [vmem:[%s136 + $0xb8] sm:$0xff] %v455
        %522 = vst [vmem:[%s136 + $0xc0] sm:$0xff] %v460
        %523 = vst [vmem:[%s136 + $0xc8] sm:$0xff] %v465
        %524 = vst [vmem:[%s136 + $0xd0] sm:$0xff] %v470
        %525 = vst [vmem:[%s136 + $0xd8] sm:$0xff] %v475
        %526 = vst [vmem:[%s136 + $0xe0] sm:$0xff] %v480
        %527 = vst [vmem:[%s136 + $0xe8] sm:$0xff] %v485
        %528 = vst [vmem:[%s136 + $0xf0] sm:$0xff] %v490
        %529 = vst [vmem:[%s136 + $0xf8] sm:$0xff] %v495
        %s530 = sand.u32 %s71, 1
        %s531 = scalar_lea.sflag [#allocation3], %s530
        %s532 = sand.u32 %s71, 1
        %s533 = smul.addr %s532, 256
        %s534 = scalar_lea.vmem [#allocation2], %s533
        // Predicated region
        $region29: #{vit_forward.47} parent=27 // pred_check
          %p535 = pneg %p81
        $region30: #{vit_forward.47} parent=27 // pred_check_branch
          %537 = sbr.rel (%p535) target = $region32
        $region31: #{vit_forward.47} parent=27 // pred_region
          %s539 = ssub.s32 4096, 4096
          %540 = vsyncadd %s531, %s539
          %s541 = smul.addr %s16, 32
          %s542 = smul.addr %s541, 128
          %s543 = scalar_lea.hbm %s2, %s542
          %s544 = sshll.u32 %s534, 4
          %s545 = int_to_ptr.vmem [resolvable:$true] %s544
          %550 = dma.vmem_to_hbm [thread:$0]  %s545, 4096, %s543, %s531, 128, 128, 8
        $region32: #{vit_forward.47} parent=27 // pred_fallthru
          _
      $region28: #{vit_forward.47} parent=5 // pred_fallthru
        _
      %p551 = scmp.le.s32.totalorder 2, %s11
      // Predicated region
      $region33: #{vit_forward.47} parent=5 // pred_check
        %p552 = pneg %p551
      $region34: #{vit_forward.47} parent=5 // pred_check_branch
        %554 = sbr.rel (%p552) target = $region36
      $region35: #{vit_forward.47} parent=5 // pred_region
        %s555 = ssub.s32 %s11, 2
        // Predicated region
        $region37: #{vit_forward.47} parent=35 // pred_check
          %p556 = pneg %p87
        $region38: #{vit_forward.47} parent=35 // pred_check_branch
          %558 = sbr.rel (%p556) target = $region40
        $region39: #{vit_forward.47} parent=35 // pred_region
          %s559 = sand.u32 %s72, 1
          %s560 = scalar_lea.sflag [#allocation3], %s559
          %s561 = sand.u32 %s72, 1
          %s562 = smul.addr %s561, 256
          %s563 = scalar_lea.vmem [#allocation2], %s562
          %564 = dma.done %s560, 4096
        $region40: #{vit_forward.47} parent=35 // pred_fallthru
          _
      $region36: #{vit_forward.47} parent=5 // pred_fallthru
        _
    $region6: #{vit_forward.47} parent=1 // loop_footer
      %s15 = sadd.s32 1, %s11
    $region7: #{vit_forward.47} parent=1 // loop_footer_branch
      %10 = sbr.rel target = $region3
    $region8: #{vit_forward.47} parent=1 // loop_exit
      _
    %565 = vsyncpa [#allocation3], 1
    %s566 = scalar_lea.sflag [#allocation3], 1
    %567 = vsyncpa %s566, 1

// kernel: vit_forward.39
$region0: #{vit_forward.39}
  #allocation0 [shape = 'u32[]', space=smem, size = 0x4, offset = 0x4, fixed_abs, tag = 'smem constant byte address 0x4 - core index']
  #allocation1 [shape = 'u32[144,128]{1,0:T(1,128)}', space=vmem, size = 0x12000, scoped, tag = 'internal scratch']
  %s0 = inlined_call_operand.vmem [shape: f32[48,128], index: 0, kind: input, shape index: {}]
  %s1 = inlined_call_operand.vmem [shape: f32[1,128], index: 1, kind: input, shape index: {}]
  %s2 = inlined_call_operand.vmem [shape: f32[1,128], index: 2, kind: input, shape index: {}]
  %s3 = inlined_call_operand.vmem [shape: f32[128,512], index: 3, kind: input, shape index: {}]
  %s4 = inlined_call_operand.vmem [shape: f32[1,512], index: 4, kind: input, shape index: {}]
  %s5 = inlined_call_operand.vmem [shape: f32[48,512], index: 5, kind: output, shape index: {}]
  %s6 = sld [smem:[#allocation0]]
  $region30: #{vit_forward.39} parent=0
    _
  %s8 = ssub.s32 1, %s6
  %s9 = scalar_select 0, %s8, %s6
  // Predicated region
  $region2: #{vit_forward.39} parent=0 // pred_check
    _
  $region3: #{vit_forward.39} parent=0 // pred_check_branch
    %11 = sbr.rel (0) target = $region5
  $region4: #{vit_forward.39} parent=0 // pred_region
    _
  $region5: #{vit_forward.39} parent=0 // pred_fallthru
    _
  // Predicated region
  $region6: #{vit_forward.39} parent=0 // pred_check
    _
  $region7: #{vit_forward.39} parent=0 // pred_check_branch
    %13 = sbr.rel (0) target = $region9
  $region8: #{vit_forward.39} parent=0 // pred_region
    _
  $region9: #{vit_forward.39} parent=0 // pred_fallthru
    _
  // Predicated region
  $region10: #{vit_forward.39} parent=0 // pred_check
    _
  $region11: #{vit_forward.39} parent=0 // pred_check_branch
    %15 = sbr.rel (0) target = $region13
  $region12: #{vit_forward.39} parent=0 // pred_region
    _
  $region13: #{vit_forward.39} parent=0 // pred_fallthru
    _
  // Predicated region
  $region14: #{vit_forward.39} parent=0 // pred_check
    _
  $region15: #{vit_forward.39} parent=0 // pred_check_branch
    %17 = sbr.rel (0) target = $region17
  $region16: #{vit_forward.39} parent=0 // pred_region
    _
  $region17: #{vit_forward.39} parent=0 // pred_fallthru
    _
  // Predicated region
  $region18: #{vit_forward.39} parent=0 // pred_check
    _
  $region19: #{vit_forward.39} parent=0 // pred_check_branch
    %19 = sbr.rel (0) target = $region21
  $region20: #{vit_forward.39} parent=0 // pred_region
    _
  $region21: #{vit_forward.39} parent=0 // pred_fallthru
    _
  %v20 = vld [vmem:[%s0] sm:$0xff]
  %v21 = vld [vmem:[%s0 + $0x8] sm:$0xff]
  %v22 = vld [vmem:[%s0 + $0x10] sm:$0xff]
  %v23 = vld [vmem:[%s0 + $0x18] sm:$0xff]
  %v24 = vld [vmem:[%s0 + $0x20] sm:$0xff]
  %v25 = vld [vmem:[%s0 + $0x28] sm:$0xff]
  %26 = vadd.xlane.f32.xlu0 %v20
  %v27 = vpop.xlane.xlu0 %26
  %28 = vadd.xlane.f32.xlu0 %v21
  %v29 = vpop.xlane.xlu0 %28
  %30 = vadd.xlane.f32.xlu0 %v22
  %v31 = vpop.xlane.xlu0 %30
  %32 = vadd.xlane.f32.xlu0 %v23
  %v33 = vpop.xlane.xlu0 %32
  %34 = vadd.xlane.f32.xlu0 %v24
  %v35 = vpop.xlane.xlu0 %34
  %36 = vadd.xlane.f32.xlu0 %v25
  %v37 = vpop.xlane.xlu0 %36
  %v38 = vrcp.pop 128.0
  %v39 = vmul.f32 %v27, %v38
  %v40 = vmul.f32 %v29, %v38
  %v41 = vmul.f32 %v31, %v38
  %v42 = vmul.f32 %v33, %v38
  %v43 = vmul.f32 %v35, %v38
  %v44 = vmul.f32 %v37, %v38
  %v45 = vsub.f32 %v20, %v39
  %v46 = vsub.f32 %v21, %v40
  %v47 = vsub.f32 %v22, %v41
  %v48 = vsub.f32 %v23, %v42
  %v49 = vsub.f32 %v24, %v43
  %v50 = vsub.f32 %v25, %v44
  %v51 = vmul.f32 %v45, %v45
  %v52 = vmul.f32 %v46, %v46
  %v53 = vmul.f32 %v47, %v47
  %v54 = vmul.f32 %v48, %v48
  %v55 = vmul.f32 %v49, %v49
  %v56 = vmul.f32 %v50, %v50
  %57 = vadd.xlane.f32.xlu0 %v51
  %v58 = vpop.xlane.xlu0 %57
  %59 = vadd.xlane.f32.xlu0 %v52
  %v60 = vpop.xlane.xlu0 %59
  %61 = vadd.xlane.f32.xlu0 %v53
  %v62 = vpop.xlane.xlu0 %61
  %63 = vadd.xlane.f32.xlu0 %v54
  %v64 = vpop.xlane.xlu0 %63
  %65 = vadd.xlane.f32.xlu0 %v55
  %v66 = vpop.xlane.xlu0 %65
  %67 = vadd.xlane.f32.xlu0 %v56
  %v68 = vpop.xlane.xlu0 %67
  %v69 = vmul.f32 %v58, %v38
  %v70 = vmul.f32 %v60, %v38
  %v71 = vmul.f32 %v62, %v38
  %v72 = vmul.f32 %v64, %v38
  %v73 = vmul.f32 %v66, %v38
  %v74 = vmul.f32 %v68, %v38
  %v75 = vadd.f32 %v69, 1e-05
  %v76 = vadd.f32 %v70, 1e-05
  %v77 = vadd.f32 %v71, 1e-05
  %v78 = vadd.f32 %v72, 1e-05
  %v79 = vadd.f32 %v73, 1e-05
  %v80 = vadd.f32 %v74, 1e-05
  %v81 = vrsqrt.pop %v75
  %v82 = vrsqrt.pop %v76
  %v83 = vrsqrt.pop %v77
  %v84 = vrsqrt.pop %v78
  %v85 = vrsqrt.pop %v79
  %v86 = vrsqrt.pop %v80
  %v87 = vmul.f32 %v45, %v81
  %v88 = vmul.f32 %v46, %v82
  %v89 = vmul.f32 %v47, %v83
  %v90 = vmul.f32 %v48, %v84
  %v91 = vmul.f32 %v49, %v85
  %v92 = vmul.f32 %v50, %v86
  %v93 = vld [vmem:[%s1] sm:$0x1]
  %v95 = vlaneseq
  %v96 = vshrl.u32 %v95, 7
  %v97 = vsub.s32 0, %v96
  %v98 = vrot.slane %v93, %v97
  %v100 = vmul.f32 %v87, %v98
  %v101 = vmul.f32 %v88, %v98
  %v102 = vmul.f32 %v89, %v98
  %v103 = vmul.f32 %v90, %v98
  %v104 = vmul.f32 %v91, %v98
  %v105 = vmul.f32 %v92, %v98
  %v106 = vld [vmem:[%s2] sm:$0x1]
  %v108 = vlaneseq
  %v109 = vshrl.u32 %v108, 7
  %v110 = vsub.s32 0, %v109
  %v111 = vrot.slane %v106, %v110
  %v113 = vadd.f32 %v100, %v111
  %v114 = vadd.f32 %v101, %v111
  %v115 = vadd.f32 %v102, %v111
  %v116 = vadd.f32 %v103, %v111
  %v117 = vadd.f32 %v104, %v111
  %v118 = vadd.f32 %v105, %v111
  %v119 = vld [vmem:[%s3] sm:$0xff]
  %v120 = vld [vmem:[%s3 + $0x8] sm:$0xff]
  %v121 = vld [vmem:[%s3 + $0x10] sm:$0xff]
  %v122 = vld [vmem:[%s3 + $0x18] sm:$0xff]
  %v123 = vld [vmem:[%s3 + $0x20] sm:$0xff]
  %v124 = vld [vmem:[%s3 + $0x28] sm:$0xff]
  %v125 = vld [vmem:[%s3 + $0x30] sm:$0xff]
  %v126 = vld [vmem:[%s3 + $0x38] sm:$0xff]
  %v127 = vld [vmem:[%s3 + $0x40] sm:$0xff]
  %v128 = vld [vmem:[%s3 + $0x48] sm:$0xff]
  %v129 = vld [vmem:[%s3 + $0x50] sm:$0xff]
  %v130 = vld [vmem:[%s3 + $0x58] sm:$0xff]
  %v131 = vld [vmem:[%s3 + $0x60] sm:$0xff]
  %v132 = vld [vmem:[%s3 + $0x68] sm:$0xff]
  %v133 = vld [vmem:[%s3 + $0x70] sm:$0xff]
  %v134 = vld [vmem:[%s3 + $0x78] sm:$0xff]
  %v135 = vld [vmem:[%s3 + $0x80] sm:$0xff]
  %v136 = vld [vmem:[%s3 + $0x88] sm:$0xff]
  %v137 = vld [vmem:[%s3 + $0x90] sm:$0xff]
  %v138 = vld [vmem:[%s3 + $0x98] sm:$0xff]
  %v139 = vld [vmem:[%s3 + $0xa0] sm:$0xff]
  %v140 = vld [vmem:[%s3 + $0xa8] sm:$0xff]
  %v141 = vld [vmem:[%s3 + $0xb0] sm:$0xff]
  %v142 = vld [vmem:[%s3 + $0xb8] sm:$0xff]
  %v143 = vld [vmem:[%s3 + $0xc0] sm:$0xff]
  %v144 = vld [vmem:[%s3 + $0xc8] sm:$0xff]
  %v145 = vld [vmem:[%s3 + $0xd0] sm:$0xff]
  %v146 = vld [vmem:[%s3 + $0xd8] sm:$0xff]
  %v147 = vld [vmem:[%s3 + $0xe0] sm:$0xff]
  %v148 = vld [vmem:[%s3 + $0xe8] sm:$0xff]
  %v149 = vld [vmem:[%s3 + $0xf0] sm:$0xff]
  %v150 = vld [vmem:[%s3 + $0xf8] sm:$0xff]
  %v151 = vld [vmem:[%s3 + $0x100] sm:$0xff]
  %v152 = vld [vmem:[%s3 + $0x108] sm:$0xff]
  %v153 = vld [vmem:[%s3 + $0x110] sm:$0xff]
  %v154 = vld [vmem:[%s3 + $0x118] sm:$0xff]
  %v155 = vld [vmem:[%s3 + $0x120] sm:$0xff]
  %v156 = vld [vmem:[%s3 + $0x128] sm:$0xff]
  %v157 = vld [vmem:[%s3 + $0x130] sm:$0xff]
  %v158 = vld [vmem:[%s3 + $0x138] sm:$0xff]
  %v159 = vld [vmem:[%s3 + $0x140] sm:$0xff]
  %v160 = vld [vmem:[%s3 + $0x148] sm:$0xff]
  %v161 = vld [vmem:[%s3 + $0x150] sm:$0xff]
  %v162 = vld [vmem:[%s3 + $0x158] sm:$0xff]
  %v163 = vld [vmem:[%s3 + $0x160] sm:$0xff]
  %v164 = vld [vmem:[%s3 + $0x168] sm:$0xff]
  %v165 = vld [vmem:[%s3 + $0x170] sm:$0xff]
  %v166 = vld [vmem:[%s3 + $0x178] sm:$0xff]
  %v167 = vld [vmem:[%s3 + $0x180] sm:$0xff]
  %v168 = vld [vmem:[%s3 + $0x188] sm:$0xff]
  %v169 = vld [vmem:[%s3 + $0x190] sm:$0xff]
  %v170 = vld [vmem:[%s3 + $0x198] sm:$0xff]
  %v171 = vld [vmem:[%s3 + $0x1a0] sm:$0xff]
  %v172 = vld [vmem:[%s3 + $0x1a8] sm:$0xff]
  %v173 = vld [vmem:[%s3 + $0x1b0] sm:$0xff]
  %v174 = vld [vmem:[%s3 + $0x1b8] sm:$0xff]
  %v175 = vld [vmem:[%s3 + $0x1c0] sm:$0xff]
  %v176 = vld [vmem:[%s3 + $0x1c8] sm:$0xff]
  %v177 = vld [vmem:[%s3 + $0x1d0] sm:$0xff]
  %v178 = vld [vmem:[%s3 + $0x1d8] sm:$0xff]
  %v179 = vld [vmem:[%s3 + $0x1e0] sm:$0xff]
  %v180 = vld [vmem:[%s3 + $0x1e8] sm:$0xff]
  %v181 = vld [vmem:[%s3 + $0x1f0] sm:$0xff]
  %v182 = vld [vmem:[%s3 + $0x1f8] sm:$0xff]
  %v183 = vld [vmem:[%s4] sm:$0xf]
  %v185 = vlaneseq
  %v186 = vshrl.u32 %v185, 7
  %v187 = vsub.s32 0, %v186
  %v188 = vrot.slane %v183, %v187
  %v189 = vlaneseq
  %v190 = vshrl.u32 %v189, 7
  %v191 = vsub.s32 1, %v190
  %v192 = vrot.slane %v183, %v191
  %v193 = vlaneseq
  %v194 = vshrl.u32 %v193, 7
  %v195 = vsub.s32 2, %v194
  %v196 = vrot.slane %v183, %v195
  %v197 = vlaneseq
  %v198 = vshrl.u32 %v197, 7
  %v199 = vsub.s32 3, %v198
  %v200 = vrot.slane %v183, %v199
  %205 = vmatprep.subr.mxu0 %v120
  %206 = vmatpush1.msra.mxu0 %v119
  %207 = vmatprep.subr.mxu0 %v124
  %208 = vmatpush1.msra.mxu0 %v123
  %209 = vmatprep.subr.mxu0 %v128
  %210 = vmatpush1.msra.mxu0 %v127
  %211 = vmatprep.subr.mxu0 %v132
  %212 = vmatpush1.msra.mxu0 %v131
  %213 = vmatprep.subr.mxu0 %v136
  %214 = vmatpush1.msra.mxu0 %v135
  %215 = vmatprep.subr.mxu0 %v140
  %216 = vmatpush1.msra.mxu0 %v139
  %217 = vmatprep.subr.mxu0 %v144
  %218 = vmatpush1.msra.mxu0 %v143
  %219 = vmatprep.subr.mxu0 %v148
  %220 = vmatpush1.msra.mxu0 %v147
  %221 = vmatprep.subr.mxu0 %v152
  %222 = vmatpush1.msra.mxu0 %v151
  %223 = vmatprep.subr.mxu0 %v156
  %224 = vmatpush1.msra.mxu0 %v155
  %225 = vmatprep.subr.mxu0 %v160
  %226 = vmatpush1.msra.mxu0 %v159
  %227 = vmatprep.subr.mxu0 %v164
  %228 = vmatpush1.msra.mxu0 %v163
  %229 = vmatprep.subr.mxu0 %v168
  %230 = vmatpush1.msra.mxu0 %v167
  %231 = vmatprep.subr.mxu0 %v172
  %232 = vmatpush1.msra.mxu0 %v171
  %233 = vmatprep.subr.mxu0 %v176
  %234 = vmatpush1.msra.mxu0 %v175
  %235 = vmatprep.subr.mxu0 %v180
  %236 = vmatpush1.msra.mxu0 %v179
  %237 = vmatprep.subr.mxu0 0.0
  %238 = vmatpush1.msra.mxu0 0.0
  %239 = vmatprep.subr.mxu0 0.0
  %240 = vmatpush1.msra.mxu0 0.0
  %241 = vmatprep.subr.mxu0 0.0
  %242 = vmatpush1.msra.mxu0 0.0
  %243 = vmatprep.subr.mxu0 0.0
  %244 = vmatpush1.msra.mxu0 0.0
  %245 = vmatprep.subr.mxu0 0.0
  %246 = vmatpush1.msra.mxu0 0.0
  %247 = vmatprep.subr.mxu0 0.0
  %248 = vmatpush1.msra.mxu0 0.0
  %249 = vmatprep.subr.mxu0 0.0
  %250 = vmatpush1.msra.mxu0 0.0
  %251 = vmatprep.subr.mxu0 0.0
  %252 = vmatpush1.msra.mxu0 0.0
  %253 = vmatprep.subr.mxu0 0.0
  %254 = vmatpush1.msra.mxu0 0.0
  %255 = vmatprep.subr.mxu0 0.0
  %256 = vmatpush1.msra.mxu0 0.0
  %257 = vmatprep.subr.mxu0 0.0
  %258 = vmatpush1.msra.mxu0 0.0
  %259 = vmatprep.subr.mxu0 0.0
  %260 = vmatpush1.msra.mxu0 0.0
  %261 = vmatprep.subr.mxu0 0.0
  %262 = vmatpush1.msra.mxu0 0.0
  %263 = vmatprep.subr.mxu0 0.0
  %264 = vmatpush1.msra.mxu0 0.0
  %265 = vmatprep.subr.mxu0 0.0
  %266 = vmatpush1.msra.mxu0 0.0
  %267 = vmatprep.subr.mxu0 0.0
  %268 = vmatpush1.msra.mxu0 0.0
  %269 = vmatprep.mubr.f32.mxu0 0.0
  %270 = vmatmul.mubr.f32.gmra.mrb[0].mxu0 %v113
  %v271 = vpop.f32.mrb[0].mxu0
  %v272 = vadd.f32 %v188, %v271
  %v273 = vpop.f32.mrb[0].mxu0
  %v274 = vadd.f32 %v192, %v273
  %275 = vmatprep.mubr.f32.mxu0 0.0
  %276 = vmatmul.mubr.f32.gmra.mrb[0].mxu0 %v114
  %v277 = vpop.f32.mrb[0].mxu0
  %v278 = vadd.f32 %v188, %v277
  %v279 = vpop.f32.mrb[0].mxu0
  %v280 = vadd.f32 %v192, %v279
  %281 = vmatprep.mubr.f32.mxu0 0.0
  %282 = vmatmul.mubr.f32.gmra.mrb[0].mxu0 %v115
  %v283 = vpop.f32.mrb[0].mxu0
  %v284 = vadd.f32 %v188, %v283
  %v285 = vpop.f32.mrb[0].mxu0
  %v286 = vadd.f32 %v192, %v285
  %287 = vmatprep.mubr.f32.mxu0 0.0
  %288 = vmatmul.mubr.f32.gmra.mrb[0].mxu0 %v116
  %v289 = vpop.f32.mrb[0].mxu0
  %v290 = vadd.f32 %v188, %v289
  %v291 = vpop.f32.mrb[0].mxu0
  %v292 = vadd.f32 %v192, %v291
  %293 = vmatprep.mubr.f32.mxu0 0.0
  %294 = vmatmul.mubr.f32.gmra.mrb[0].mxu0 %v117
  %v295 = vpop.f32.mrb[0].mxu0
  %v296 = vadd.f32 %v188, %v295
  %v297 = vpop.f32.mrb[0].mxu0
  %v298 = vadd.f32 %v192, %v297
  %299 = vmatprep.mubr.f32.mxu0 0.0
  %300 = vmatmul.mubr.f32.gmra.mrb[0].mxu0 %v118
  %v301 = vpop.f32.mrb[0].mxu0
  %v302 = vadd.f32 %v188, %v301
  %v303 = vpop.f32.mrb[0].mxu0
  %v304 = vadd.f32 %v192, %v303
  %305 = vdwg.mxu0
  %306 = vmatprep.subr.mxu0 %v122
  %307 = vmatpush1.msra.mxu0 %v121
  %308 = vmatprep.subr.mxu0 %v126
  %309 = vmatpush1.msra.mxu0 %v125
  %310 = vmatprep.subr.mxu0 %v130
  %311 = vmatpush1.msra.mxu0 %v129
  %312 = vmatprep.subr.mxu0 %v134
  %313 = vmatpush1.msra.mxu0 %v133
  %314 = vmatprep.subr.mxu0 %v138
  %315 = vmatpush1.msra.mxu0 %v137
  %316 = vmatprep.subr.mxu0 %v142
  %317 = vmatpush1.msra.mxu0 %v141
  %318 = vmatprep.subr.mxu0 %v146
  %319 = vmatpush1.msra.mxu0 %v145
  %320 = vmatprep.subr.mxu0 %v150
  %321 = vmatpush1.msra.mxu0 %v149
  %322 = vmatprep.subr.mxu0 %v154
  %323 = vmatpush1.msra.mxu0 %v153
  %324 = vmatprep.subr.mxu0 %v158
  %325 = vmatpush1.msra.mxu0 %v157
  %326 = vmatprep.subr.mxu0 %v162
  %327 = vmatpush1.msra.mxu0 %v161
  %328 = vmatprep.subr.mxu0 %v166
  %329 = vmatpush1.msra.mxu0 %v165
  %330 = vmatprep.subr.mxu0 %v170
  %331 = vmatpush1.msra.mxu0 %v169
  %332 = vmatprep.subr.mxu0 %v174
  %333 = vmatpush1.msra.mxu0 %v173
  %334 = vmatprep.subr.mxu0 %v178
  %335 = vmatpush1.msra.mxu0 %v177
  %336 = vmatprep.subr.mxu0 %v182
  %337 = vmatpush1.msra.mxu0 %v181
  %338 = vmatprep.subr.mxu0 0.0
  %339 = vmatpush1.msra.mxu0 0.0
  %340 = vmatprep.subr.mxu0 0.0
  %341 = vmatpush1.msra.mxu0 0.0
  %342 = vmatprep.subr.mxu0 0.0
  %343 = vmatpush1.msra.mxu0 0.0
  %344 = vmatprep.subr.mxu0 0.0
  %345 = vmatpush1.msra.mxu0 0.0
  %346 = vmatprep.subr.mxu0 0.0
  %347 = vmatpush1.msra.mxu0 0.0
  %348 = vmatprep.subr.mxu0 0.0
  %349 = vmatpush1.msra.mxu0 0.0
  %350 = vmatprep.subr.mxu0 0.0
  %351 = vmatpush1.msra.mxu0 0.0
  %352 = vmatprep.subr.mxu0 0.0
  %353 = vmatpush1.msra.mxu0 0.0
  %354 = vmatprep.subr.mxu0 0.0
  %355 = vmatpush1.msra.mxu0 0.0
  %356 = vmatprep.subr.mxu0 0.0
  %357 = vmatpush1.msra.mxu0 0.0
  %358 = vmatprep.subr.mxu0 0.0
  %359 = vmatpush1.msra.mxu0 0.0
  %360 = vmatprep.subr.mxu0 0.0
  %361 = vmatpush1.msra.mxu0 0.0
  %362 = vmatprep.subr.mxu0 0.0
  %363 = vmatpush1.msra.mxu0 0.0
  %364 = vmatprep.subr.mxu0 0.0
  %365 = vmatpush1.msra.mxu0 0.0
  %366 = vmatprep.subr.mxu0 0.0
  %367 = vmatpush1.msra.mxu0 0.0
  %368 = vmatprep.subr.mxu0 0.0
  %369 = vmatpush1.msra.mxu0 0.0
  %370 = vmatprep.mubr.f32.mxu0 0.0
  %371 = vmatmul.mubr.f32.gmra.mrb[0].mxu0 %v113
  %v372 = vpop.f32.mrb[0].mxu0
  %v373 = vadd.f32 %v196, %v372
  %v374 = vpop.f32.mrb[0].mxu0
  %v375 = vadd.f32 %v200, %v374
  %376 = vmatprep.mubr.f32.mxu0 0.0
  %377 = vmatmul.mubr.f32.gmra.mrb[0].mxu0 %v114
  %v378 = vpop.f32.mrb[0].mxu0
  %v379 = vadd.f32 %v196, %v378
  %v380 = vpop.f32.mrb[0].mxu0
  %v381 = vadd.f32 %v200, %v380
  %382 = vmatprep.mubr.f32.mxu0 0.0
  %383 = vmatmul.mubr.f32.gmra.mrb[0].mxu0 %v115
  %v384 = vpop.f32.mrb[0].mxu0
  %v385 = vadd.f32 %v196, %v384
  %v386 = vpop.f32.mrb[0].mxu0
  %v387 = vadd.f32 %v200, %v386
  %388 = vmatprep.mubr.f32.mxu0 0.0
  %389 = vmatmul.mubr.f32.gmra.mrb[0].mxu0 %v116
  %v390 = vpop.f32.mrb[0].mxu0
  %v391 = vadd.f32 %v196, %v390
  %v392 = vpop.f32.mrb[0].mxu0
  %v393 = vadd.f32 %v200, %v392
  %394 = vmatprep.mubr.f32.mxu0 0.0
  %395 = vmatmul.mubr.f32.gmra.mrb[0].mxu0 %v117
  %v396 = vpop.f32.mrb[0].mxu0
  %v397 = vadd.f32 %v196, %v396
  %v398 = vpop.f32.mrb[0].mxu0
  %v399 = vadd.f32 %v200, %v398
  %400 = vmatprep.mubr.f32.mxu0 0.0
  %401 = vmatmul.mubr.f32.gmra.mrb[0].mxu0 %v118
  %v402 = vpop.f32.mrb[0].mxu0
  %v403 = vadd.f32 %v196, %v402
  %v404 = vpop.f32.mrb[0].mxu0
  %v405 = vadd.f32 %v200, %v404
  %406 = vdwg.mxu0
  %v407 = vmul.f32 %v272, 0.5
  %v408 = vmul.f32 %v274, 0.5
  %v409 = vmul.f32 %v373, 0.5
  %v410 = vmul.f32 %v375, 0.5
  %v411 = vmul.f32 %v278, 0.5
  %v412 = vmul.f32 %v280, 0.5
  %v413 = vmul.f32 %v379, 0.5
  %v414 = vmul.f32 %v381, 0.5
  %v415 = vmul.f32 %v284, 0.5
  %v416 = vmul.f32 %v286, 0.5
  %v417 = vmul.f32 %v385, 0.5
  %v418 = vmul.f32 %v387, 0.5
  %v419 = vmul.f32 %v290, 0.5
  %v420 = vmul.f32 %v292, 0.5
  %v421 = vmul.f32 %v391, 0.5
  %v422 = vmul.f32 %v393, 0.5
  %v423 = vmul.f32 %v296, 0.5
  %v424 = vmul.f32 %v298, 0.5
  %v425 = vmul.f32 %v397, 0.5
  %v426 = vmul.f32 %v399, 0.5
  %v427 = vmul.f32 %v302, 0.5
  %v428 = vmul.f32 %v304, 0.5
  %v429 = vmul.f32 %v403, 0.5
  %v430 = vmul.f32 %v405, 0.5
  %v431 = vmul.f32 %v272, 0.70710677
  %v432 = vmul.f32 %v274, 0.70710677
  %v433 = vmul.f32 %v373, 0.70710677
  %v434 = vmul.f32 %v375, 0.70710677
  %v435 = vmul.f32 %v278, 0.70710677
  %v436 = vmul.f32 %v280, 0.70710677
  %v437 = vmul.f32 %v379, 0.70710677
  %v438 = vmul.f32 %v381, 0.70710677
  %v439 = vmul.f32 %v284, 0.70710677
  %v440 = vmul.f32 %v286, 0.70710677
  %v441 = vmul.f32 %v385, 0.70710677
  %v442 = vmul.f32 %v387, 0.70710677
  %v443 = vmul.f32 %v290, 0.70710677
  %v444 = vmul.f32 %v292, 0.70710677
  %v445 = vmul.f32 %v391, 0.70710677
  %v446 = vmul.f32 %v393, 0.70710677
  %v447 = vmul.f32 %v296, 0.70710677
  %v448 = vmul.f32 %v298, 0.70710677
  %v449 = vmul.f32 %v397, 0.70710677
  %v450 = vmul.f32 %v399, 0.70710677
  %v451 = vmul.f32 %v302, 0.70710677
  %v452 = vmul.f32 %v304, 0.70710677
  %v453 = vmul.f32 %v403, 0.70710677
  %v454 = vmul.f32 %v405, 0.70710677
  %v455 = verf.f32.pop %v431
  %v456 = verf.f32.pop %v432
  %v457 = verf.f32.pop %v433
  %v458 = verf.f32.pop %v434
  %v459 = verf.f32.pop %v435
  %v460 = verf.f32.pop %v436
  %v461 = verf.f32.pop %v437
  %v462 = verf.f32.pop %v438
  %v463 = verf.f32.pop %v439
  %v464 = verf.f32.pop %v440
  %v465 = verf.f32.pop %v441
  %v466 = verf.f32.pop %v442
  %v467 = verf.f32.pop %v443
  %v468 = verf.f32.pop %v444
  %v469 = verf.f32.pop %v445
  %v470 = verf.f32.pop %v446
  %v471 = verf.f32.pop %v447
  %v472 = verf.f32.pop %v448
  %v473 = verf.f32.pop %v449
  %v474 = verf.f32.pop %v450
  %v475 = verf.f32.pop %v451
  %v476 = verf.f32.pop %v452
  %v477 = verf.f32.pop %v453
  %v478 = verf.f32.pop %v454
  %v479 = vadd.f32 %v455, 1.0
  %v480 = vadd.f32 %v456, 1.0
  %v481 = vadd.f32 %v457, 1.0
  %v482 = vadd.f32 %v458, 1.0
  %v483 = vadd.f32 %v459, 1.0
  %v484 = vadd.f32 %v460, 1.0
  %v485 = vadd.f32 %v461, 1.0
  %v486 = vadd.f32 %v462, 1.0
  %v487 = vadd.f32 %v463, 1.0
  %v488 = vadd.f32 %v464, 1.0
  %v489 = vadd.f32 %v465, 1.0
  %v490 = vadd.f32 %v466, 1.0
  %v491 = vadd.f32 %v467, 1.0
  %v492 = vadd.f32 %v468, 1.0
  %v493 = vadd.f32 %v469, 1.0
  %v494 = vadd.f32 %v470, 1.0
  %v495 = vadd.f32 %v471, 1.0
  %v496 = vadd.f32 %v472, 1.0
  %v497 = vadd.f32 %v473, 1.0
  %v498 = vadd.f32 %v474, 1.0
  %v499 = vadd.f32 %v475, 1.0
  %v500 = vadd.f32 %v476, 1.0
  %v501 = vadd.f32 %v477, 1.0
  %v502 = vadd.f32 %v478, 1.0
  %v503 = vmul.f32 %v407, %v479
  %v504 = vmul.f32 %v408, %v480
  %v505 = vmul.f32 %v409, %v481
  %v506 = vmul.f32 %v410, %v482
  %v507 = vmul.f32 %v411, %v483
  %v508 = vmul.f32 %v412, %v484
  %v509 = vmul.f32 %v413, %v485
  %v510 = vmul.f32 %v414, %v486
  %v511 = vmul.f32 %v415, %v487
  %v512 = vmul.f32 %v416, %v488
  %v513 = vmul.f32 %v417, %v489
  %v514 = vmul.f32 %v418, %v490
  %v515 = vmul.f32 %v419, %v491
  %v516 = vmul.f32 %v420, %v492
  %v517 = vmul.f32 %v421, %v493
  %v518 = vmul.f32 %v422, %v494
  %v519 = vmul.f32 %v423, %v495
  %v520 = vmul.f32 %v424, %v496
  %v521 = vmul.f32 %v425, %v497
  %v522 = vmul.f32 %v426, %v498
  %v523 = vmul.f32 %v427, %v499
  %v524 = vmul.f32 %v428, %v500
  %v525 = vmul.f32 %v429, %v501
  %v526 = vmul.f32 %v430, %v502
  %527 = vst [vmem:[%s5] sm:$0xff] %v503
  %528 = vst [vmem:[%s5 + $0x8] sm:$0xff] %v504
  %529 = vst [vmem:[%s5 + $0x10] sm:$0xff] %v505
  %530 = vst [vmem:[%s5 + $0x18] sm:$0xff] %v506
  %531 = vst [vmem:[%s5 + $0x20] sm:$0xff] %v507
  %532 = vst [vmem:[%s5 + $0x28] sm:$0xff] %v508
  %533 = vst [vmem:[%s5 + $0x30] sm:$0xff] %v509
  %534 = vst [vmem:[%s5 + $0x38] sm:$0xff] %v510
  %535 = vst [vmem:[%s5 + $0x40] sm:$0xff] %v511
  %536 = vst [vmem:[%s5 + $0x48] sm:$0xff] %v512
  %537 = vst [vmem:[%s5 + $0x50] sm:$0xff] %v513
  %538 = vst [vmem:[%s5 + $0x58] sm:$0xff] %v514
  %539 = vst [vmem:[%s5 + $0x60] sm:$0xff] %v515
  %540 = vst [vmem:[%s5 + $0x68] sm:$0xff] %v516
  %541 = vst [vmem:[%s5 + $0x70] sm:$0xff] %v517
  %542 = vst [vmem:[%s5 + $0x78] sm:$0xff] %v518
  %543 = vst [vmem:[%s5 + $0x80] sm:$0xff] %v519
  %544 = vst [vmem:[%s5 + $0x88] sm:$0xff] %v520
  %545 = vst [vmem:[%s5 + $0x90] sm:$0xff] %v521
  %546 = vst [vmem:[%s5 + $0x98] sm:$0xff] %v522
  %547 = vst [vmem:[%s5 + $0xa0] sm:$0xff] %v523
  %548 = vst [vmem:[%s5 + $0xa8] sm:$0xff] %v524
  %549 = vst [vmem:[%s5 + $0xb0] sm:$0xff] %v525
  %550 = vst [vmem:[%s5 + $0xb8] sm:$0xff] %v526
  // Predicated region
  $region22: #{vit_forward.39} parent=0 // pred_check
    _
  $region23: #{vit_forward.39} parent=0 // pred_check_branch
    %552 = sbr.rel (0) target = $region25
  $region24: #{vit_forward.39} parent=0 // pred_region
    _
  $region25: #{vit_forward.39} parent=0 // pred_fallthru
    _
  // Predicated region
  $region26: #{vit_forward.39} parent=0 // pred_check
    _
  $region27: #{vit_forward.39} parent=0 // pred_check_branch
    %554 = sbr.rel (0) target = $region29
  $region28: #{vit_forward.39} parent=0 // pred_region
    _
  $region29: #{vit_forward.39} parent=0 // pred_fallthru
    _

</llo_original>
